<compile_context>
chip_gen: v5e
topology: v5e:2x2
jax: 0.10.0
libtpu: 0.0.40
codegen_flags: <defaults>
</compile_context>

<pallas_src>
import jax
import jax.numpy as jnp
import numpy as np
from jax import lax
from jax.experimental import pallas as pl
from jax.experimental.pallas import tpu as pltpu

# Hyperparameters mirroring LSTM.py.
INPUT_SIZE = 6
PADDED_INPUT = 8          # layer-0 feature dim padded 6 -> 8 (zero pad)
HIDDEN_SIZE = 64          # hidden_size = 64 in the original module
NUM_LAYERS = 5
# TODO(synk): num_classes came from len(data['Category'].unique()) in the CSV;
# fixed synthetically here (no file I/O allowed).
NUM_CLASSES = 8

_GATE_PERM = np.array([0, 1, 3, 2])   # PyTorch gate order (i,f,g,o) -> packed (i,f,o,g)


# ----------------------------- fused Pallas kernel --------------------------

def _make_crime_lstm_kernel(T, B):
    """Build the fused kernel for a fixed (T, B)."""
    H = HIDDEN_SIZE

    def cell(h, c, whh, z_t):
        # One LSTM cell step; gates packed lane-dense as (i, f, o, g).
        g = jnp.dot(h, whh, preferred_element_type=jnp.float32) + z_t      # (B, 4H)
        sig = jax.nn.sigmoid(g[:, :3 * H])       # i, f, o in one contiguous block
        i_g = sig[:, :H]
        f_g = sig[:, H:2 * H]
        o_g = sig[:, 2 * H:3 * H]
        g_g = jnp.tanh(g[:, 3 * H:])
        c_new = f_g * c + i_g * g_g
        h_new = o_g * jnp.tanh(c_new)
        return h_new, c_new

    def kernel(*refs):
        x_ref = refs[0]                      # (T*B, Din_pad), time-major rows
        fc_w_ref = refs[-3]                  # (2H, C)
        fc_b_ref = refs[-2]                  # (1, C)
        out_ref = refs[-1]                   # (B, C)
        lstm_refs = refs[1:-3]               # 4 refs per layer

        layer_in = x_ref[...]                # (T*B, Din)
        last_f = last_b = None

        for layer in range(NUM_LAYERS):
            w_in = lstm_refs[4 * layer + 0][...]    # (Din, 8H)  [fwd 4H | bwd 4H]
            b_in = lstm_refs[4 * layer + 1][...]    # (1, 8H)
            whh_f = lstm_refs[4 * layer + 2][...]   # (H, 4H)
            whh_b = lstm_refs[4 * layer + 3][...]   # (H, 4H)

            # Input projection (+ bias) for all timesteps and BOTH directions
            # in one lane-dense matmul, hoisted off the serial recurrence.
            z = jnp.dot(layer_in, w_in, preferred_element_type=jnp.float32) + b_in
            z_f = z[:, :4 * H]
            z_b = z[:, 4 * H:]

            h_f = jnp.zeros((B, H), jnp.float32)
            c_f = jnp.zeros((B, H), jnp.float32)
            h_b = jnp.zeros((B, H), jnp.float32)
            c_b = jnp.zeros((B, H), jnp.float32)
            outs_f = [None] * T
            outs_b = [None] * T

            # Fully unrolled recurrence (T is a compile-time constant); the two
            # independent directions advance together so their matmul / EUP
            # chains interleave.
            for t in range(T):
                tb = T - 1 - t
                h_f, c_f = cell(h_f, c_f, whh_f, z_f[t * B:(t + 1) * B, :])
                h_b, c_b = cell(h_b, c_b, whh_b, z_b[tb * B:(tb + 1) * B, :])
                outs_f[t] = h_f
                outs_b[tb] = h_b

            last_f, last_b = outs_f[T - 1], outs_b[T - 1]
            if layer + 1 < NUM_LAYERS:
                # Next layer input: time-aligned [fwd_t | bwd_t]; two big
                # concatenates instead of per-timestep glue, kept in vregs.
                layer_in = jnp.concatenate(
                    [jnp.concatenate(outs_f, axis=0),        # (T*B, H)
                     jnp.concatenate(outs_b, axis=0)],       # (T*B, H), time order
                    axis=-1)                                  # (T*B, 2H)

        # out[:, -1, :] == [fwd h_{T-1} | bwd h at time T-1]; FC head fused in.
        last = jnp.concatenate([last_f, last_b], axis=-1)     # (B, 2H)
        out_ref[...] = (jnp.dot(last, fc_w_ref[...],
                                preferred_element_type=jnp.float32)
                        + fc_b_ref[...])

    return kernel


# ----------------------------- parameters ----------------------------------

def init_params(key):
    """Per-gate weights in PyTorch layout/order (i,f,g,o), U(-1/sqrt(H), 1/sqrt(H))."""
    bound = 1.0 / np.sqrt(HIDDEN_SIZE)
    layers = []
    for layer in range(NUM_LAYERS):
        din = INPUT_SIZE if layer == 0 else 2 * HIDDEN_SIZE
        dirs = []
        for _direction in range(2):
            key, k1, k2, k3, k4 = jax.random.split(key, 5)
            wih = jax.random.uniform(k1, (4, din, HIDDEN_SIZE), jnp.float32, -bound, bound)
            whh = jax.random.uniform(k2, (4, HIDDEN_SIZE, HIDDEN_SIZE), jnp.float32, -bound, bound)
            b_ih = jax.random.uniform(k3, (4, HIDDEN_SIZE), jnp.float32, -bound, bound)
            b_hh = jax.random.uniform(k4, (4, HIDDEN_SIZE), jnp.float32, -bound, bound)
            dirs.append({"wih": wih, "whh": whh, "b": b_ih + b_hh})
        layers.append(dirs)
    kb = 1.0 / np.sqrt(2 * HIDDEN_SIZE)
    key, k1, k2 = jax.random.split(key, 3)
    fc_w = jax.random.uniform(k1, (2 * HIDDEN_SIZE, NUM_CLASSES), jnp.float32, -kb, kb)
    fc_b = jax.random.uniform(k2, (1, NUM_CLASSES), jnp.float32, -kb, kb)
    return {"lstm": layers, "fc_w": fc_w, "fc_b": fc_b}


def _pack_params(params):
    """Repack per-gate (i,f,g,o) weights into lane-dense matrices.

    Per layer the kernel gets:
      w_in  (Din_pad, 8H)  = [Wih_fwd(4H cols) | Wih_bwd(4H cols)], gate order (i,f,o,g)
      b_in  (1, 8H)
      whh_f (H, 4H), whh_b (H, 4H)
    plus fc_w (2H, C), fc_b (1, C) at the end.
    """
    H = HIDDEN_SIZE
    flat = []
    for layer_idx, dirs in enumerate(params["lstm"]):
        w_in_dirs, b_dirs, whh_dirs = [], [], []
        for d in dirs:
            wih = jnp.transpose(d["wih"][_GATE_PERM], (1, 0, 2)).reshape(-1, 4 * H)
            if layer_idx == 0:
                wih = jnp.pad(wih, ((0, PADDED_INPUT - INPUT_SIZE), (0, 0)))
            w_in_dirs.append(wih)
            b_dirs.append(d["b"][_GATE_PERM].reshape(1, 4 * H))
            whh_dirs.append(jnp.transpose(d["whh"][_GATE_PERM], (1, 0, 2)).reshape(H, 4 * H))
        flat.append(jnp.concatenate(w_in_dirs, axis=1))    # (Din_pad, 8H)
        flat.append(jnp.concatenate(b_dirs, axis=1))        # (1, 8H)
        flat.extend(whh_dirs)                                # 2 x (H, 4H)
    flat.extend([params["fc_w"], params["fc_b"]])
    return flat


# ----------------------------- forward pass --------------------------------

def crime_lstm_forward(x, params):
    """x: (B, T, INPUT_SIZE) -> logits (B, NUM_CLASSES). h0 = c0 = 0 as in the module."""
    B, T, D = x.shape
    # Time-major, flattened rows (row t*B + b = timestep t of batch elem b),
    # feature dim zero-padded to a sublane-aligned 8. Done once, outside the kernel.
    x2d = jnp.transpose(x, (1, 0, 2)).reshape(T * B, D)
    x2d = jnp.pad(x2d, ((0, 0), (0, PADDED_INPUT - D)))

    inputs = [x2d] + _pack_params(params)
    vmem = pl.BlockSpec(memory_space=pltpu.MemorySpace.VMEM)
    return pl.pallas_call(
        _make_crime_lstm_kernel(T, B),
        out_shape=jax.ShapeDtypeStruct((B, NUM_CLASSES), jnp.float32),
        in_specs=[vmem] * len(inputs),
        out_specs=vmem,
    )(*inputs)


def reference_forward(x, params):
    """Pure-JAX reference with identical math (unpacked PyTorch-order weights)."""
    seq = jnp.transpose(x, (1, 0, 2))
    layer_in = seq
    for layer in range(NUM_LAYERS):
        outs = []
        for direction in range(2):
            d = params["lstm"][layer][direction]
            wih, whh, b = d["wih"], d["whh"], d["b"]
            inp = layer_in if direction == 0 else jnp.flip(layer_in, axis=0)
            B = inp.shape[1]

            def cell(carry, x_t, wih=wih, whh=whh, b=b):
                h, c = carry
                def gate(idx):
                    return x_t @ wih[idx] + h @ whh[idx] + b[idx]
                i = jax.nn.sigmoid(gate(0)); f = jax.nn.sigmoid(gate(1))
                g = jnp.tanh(gate(2)); o = jax.nn.sigmoid(gate(3))
                c2 = f * c + i * g
                h2 = o * jnp.tanh(c2)
                return (h2, c2), h2

            h0 = jnp.zeros((B, HIDDEN_SIZE), jnp.float32)
            (_, _), y = lax.scan(cell, (h0, h0), inp)
            if direction == 1:
                y = jnp.flip(y, axis=0)
            outs.append(y)
        layer_in = jnp.concatenate(outs, axis=-1)
    return layer_in[-1] @ params["fc_w"] + params["fc_b"]


if __name__ == "__main__":
    key = jax.random.PRNGKey(0)
    pkey, xkey = jax.random.split(key)
    params = init_params(pkey)

    B, T = 2, 8
    x = jax.random.normal(xkey, (B, T, INPUT_SIZE), dtype=jnp.float32)

    out = jax.jit(crime_lstm_forward)(x, params)
    out = jax.block_until_ready(out)

    assert out.shape == (B, NUM_CLASSES)
    ref = reference_forward(x, params)
    np.testing.assert_allclose(np.asarray(out), np.asarray(ref), rtol=2e-2, atol=2e-2)

    print("KERNEL_OK")
</pallas_src>

<mosaic_0001>
module attributes {stable_mosaic.version = 11 : i64} {
  func.func @kernel(%arg0: memref<16x8xf32, #tpu.memory_space<vmem>>, %arg1: memref<8x512xf32, #tpu.memory_space<vmem>>, %arg2: memref<1x512xf32, #tpu.memory_space<vmem>>, %arg3: memref<64x256xf32, #tpu.memory_space<vmem>>, %arg4: memref<64x256xf32, #tpu.memory_space<vmem>>, %arg5: memref<128x512xf32, #tpu.memory_space<vmem>>, %arg6: memref<1x512xf32, #tpu.memory_space<vmem>>, %arg7: memref<64x256xf32, #tpu.memory_space<vmem>>, %arg8: memref<64x256xf32, #tpu.memory_space<vmem>>, %arg9: memref<128x512xf32, #tpu.memory_space<vmem>>, %arg10: memref<1x512xf32, #tpu.memory_space<vmem>>, %arg11: memref<64x256xf32, #tpu.memory_space<vmem>>, %arg12: memref<64x256xf32, #tpu.memory_space<vmem>>, %arg13: memref<128x512xf32, #tpu.memory_space<vmem>>, %arg14: memref<1x512xf32, #tpu.memory_space<vmem>>, %arg15: memref<64x256xf32, #tpu.memory_space<vmem>>, %arg16: memref<64x256xf32, #tpu.memory_space<vmem>>, %arg17: memref<128x512xf32, #tpu.memory_space<vmem>>, %arg18: memref<1x512xf32, #tpu.memory_space<vmem>>, %arg19: memref<64x256xf32, #tpu.memory_space<vmem>>, %arg20: memref<64x256xf32, #tpu.memory_space<vmem>>, %arg21: memref<128x8xf32, #tpu.memory_space<vmem>>, %arg22: memref<1x8xf32, #tpu.memory_space<vmem>>, %arg23: memref<2x8xf32, #tpu.memory_space<vmem>>) attributes {dimension_semantics = [], scalar_prefetch = 0 : i64, scratch_operands = 0 : i64, tpu.core_type = #tpu.core_type<tc>} {
    %c0 = arith.constant 0 : index
    %c0_0 = arith.constant 0 : index
    %0 = vector.load %arg0[%c0, %c0_0] : memref<16x8xf32, #tpu.memory_space<vmem>>, vector<16x8xf32>
    %c0_1 = arith.constant 0 : index
    %c0_2 = arith.constant 0 : index
    %1 = vector.load %arg1[%c0_1, %c0_2] : memref<8x512xf32, #tpu.memory_space<vmem>>, vector<8x512xf32>
    %c0_3 = arith.constant 0 : index
    %c0_4 = arith.constant 0 : index
    %2 = vector.load %arg2[%c0_3, %c0_4] : memref<1x512xf32, #tpu.memory_space<vmem>>, vector<1x512xf32>
    %c0_5 = arith.constant 0 : index
    %c0_6 = arith.constant 0 : index
    %3 = vector.load %arg3[%c0_5, %c0_6] : memref<64x256xf32, #tpu.memory_space<vmem>>, vector<64x256xf32>
    %c0_7 = arith.constant 0 : index
    %c0_8 = arith.constant 0 : index
    %4 = vector.load %arg4[%c0_7, %c0_8] : memref<64x256xf32, #tpu.memory_space<vmem>>, vector<64x256xf32>
    %cst = arith.constant dense<0.000000e+00> : vector<16x512xf32>
    %5 = tpu.matmul %0, %1, %cst {dimension_numbers = #tpu.dot_dimension_numbers<[1], [0], [0], [1], [0, 0, 1, 1], [], []>} : vector<16x8xf32>, vector<8x512xf32>, vector<16x512xf32> -> vector<16x512xf32>
    %6 = vector.broadcast %2 : vector<1x512xf32> to vector<16x512xf32>
    %7 = arith.addf %5, %6 : vector<16x512xf32>
    %8 = vector.extract_strided_slice %7 {offsets = [0, 0], sizes = [16, 256], strides = [1, 1]} : vector<16x512xf32> to vector<16x256xf32>
    %9 = vector.extract_strided_slice %7 {offsets = [0, 256], sizes = [16, 256], strides = [1, 1]} : vector<16x512xf32> to vector<16x256xf32>
    %cst_9 = arith.constant 0.000000e+00 : f32
    %10 = vector.broadcast %cst_9 : f32 to vector<2x64xf32>
    %cst_10 = arith.constant 0.000000e+00 : f32
    %11 = vector.broadcast %cst_10 : f32 to vector<2x64xf32>
    %cst_11 = arith.constant 0.000000e+00 : f32
    %12 = vector.broadcast %cst_11 : f32 to vector<2x64xf32>
    %cst_12 = arith.constant 0.000000e+00 : f32
    %13 = vector.broadcast %cst_12 : f32 to vector<2x64xf32>
    %14 = vector.extract_strided_slice %8 {offsets = [0, 0], sizes = [2, 256], strides = [1, 1]} : vector<16x256xf32> to vector<2x256xf32>
    %cst_13 = arith.constant dense<0.000000e+00> : vector<2x256xf32>
    %15 = tpu.matmul %10, %3, %cst_13 {dimension_numbers = #tpu.dot_dimension_numbers<[1], [0], [0], [1], [0, 0, 1, 1], [], []>} : vector<2x64xf32>, vector<64x256xf32>, vector<2x256xf32> -> vector<2x256xf32>
    %16 = arith.addf %15, %14 : vector<2x256xf32>
    %17 = vector.extract_strided_slice %16 {offsets = [0, 0], sizes = [2, 192], strides = [1, 1]} : vector<2x256xf32> to vector<2x192xf32>
    %18 = arith.negf %17 : vector<2x192xf32>
    %19 = math.exp %18 : vector<2x192xf32>
    %cst_14 = arith.constant 1.000000e+00 : f32
    %20 = vector.broadcast %cst_14 : f32 to vector<2x192xf32>
    %21 = arith.addf %20, %19 : vector<2x192xf32>
    %22 = arith.divf %20, %21 : vector<2x192xf32>
    %23 = vector.extract_strided_slice %22 {offsets = [0, 0], sizes = [2, 64], strides = [1, 1]} : vector<2x192xf32> to vector<2x64xf32>
    %24 = vector.extract_strided_slice %22 {offsets = [0, 64], sizes = [2, 64], strides = [1, 1]} : vector<2x192xf32> to vector<2x64xf32>
    %25 = vector.extract_strided_slice %22 {offsets = [0, 128], sizes = [2, 64], strides = [1, 1]} : vector<2x192xf32> to vector<2x64xf32>
    %26 = vector.extract_strided_slice %16 {offsets = [0, 192], sizes = [2, 64], strides = [1, 1]} : vector<2x256xf32> to vector<2x64xf32>
    %27 = math.tanh %26 : vector<2x64xf32>
    %28 = arith.mulf %24, %11 : vector<2x64xf32>
    %29 = arith.mulf %23, %27 : vector<2x64xf32>
    %30 = arith.addf %28, %29 : vector<2x64xf32>
    %31 = math.tanh %30 : vector<2x64xf32>
    %32 = arith.mulf %25, %31 : vector<2x64xf32>
    %33 = vector.extract_strided_slice %9 {offsets = [14, 0], sizes = [2, 256], strides = [1, 1]} : vector<16x256xf32> to vector<2x256xf32>
    %cst_15 = arith.constant dense<0.000000e+00> : vector<2x256xf32>
    %34 = tpu.matmul %12, %4, %cst_15 {dimension_numbers = #tpu.dot_dimension_numbers<[1], [0], [0], [1], [0, 0, 1, 1], [], []>} : vector<2x64xf32>, vector<64x256xf32>, vector<2x256xf32> -> vector<2x256xf32>
    %35 = arith.addf %34, %33 : vector<2x256xf32>
    %36 = vector.extract_strided_slice %35 {offsets = [0, 0], sizes = [2, 192], strides = [1, 1]} : vector<2x256xf32> to vector<2x192xf32>
    %37 = arith.negf %36 : vector<2x192xf32>
    %38 = math.exp %37 : vector<2x192xf32>
    %cst_16 = arith.constant 1.000000e+00 : f32
    %39 = vector.broadcast %cst_16 : f32 to vector<2x192xf32>
    %40 = arith.addf %39, %38 : vector<2x192xf32>
    %41 = arith.divf %39, %40 : vector<2x192xf32>
    %42 = vector.extract_strided_slice %41 {offsets = [0, 0], sizes = [2, 64], strides = [1, 1]} : vector<2x192xf32> to vector<2x64xf32>
    %43 = vector.extract_strided_slice %41 {offsets = [0, 64], sizes = [2, 64], strides = [1, 1]} : vector<2x192xf32> to vector<2x64xf32>
    %44 = vector.extract_strided_slice %41 {offsets = [0, 128], sizes = [2, 64], strides = [1, 1]} : vector<2x192xf32> to vector<2x64xf32>
    %45 = vector.extract_strided_slice %35 {offsets = [0, 192], sizes = [2, 64], strides = [1, 1]} : vector<2x256xf32> to vector<2x64xf32>
    %46 = math.tanh %45 : vector<2x64xf32>
    %47 = arith.mulf %43, %13 : vector<2x64xf32>
    %48 = arith.mulf %42, %46 : vector<2x64xf32>
    %49 = arith.addf %47, %48 : vector<2x64xf32>
    %50 = math.tanh %49 : vector<2x64xf32>
    %51 = arith.mulf %44, %50 : vector<2x64xf32>
    %52 = vector.extract_strided_slice %8 {offsets = [2, 0], sizes = [2, 256], strides = [1, 1]} : vector<16x256xf32> to vector<2x256xf32>
    %cst_17 = arith.constant dense<0.000000e+00> : vector<2x256xf32>
    %53 = tpu.matmul %32, %3, %cst_17 {dimension_numbers = #tpu.dot_dimension_numbers<[1], [0], [0], [1], [0, 0, 1, 1], [], []>} : vector<2x64xf32>, vector<64x256xf32>, vector<2x256xf32> -> vector<2x256xf32>
    %54 = arith.addf %53, %52 : vector<2x256xf32>
    %55 = vector.extract_strided_slice %54 {offsets = [0, 0], sizes = [2, 192], strides = [1, 1]} : vector<2x256xf32> to vector<2x192xf32>
    %56 = arith.negf %55 : vector<2x192xf32>
    %57 = math.exp %56 : vector<2x192xf32>
    %cst_18 = arith.constant 1.000000e+00 : f32
    %58 = vector.broadcast %cst_18 : f32 to vector<2x192xf32>
    %59 = arith.addf %58, %57 : vector<2x192xf32>
    %60 = arith.divf %58, %59 : vector<2x192xf32>
    %61 = vector.extract_strided_slice %60 {offsets = [0, 0], sizes = [2, 64], strides = [1, 1]} : vector<2x192xf32> to vector<2x64xf32>
    %62 = vector.extract_strided_slice %60 {offsets = [0, 64], sizes = [2, 64], strides = [1, 1]} : vector<2x192xf32> to vector<2x64xf32>
    %63 = vector.extract_strided_slice %60 {offsets = [0, 128], sizes = [2, 64], strides = [1, 1]} : vector<2x192xf32> to vector<2x64xf32>
    %64 = vector.extract_strided_slice %54 {offsets = [0, 192], sizes = [2, 64], strides = [1, 1]} : vector<2x256xf32> to vector<2x64xf32>
    %65 = math.tanh %64 : vector<2x64xf32>
    %66 = arith.mulf %62, %30 : vector<2x64xf32>
    %67 = arith.mulf %61, %65 : vector<2x64xf32>
    %68 = arith.addf %66, %67 : vector<2x64xf32>
    %69 = math.tanh %68 : vector<2x64xf32>
    %70 = arith.mulf %63, %69 : vector<2x64xf32>
    %71 = vector.extract_strided_slice %9 {offsets = [12, 0], sizes = [2, 256], strides = [1, 1]} : vector<16x256xf32> to vector<2x256xf32>
    %cst_19 = arith.constant dense<0.000000e+00> : vector<2x256xf32>
    %72 = tpu.matmul %51, %4, %cst_19 {dimension_numbers = #tpu.dot_dimension_numbers<[1], [0], [0], [1], [0, 0, 1, 1], [], []>} : vector<2x64xf32>, vector<64x256xf32>, vector<2x256xf32> -> vector<2x256xf32>
    %73 = arith.addf %72, %71 : vector<2x256xf32>
    %74 = vector.extract_strided_slice %73 {offsets = [0, 0], sizes = [2, 192], strides = [1, 1]} : vector<2x256xf32> to vector<2x192xf32>
    %75 = arith.negf %74 : vector<2x192xf32>
    %76 = math.exp %75 : vector<2x192xf32>
    %cst_20 = arith.constant 1.000000e+00 : f32
    %77 = vector.broadcast %cst_20 : f32 to vector<2x192xf32>
    %78 = arith.addf %77, %76 : vector<2x192xf32>
    %79 = arith.divf %77, %78 : vector<2x192xf32>
    %80 = vector.extract_strided_slice %79 {offsets = [0, 0], sizes = [2, 64], strides = [1, 1]} : vector<2x192xf32> to vector<2x64xf32>
    %81 = vector.extract_strided_slice %79 {offsets = [0, 64], sizes = [2, 64], strides = [1, 1]} : vector<2x192xf32> to vector<2x64xf32>
    %82 = vector.extract_strided_slice %79 {offsets = [0, 128], sizes = [2, 64], strides = [1, 1]} : vector<2x192xf32> to vector<2x64xf32>
    %83 = vector.extract_strided_slice %73 {offsets = [0, 192], sizes = [2, 64], strides = [1, 1]} : vector<2x256xf32> to vector<2x64xf32>
    %84 = math.tanh %83 : vector<2x64xf32>
    %85 = arith.mulf %81, %49 : vector<2x64xf32>
    %86 = arith.mulf %80, %84 : vector<2x64xf32>
    %87 = arith.addf %85, %86 : vector<2x64xf32>
    %88 = math.tanh %87 : vector<2x64xf32>
    %89 = arith.mulf %82, %88 : vector<2x64xf32>
    %90 = vector.extract_strided_slice %8 {offsets = [4, 0], sizes = [2, 256], strides = [1, 1]} : vector<16x256xf32> to vector<2x256xf32>
    %cst_21 = arith.constant dense<0.000000e+00> : vector<2x256xf32>
    %91 = tpu.matmul %70, %3, %cst_21 {dimension_numbers = #tpu.dot_dimension_numbers<[1], [0], [0], [1], [0, 0, 1, 1], [], []>} : vector<2x64xf32>, vector<64x256xf32>, vector<2x256xf32> -> vector<2x256xf32>
    %92 = arith.addf %91, %90 : vector<2x256xf32>
    %93 = vector.extract_strided_slice %92 {offsets = [0, 0], sizes = [2, 192], strides = [1, 1]} : vector<2x256xf32> to vector<2x192xf32>
    %94 = arith.negf %93 : vector<2x192xf32>
    %95 = math.exp %94 : vector<2x192xf32>
    %cst_22 = arith.constant 1.000000e+00 : f32
    %96 = vector.broadcast %cst_22 : f32 to vector<2x192xf32>
    %97 = arith.addf %96, %95 : vector<2x192xf32>
    %98 = arith.divf %96, %97 : vector<2x192xf32>
    %99 = vector.extract_strided_slice %98 {offsets = [0, 0], sizes = [2, 64], strides = [1, 1]} : vector<2x192xf32> to vector<2x64xf32>
    %100 = vector.extract_strided_slice %98 {offsets = [0, 64], sizes = [2, 64], strides = [1, 1]} : vector<2x192xf32> to vector<2x64xf32>
    %101 = vector.extract_strided_slice %98 {offsets = [0, 128], sizes = [2, 64], strides = [1, 1]} : vector<2x192xf32> to vector<2x64xf32>
    %102 = vector.extract_strided_slice %92 {offsets = [0, 192], sizes = [2, 64], strides = [1, 1]} : vector<2x256xf32> to vector<2x64xf32>
    %103 = math.tanh %102 : vector<2x64xf32>
    %104 = arith.mulf %100, %68 : vector<2x64xf32>
    %105 = arith.mulf %99, %103 : vector<2x64xf32>
    %106 = arith.addf %104, %105 : vector<2x64xf32>
    %107 = math.tanh %106 : vector<2x64xf32>
    %108 = arith.mulf %101, %107 : vector<2x64xf32>
    %109 = vector.extract_strided_slice %9 {offsets = [10, 0], sizes = [2, 256], strides = [1, 1]} : vector<16x256xf32> to vector<2x256xf32>
    %cst_23 = arith.constant dense<0.000000e+00> : vector<2x256xf32>
    %110 = tpu.matmul %89, %4, %cst_23 {dimension_numbers = #tpu.dot_dimension_numbers<[1], [0], [0], [1], [0, 0, 1, 1], [], []>} : vector<2x64xf32>, vector<64x256xf32>, vector<2x256xf32> -> vector<2x256xf32>
    %111 = arith.addf %110, %109 : vector<2x256xf32>
    %112 = vector.extract_strided_slice %111 {offsets = [0, 0], sizes = [2, 192], strides = [1, 1]} : vector<2x256xf32> to vector<2x192xf32>
    %113 = arith.negf %112 : vector<2x192xf32>
    %114 = math.exp %113 : vector<2x192xf32>
    %cst_24 = arith.constant 1.000000e+00 : f32
    %115 = vector.broadcast %cst_24 : f32 to vector<2x192xf32>
    %116 = arith.addf %115, %114 : vector<2x192xf32>
    %117 = arith.divf %115, %116 : vector<2x192xf32>
    %118 = vector.extract_strided_slice %117 {offsets = [0, 0], sizes = [2, 64], strides = [1, 1]} : vector<2x192xf32> to vector<2x64xf32>
    %119 = vector.extract_strided_slice %117 {offsets = [0, 64], sizes = [2, 64], strides = [1, 1]} : vector<2x192xf32> to vector<2x64xf32>
    %120 = vector.extract_strided_slice %117 {offsets = [0, 128], sizes = [2, 64], strides = [1, 1]} : vector<2x192xf32> to vector<2x64xf32>
    %121 = vector.extract_strided_slice %111 {offsets = [0, 192], sizes = [2, 64], strides = [1, 1]} : vector<2x256xf32> to vector<2x64xf32>
    %122 = math.tanh %121 : vector<2x64xf32>
    %123 = arith.mulf %119, %87 : vector<2x64xf32>
    %124 = arith.mulf %118, %122 : vector<2x64xf32>
    %125 = arith.addf %123, %124 : vector<2x64xf32>
    %126 = math.tanh %125 : vector<2x64xf32>
    %127 = arith.mulf %120, %126 : vector<2x64xf32>
    %128 = vector.extract_strided_slice %8 {offsets = [6, 0], sizes = [2, 256], strides = [1, 1]} : vector<16x256xf32> to vector<2x256xf32>
    %cst_25 = arith.constant dense<0.000000e+00> : vector<2x256xf32>
    %129 = tpu.matmul %108, %3, %cst_25 {dimension_numbers = #tpu.dot_dimension_numbers<[1], [0], [0], [1], [0, 0, 1, 1], [], []>} : vector<2x64xf32>, vector<64x256xf32>, vector<2x256xf32> -> vector<2x256xf32>
    %130 = arith.addf %129, %128 : vector<2x256xf32>
    %131 = vector.extract_strided_slice %130 {offsets = [0, 0], sizes = [2, 192], strides = [1, 1]} : vector<2x256xf32> to vector<2x192xf32>
    %132 = arith.negf %131 : vector<2x192xf32>
    %133 = math.exp %132 : vector<2x192xf32>
    %cst_26 = arith.constant 1.000000e+00 : f32
    %134 = vector.broadcast %cst_26 : f32 to vector<2x192xf32>
    %135 = arith.addf %134, %133 : vector<2x192xf32>
    %136 = arith.divf %134, %135 : vector<2x192xf32>
    %137 = vector.extract_strided_slice %136 {offsets = [0, 0], sizes = [2, 64], strides = [1, 1]} : vector<2x192xf32> to vector<2x64xf32>
    %138 = vector.extract_strided_slice %136 {offsets = [0, 64], sizes = [2, 64], strides = [1, 1]} : vector<2x192xf32> to vector<2x64xf32>
    %139 = vector.extract_strided_slice %136 {offsets = [0, 128], sizes = [2, 64], strides = [1, 1]} : vector<2x192xf32> to vector<2x64xf32>
    %140 = vector.extract_strided_slice %130 {offsets = [0, 192], sizes = [2, 64], strides = [1, 1]} : vector<2x256xf32> to vector<2x64xf32>
    %141 = math.tanh %140 : vector<2x64xf32>
    %142 = arith.mulf %138, %106 : vector<2x64xf32>
    %143 = arith.mulf %137, %141 : vector<2x64xf32>
    %144 = arith.addf %142, %143 : vector<2x64xf32>
    %145 = math.tanh %144 : vector<2x64xf32>
    %146 = arith.mulf %139, %145 : vector<2x64xf32>
    %147 = vector.extract_strided_slice %9 {offsets = [8, 0], sizes = [2, 256], strides = [1, 1]} : vector<16x256xf32> to vector<2x256xf32>
    %cst_27 = arith.constant dense<0.000000e+00> : vector<2x256xf32>
    %148 = tpu.matmul %127, %4, %cst_27 {dimension_numbers = #tpu.dot_dimension_numbers<[1], [0], [0], [1], [0, 0, 1, 1], [], []>} : vector<2x64xf32>, vector<64x256xf32>, vector<2x256xf32> -> vector<2x256xf32>
    %149 = arith.addf %148, %147 : vector<2x256xf32>
    %150 = vector.extract_strided_slice %149 {offsets = [0, 0], sizes = [2, 192], strides = [1, 1]} : vector<2x256xf32> to vector<2x192xf32>
    %151 = arith.negf %150 : vector<2x192xf32>
    %152 = math.exp %151 : vector<2x192xf32>
    %cst_28 = arith.constant 1.000000e+00 : f32
    %153 = vector.broadcast %cst_28 : f32 to vector<2x192xf32>
    %154 = arith.addf %153, %152 : vector<2x192xf32>
    %155 = arith.divf %153, %154 : vector<2x192xf32>
    %156 = vector.extract_strided_slice %155 {offsets = [0, 0], sizes = [2, 64], strides = [1, 1]} : vector<2x192xf32> to vector<2x64xf32>
    %157 = vector.extract_strided_slice %155 {offsets = [0, 64], sizes = [2, 64], strides = [1, 1]} : vector<2x192xf32> to vector<2x64xf32>
    %158 = vector.extract_strided_slice %155 {offsets = [0, 128], sizes = [2, 64], strides = [1, 1]} : vector<2x192xf32> to vector<2x64xf32>
    %159 = vector.extract_strided_slice %149 {offsets = [0, 192], sizes = [2, 64], strides = [1, 1]} : vector<2x256xf32> to vector<2x64xf32>
    %160 = math.tanh %159 : vector<2x64xf32>
    %161 = arith.mulf %157, %125 : vector<2x64xf32>
    %162 = arith.mulf %156, %160 : vector<2x64xf32>
    %163 = arith.addf %161, %162 : vector<2x64xf32>
    %164 = math.tanh %163 : vector<2x64xf32>
    %165 = arith.mulf %158, %164 : vector<2x64xf32>
    %166 = vector.extract_strided_slice %8 {offsets = [8, 0], sizes = [2, 256], strides = [1, 1]} : vector<16x256xf32> to vector<2x256xf32>
    %cst_29 = arith.constant dense<0.000000e+00> : vector<2x256xf32>
    %167 = tpu.matmul %146, %3, %cst_29 {dimension_numbers = #tpu.dot_dimension_numbers<[1], [0], [0], [1], [0, 0, 1, 1], [], []>} : vector<2x64xf32>, vector<64x256xf32>, vector<2x256xf32> -> vector<2x256xf32>
    %168 = arith.addf %167, %166 : vector<2x256xf32>
    %169 = vector.extract_strided_slice %168 {offsets = [0, 0], sizes = [2, 192], strides = [1, 1]} : vector<2x256xf32> to vector<2x192xf32>
    %170 = arith.negf %169 : vector<2x192xf32>
    %171 = math.exp %170 : vector<2x192xf32>
    %cst_30 = arith.constant 1.000000e+00 : f32
    %172 = vector.broadcast %cst_30 : f32 to vector<2x192xf32>
    %173 = arith.addf %172, %171 : vector<2x192xf32>
    %174 = arith.divf %172, %173 : vector<2x192xf32>
    %175 = vector.extract_strided_slice %174 {offsets = [0, 0], sizes = [2, 64], strides = [1, 1]} : vector<2x192xf32> to vector<2x64xf32>
    %176 = vector.extract_strided_slice %174 {offsets = [0, 64], sizes = [2, 64], strides = [1, 1]} : vector<2x192xf32> to vector<2x64xf32>
    %177 = vector.extract_strided_slice %174 {offsets = [0, 128], sizes = [2, 64], strides = [1, 1]} : vector<2x192xf32> to vector<2x64xf32>
    %178 = vector.extract_strided_slice %168 {offsets = [0, 192], sizes = [2, 64], strides = [1, 1]} : vector<2x256xf32> to vector<2x64xf32>
    %179 = math.tanh %178 : vector<2x64xf32>
    %180 = arith.mulf %176, %144 : vector<2x64xf32>
    %181 = arith.mulf %175, %179 : vector<2x64xf32>
    %182 = arith.addf %180, %181 : vector<2x64xf32>
    %183 = math.tanh %182 : vector<2x64xf32>
    %184 = arith.mulf %177, %183 : vector<2x64xf32>
    %185 = vector.extract_strided_slice %9 {offsets = [6, 0], sizes = [2, 256], strides = [1, 1]} : vector<16x256xf32> to vector<2x256xf32>
    %cst_31 = arith.constant dense<0.000000e+00> : vector<2x256xf32>
    %186 = tpu.matmul %165, %4, %cst_31 {dimension_numbers = #tpu.dot_dimension_numbers<[1], [0], [0], [1], [0, 0, 1, 1], [], []>} : vector<2x64xf32>, vector<64x256xf32>, vector<2x256xf32> -> vector<2x256xf32>
    %187 = arith.addf %186, %185 : vector<2x256xf32>
    %188 = vector.extract_strided_slice %187 {offsets = [0, 0], sizes = [2, 192], strides = [1, 1]} : vector<2x256xf32> to vector<2x192xf32>
    %189 = arith.negf %188 : vector<2x192xf32>
    %190 = math.exp %189 : vector<2x192xf32>
    %cst_32 = arith.constant 1.000000e+00 : f32
    %191 = vector.broadcast %cst_32 : f32 to vector<2x192xf32>
    %192 = arith.addf %191, %190 : vector<2x192xf32>
    %193 = arith.divf %191, %192 : vector<2x192xf32>
    %194 = vector.extract_strided_slice %193 {offsets = [0, 0], sizes = [2, 64], strides = [1, 1]} : vector<2x192xf32> to vector<2x64xf32>
    %195 = vector.extract_strided_slice %193 {offsets = [0, 64], sizes = [2, 64], strides = [1, 1]} : vector<2x192xf32> to vector<2x64xf32>
    %196 = vector.extract_strided_slice %193 {offsets = [0, 128], sizes = [2, 64], strides = [1, 1]} : vector<2x192xf32> to vector<2x64xf32>
    %197 = vector.extract_strided_slice %187 {offsets = [0, 192], sizes = [2, 64], strides = [1, 1]} : vector<2x256xf32> to vector<2x64xf32>
    %198 = math.tanh %197 : vector<2x64xf32>
    %199 = arith.mulf %195, %163 : vector<2x64xf32>
    %200 = arith.mulf %194, %198 : vector<2x64xf32>
    %201 = arith.addf %199, %200 : vector<2x64xf32>
    %202 = math.tanh %201 : vector<2x64xf32>
    %203 = arith.mulf %196, %202 : vector<2x64xf32>
    %204 = vector.extract_strided_slice %8 {offsets = [10, 0], sizes = [2, 256], strides = [1, 1]} : vector<16x256xf32> to vector<2x256xf32>
    %cst_33 = arith.constant dense<0.000000e+00> : vector<2x256xf32>
    %205 = tpu.matmul %184, %3, %cst_33 {dimension_numbers = #tpu.dot_dimension_numbers<[1], [0], [0], [1], [0, 0, 1, 1], [], []>} : vector<2x64xf32>, vector<64x256xf32>, vector<2x256xf32> -> vector<2x256xf32>
    %206 = arith.addf %205, %204 : vector<2x256xf32>
    %207 = vector.extract_strided_slice %206 {offsets = [0, 0], sizes = [2, 192], strides = [1, 1]} : vector<2x256xf32> to vector<2x192xf32>
    %208 = arith.negf %207 : vector<2x192xf32>
    %209 = math.exp %208 : vector<2x192xf32>
    %cst_34 = arith.constant 1.000000e+00 : f32
    %210 = vector.broadcast %cst_34 : f32 to vector<2x192xf32>
    %211 = arith.addf %210, %209 : vector<2x192xf32>
    %212 = arith.divf %210, %211 : vector<2x192xf32>
    %213 = vector.extract_strided_slice %212 {offsets = [0, 0], sizes = [2, 64], strides = [1, 1]} : vector<2x192xf32> to vector<2x64xf32>
    %214 = vector.extract_strided_slice %212 {offsets = [0, 64], sizes = [2, 64], strides = [1, 1]} : vector<2x192xf32> to vector<2x64xf32>
    %215 = vector.extract_strided_slice %212 {offsets = [0, 128], sizes = [2, 64], strides = [1, 1]} : vector<2x192xf32> to vector<2x64xf32>
    %216 = vector.extract_strided_slice %206 {offsets = [0, 192], sizes = [2, 64], strides = [1, 1]} : vector<2x256xf32> to vector<2x64xf32>
    %217 = math.tanh %216 : vector<2x64xf32>
    %218 = arith.mulf %214, %182 : vector<2x64xf32>
    %219 = arith.mulf %213, %217 : vector<2x64xf32>
    %220 = arith.addf %218, %219 : vector<2x64xf32>
    %221 = math.tanh %220 : vector<2x64xf32>
    %222 = arith.mulf %215, %221 : vector<2x64xf32>
    %223 = vector.extract_strided_slice %9 {offsets = [4, 0], sizes = [2, 256], strides = [1, 1]} : vector<16x256xf32> to vector<2x256xf32>
    %cst_35 = arith.constant dense<0.000000e+00> : vector<2x256xf32>
    %224 = tpu.matmul %203, %4, %cst_35 {dimension_numbers = #tpu.dot_dimension_numbers<[1], [0], [0], [1], [0, 0, 1, 1], [], []>} : vector<2x64xf32>, vector<64x256xf32>, vector<2x256xf32> -> vector<2x256xf32>
    %225 = arith.addf %224, %223 : vector<2x256xf32>
    %226 = vector.extract_strided_slice %225 {offsets = [0, 0], sizes = [2, 192], strides = [1, 1]} : vector<2x256xf32> to vector<2x192xf32>
    %227 = arith.negf %226 : vector<2x192xf32>
    %228 = math.exp %227 : vector<2x192xf32>
    %cst_36 = arith.constant 1.000000e+00 : f32
    %229 = vector.broadcast %cst_36 : f32 to vector<2x192xf32>
    %230 = arith.addf %229, %228 : vector<2x192xf32>
    %231 = arith.divf %229, %230 : vector<2x192xf32>
    %232 = vector.extract_strided_slice %231 {offsets = [0, 0], sizes = [2, 64], strides = [1, 1]} : vector<2x192xf32> to vector<2x64xf32>
    %233 = vector.extract_strided_slice %231 {offsets = [0, 64], sizes = [2, 64], strides = [1, 1]} : vector<2x192xf32> to vector<2x64xf32>
    %234 = vector.extract_strided_slice %231 {offsets = [0, 128], sizes = [2, 64], strides = [1, 1]} : vector<2x192xf32> to vector<2x64xf32>
    %235 = vector.extract_strided_slice %225 {offsets = [0, 192], sizes = [2, 64], strides = [1, 1]} : vector<2x256xf32> to vector<2x64xf32>
    %236 = math.tanh %235 : vector<2x64xf32>
    %237 = arith.mulf %233, %201 : vector<2x64xf32>
    %238 = arith.mulf %232, %236 : vector<2x64xf32>
    %239 = arith.addf %237, %238 : vector<2x64xf32>
    %240 = math.tanh %239 : vector<2x64xf32>
    %241 = arith.mulf %234, %240 : vector<2x64xf32>
    %242 = vector.extract_strided_slice %8 {offsets = [12, 0], sizes = [2, 256], strides = [1, 1]} : vector<16x256xf32> to vector<2x256xf32>
    %cst_37 = arith.constant dense<0.000000e+00> : vector<2x256xf32>
    %243 = tpu.matmul %222, %3, %cst_37 {dimension_numbers = #tpu.dot_dimension_numbers<[1], [0], [0], [1], [0, 0, 1, 1], [], []>} : vector<2x64xf32>, vector<64x256xf32>, vector<2x256xf32> -> vector<2x256xf32>
    %244 = arith.addf %243, %242 : vector<2x256xf32>
    %245 = vector.extract_strided_slice %244 {offsets = [0, 0], sizes = [2, 192], strides = [1, 1]} : vector<2x256xf32> to vector<2x192xf32>
    %246 = arith.negf %245 : vector<2x192xf32>
    %247 = math.exp %246 : vector<2x192xf32>
    %cst_38 = arith.constant 1.000000e+00 : f32
    %248 = vector.broadcast %cst_38 : f32 to vector<2x192xf32>
    %249 = arith.addf %248, %247 : vector<2x192xf32>
    %250 = arith.divf %248, %249 : vector<2x192xf32>
    %251 = vector.extract_strided_slice %250 {offsets = [0, 0], sizes = [2, 64], strides = [1, 1]} : vector<2x192xf32> to vector<2x64xf32>
    %252 = vector.extract_strided_slice %250 {offsets = [0, 64], sizes = [2, 64], strides = [1, 1]} : vector<2x192xf32> to vector<2x64xf32>
    %253 = vector.extract_strided_slice %250 {offsets = [0, 128], sizes = [2, 64], strides = [1, 1]} : vector<2x192xf32> to vector<2x64xf32>
    %254 = vector.extract_strided_slice %244 {offsets = [0, 192], sizes = [2, 64], strides = [1, 1]} : vector<2x256xf32> to vector<2x64xf32>
    %255 = math.tanh %254 : vector<2x64xf32>
    %256 = arith.mulf %252, %220 : vector<2x64xf32>
    %257 = arith.mulf %251, %255 : vector<2x64xf32>
    %258 = arith.addf %256, %257 : vector<2x64xf32>
    %259 = math.tanh %258 : vector<2x64xf32>
    %260 = arith.mulf %253, %259 : vector<2x64xf32>
    %261 = vector.extract_strided_slice %9 {offsets = [2, 0], sizes = [2, 256], strides = [1, 1]} : vector<16x256xf32> to vector<2x256xf32>
    %cst_39 = arith.constant dense<0.000000e+00> : vector<2x256xf32>
    %262 = tpu.matmul %241, %4, %cst_39 {dimension_numbers = #tpu.dot_dimension_numbers<[1], [0], [0], [1], [0, 0, 1, 1], [], []>} : vector<2x64xf32>, vector<64x256xf32>, vector<2x256xf32> -> vector<2x256xf32>
    %263 = arith.addf %262, %261 : vector<2x256xf32>
    %264 = vector.extract_strided_slice %263 {offsets = [0, 0], sizes = [2, 192], strides = [1, 1]} : vector<2x256xf32> to vector<2x192xf32>
    %265 = arith.negf %264 : vector<2x192xf32>
    %266 = math.exp %265 : vector<2x192xf32>
    %cst_40 = arith.constant 1.000000e+00 : f32
    %267 = vector.broadcast %cst_40 : f32 to vector<2x192xf32>
    %268 = arith.addf %267, %266 : vector<2x192xf32>
    %269 = arith.divf %267, %268 : vector<2x192xf32>
    %270 = vector.extract_strided_slice %269 {offsets = [0, 0], sizes = [2, 64], strides = [1, 1]} : vector<2x192xf32> to vector<2x64xf32>
    %271 = vector.extract_strided_slice %269 {offsets = [0, 64], sizes = [2, 64], strides = [1, 1]} : vector<2x192xf32> to vector<2x64xf32>
    %272 = vector.extract_strided_slice %269 {offsets = [0, 128], sizes = [2, 64], strides = [1, 1]} : vector<2x192xf32> to vector<2x64xf32>
    %273 = vector.extract_strided_slice %263 {offsets = [0, 192], sizes = [2, 64], strides = [1, 1]} : vector<2x256xf32> to vector<2x64xf32>
    %274 = math.tanh %273 : vector<2x64xf32>
    %275 = arith.mulf %271, %239 : vector<2x64xf32>
    %276 = arith.mulf %270, %274 : vector<2x64xf32>
    %277 = arith.addf %275, %276 : vector<2x64xf32>
    %278 = math.tanh %277 : vector<2x64xf32>
    %279 = arith.mulf %272, %278 : vector<2x64xf32>
    %280 = vector.extract_strided_slice %8 {offsets = [14, 0], sizes = [2, 256], strides = [1, 1]} : vector<16x256xf32> to vector<2x256xf32>
    %cst_41 = arith.constant dense<0.000000e+00> : vector<2x256xf32>
    %281 = tpu.matmul %260, %3, %cst_41 {dimension_numbers = #tpu.dot_dimension_numbers<[1], [0], [0], [1], [0, 0, 1, 1], [], []>} : vector<2x64xf32>, vector<64x256xf32>, vector<2x256xf32> -> vector<2x256xf32>
    %282 = arith.addf %281, %280 : vector<2x256xf32>
    %283 = vector.extract_strided_slice %282 {offsets = [0, 0], sizes = [2, 192], strides = [1, 1]} : vector<2x256xf32> to vector<2x192xf32>
    %284 = arith.negf %283 : vector<2x192xf32>
    %285 = math.exp %284 : vector<2x192xf32>
    %cst_42 = arith.constant 1.000000e+00 : f32
    %286 = vector.broadcast %cst_42 : f32 to vector<2x192xf32>
    %287 = arith.addf %286, %285 : vector<2x192xf32>
    %288 = arith.divf %286, %287 : vector<2x192xf32>
    %289 = vector.extract_strided_slice %288 {offsets = [0, 0], sizes = [2, 64], strides = [1, 1]} : vector<2x192xf32> to vector<2x64xf32>
    %290 = vector.extract_strided_slice %288 {offsets = [0, 64], sizes = [2, 64], strides = [1, 1]} : vector<2x192xf32> to vector<2x64xf32>
    %291 = vector.extract_strided_slice %288 {offsets = [0, 128], sizes = [2, 64], strides = [1, 1]} : vector<2x192xf32> to vector<2x64xf32>
    %292 = vector.extract_strided_slice %282 {offsets = [0, 192], sizes = [2, 64], strides = [1, 1]} : vector<2x256xf32> to vector<2x64xf32>
    %293 = math.tanh %292 : vector<2x64xf32>
    %294 = arith.mulf %290, %258 : vector<2x64xf32>
    %295 = arith.mulf %289, %293 : vector<2x64xf32>
    %296 = arith.addf %294, %295 : vector<2x64xf32>
    %297 = math.tanh %296 : vector<2x64xf32>
    %298 = arith.mulf %291, %297 : vector<2x64xf32>
    %299 = vector.extract_strided_slice %9 {offsets = [0, 0], sizes = [2, 256], strides = [1, 1]} : vector<16x256xf32> to vector<2x256xf32>
    %cst_43 = arith.constant dense<0.000000e+00> : vector<2x256xf32>
    %300 = tpu.matmul %279, %4, %cst_43 {dimension_numbers = #tpu.dot_dimension_numbers<[1], [0], [0], [1], [0, 0, 1, 1], [], []>} : vector<2x64xf32>, vector<64x256xf32>, vector<2x256xf32> -> vector<2x256xf32>
    %301 = arith.addf %300, %299 : vector<2x256xf32>
    %302 = vector.extract_strided_slice %301 {offsets = [0, 0], sizes = [2, 192], strides = [1, 1]} : vector<2x256xf32> to vector<2x192xf32>
    %303 = arith.negf %302 : vector<2x192xf32>
    %304 = math.exp %303 : vector<2x192xf32>
    %cst_44 = arith.constant 1.000000e+00 : f32
    %305 = vector.broadcast %cst_44 : f32 to vector<2x192xf32>
    %306 = arith.addf %305, %304 : vector<2x192xf32>
    %307 = arith.divf %305, %306 : vector<2x192xf32>
    %308 = vector.extract_strided_slice %307 {offsets = [0, 0], sizes = [2, 64], strides = [1, 1]} : vector<2x192xf32> to vector<2x64xf32>
    %309 = vector.extract_strided_slice %307 {offsets = [0, 64], sizes = [2, 64], strides = [1, 1]} : vector<2x192xf32> to vector<2x64xf32>
    %310 = vector.extract_strided_slice %307 {offsets = [0, 128], sizes = [2, 64], strides = [1, 1]} : vector<2x192xf32> to vector<2x64xf32>
    %311 = vector.extract_strided_slice %301 {offsets = [0, 192], sizes = [2, 64], strides = [1, 1]} : vector<2x256xf32> to vector<2x64xf32>
    %312 = math.tanh %311 : vector<2x64xf32>
    %313 = arith.mulf %309, %277 : vector<2x64xf32>
    %314 = arith.mulf %308, %312 : vector<2x64xf32>
    %315 = arith.addf %313, %314 : vector<2x64xf32>
    %316 = math.tanh %315 : vector<2x64xf32>
    %317 = arith.mulf %310, %316 : vector<2x64xf32>
    %318 = tpu.concatenate %32, %70, %108, %146, %184, %222, %260, %298 in 0 : vector<2x64xf32>, vector<2x64xf32>, vector<2x64xf32>, vector<2x64xf32>, vector<2x64xf32>, vector<2x64xf32>, vector<2x64xf32>, vector<2x64xf32> -> vector<16x64xf32>
    %319 = tpu.concatenate %317, %279, %241, %203, %165, %127, %89, %51 in 0 : vector<2x64xf32>, vector<2x64xf32>, vector<2x64xf32>, vector<2x64xf32>, vector<2x64xf32>, vector<2x64xf32>, vector<2x64xf32>, vector<2x64xf32> -> vector<16x64xf32>
    %320 = tpu.concatenate %318, %319 in 1 : vector<16x64xf32>, vector<16x64xf32> -> vector<16x128xf32>
    %c0_45 = arith.constant 0 : index
    %c0_46 = arith.constant 0 : index
    %321 = vector.load %arg5[%c0_45, %c0_46] : memref<128x512xf32, #tpu.memory_space<vmem>>, vector<128x512xf32>
    %c0_47 = arith.constant 0 : index
    %c0_48 = arith.constant 0 : index
    %322 = vector.load %arg6[%c0_47, %c0_48] : memref<1x512xf32, #tpu.memory_space<vmem>>, vector<1x512xf32>
    %c0_49 = arith.constant 0 : index
    %c0_50 = arith.constant 0 : index
    %323 = vector.load %arg7[%c0_49, %c0_50] : memref<64x256xf32, #tpu.memory_space<vmem>>, vector<64x256xf32>
    %c0_51 = arith.constant 0 : index
    %c0_52 = arith.constant 0 : index
    %324 = vector.load %arg8[%c0_51, %c0_52] : memref<64x256xf32, #tpu.memory_space<vmem>>, vector<64x256xf32>
    %cst_53 = arith.constant dense<0.000000e+00> : vector<16x512xf32>
    %325 = tpu.matmul %320, %321, %cst_53 {dimension_numbers = #tpu.dot_dimension_numbers<[1], [0], [0], [1], [0, 0, 1, 1], [], []>} : vector<16x128xf32>, vector<128x512xf32>, vector<16x512xf32> -> vector<16x512xf32>
    %326 = vector.broadcast %322 : vector<1x512xf32> to vector<16x512xf32>
    %327 = arith.addf %325, %326 : vector<16x512xf32>
    %328 = vector.extract_strided_slice %327 {offsets = [0, 0], sizes = [16, 256], strides = [1, 1]} : vector<16x512xf32> to vector<16x256xf32>
    %329 = vector.extract_strided_slice %327 {offsets = [0, 256], sizes = [16, 256], strides = [1, 1]} : vector<16x512xf32> to vector<16x256xf32>
    %cst_54 = arith.constant 0.000000e+00 : f32
    %330 = vector.broadcast %cst_54 : f32 to vector<2x64xf32>
    %cst_55 = arith.constant 0.000000e+00 : f32
    %331 = vector.broadcast %cst_55 : f32 to vector<2x64xf32>
    %cst_56 = arith.constant 0.000000e+00 : f32
    %332 = vector.broadcast %cst_56 : f32 to vector<2x64xf32>
    %cst_57 = arith.constant 0.000000e+00 : f32
    %333 = vector.broadcast %cst_57 : f32 to vector<2x64xf32>
    %334 = vector.extract_strided_slice %328 {offsets = [0, 0], sizes = [2, 256], strides = [1, 1]} : vector<16x256xf32> to vector<2x256xf32>
    %cst_58 = arith.constant dense<0.000000e+00> : vector<2x256xf32>
    %335 = tpu.matmul %330, %323, %cst_58 {dimension_numbers = #tpu.dot_dimension_numbers<[1], [0], [0], [1], [0, 0, 1, 1], [], []>} : vector<2x64xf32>, vector<64x256xf32>, vector<2x256xf32> -> vector<2x256xf32>
    %336 = arith.addf %335, %334 : vector<2x256xf32>
    %337 = vector.extract_strided_slice %336 {offsets = [0, 0], sizes = [2, 192], strides = [1, 1]} : vector<2x256xf32> to vector<2x192xf32>
    %338 = arith.negf %337 : vector<2x192xf32>
    %339 = math.exp %338 : vector<2x192xf32>
    %cst_59 = arith.constant 1.000000e+00 : f32
    %340 = vector.broadcast %cst_59 : f32 to vector<2x192xf32>
    %341 = arith.addf %340, %339 : vector<2x192xf32>
    %342 = arith.divf %340, %341 : vector<2x192xf32>
    %343 = vector.extract_strided_slice %342 {offsets = [0, 0], sizes = [2, 64], strides = [1, 1]} : vector<2x192xf32> to vector<2x64xf32>
    %344 = vector.extract_strided_slice %342 {offsets = [0, 64], sizes = [2, 64], strides = [1, 1]} : vector<2x192xf32> to vector<2x64xf32>
    %345 = vector.extract_strided_slice %342 {offsets = [0, 128], sizes = [2, 64], strides = [1, 1]} : vector<2x192xf32> to vector<2x64xf32>
    %346 = vector.extract_strided_slice %336 {offsets = [0, 192], sizes = [2, 64], strides = [1, 1]} : vector<2x256xf32> to vector<2x64xf32>
    %347 = math.tanh %346 : vector<2x64xf32>
    %348 = arith.mulf %344, %331 : vector<2x64xf32>
    %349 = arith.mulf %343, %347 : vector<2x64xf32>
    %350 = arith.addf %348, %349 : vector<2x64xf32>
    %351 = math.tanh %350 : vector<2x64xf32>
    %352 = arith.mulf %345, %351 : vector<2x64xf32>
    %353 = vector.extract_strided_slice %329 {offsets = [14, 0], sizes = [2, 256], strides = [1, 1]} : vector<16x256xf32> to vector<2x256xf32>
    %cst_60 = arith.constant dense<0.000000e+00> : vector<2x256xf32>
    %354 = tpu.matmul %332, %324, %cst_60 {dimension_numbers = #tpu.dot_dimension_numbers<[1], [0], [0], [1], [0, 0, 1, 1], [], []>} : vector<2x64xf32>, vector<64x256xf32>, vector<2x256xf32> -> vector<2x256xf32>
    %355 = arith.addf %354, %353 : vector<2x256xf32>
    %356 = vector.extract_strided_slice %355 {offsets = [0, 0], sizes = [2, 192], strides = [1, 1]} : vector<2x256xf32> to vector<2x192xf32>
    %357 = arith.negf %356 : vector<2x192xf32>
    %358 = math.exp %357 : vector<2x192xf32>
    %cst_61 = arith.constant 1.000000e+00 : f32
    %359 = vector.broadcast %cst_61 : f32 to vector<2x192xf32>
    %360 = arith.addf %359, %358 : vector<2x192xf32>
    %361 = arith.divf %359, %360 : vector<2x192xf32>
    %362 = vector.extract_strided_slice %361 {offsets = [0, 0], sizes = [2, 64], strides = [1, 1]} : vector<2x192xf32> to vector<2x64xf32>
    %363 = vector.extract_strided_slice %361 {offsets = [0, 64], sizes = [2, 64], strides = [1, 1]} : vector<2x192xf32> to vector<2x64xf32>
    %364 = vector.extract_strided_slice %361 {offsets = [0, 128], sizes = [2, 64], strides = [1, 1]} : vector<2x192xf32> to vector<2x64xf32>
    %365 = vector.extract_strided_slice %355 {offsets = [0, 192], sizes = [2, 64], strides = [1, 1]} : vector<2x256xf32> to vector<2x64xf32>
    %366 = math.tanh %365 : vector<2x64xf32>
    %367 = arith.mulf %363, %333 : vector<2x64xf32>
    %368 = arith.mulf %362, %366 : vector<2x64xf32>
    %369 = arith.addf %367, %368 : vector<2x64xf32>
    %370 = math.tanh %369 : vector<2x64xf32>
    %371 = arith.mulf %364, %370 : vector<2x64xf32>
    %372 = vector.extract_strided_slice %328 {offsets = [2, 0], sizes = [2, 256], strides = [1, 1]} : vector<16x256xf32> to vector<2x256xf32>
    %cst_62 = arith.constant dense<0.000000e+00> : vector<2x256xf32>
    %373 = tpu.matmul %352, %323, %cst_62 {dimension_numbers = #tpu.dot_dimension_numbers<[1], [0], [0], [1], [0, 0, 1, 1], [], []>} : vector<2x64xf32>, vector<64x256xf32>, vector<2x256xf32> -> vector<2x256xf32>
    %374 = arith.addf %373, %372 : vector<2x256xf32>
    %375 = vector.extract_strided_slice %374 {offsets = [0, 0], sizes = [2, 192], strides = [1, 1]} : vector<2x256xf32> to vector<2x192xf32>
    %376 = arith.negf %375 : vector<2x192xf32>
    %377 = math.exp %376 : vector<2x192xf32>
    %cst_63 = arith.constant 1.000000e+00 : f32
    %378 = vector.broadcast %cst_63 : f32 to vector<2x192xf32>
    %379 = arith.addf %378, %377 : vector<2x192xf32>
    %380 = arith.divf %378, %379 : vector<2x192xf32>
    %381 = vector.extract_strided_slice %380 {offsets = [0, 0], sizes = [2, 64], strides = [1, 1]} : vector<2x192xf32> to vector<2x64xf32>
    %382 = vector.extract_strided_slice %380 {offsets = [0, 64], sizes = [2, 64], strides = [1, 1]} : vector<2x192xf32> to vector<2x64xf32>
    %383 = vector.extract_strided_slice %380 {offsets = [0, 128], sizes = [2, 64], strides = [1, 1]} : vector<2x192xf32> to vector<2x64xf32>
    %384 = vector.extract_strided_slice %374 {offsets = [0, 192], sizes = [2, 64], strides = [1, 1]} : vector<2x256xf32> to vector<2x64xf32>
    %385 = math.tanh %384 : vector<2x64xf32>
    %386 = arith.mulf %382, %350 : vector<2x64xf32>
    %387 = arith.mulf %381, %385 : vector<2x64xf32>
    %388 = arith.addf %386, %387 : vector<2x64xf32>
    %389 = math.tanh %388 : vector<2x64xf32>
    %390 = arith.mulf %383, %389 : vector<2x64xf32>
    %391 = vector.extract_strided_slice %329 {offsets = [12, 0], sizes = [2, 256], strides = [1, 1]} : vector<16x256xf32> to vector<2x256xf32>
    %cst_64 = arith.constant dense<0.000000e+00> : vector<2x256xf32>
    %392 = tpu.matmul %371, %324, %cst_64 {dimension_numbers = #tpu.dot_dimension_numbers<[1], [0], [0], [1], [0, 0, 1, 1], [], []>} : vector<2x64xf32>, vector<64x256xf32>, vector<2x256xf32> -> vector<2x256xf32>
    %393 = arith.addf %392, %391 : vector<2x256xf32>
    %394 = vector.extract_strided_slice %393 {offsets = [0, 0], sizes = [2, 192], strides = [1, 1]} : vector<2x256xf32> to vector<2x192xf32>
    %395 = arith.negf %394 : vector<2x192xf32>
    %396 = math.exp %395 : vector<2x192xf32>
    %cst_65 = arith.constant 1.000000e+00 : f32
    %397 = vector.broadcast %cst_65 : f32 to vector<2x192xf32>
    %398 = arith.addf %397, %396 : vector<2x192xf32>
    %399 = arith.divf %397, %398 : vector<2x192xf32>
    %400 = vector.extract_strided_slice %399 {offsets = [0, 0], sizes = [2, 64], strides = [1, 1]} : vector<2x192xf32> to vector<2x64xf32>
    %401 = vector.extract_strided_slice %399 {offsets = [0, 64], sizes = [2, 64], strides = [1, 1]} : vector<2x192xf32> to vector<2x64xf32>
    %402 = vector.extract_strided_slice %399 {offsets = [0, 128], sizes = [2, 64], strides = [1, 1]} : vector<2x192xf32> to vector<2x64xf32>
    %403 = vector.extract_strided_slice %393 {offsets = [0, 192], sizes = [2, 64], strides = [1, 1]} : vector<2x256xf32> to vector<2x64xf32>
    %404 = math.tanh %403 : vector<2x64xf32>
    %405 = arith.mulf %401, %369 : vector<2x64xf32>
    %406 = arith.mulf %400, %404 : vector<2x64xf32>
    %407 = arith.addf %405, %406 : vector<2x64xf32>
    %408 = math.tanh %407 : vector<2x64xf32>
    %409 = arith.mulf %402, %408 : vector<2x64xf32>
    %410 = vector.extract_strided_slice %328 {offsets = [4, 0], sizes = [2, 256], strides = [1, 1]} : vector<16x256xf32> to vector<2x256xf32>
    %cst_66 = arith.constant dense<0.000000e+00> : vector<2x256xf32>
    %411 = tpu.matmul %390, %323, %cst_66 {dimension_numbers = #tpu.dot_dimension_numbers<[1], [0], [0], [1], [0, 0, 1, 1], [], []>} : vector<2x64xf32>, vector<64x256xf32>, vector<2x256xf32> -> vector<2x256xf32>
    %412 = arith.addf %411, %410 : vector<2x256xf32>
    %413 = vector.extract_strided_slice %412 {offsets = [0, 0], sizes = [2, 192], strides = [1, 1]} : vector<2x256xf32> to vector<2x192xf32>
    %414 = arith.negf %413 : vector<2x192xf32>
    %415 = math.exp %414 : vector<2x192xf32>
    %cst_67 = arith.constant 1.000000e+00 : f32
    %416 = vector.broadcast %cst_67 : f32 to vector<2x192xf32>
    %417 = arith.addf %416, %415 : vector<2x192xf32>
    %418 = arith.divf %416, %417 : vector<2x192xf32>
    %419 = vector.extract_strided_slice %418 {offsets = [0, 0], sizes = [2, 64], strides = [1, 1]} : vector<2x192xf32> to vector<2x64xf32>
    %420 = vector.extract_strided_slice %418 {offsets = [0, 64], sizes = [2, 64], strides = [1, 1]} : vector<2x192xf32> to vector<2x64xf32>
    %421 = vector.extract_strided_slice %418 {offsets = [0, 128], sizes = [2, 64], strides = [1, 1]} : vector<2x192xf32> to vector<2x64xf32>
    %422 = vector.extract_strided_slice %412 {offsets = [0, 192], sizes = [2, 64], strides = [1, 1]} : vector<2x256xf32> to vector<2x64xf32>
    %423 = math.tanh %422 : vector<2x64xf32>
    %424 = arith.mulf %420, %388 : vector<2x64xf32>
    %425 = arith.mulf %419, %423 : vector<2x64xf32>
    %426 = arith.addf %424, %425 : vector<2x64xf32>
    %427 = math.tanh %426 : vector<2x64xf32>
    %428 = arith.mulf %421, %427 : vector<2x64xf32>
    %429 = vector.extract_strided_slice %329 {offsets = [10, 0], sizes = [2, 256], strides = [1, 1]} : vector<16x256xf32> to vector<2x256xf32>
    %cst_68 = arith.constant dense<0.000000e+00> : vector<2x256xf32>
    %430 = tpu.matmul %409, %324, %cst_68 {dimension_numbers = #tpu.dot_dimension_numbers<[1], [0], [0], [1], [0, 0, 1, 1], [], []>} : vector<2x64xf32>, vector<64x256xf32>, vector<2x256xf32> -> vector<2x256xf32>
    %431 = arith.addf %430, %429 : vector<2x256xf32>
    %432 = vector.extract_strided_slice %431 {offsets = [0, 0], sizes = [2, 192], strides = [1, 1]} : vector<2x256xf32> to vector<2x192xf32>
    %433 = arith.negf %432 : vector<2x192xf32>
    %434 = math.exp %433 : vector<2x192xf32>
    %cst_69 = arith.constant 1.000000e+00 : f32
    %435 = vector.broadcast %cst_69 : f32 to vector<2x192xf32>
    %436 = arith.addf %435, %434 : vector<2x192xf32>
    %437 = arith.divf %435, %436 : vector<2x192xf32>
    %438 = vector.extract_strided_slice %437 {offsets = [0, 0], sizes = [2, 64], strides = [1, 1]} : vector<2x192xf32> to vector<2x64xf32>
    %439 = vector.extract_strided_slice %437 {offsets = [0, 64], sizes = [2, 64], strides = [1, 1]} : vector<2x192xf32> to vector<2x64xf32>
    %440 = vector.extract_strided_slice %437 {offsets = [0, 128], sizes = [2, 64], strides = [1, 1]} : vector<2x192xf32> to vector<2x64xf32>
    %441 = vector.extract_strided_slice %431 {offsets = [0, 192], sizes = [2, 64], strides = [1, 1]} : vector<2x256xf32> to vector<2x64xf32>
    %442 = math.tanh %441 : vector<2x64xf32>
    %443 = arith.mulf %439, %407 : vector<2x64xf32>
    %444 = arith.mulf %438, %442 : vector<2x64xf32>
    %445 = arith.addf %443, %444 : vector<2x64xf32>
    %446 = math.tanh %445 : vector<2x64xf32>
    %447 = arith.mulf %440, %446 : vector<2x64xf32>
    %448 = vector.extract_strided_slice %328 {offsets = [6, 0], sizes = [2, 256], strides = [1, 1]} : vector<16x256xf32> to vector<2x256xf32>
    %cst_70 = arith.constant dense<0.000000e+00> : vector<2x256xf32>
    %449 = tpu.matmul %428, %323, %cst_70 {dimension_numbers = #tpu.dot_dimension_numbers<[1], [0], [0], [1], [0, 0, 1, 1], [], []>} : vector<2x64xf32>, vector<64x256xf32>, vector<2x256xf32> -> vector<2x256xf32>
    %450 = arith.addf %449, %448 : vector<2x256xf32>
    %451 = vector.extract_strided_slice %450 {offsets = [0, 0], sizes = [2, 192], strides = [1, 1]} : vector<2x256xf32> to vector<2x192xf32>
    %452 = arith.negf %451 : vector<2x192xf32>
    %453 = math.exp %452 : vector<2x192xf32>
    %cst_71 = arith.constant 1.000000e+00 : f32
    %454 = vector.broadcast %cst_71 : f32 to vector<2x192xf32>
    %455 = arith.addf %454, %453 : vector<2x192xf32>
    %456 = arith.divf %454, %455 : vector<2x192xf32>
    %457 = vector.extract_strided_slice %456 {offsets = [0, 0], sizes = [2, 64], strides = [1, 1]} : vector<2x192xf32> to vector<2x64xf32>
    %458 = vector.extract_strided_slice %456 {offsets = [0, 64], sizes = [2, 64], strides = [1, 1]} : vector<2x192xf32> to vector<2x64xf32>
    %459 = vector.extract_strided_slice %456 {offsets = [0, 128], sizes = [2, 64], strides = [1, 1]} : vector<2x192xf32> to vector<2x64xf32>
    %460 = vector.extract_strided_slice %450 {offsets = [0, 192], sizes = [2, 64], strides = [1, 1]} : vector<2x256xf32> to vector<2x64xf32>
    %461 = math.tanh %460 : vector<2x64xf32>
    %462 = arith.mulf %458, %426 : vector<2x64xf32>
    %463 = arith.mulf %457, %461 : vector<2x64xf32>
    %464 = arith.addf %462, %463 : vector<2x64xf32>
    %465 = math.tanh %464 : vector<2x64xf32>
    %466 = arith.mulf %459, %465 : vector<2x64xf32>
    %467 = vector.extract_strided_slice %329 {offsets = [8, 0], sizes = [2, 256], strides = [1, 1]} : vector<16x256xf32> to vector<2x256xf32>
    %cst_72 = arith.constant dense<0.000000e+00> : vector<2x256xf32>
    %468 = tpu.matmul %447, %324, %cst_72 {dimension_numbers = #tpu.dot_dimension_numbers<[1], [0], [0], [1], [0, 0, 1, 1], [], []>} : vector<2x64xf32>, vector<64x256xf32>, vector<2x256xf32> -> vector<2x256xf32>
    %469 = arith.addf %468, %467 : vector<2x256xf32>
    %470 = vector.extract_strided_slice %469 {offsets = [0, 0], sizes = [2, 192], strides = [1, 1]} : vector<2x256xf32> to vector<2x192xf32>
    %471 = arith.negf %470 : vector<2x192xf32>
    %472 = math.exp %471 : vector<2x192xf32>
    %cst_73 = arith.constant 1.000000e+00 : f32
    %473 = vector.broadcast %cst_73 : f32 to vector<2x192xf32>
    %474 = arith.addf %473, %472 : vector<2x192xf32>
    %475 = arith.divf %473, %474 : vector<2x192xf32>
    %476 = vector.extract_strided_slice %475 {offsets = [0, 0], sizes = [2, 64], strides = [1, 1]} : vector<2x192xf32> to vector<2x64xf32>
    %477 = vector.extract_strided_slice %475 {offsets = [0, 64], sizes = [2, 64], strides = [1, 1]} : vector<2x192xf32> to vector<2x64xf32>
    %478 = vector.extract_strided_slice %475 {offsets = [0, 128], sizes = [2, 64], strides = [1, 1]} : vector<2x192xf32> to vector<2x64xf32>
    %479 = vector.extract_strided_slice %469 {offsets = [0, 192], sizes = [2, 64], strides = [1, 1]} : vector<2x256xf32> to vector<2x64xf32>
    %480 = math.tanh %479 : vector<2x64xf32>
    %481 = arith.mulf %477, %445 : vector<2x64xf32>
    %482 = arith.mulf %476, %480 : vector<2x64xf32>
    %483 = arith.addf %481, %482 : vector<2x64xf32>
    %484 = math.tanh %483 : vector<2x64xf32>
    %485 = arith.mulf %478, %484 : vector<2x64xf32>
    %486 = vector.extract_strided_slice %328 {offsets = [8, 0], sizes = [2, 256], strides = [1, 1]} : vector<16x256xf32> to vector<2x256xf32>
    %cst_74 = arith.constant dense<0.000000e+00> : vector<2x256xf32>
    %487 = tpu.matmul %466, %323, %cst_74 {dimension_numbers = #tpu.dot_dimension_numbers<[1], [0], [0], [1], [0, 0, 1, 1], [], []>} : vector<2x64xf32>, vector<64x256xf32>, vector<2x256xf32> -> vector<2x256xf32>
    %488 = arith.addf %487, %486 : vector<2x256xf32>
    %489 = vector.extract_strided_slice %488 {offsets = [0, 0], sizes = [2, 192], strides = [1, 1]} : vector<2x256xf32> to vector<2x192xf32>
    %490 = arith.negf %489 : vector<2x192xf32>
    %491 = math.exp %490 : vector<2x192xf32>
    %cst_75 = arith.constant 1.000000e+00 : f32
    %492 = vector.broadcast %cst_75 : f32 to vector<2x192xf32>
    %493 = arith.addf %492, %491 : vector<2x192xf32>
    %494 = arith.divf %492, %493 : vector<2x192xf32>
    %495 = vector.extract_strided_slice %494 {offsets = [0, 0], sizes = [2, 64], strides = [1, 1]} : vector<2x192xf32> to vector<2x64xf32>
    %496 = vector.extract_strided_slice %494 {offsets = [0, 64], sizes = [2, 64], strides = [1, 1]} : vector<2x192xf32> to vector<2x64xf32>
    %497 = vector.extract_strided_slice %494 {offsets = [0, 128], sizes = [2, 64], strides = [1, 1]} : vector<2x192xf32> to vector<2x64xf32>
    %498 = vector.extract_strided_slice %488 {offsets = [0, 192], sizes = [2, 64], strides = [1, 1]} : vector<2x256xf32> to vector<2x64xf32>
    %499 = math.tanh %498 : vector<2x64xf32>
    %500 = arith.mulf %496, %464 : vector<2x64xf32>
    %501 = arith.mulf %495, %499 : vector<2x64xf32>
    %502 = arith.addf %500, %501 : vector<2x64xf32>
    %503 = math.tanh %502 : vector<2x64xf32>
    %504 = arith.mulf %497, %503 : vector<2x64xf32>
    %505 = vector.extract_strided_slice %329 {offsets = [6, 0], sizes = [2, 256], strides = [1, 1]} : vector<16x256xf32> to vector<2x256xf32>
    %cst_76 = arith.constant dense<0.000000e+00> : vector<2x256xf32>
    %506 = tpu.matmul %485, %324, %cst_76 {dimension_numbers = #tpu.dot_dimension_numbers<[1], [0], [0], [1], [0, 0, 1, 1], [], []>} : vector<2x64xf32>, vector<64x256xf32>, vector<2x256xf32> -> vector<2x256xf32>
    %507 = arith.addf %506, %505 : vector<2x256xf32>
    %508 = vector.extract_strided_slice %507 {offsets = [0, 0], sizes = [2, 192], strides = [1, 1]} : vector<2x256xf32> to vector<2x192xf32>
    %509 = arith.negf %508 : vector<2x192xf32>
    %510 = math.exp %509 : vector<2x192xf32>
    %cst_77 = arith.constant 1.000000e+00 : f32
    %511 = vector.broadcast %cst_77 : f32 to vector<2x192xf32>
    %512 = arith.addf %511, %510 : vector<2x192xf32>
    %513 = arith.divf %511, %512 : vector<2x192xf32>
    %514 = vector.extract_strided_slice %513 {offsets = [0, 0], sizes = [2, 64], strides = [1, 1]} : vector<2x192xf32> to vector<2x64xf32>
    %515 = vector.extract_strided_slice %513 {offsets = [0, 64], sizes = [2, 64], strides = [1, 1]} : vector<2x192xf32> to vector<2x64xf32>
    %516 = vector.extract_strided_slice %513 {offsets = [0, 128], sizes = [2, 64], strides = [1, 1]} : vector<2x192xf32> to vector<2x64xf32>
    %517 = vector.extract_strided_slice %507 {offsets = [0, 192], sizes = [2, 64], strides = [1, 1]} : vector<2x256xf32> to vector<2x64xf32>
    %518 = math.tanh %517 : vector<2x64xf32>
    %519 = arith.mulf %515, %483 : vector<2x64xf32>
    %520 = arith.mulf %514, %518 : vector<2x64xf32>
    %521 = arith.addf %519, %520 : vector<2x64xf32>
    %522 = math.tanh %521 : vector<2x64xf32>
    %523 = arith.mulf %516, %522 : vector<2x64xf32>
    %524 = vector.extract_strided_slice %328 {offsets = [10, 0], sizes = [2, 256], strides = [1, 1]} : vector<16x256xf32> to vector<2x256xf32>
    %cst_78 = arith.constant dense<0.000000e+00> : vector<2x256xf32>
    %525 = tpu.matmul %504, %323, %cst_78 {dimension_numbers = #tpu.dot_dimension_numbers<[1], [0], [0], [1], [0, 0, 1, 1], [], []>} : vector<2x64xf32>, vector<64x256xf32>, vector<2x256xf32> -> vector<2x256xf32>
    %526 = arith.addf %525, %524 : vector<2x256xf32>
    %527 = vector.extract_strided_slice %526 {offsets = [0, 0], sizes = [2, 192], strides = [1, 1]} : vector<2x256xf32> to vector<2x192xf32>
    %528 = arith.negf %527 : vector<2x192xf32>
    %529 = math.exp %528 : vector<2x192xf32>
    %cst_79 = arith.constant 1.000000e+00 : f32
    %530 = vector.broadcast %cst_79 : f32 to vector<2x192xf32>
    %531 = arith.addf %530, %529 : vector<2x192xf32>
    %532 = arith.divf %530, %531 : vector<2x192xf32>
    %533 = vector.extract_strided_slice %532 {offsets = [0, 0], sizes = [2, 64], strides = [1, 1]} : vector<2x192xf32> to vector<2x64xf32>
    %534 = vector.extract_strided_slice %532 {offsets = [0, 64], sizes = [2, 64], strides = [1, 1]} : vector<2x192xf32> to vector<2x64xf32>
    %535 = vector.extract_strided_slice %532 {offsets = [0, 128], sizes = [2, 64], strides = [1, 1]} : vector<2x192xf32> to vector<2x64xf32>
    %536 = vector.extract_strided_slice %526 {offsets = [0, 192], sizes = [2, 64], strides = [1, 1]} : vector<2x256xf32> to vector<2x64xf32>
    %537 = math.tanh %536 : vector<2x64xf32>
    %538 = arith.mulf %534, %502 : vector<2x64xf32>
    %539 = arith.mulf %533, %537 : vector<2x64xf32>
    %540 = arith.addf %538, %539 : vector<2x64xf32>
    %541 = math.tanh %540 : vector<2x64xf32>
    %542 = arith.mulf %535, %541 : vector<2x64xf32>
    %543 = vector.extract_strided_slice %329 {offsets = [4, 0], sizes = [2, 256], strides = [1, 1]} : vector<16x256xf32> to vector<2x256xf32>
    %cst_80 = arith.constant dense<0.000000e+00> : vector<2x256xf32>
    %544 = tpu.matmul %523, %324, %cst_80 {dimension_numbers = #tpu.dot_dimension_numbers<[1], [0], [0], [1], [0, 0, 1, 1], [], []>} : vector<2x64xf32>, vector<64x256xf32>, vector<2x256xf32> -> vector<2x256xf32>
    %545 = arith.addf %544, %543 : vector<2x256xf32>
    %546 = vector.extract_strided_slice %545 {offsets = [0, 0], sizes = [2, 192], strides = [1, 1]} : vector<2x256xf32> to vector<2x192xf32>
    %547 = arith.negf %546 : vector<2x192xf32>
    %548 = math.exp %547 : vector<2x192xf32>
    %cst_81 = arith.constant 1.000000e+00 : f32
    %549 = vector.broadcast %cst_81 : f32 to vector<2x192xf32>
    %550 = arith.addf %549, %548 : vector<2x192xf32>
    %551 = arith.divf %549, %550 : vector<2x192xf32>
    %552 = vector.extract_strided_slice %551 {offsets = [0, 0], sizes = [2, 64], strides = [1, 1]} : vector<2x192xf32> to vector<2x64xf32>
    %553 = vector.extract_strided_slice %551 {offsets = [0, 64], sizes = [2, 64], strides = [1, 1]} : vector<2x192xf32> to vector<2x64xf32>
    %554 = vector.extract_strided_slice %551 {offsets = [0, 128], sizes = [2, 64], strides = [1, 1]} : vector<2x192xf32> to vector<2x64xf32>
    %555 = vector.extract_strided_slice %545 {offsets = [0, 192], sizes = [2, 64], strides = [1, 1]} : vector<2x256xf32> to vector<2x64xf32>
    %556 = math.tanh %555 : vector<2x64xf32>
    %557 = arith.mulf %553, %521 : vector<2x64xf32>
    %558 = arith.mulf %552, %556 : vector<2x64xf32>
    %559 = arith.addf %557, %558 : vector<2x64xf32>
    %560 = math.tanh %559 : vector<2x64xf32>
    %561 = arith.mulf %554, %560 : vector<2x64xf32>
    %562 = vector.extract_strided_slice %328 {offsets = [12, 0], sizes = [2, 256], strides = [1, 1]} : vector<16x256xf32> to vector<2x256xf32>
    %cst_82 = arith.constant dense<0.000000e+00> : vector<2x256xf32>
    %563 = tpu.matmul %542, %323, %cst_82 {dimension_numbers = #tpu.dot_dimension_numbers<[1], [0], [0], [1], [0, 0, 1, 1], [], []>} : vector<2x64xf32>, vector<64x256xf32>, vector<2x256xf32> -> vector<2x256xf32>
    %564 = arith.addf %563, %562 : vector<2x256xf32>
    %565 = vector.extract_strided_slice %564 {offsets = [0, 0], sizes = [2, 192], strides = [1, 1]} : vector<2x256xf32> to vector<2x192xf32>
    %566 = arith.negf %565 : vector<2x192xf32>
    %567 = math.exp %566 : vector<2x192xf32>
    %cst_83 = arith.constant 1.000000e+00 : f32
    %568 = vector.broadcast %cst_83 : f32 to vector<2x192xf32>
    %569 = arith.addf %568, %567 : vector<2x192xf32>
    %570 = arith.divf %568, %569 : vector<2x192xf32>
    %571 = vector.extract_strided_slice %570 {offsets = [0, 0], sizes = [2, 64], strides = [1, 1]} : vector<2x192xf32> to vector<2x64xf32>
    %572 = vector.extract_strided_slice %570 {offsets = [0, 64], sizes = [2, 64], strides = [1, 1]} : vector<2x192xf32> to vector<2x64xf32>
    %573 = vector.extract_strided_slice %570 {offsets = [0, 128], sizes = [2, 64], strides = [1, 1]} : vector<2x192xf32> to vector<2x64xf32>
    %574 = vector.extract_strided_slice %564 {offsets = [0, 192], sizes = [2, 64], strides = [1, 1]} : vector<2x256xf32> to vector<2x64xf32>
    %575 = math.tanh %574 : vector<2x64xf32>
    %576 = arith.mulf %572, %540 : vector<2x64xf32>
    %577 = arith.mulf %571, %575 : vector<2x64xf32>
    %578 = arith.addf %576, %577 : vector<2x64xf32>
    %579 = math.tanh %578 : vector<2x64xf32>
    %580 = arith.mulf %573, %579 : vector<2x64xf32>
    %581 = vector.extract_strided_slice %329 {offsets = [2, 0], sizes = [2, 256], strides = [1, 1]} : vector<16x256xf32> to vector<2x256xf32>
    %cst_84 = arith.constant dense<0.000000e+00> : vector<2x256xf32>
    %582 = tpu.matmul %561, %324, %cst_84 {dimension_numbers = #tpu.dot_dimension_numbers<[1], [0], [0], [1], [0, 0, 1, 1], [], []>} : vector<2x64xf32>, vector<64x256xf32>, vector<2x256xf32> -> vector<2x256xf32>
    %583 = arith.addf %582, %581 : vector<2x256xf32>
    %584 = vector.extract_strided_slice %583 {offsets = [0, 0], sizes = [2, 192], strides = [1, 1]} : vector<2x256xf32> to vector<2x192xf32>
    %585 = arith.negf %584 : vector<2x192xf32>
    %586 = math.exp %585 : vector<2x192xf32>
    %cst_85 = arith.constant 1.000000e+00 : f32
    %587 = vector.broadcast %cst_85 : f32 to vector<2x192xf32>
    %588 = arith.addf %587, %586 : vector<2x192xf32>
    %589 = arith.divf %587, %588 : vector<2x192xf32>
    %590 = vector.extract_strided_slice %589 {offsets = [0, 0], sizes = [2, 64], strides = [1, 1]} : vector<2x192xf32> to vector<2x64xf32>
    %591 = vector.extract_strided_slice %589 {offsets = [0, 64], sizes = [2, 64], strides = [1, 1]} : vector<2x192xf32> to vector<2x64xf32>
    %592 = vector.extract_strided_slice %589 {offsets = [0, 128], sizes = [2, 64], strides = [1, 1]} : vector<2x192xf32> to vector<2x64xf32>
    %593 = vector.extract_strided_slice %583 {offsets = [0, 192], sizes = [2, 64], strides = [1, 1]} : vector<2x256xf32> to vector<2x64xf32>
    %594 = math.tanh %593 : vector<2x64xf32>
    %595 = arith.mulf %591, %559 : vector<2x64xf32>
    %596 = arith.mulf %590, %594 : vector<2x64xf32>
    %597 = arith.addf %595, %596 : vector<2x64xf32>
    %598 = math.tanh %597 : vector<2x64xf32>
    %599 = arith.mulf %592, %598 : vector<2x64xf32>
    %600 = vector.extract_strided_slice %328 {offsets = [14, 0], sizes = [2, 256], strides = [1, 1]} : vector<16x256xf32> to vector<2x256xf32>
    %cst_86 = arith.constant dense<0.000000e+00> : vector<2x256xf32>
    %601 = tpu.matmul %580, %323, %cst_86 {dimension_numbers = #tpu.dot_dimension_numbers<[1], [0], [0], [1], [0, 0, 1, 1], [], []>} : vector<2x64xf32>, vector<64x256xf32>, vector<2x256xf32> -> vector<2x256xf32>
    %602 = arith.addf %601, %600 : vector<2x256xf32>
    %603 = vector.extract_strided_slice %602 {offsets = [0, 0], sizes = [2, 192], strides = [1, 1]} : vector<2x256xf32> to vector<2x192xf32>
    %604 = arith.negf %603 : vector<2x192xf32>
    %605 = math.exp %604 : vector<2x192xf32>
    %cst_87 = arith.constant 1.000000e+00 : f32
    %606 = vector.broadcast %cst_87 : f32 to vector<2x192xf32>
    %607 = arith.addf %606, %605 : vector<2x192xf32>
    %608 = arith.divf %606, %607 : vector<2x192xf32>
    %609 = vector.extract_strided_slice %608 {offsets = [0, 0], sizes = [2, 64], strides = [1, 1]} : vector<2x192xf32> to vector<2x64xf32>
    %610 = vector.extract_strided_slice %608 {offsets = [0, 64], sizes = [2, 64], strides = [1, 1]} : vector<2x192xf32> to vector<2x64xf32>
    %611 = vector.extract_strided_slice %608 {offsets = [0, 128], sizes = [2, 64], strides = [1, 1]} : vector<2x192xf32> to vector<2x64xf32>
    %612 = vector.extract_strided_slice %602 {offsets = [0, 192], sizes = [2, 64], strides = [1, 1]} : vector<2x256xf32> to vector<2x64xf32>
    %613 = math.tanh %612 : vector<2x64xf32>
    %614 = arith.mulf %610, %578 : vector<2x64xf32>
    %615 = arith.mulf %609, %613 : vector<2x64xf32>
    %616 = arith.addf %614, %615 : vector<2x64xf32>
    %617 = math.tanh %616 : vector<2x64xf32>
    %618 = arith.mulf %611, %617 : vector<2x64xf32>
    %619 = vector.extract_strided_slice %329 {offsets = [0, 0], sizes = [2, 256], strides = [1, 1]} : vector<16x256xf32> to vector<2x256xf32>
    %cst_88 = arith.constant dense<0.000000e+00> : vector<2x256xf32>
    %620 = tpu.matmul %599, %324, %cst_88 {dimension_numbers = #tpu.dot_dimension_numbers<[1], [0], [0], [1], [0, 0, 1, 1], [], []>} : vector<2x64xf32>, vector<64x256xf32>, vector<2x256xf32> -> vector<2x256xf32>
    %621 = arith.addf %620, %619 : vector<2x256xf32>
    %622 = vector.extract_strided_slice %621 {offsets = [0, 0], sizes = [2, 192], strides = [1, 1]} : vector<2x256xf32> to vector<2x192xf32>
    %623 = arith.negf %622 : vector<2x192xf32>
    %624 = math.exp %623 : vector<2x192xf32>
    %cst_89 = arith.constant 1.000000e+00 : f32
    %625 = vector.broadcast %cst_89 : f32 to vector<2x192xf32>
    %626 = arith.addf %625, %624 : vector<2x192xf32>
    %627 = arith.divf %625, %626 : vector<2x192xf32>
    %628 = vector.extract_strided_slice %627 {offsets = [0, 0], sizes = [2, 64], strides = [1, 1]} : vector<2x192xf32> to vector<2x64xf32>
    %629 = vector.extract_strided_slice %627 {offsets = [0, 64], sizes = [2, 64], strides = [1, 1]} : vector<2x192xf32> to vector<2x64xf32>
    %630 = vector.extract_strided_slice %627 {offsets = [0, 128], sizes = [2, 64], strides = [1, 1]} : vector<2x192xf32> to vector<2x64xf32>
    %631 = vector.extract_strided_slice %621 {offsets = [0, 192], sizes = [2, 64], strides = [1, 1]} : vector<2x256xf32> to vector<2x64xf32>
    %632 = math.tanh %631 : vector<2x64xf32>
    %633 = arith.mulf %629, %597 : vector<2x64xf32>
    %634 = arith.mulf %628, %632 : vector<2x64xf32>
    %635 = arith.addf %633, %634 : vector<2x64xf32>
    %636 = math.tanh %635 : vector<2x64xf32>
    %637 = arith.mulf %630, %636 : vector<2x64xf32>
    %638 = tpu.concatenate %352, %390, %428, %466, %504, %542, %580, %618 in 0 : vector<2x64xf32>, vector<2x64xf32>, vector<2x64xf32>, vector<2x64xf32>, vector<2x64xf32>, vector<2x64xf32>, vector<2x64xf32>, vector<2x64xf32> -> vector<16x64xf32>
    %639 = tpu.concatenate %637, %599, %561, %523, %485, %447, %409, %371 in 0 : vector<2x64xf32>, vector<2x64xf32>, vector<2x64xf32>, vector<2x64xf32>, vector<2x64xf32>, vector<2x64xf32>, vector<2x64xf32>, vector<2x64xf32> -> vector<16x64xf32>
    %640 = tpu.concatenate %638, %639 in 1 : vector<16x64xf32>, vector<16x64xf32> -> vector<16x128xf32>
    %c0_90 = arith.constant 0 : index
    %c0_91 = arith.constant 0 : index
    %641 = vector.load %arg9[%c0_90, %c0_91] : memref<128x512xf32, #tpu.memory_space<vmem>>, vector<128x512xf32>
    %c0_92 = arith.constant 0 : index
    %c0_93 = arith.constant 0 : index
    %642 = vector.load %arg10[%c0_92, %c0_93] : memref<1x512xf32, #tpu.memory_space<vmem>>, vector<1x512xf32>
    %c0_94 = arith.constant 0 : index
    %c0_95 = arith.constant 0 : index
    %643 = vector.load %arg11[%c0_94, %c0_95] : memref<64x256xf32, #tpu.memory_space<vmem>>, vector<64x256xf32>
    %c0_96 = arith.constant 0 : index
    %c0_97 = arith.constant 0 : index
    %644 = vector.load %arg12[%c0_96, %c0_97] : memref<64x256xf32, #tpu.memory_space<vmem>>, vector<64x256xf32>
    %cst_98 = arith.constant dense<0.000000e+00> : vector<16x512xf32>
    %645 = tpu.matmul %640, %641, %cst_98 {dimension_numbers = #tpu.dot_dimension_numbers<[1], [0], [0], [1], [0, 0, 1, 1], [], []>} : vector<16x128xf32>, vector<128x512xf32>, vector<16x512xf32> -> vector<16x512xf32>
    %646 = vector.broadcast %642 : vector<1x512xf32> to vector<16x512xf32>
    %647 = arith.addf %645, %646 : vector<16x512xf32>
    %648 = vector.extract_strided_slice %647 {offsets = [0, 0], sizes = [16, 256], strides = [1, 1]} : vector<16x512xf32> to vector<16x256xf32>
    %649 = vector.extract_strided_slice %647 {offsets = [0, 256], sizes = [16, 256], strides = [1, 1]} : vector<16x512xf32> to vector<16x256xf32>
    %cst_99 = arith.constant 0.000000e+00 : f32
    %650 = vector.broadcast %cst_99 : f32 to vector<2x64xf32>
    %cst_100 = arith.constant 0.000000e+00 : f32
    %651 = vector.broadcast %cst_100 : f32 to vector<2x64xf32>
    %cst_101 = arith.constant 0.000000e+00 : f32
    %652 = vector.broadcast %cst_101 : f32 to vector<2x64xf32>
    %cst_102 = arith.constant 0.000000e+00 : f32
    %653 = vector.broadcast %cst_102 : f32 to vector<2x64xf32>
    %654 = vector.extract_strided_slice %648 {offsets = [0, 0], sizes = [2, 256], strides = [1, 1]} : vector<16x256xf32> to vector<2x256xf32>
    %cst_103 = arith.constant dense<0.000000e+00> : vector<2x256xf32>
    %655 = tpu.matmul %650, %643, %cst_103 {dimension_numbers = #tpu.dot_dimension_numbers<[1], [0], [0], [1], [0, 0, 1, 1], [], []>} : vector<2x64xf32>, vector<64x256xf32>, vector<2x256xf32> -> vector<2x256xf32>
    %656 = arith.addf %655, %654 : vector<2x256xf32>
    %657 = vector.extract_strided_slice %656 {offsets = [0, 0], sizes = [2, 192], strides = [1, 1]} : vector<2x256xf32> to vector<2x192xf32>
    %658 = arith.negf %657 : vector<2x192xf32>
    %659 = math.exp %658 : vector<2x192xf32>
    %cst_104 = arith.constant 1.000000e+00 : f32
    %660 = vector.broadcast %cst_104 : f32 to vector<2x192xf32>
    %661 = arith.addf %660, %659 : vector<2x192xf32>
    %662 = arith.divf %660, %661 : vector<2x192xf32>
    %663 = vector.extract_strided_slice %662 {offsets = [0, 0], sizes = [2, 64], strides = [1, 1]} : vector<2x192xf32> to vector<2x64xf32>
    %664 = vector.extract_strided_slice %662 {offsets = [0, 64], sizes = [2, 64], strides = [1, 1]} : vector<2x192xf32> to vector<2x64xf32>
    %665 = vector.extract_strided_slice %662 {offsets = [0, 128], sizes = [2, 64], strides = [1, 1]} : vector<2x192xf32> to vector<2x64xf32>
    %666 = vector.extract_strided_slice %656 {offsets = [0, 192], sizes = [2, 64], strides = [1, 1]} : vector<2x256xf32> to vector<2x64xf32>
    %667 = math.tanh %666 : vector<2x64xf32>
    %668 = arith.mulf %664, %651 : vector<2x64xf32>
    %669 = arith.mulf %663, %667 : vector<2x64xf32>
    %670 = arith.addf %668, %669 : vector<2x64xf32>
    %671 = math.tanh %670 : vector<2x64xf32>
    %672 = arith.mulf %665, %671 : vector<2x64xf32>
    %673 = vector.extract_strided_slice %649 {offsets = [14, 0], sizes = [2, 256], strides = [1, 1]} : vector<16x256xf32> to vector<2x256xf32>
    %cst_105 = arith.constant dense<0.000000e+00> : vector<2x256xf32>
    %674 = tpu.matmul %652, %644, %cst_105 {dimension_numbers = #tpu.dot_dimension_numbers<[1], [0], [0], [1], [0, 0, 1, 1], [], []>} : vector<2x64xf32>, vector<64x256xf32>, vector<2x256xf32> -> vector<2x256xf32>
    %675 = arith.addf %674, %673 : vector<2x256xf32>
    %676 = vector.extract_strided_slice %675 {offsets = [0, 0], sizes = [2, 192], strides = [1, 1]} : vector<2x256xf32> to vector<2x192xf32>
    %677 = arith.negf %676 : vector<2x192xf32>
    %678 = math.exp %677 : vector<2x192xf32>
    %cst_106 = arith.constant 1.000000e+00 : f32
    %679 = vector.broadcast %cst_106 : f32 to vector<2x192xf32>
    %680 = arith.addf %679, %678 : vector<2x192xf32>
    %681 = arith.divf %679, %680 : vector<2x192xf32>
    %682 = vector.extract_strided_slice %681 {offsets = [0, 0], sizes = [2, 64], strides = [1, 1]} : vector<2x192xf32> to vector<2x64xf32>
    %683 = vector.extract_strided_slice %681 {offsets = [0, 64], sizes = [2, 64], strides = [1, 1]} : vector<2x192xf32> to vector<2x64xf32>
    %684 = vector.extract_strided_slice %681 {offsets = [0, 128], sizes = [2, 64], strides = [1, 1]} : vector<2x192xf32> to vector<2x64xf32>
    %685 = vector.extract_strided_slice %675 {offsets = [0, 192], sizes = [2, 64], strides = [1, 1]} : vector<2x256xf32> to vector<2x64xf32>
    %686 = math.tanh %685 : vector<2x64xf32>
    %687 = arith.mulf %683, %653 : vector<2x64xf32>
    %688 = arith.mulf %682, %686 : vector<2x64xf32>
    %689 = arith.addf %687, %688 : vector<2x64xf32>
    %690 = math.tanh %689 : vector<2x64xf32>
    %691 = arith.mulf %684, %690 : vector<2x64xf32>
    %692 = vector.extract_strided_slice %648 {offsets = [2, 0], sizes = [2, 256], strides = [1, 1]} : vector<16x256xf32> to vector<2x256xf32>
    %cst_107 = arith.constant dense<0.000000e+00> : vector<2x256xf32>
    %693 = tpu.matmul %672, %643, %cst_107 {dimension_numbers = #tpu.dot_dimension_numbers<[1], [0], [0], [1], [0, 0, 1, 1], [], []>} : vector<2x64xf32>, vector<64x256xf32>, vector<2x256xf32> -> vector<2x256xf32>
    %694 = arith.addf %693, %692 : vector<2x256xf32>
    %695 = vector.extract_strided_slice %694 {offsets = [0, 0], sizes = [2, 192], strides = [1, 1]} : vector<2x256xf32> to vector<2x192xf32>
    %696 = arith.negf %695 : vector<2x192xf32>
    %697 = math.exp %696 : vector<2x192xf32>
    %cst_108 = arith.constant 1.000000e+00 : f32
    %698 = vector.broadcast %cst_108 : f32 to vector<2x192xf32>
    %699 = arith.addf %698, %697 : vector<2x192xf32>
    %700 = arith.divf %698, %699 : vector<2x192xf32>
    %701 = vector.extract_strided_slice %700 {offsets = [0, 0], sizes = [2, 64], strides = [1, 1]} : vector<2x192xf32> to vector<2x64xf32>
    %702 = vector.extract_strided_slice %700 {offsets = [0, 64], sizes = [2, 64], strides = [1, 1]} : vector<2x192xf32> to vector<2x64xf32>
    %703 = vector.extract_strided_slice %700 {offsets = [0, 128], sizes = [2, 64], strides = [1, 1]} : vector<2x192xf32> to vector<2x64xf32>
    %704 = vector.extract_strided_slice %694 {offsets = [0, 192], sizes = [2, 64], strides = [1, 1]} : vector<2x256xf32> to vector<2x64xf32>
    %705 = math.tanh %704 : vector<2x64xf32>
    %706 = arith.mulf %702, %670 : vector<2x64xf32>
    %707 = arith.mulf %701, %705 : vector<2x64xf32>
    %708 = arith.addf %706, %707 : vector<2x64xf32>
    %709 = math.tanh %708 : vector<2x64xf32>
    %710 = arith.mulf %703, %709 : vector<2x64xf32>
    %711 = vector.extract_strided_slice %649 {offsets = [12, 0], sizes = [2, 256], strides = [1, 1]} : vector<16x256xf32> to vector<2x256xf32>
    %cst_109 = arith.constant dense<0.000000e+00> : vector<2x256xf32>
    %712 = tpu.matmul %691, %644, %cst_109 {dimension_numbers = #tpu.dot_dimension_numbers<[1], [0], [0], [1], [0, 0, 1, 1], [], []>} : vector<2x64xf32>, vector<64x256xf32>, vector<2x256xf32> -> vector<2x256xf32>
    %713 = arith.addf %712, %711 : vector<2x256xf32>
    %714 = vector.extract_strided_slice %713 {offsets = [0, 0], sizes = [2, 192], strides = [1, 1]} : vector<2x256xf32> to vector<2x192xf32>
    %715 = arith.negf %714 : vector<2x192xf32>
    %716 = math.exp %715 : vector<2x192xf32>
    %cst_110 = arith.constant 1.000000e+00 : f32
    %717 = vector.broadcast %cst_110 : f32 to vector<2x192xf32>
    %718 = arith.addf %717, %716 : vector<2x192xf32>
    %719 = arith.divf %717, %718 : vector<2x192xf32>
    %720 = vector.extract_strided_slice %719 {offsets = [0, 0], sizes = [2, 64], strides = [1, 1]} : vector<2x192xf32> to vector<2x64xf32>
    %721 = vector.extract_strided_slice %719 {offsets = [0, 64], sizes = [2, 64], strides = [1, 1]} : vector<2x192xf32> to vector<2x64xf32>
    %722 = vector.extract_strided_slice %719 {offsets = [0, 128], sizes = [2, 64], strides = [1, 1]} : vector<2x192xf32> to vector<2x64xf32>
    %723 = vector.extract_strided_slice %713 {offsets = [0, 192], sizes = [2, 64], strides = [1, 1]} : vector<2x256xf32> to vector<2x64xf32>
    %724 = math.tanh %723 : vector<2x64xf32>
    %725 = arith.mulf %721, %689 : vector<2x64xf32>
    %726 = arith.mulf %720, %724 : vector<2x64xf32>
    %727 = arith.addf %725, %726 : vector<2x64xf32>
    %728 = math.tanh %727 : vector<2x64xf32>
    %729 = arith.mulf %722, %728 : vector<2x64xf32>
    %730 = vector.extract_strided_slice %648 {offsets = [4, 0], sizes = [2, 256], strides = [1, 1]} : vector<16x256xf32> to vector<2x256xf32>
    %cst_111 = arith.constant dense<0.000000e+00> : vector<2x256xf32>
    %731 = tpu.matmul %710, %643, %cst_111 {dimension_numbers = #tpu.dot_dimension_numbers<[1], [0], [0], [1], [0, 0, 1, 1], [], []>} : vector<2x64xf32>, vector<64x256xf32>, vector<2x256xf32> -> vector<2x256xf32>
    %732 = arith.addf %731, %730 : vector<2x256xf32>
    %733 = vector.extract_strided_slice %732 {offsets = [0, 0], sizes = [2, 192], strides = [1, 1]} : vector<2x256xf32> to vector<2x192xf32>
    %734 = arith.negf %733 : vector<2x192xf32>
    %735 = math.exp %734 : vector<2x192xf32>
    %cst_112 = arith.constant 1.000000e+00 : f32
    %736 = vector.broadcast %cst_112 : f32 to vector<2x192xf32>
    %737 = arith.addf %736, %735 : vector<2x192xf32>
    %738 = arith.divf %736, %737 : vector<2x192xf32>
    %739 = vector.extract_strided_slice %738 {offsets = [0, 0], sizes = [2, 64], strides = [1, 1]} : vector<2x192xf32> to vector<2x64xf32>
    %740 = vector.extract_strided_slice %738 {offsets = [0, 64], sizes = [2, 64], strides = [1, 1]} : vector<2x192xf32> to vector<2x64xf32>
    %741 = vector.extract_strided_slice %738 {offsets = [0, 128], sizes = [2, 64], strides = [1, 1]} : vector<2x192xf32> to vector<2x64xf32>
    %742 = vector.extract_strided_slice %732 {offsets = [0, 192], sizes = [2, 64], strides = [1, 1]} : vector<2x256xf32> to vector<2x64xf32>
    %743 = math.tanh %742 : vector<2x64xf32>
    %744 = arith.mulf %740, %708 : vector<2x64xf32>
    %745 = arith.mulf %739, %743 : vector<2x64xf32>
    %746 = arith.addf %744, %745 : vector<2x64xf32>
    %747 = math.tanh %746 : vector<2x64xf32>
    %748 = arith.mulf %741, %747 : vector<2x64xf32>
    %749 = vector.extract_strided_slice %649 {offsets = [10, 0], sizes = [2, 256], strides = [1, 1]} : vector<16x256xf32> to vector<2x256xf32>
    %cst_113 = arith.constant dense<0.000000e+00> : vector<2x256xf32>
    %750 = tpu.matmul %729, %644, %cst_113 {dimension_numbers = #tpu.dot_dimension_numbers<[1], [0], [0], [1], [0, 0, 1, 1], [], []>} : vector<2x64xf32>, vector<64x256xf32>, vector<2x256xf32> -> vector<2x256xf32>
    %751 = arith.addf %750, %749 : vector<2x256xf32>
    %752 = vector.extract_strided_slice %751 {offsets = [0, 0], sizes = [2, 192], strides = [1, 1]} : vector<2x256xf32> to vector<2x192xf32>
    %753 = arith.negf %752 : vector<2x192xf32>
    %754 = math.exp %753 : vector<2x192xf32>
    %cst_114 = arith.constant 1.000000e+00 : f32
    %755 = vector.broadcast %cst_114 : f32 to vector<2x192xf32>
    %756 = arith.addf %755, %754 : vector<2x192xf32>
    %757 = arith.divf %755, %756 : vector<2x192xf32>
    %758 = vector.extract_strided_slice %757 {offsets = [0, 0], sizes = [2, 64], strides = [1, 1]} : vector<2x192xf32> to vector<2x64xf32>
    %759 = vector.extract_strided_slice %757 {offsets = [0, 64], sizes = [2, 64], strides = [1, 1]} : vector<2x192xf32> to vector<2x64xf32>
    %760 = vector.extract_strided_slice %757 {offsets = [0, 128], sizes = [2, 64], strides = [1, 1]} : vector<2x192xf32> to vector<2x64xf32>
    %761 = vector.extract_strided_slice %751 {offsets = [0, 192], sizes = [2, 64], strides = [1, 1]} : vector<2x256xf32> to vector<2x64xf32>
    %762 = math.tanh %761 : vector<2x64xf32>
    %763 = arith.mulf %759, %727 : vector<2x64xf32>
    %764 = arith.mulf %758, %762 : vector<2x64xf32>
    %765 = arith.addf %763, %764 : vector<2x64xf32>
    %766 = math.tanh %765 : vector<2x64xf32>
    %767 = arith.mulf %760, %766 : vector<2x64xf32>
    %768 = vector.extract_strided_slice %648 {offsets = [6, 0], sizes = [2, 256], strides = [1, 1]} : vector<16x256xf32> to vector<2x256xf32>
    %cst_115 = arith.constant dense<0.000000e+00> : vector<2x256xf32>
    %769 = tpu.matmul %748, %643, %cst_115 {dimension_numbers = #tpu.dot_dimension_numbers<[1], [0], [0], [1], [0, 0, 1, 1], [], []>} : vector<2x64xf32>, vector<64x256xf32>, vector<2x256xf32> -> vector<2x256xf32>
    %770 = arith.addf %769, %768 : vector<2x256xf32>
    %771 = vector.extract_strided_slice %770 {offsets = [0, 0], sizes = [2, 192], strides = [1, 1]} : vector<2x256xf32> to vector<2x192xf32>
    %772 = arith.negf %771 : vector<2x192xf32>
    %773 = math.exp %772 : vector<2x192xf32>
    %cst_116 = arith.constant 1.000000e+00 : f32
    %774 = vector.broadcast %cst_116 : f32 to vector<2x192xf32>
    %775 = arith.addf %774, %773 : vector<2x192xf32>
    %776 = arith.divf %774, %775 : vector<2x192xf32>
    %777 = vector.extract_strided_slice %776 {offsets = [0, 0], sizes = [2, 64], strides = [1, 1]} : vector<2x192xf32> to vector<2x64xf32>
    %778 = vector.extract_strided_slice %776 {offsets = [0, 64], sizes = [2, 64], strides = [1, 1]} : vector<2x192xf32> to vector<2x64xf32>
    %779 = vector.extract_strided_slice %776 {offsets = [0, 128], sizes = [2, 64], strides = [1, 1]} : vector<2x192xf32> to vector<2x64xf32>
    %780 = vector.extract_strided_slice %770 {offsets = [0, 192], sizes = [2, 64], strides = [1, 1]} : vector<2x256xf32> to vector<2x64xf32>
    %781 = math.tanh %780 : vector<2x64xf32>
    %782 = arith.mulf %778, %746 : vector<2x64xf32>
    %783 = arith.mulf %777, %781 : vector<2x64xf32>
    %784 = arith.addf %782, %783 : vector<2x64xf32>
    %785 = math.tanh %784 : vector<2x64xf32>
    %786 = arith.mulf %779, %785 : vector<2x64xf32>
    %787 = vector.extract_strided_slice %649 {offsets = [8, 0], sizes = [2, 256], strides = [1, 1]} : vector<16x256xf32> to vector<2x256xf32>
    %cst_117 = arith.constant dense<0.000000e+00> : vector<2x256xf32>
    %788 = tpu.matmul %767, %644, %cst_117 {dimension_numbers = #tpu.dot_dimension_numbers<[1], [0], [0], [1], [0, 0, 1, 1], [], []>} : vector<2x64xf32>, vector<64x256xf32>, vector<2x256xf32> -> vector<2x256xf32>
    %789 = arith.addf %788, %787 : vector<2x256xf32>
    %790 = vector.extract_strided_slice %789 {offsets = [0, 0], sizes = [2, 192], strides = [1, 1]} : vector<2x256xf32> to vector<2x192xf32>
    %791 = arith.negf %790 : vector<2x192xf32>
    %792 = math.exp %791 : vector<2x192xf32>
    %cst_118 = arith.constant 1.000000e+00 : f32
    %793 = vector.broadcast %cst_118 : f32 to vector<2x192xf32>
    %794 = arith.addf %793, %792 : vector<2x192xf32>
    %795 = arith.divf %793, %794 : vector<2x192xf32>
    %796 = vector.extract_strided_slice %795 {offsets = [0, 0], sizes = [2, 64], strides = [1, 1]} : vector<2x192xf32> to vector<2x64xf32>
    %797 = vector.extract_strided_slice %795 {offsets = [0, 64], sizes = [2, 64], strides = [1, 1]} : vector<2x192xf32> to vector<2x64xf32>
    %798 = vector.extract_strided_slice %795 {offsets = [0, 128], sizes = [2, 64], strides = [1, 1]} : vector<2x192xf32> to vector<2x64xf32>
    %799 = vector.extract_strided_slice %789 {offsets = [0, 192], sizes = [2, 64], strides = [1, 1]} : vector<2x256xf32> to vector<2x64xf32>
    %800 = math.tanh %799 : vector<2x64xf32>
    %801 = arith.mulf %797, %765 : vector<2x64xf32>
    %802 = arith.mulf %796, %800 : vector<2x64xf32>
    %803 = arith.addf %801, %802 : vector<2x64xf32>
    %804 = math.tanh %803 : vector<2x64xf32>
    %805 = arith.mulf %798, %804 : vector<2x64xf32>
    %806 = vector.extract_strided_slice %648 {offsets = [8, 0], sizes = [2, 256], strides = [1, 1]} : vector<16x256xf32> to vector<2x256xf32>
    %cst_119 = arith.constant dense<0.000000e+00> : vector<2x256xf32>
    %807 = tpu.matmul %786, %643, %cst_119 {dimension_numbers = #tpu.dot_dimension_numbers<[1], [0], [0], [1], [0, 0, 1, 1], [], []>} : vector<2x64xf32>, vector<64x256xf32>, vector<2x256xf32> -> vector<2x256xf32>
    %808 = arith.addf %807, %806 : vector<2x256xf32>
    %809 = vector.extract_strided_slice %808 {offsets = [0, 0], sizes = [2, 192], strides = [1, 1]} : vector<2x256xf32> to vector<2x192xf32>
    %810 = arith.negf %809 : vector<2x192xf32>
    %811 = math.exp %810 : vector<2x192xf32>
    %cst_120 = arith.constant 1.000000e+00 : f32
    %812 = vector.broadcast %cst_120 : f32 to vector<2x192xf32>
    %813 = arith.addf %812, %811 : vector<2x192xf32>
    %814 = arith.divf %812, %813 : vector<2x192xf32>
    %815 = vector.extract_strided_slice %814 {offsets = [0, 0], sizes = [2, 64], strides = [1, 1]} : vector<2x192xf32> to vector<2x64xf32>
    %816 = vector.extract_strided_slice %814 {offsets = [0, 64], sizes = [2, 64], strides = [1, 1]} : vector<2x192xf32> to vector<2x64xf32>
    %817 = vector.extract_strided_slice %814 {offsets = [0, 128], sizes = [2, 64], strides = [1, 1]} : vector<2x192xf32> to vector<2x64xf32>
    %818 = vector.extract_strided_slice %808 {offsets = [0, 192], sizes = [2, 64], strides = [1, 1]} : vector<2x256xf32> to vector<2x64xf32>
    %819 = math.tanh %818 : vector<2x64xf32>
    %820 = arith.mulf %816, %784 : vector<2x64xf32>
    %821 = arith.mulf %815, %819 : vector<2x64xf32>
    %822 = arith.addf %820, %821 : vector<2x64xf32>
    %823 = math.tanh %822 : vector<2x64xf32>
    %824 = arith.mulf %817, %823 : vector<2x64xf32>
    %825 = vector.extract_strided_slice %649 {offsets = [6, 0], sizes = [2, 256], strides = [1, 1]} : vector<16x256xf32> to vector<2x256xf32>
    %cst_121 = arith.constant dense<0.000000e+00> : vector<2x256xf32>
    %826 = tpu.matmul %805, %644, %cst_121 {dimension_numbers = #tpu.dot_dimension_numbers<[1], [0], [0], [1], [0, 0, 1, 1], [], []>} : vector<2x64xf32>, vector<64x256xf32>, vector<2x256xf32> -> vector<2x256xf32>
    %827 = arith.addf %826, %825 : vector<2x256xf32>
    %828 = vector.extract_strided_slice %827 {offsets = [0, 0], sizes = [2, 192], strides = [1, 1]} : vector<2x256xf32> to vector<2x192xf32>
    %829 = arith.negf %828 : vector<2x192xf32>
    %830 = math.exp %829 : vector<2x192xf32>
    %cst_122 = arith.constant 1.000000e+00 : f32
    %831 = vector.broadcast %cst_122 : f32 to vector<2x192xf32>
    %832 = arith.addf %831, %830 : vector<2x192xf32>
    %833 = arith.divf %831, %832 : vector<2x192xf32>
    %834 = vector.extract_strided_slice %833 {offsets = [0, 0], sizes = [2, 64], strides = [1, 1]} : vector<2x192xf32> to vector<2x64xf32>
    %835 = vector.extract_strided_slice %833 {offsets = [0, 64], sizes = [2, 64], strides = [1, 1]} : vector<2x192xf32> to vector<2x64xf32>
    %836 = vector.extract_strided_slice %833 {offsets = [0, 128], sizes = [2, 64], strides = [1, 1]} : vector<2x192xf32> to vector<2x64xf32>
    %837 = vector.extract_strided_slice %827 {offsets = [0, 192], sizes = [2, 64], strides = [1, 1]} : vector<2x256xf32> to vector<2x64xf32>
    %838 = math.tanh %837 : vector<2x64xf32>
    %839 = arith.mulf %835, %803 : vector<2x64xf32>
    %840 = arith.mulf %834, %838 : vector<2x64xf32>
    %841 = arith.addf %839, %840 : vector<2x64xf32>
    %842 = math.tanh %841 : vector<2x64xf32>
    %843 = arith.mulf %836, %842 : vector<2x64xf32>
    %844 = vector.extract_strided_slice %648 {offsets = [10, 0], sizes = [2, 256], strides = [1, 1]} : vector<16x256xf32> to vector<2x256xf32>
    %cst_123 = arith.constant dense<0.000000e+00> : vector<2x256xf32>
    %845 = tpu.matmul %824, %643, %cst_123 {dimension_numbers = #tpu.dot_dimension_numbers<[1], [0], [0], [1], [0, 0, 1, 1], [], []>} : vector<2x64xf32>, vector<64x256xf32>, vector<2x256xf32> -> vector<2x256xf32>
    %846 = arith.addf %845, %844 : vector<2x256xf32>
    %847 = vector.extract_strided_slice %846 {offsets = [0, 0], sizes = [2, 192], strides = [1, 1]} : vector<2x256xf32> to vector<2x192xf32>
    %848 = arith.negf %847 : vector<2x192xf32>
    %849 = math.exp %848 : vector<2x192xf32>
    %cst_124 = arith.constant 1.000000e+00 : f32
    %850 = vector.broadcast %cst_124 : f32 to vector<2x192xf32>
    %851 = arith.addf %850, %849 : vector<2x192xf32>
    %852 = arith.divf %850, %851 : vector<2x192xf32>
    %853 = vector.extract_strided_slice %852 {offsets = [0, 0], sizes = [2, 64], strides = [1, 1]} : vector<2x192xf32> to vector<2x64xf32>
    %854 = vector.extract_strided_slice %852 {offsets = [0, 64], sizes = [2, 64], strides = [1, 1]} : vector<2x192xf32> to vector<2x64xf32>
    %855 = vector.extract_strided_slice %852 {offsets = [0, 128], sizes = [2, 64], strides = [1, 1]} : vector<2x192xf32> to vector<2x64xf32>
    %856 = vector.extract_strided_slice %846 {offsets = [0, 192], sizes = [2, 64], strides = [1, 1]} : vector<2x256xf32> to vector<2x64xf32>
    %857 = math.tanh %856 : vector<2x64xf32>
    %858 = arith.mulf %854, %822 : vector<2x64xf32>
    %859 = arith.mulf %853, %857 : vector<2x64xf32>
    %860 = arith.addf %858, %859 : vector<2x64xf32>
    %861 = math.tanh %860 : vector<2x64xf32>
    %862 = arith.mulf %855, %861 : vector<2x64xf32>
    %863 = vector.extract_strided_slice %649 {offsets = [4, 0], sizes = [2, 256], strides = [1, 1]} : vector<16x256xf32> to vector<2x256xf32>
    %cst_125 = arith.constant dense<0.000000e+00> : vector<2x256xf32>
    %864 = tpu.matmul %843, %644, %cst_125 {dimension_numbers = #tpu.dot_dimension_numbers<[1], [0], [0], [1], [0, 0, 1, 1], [], []>} : vector<2x64xf32>, vector<64x256xf32>, vector<2x256xf32> -> vector<2x256xf32>
    %865 = arith.addf %864, %863 : vector<2x256xf32>
    %866 = vector.extract_strided_slice %865 {offsets = [0, 0], sizes = [2, 192], strides = [1, 1]} : vector<2x256xf32> to vector<2x192xf32>
    %867 = arith.negf %866 : vector<2x192xf32>
    %868 = math.exp %867 : vector<2x192xf32>
    %cst_126 = arith.constant 1.000000e+00 : f32
    %869 = vector.broadcast %cst_126 : f32 to vector<2x192xf32>
    %870 = arith.addf %869, %868 : vector<2x192xf32>
    %871 = arith.divf %869, %870 : vector<2x192xf32>
    %872 = vector.extract_strided_slice %871 {offsets = [0, 0], sizes = [2, 64], strides = [1, 1]} : vector<2x192xf32> to vector<2x64xf32>
    %873 = vector.extract_strided_slice %871 {offsets = [0, 64], sizes = [2, 64], strides = [1, 1]} : vector<2x192xf32> to vector<2x64xf32>
    %874 = vector.extract_strided_slice %871 {offsets = [0, 128], sizes = [2, 64], strides = [1, 1]} : vector<2x192xf32> to vector<2x64xf32>
    %875 = vector.extract_strided_slice %865 {offsets = [0, 192], sizes = [2, 64], strides = [1, 1]} : vector<2x256xf32> to vector<2x64xf32>
    %876 = math.tanh %875 : vector<2x64xf32>
    %877 = arith.mulf %873, %841 : vector<2x64xf32>
    %878 = arith.mulf %872, %876 : vector<2x64xf32>
    %879 = arith.addf %877, %878 : vector<2x64xf32>
    %880 = math.tanh %879 : vector<2x64xf32>
    %881 = arith.mulf %874, %880 : vector<2x64xf32>
    %882 = vector.extract_strided_slice %648 {offsets = [12, 0], sizes = [2, 256], strides = [1, 1]} : vector<16x256xf32> to vector<2x256xf32>
    %cst_127 = arith.constant dense<0.000000e+00> : vector<2x256xf32>
    %883 = tpu.matmul %862, %643, %cst_127 {dimension_numbers = #tpu.dot_dimension_numbers<[1], [0], [0], [1], [0, 0, 1, 1], [], []>} : vector<2x64xf32>, vector<64x256xf32>, vector<2x256xf32> -> vector<2x256xf32>
    %884 = arith.addf %883, %882 : vector<2x256xf32>
    %885 = vector.extract_strided_slice %884 {offsets = [0, 0], sizes = [2, 192], strides = [1, 1]} : vector<2x256xf32> to vector<2x192xf32>
    %886 = arith.negf %885 : vector<2x192xf32>
    %887 = math.exp %886 : vector<2x192xf32>
    %cst_128 = arith.constant 1.000000e+00 : f32
    %888 = vector.broadcast %cst_128 : f32 to vector<2x192xf32>
    %889 = arith.addf %888, %887 : vector<2x192xf32>
    %890 = arith.divf %888, %889 : vector<2x192xf32>
    %891 = vector.extract_strided_slice %890 {offsets = [0, 0], sizes = [2, 64], strides = [1, 1]} : vector<2x192xf32> to vector<2x64xf32>
    %892 = vector.extract_strided_slice %890 {offsets = [0, 64], sizes = [2, 64], strides = [1, 1]} : vector<2x192xf32> to vector<2x64xf32>
    %893 = vector.extract_strided_slice %890 {offsets = [0, 128], sizes = [2, 64], strides = [1, 1]} : vector<2x192xf32> to vector<2x64xf32>
    %894 = vector.extract_strided_slice %884 {offsets = [0, 192], sizes = [2, 64], strides = [1, 1]} : vector<2x256xf32> to vector<2x64xf32>
    %895 = math.tanh %894 : vector<2x64xf32>
    %896 = arith.mulf %892, %860 : vector<2x64xf32>
    %897 = arith.mulf %891, %895 : vector<2x64xf32>
    %898 = arith.addf %896, %897 : vector<2x64xf32>
    %899 = math.tanh %898 : vector<2x64xf32>
    %900 = arith.mulf %893, %899 : vector<2x64xf32>
    %901 = vector.extract_strided_slice %649 {offsets = [2, 0], sizes = [2, 256], strides = [1, 1]} : vector<16x256xf32> to vector<2x256xf32>
    %cst_129 = arith.constant dense<0.000000e+00> : vector<2x256xf32>
    %902 = tpu.matmul %881, %644, %cst_129 {dimension_numbers = #tpu.dot_dimension_numbers<[1], [0], [0], [1], [0, 0, 1, 1], [], []>} : vector<2x64xf32>, vector<64x256xf32>, vector<2x256xf32> -> vector<2x256xf32>
    %903 = arith.addf %902, %901 : vector<2x256xf32>
    %904 = vector.extract_strided_slice %903 {offsets = [0, 0], sizes = [2, 192], strides = [1, 1]} : vector<2x256xf32> to vector<2x192xf32>
    %905 = arith.negf %904 : vector<2x192xf32>
    %906 = math.exp %905 : vector<2x192xf32>
    %cst_130 = arith.constant 1.000000e+00 : f32
    %907 = vector.broadcast %cst_130 : f32 to vector<2x192xf32>
    %908 = arith.addf %907, %906 : vector<2x192xf32>
    %909 = arith.divf %907, %908 : vector<2x192xf32>
    %910 = vector.extract_strided_slice %909 {offsets = [0, 0], sizes = [2, 64], strides = [1, 1]} : vector<2x192xf32> to vector<2x64xf32>
    %911 = vector.extract_strided_slice %909 {offsets = [0, 64], sizes = [2, 64], strides = [1, 1]} : vector<2x192xf32> to vector<2x64xf32>
    %912 = vector.extract_strided_slice %909 {offsets = [0, 128], sizes = [2, 64], strides = [1, 1]} : vector<2x192xf32> to vector<2x64xf32>
    %913 = vector.extract_strided_slice %903 {offsets = [0, 192], sizes = [2, 64], strides = [1, 1]} : vector<2x256xf32> to vector<2x64xf32>
    %914 = math.tanh %913 : vector<2x64xf32>
    %915 = arith.mulf %911, %879 : vector<2x64xf32>
    %916 = arith.mulf %910, %914 : vector<2x64xf32>
    %917 = arith.addf %915, %916 : vector<2x64xf32>
    %918 = math.tanh %917 : vector<2x64xf32>
    %919 = arith.mulf %912, %918 : vector<2x64xf32>
    %920 = vector.extract_strided_slice %648 {offsets = [14, 0], sizes = [2, 256], strides = [1, 1]} : vector<16x256xf32> to vector<2x256xf32>
    %cst_131 = arith.constant dense<0.000000e+00> : vector<2x256xf32>
    %921 = tpu.matmul %900, %643, %cst_131 {dimension_numbers = #tpu.dot_dimension_numbers<[1], [0], [0], [1], [0, 0, 1, 1], [], []>} : vector<2x64xf32>, vector<64x256xf32>, vector<2x256xf32> -> vector<2x256xf32>
    %922 = arith.addf %921, %920 : vector<2x256xf32>
    %923 = vector.extract_strided_slice %922 {offsets = [0, 0], sizes = [2, 192], strides = [1, 1]} : vector<2x256xf32> to vector<2x192xf32>
    %924 = arith.negf %923 : vector<2x192xf32>
    %925 = math.exp %924 : vector<2x192xf32>
    %cst_132 = arith.constant 1.000000e+00 : f32
    %926 = vector.broadcast %cst_132 : f32 to vector<2x192xf32>
    %927 = arith.addf %926, %925 : vector<2x192xf32>
    %928 = arith.divf %926, %927 : vector<2x192xf32>
    %929 = vector.extract_strided_slice %928 {offsets = [0, 0], sizes = [2, 64], strides = [1, 1]} : vector<2x192xf32> to vector<2x64xf32>
    %930 = vector.extract_strided_slice %928 {offsets = [0, 64], sizes = [2, 64], strides = [1, 1]} : vector<2x192xf32> to vector<2x64xf32>
    %931 = vector.extract_strided_slice %928 {offsets = [0, 128], sizes = [2, 64], strides = [1, 1]} : vector<2x192xf32> to vector<2x64xf32>
    %932 = vector.extract_strided_slice %922 {offsets = [0, 192], sizes = [2, 64], strides = [1, 1]} : vector<2x256xf32> to vector<2x64xf32>
    %933 = math.tanh %932 : vector<2x64xf32>
    %934 = arith.mulf %930, %898 : vector<2x64xf32>
    %935 = arith.mulf %929, %933 : vector<2x64xf32>
    %936 = arith.addf %934, %935 : vector<2x64xf32>
    %937 = math.tanh %936 : vector<2x64xf32>
    %938 = arith.mulf %931, %937 : vector<2x64xf32>
    %939 = vector.extract_strided_slice %649 {offsets = [0, 0], sizes = [2, 256], strides = [1, 1]} : vector<16x256xf32> to vector<2x256xf32>
    %cst_133 = arith.constant dense<0.000000e+00> : vector<2x256xf32>
    %940 = tpu.matmul %919, %644, %cst_133 {dimension_numbers = #tpu.dot_dimension_numbers<[1], [0], [0], [1], [0, 0, 1, 1], [], []>} : vector<2x64xf32>, vector<64x256xf32>, vector<2x256xf32> -> vector<2x256xf32>
    %941 = arith.addf %940, %939 : vector<2x256xf32>
    %942 = vector.extract_strided_slice %941 {offsets = [0, 0], sizes = [2, 192], strides = [1, 1]} : vector<2x256xf32> to vector<2x192xf32>
    %943 = arith.negf %942 : vector<2x192xf32>
    %944 = math.exp %943 : vector<2x192xf32>
    %cst_134 = arith.constant 1.000000e+00 : f32
    %945 = vector.broadcast %cst_134 : f32 to vector<2x192xf32>
    %946 = arith.addf %945, %944 : vector<2x192xf32>
    %947 = arith.divf %945, %946 : vector<2x192xf32>
    %948 = vector.extract_strided_slice %947 {offsets = [0, 0], sizes = [2, 64], strides = [1, 1]} : vector<2x192xf32> to vector<2x64xf32>
    %949 = vector.extract_strided_slice %947 {offsets = [0, 64], sizes = [2, 64], strides = [1, 1]} : vector<2x192xf32> to vector<2x64xf32>
    %950 = vector.extract_strided_slice %947 {offsets = [0, 128], sizes = [2, 64], strides = [1, 1]} : vector<2x192xf32> to vector<2x64xf32>
    %951 = vector.extract_strided_slice %941 {offsets = [0, 192], sizes = [2, 64], strides = [1, 1]} : vector<2x256xf32> to vector<2x64xf32>
    %952 = math.tanh %951 : vector<2x64xf32>
    %953 = arith.mulf %949, %917 : vector<2x64xf32>
    %954 = arith.mulf %948, %952 : vector<2x64xf32>
    %955 = arith.addf %953, %954 : vector<2x64xf32>
    %956 = math.tanh %955 : vector<2x64xf32>
    %957 = arith.mulf %950, %956 : vector<2x64xf32>
    %958 = tpu.concatenate %672, %710, %748, %786, %824, %862, %900, %938 in 0 : vector<2x64xf32>, vector<2x64xf32>, vector<2x64xf32>, vector<2x64xf32>, vector<2x64xf32>, vector<2x64xf32>, vector<2x64xf32>, vector<2x64xf32> -> vector<16x64xf32>
    %959 = tpu.concatenate %957, %919, %881, %843, %805, %767, %729, %691 in 0 : vector<2x64xf32>, vector<2x64xf32>, vector<2x64xf32>, vector<2x64xf32>, vector<2x64xf32>, vector<2x64xf32>, vector<2x64xf32>, vector<2x64xf32> -> vector<16x64xf32>
    %960 = tpu.concatenate %958, %959 in 1 : vector<16x64xf32>, vector<16x64xf32> -> vector<16x128xf32>
    %c0_135 = arith.constant 0 : index
    %c0_136 = arith.constant 0 : index
    %961 = vector.load %arg13[%c0_135, %c0_136] : memref<128x512xf32, #tpu.memory_space<vmem>>, vector<128x512xf32>
    %c0_137 = arith.constant 0 : index
    %c0_138 = arith.constant 0 : index
    %962 = vector.load %arg14[%c0_137, %c0_138] : memref<1x512xf32, #tpu.memory_space<vmem>>, vector<1x512xf32>
    %c0_139 = arith.constant 0 : index
    %c0_140 = arith.constant 0 : index
    %963 = vector.load %arg15[%c0_139, %c0_140] : memref<64x256xf32, #tpu.memory_space<vmem>>, vector<64x256xf32>
    %c0_141 = arith.constant 0 : index
    %c0_142 = arith.constant 0 : index
    %964 = vector.load %arg16[%c0_141, %c0_142] : memref<64x256xf32, #tpu.memory_space<vmem>>, vector<64x256xf32>
    %cst_143 = arith.constant dense<0.000000e+00> : vector<16x512xf32>
    %965 = tpu.matmul %960, %961, %cst_143 {dimension_numbers = #tpu.dot_dimension_numbers<[1], [0], [0], [1], [0, 0, 1, 1], [], []>} : vector<16x128xf32>, vector<128x512xf32>, vector<16x512xf32> -> vector<16x512xf32>
    %966 = vector.broadcast %962 : vector<1x512xf32> to vector<16x512xf32>
    %967 = arith.addf %965, %966 : vector<16x512xf32>
    %968 = vector.extract_strided_slice %967 {offsets = [0, 0], sizes = [16, 256], strides = [1, 1]} : vector<16x512xf32> to vector<16x256xf32>
    %969 = vector.extract_strided_slice %967 {offsets = [0, 256], sizes = [16, 256], strides = [1, 1]} : vector<16x512xf32> to vector<16x256xf32>
    %cst_144 = arith.constant 0.000000e+00 : f32
    %970 = vector.broadcast %cst_144 : f32 to vector<2x64xf32>
    %cst_145 = arith.constant 0.000000e+00 : f32
    %971 = vector.broadcast %cst_145 : f32 to vector<2x64xf32>
    %cst_146 = arith.constant 0.000000e+00 : f32
    %972 = vector.broadcast %cst_146 : f32 to vector<2x64xf32>
    %cst_147 = arith.constant 0.000000e+00 : f32
    %973 = vector.broadcast %cst_147 : f32 to vector<2x64xf32>
    %974 = vector.extract_strided_slice %968 {offsets = [0, 0], sizes = [2, 256], strides = [1, 1]} : vector<16x256xf32> to vector<2x256xf32>
    %cst_148 = arith.constant dense<0.000000e+00> : vector<2x256xf32>
    %975 = tpu.matmul %970, %963, %cst_148 {dimension_numbers = #tpu.dot_dimension_numbers<[1], [0], [0], [1], [0, 0, 1, 1], [], []>} : vector<2x64xf32>, vector<64x256xf32>, vector<2x256xf32> -> vector<2x256xf32>
    %976 = arith.addf %975, %974 : vector<2x256xf32>
    %977 = vector.extract_strided_slice %976 {offsets = [0, 0], sizes = [2, 192], strides = [1, 1]} : vector<2x256xf32> to vector<2x192xf32>
    %978 = arith.negf %977 : vector<2x192xf32>
    %979 = math.exp %978 : vector<2x192xf32>
    %cst_149 = arith.constant 1.000000e+00 : f32
    %980 = vector.broadcast %cst_149 : f32 to vector<2x192xf32>
    %981 = arith.addf %980, %979 : vector<2x192xf32>
    %982 = arith.divf %980, %981 : vector<2x192xf32>
    %983 = vector.extract_strided_slice %982 {offsets = [0, 0], sizes = [2, 64], strides = [1, 1]} : vector<2x192xf32> to vector<2x64xf32>
    %984 = vector.extract_strided_slice %982 {offsets = [0, 64], sizes = [2, 64], strides = [1, 1]} : vector<2x192xf32> to vector<2x64xf32>
    %985 = vector.extract_strided_slice %982 {offsets = [0, 128], sizes = [2, 64], strides = [1, 1]} : vector<2x192xf32> to vector<2x64xf32>
    %986 = vector.extract_strided_slice %976 {offsets = [0, 192], sizes = [2, 64], strides = [1, 1]} : vector<2x256xf32> to vector<2x64xf32>
    %987 = math.tanh %986 : vector<2x64xf32>
    %988 = arith.mulf %984, %971 : vector<2x64xf32>
    %989 = arith.mulf %983, %987 : vector<2x64xf32>
    %990 = arith.addf %988, %989 : vector<2x64xf32>
    %991 = math.tanh %990 : vector<2x64xf32>
    %992 = arith.mulf %985, %991 : vector<2x64xf32>
    %993 = vector.extract_strided_slice %969 {offsets = [14, 0], sizes = [2, 256], strides = [1, 1]} : vector<16x256xf32> to vector<2x256xf32>
    %cst_150 = arith.constant dense<0.000000e+00> : vector<2x256xf32>
    %994 = tpu.matmul %972, %964, %cst_150 {dimension_numbers = #tpu.dot_dimension_numbers<[1], [0], [0], [1], [0, 0, 1, 1], [], []>} : vector<2x64xf32>, vector<64x256xf32>, vector<2x256xf32> -> vector<2x256xf32>
    %995 = arith.addf %994, %993 : vector<2x256xf32>
    %996 = vector.extract_strided_slice %995 {offsets = [0, 0], sizes = [2, 192], strides = [1, 1]} : vector<2x256xf32> to vector<2x192xf32>
    %997 = arith.negf %996 : vector<2x192xf32>
    %998 = math.exp %997 : vector<2x192xf32>
    %cst_151 = arith.constant 1.000000e+00 : f32
    %999 = vector.broadcast %cst_151 : f32 to vector<2x192xf32>
    %1000 = arith.addf %999, %998 : vector<2x192xf32>
    %1001 = arith.divf %999, %1000 : vector<2x192xf32>
    %1002 = vector.extract_strided_slice %1001 {offsets = [0, 0], sizes = [2, 64], strides = [1, 1]} : vector<2x192xf32> to vector<2x64xf32>
    %1003 = vector.extract_strided_slice %1001 {offsets = [0, 64], sizes = [2, 64], strides = [1, 1]} : vector<2x192xf32> to vector<2x64xf32>
    %1004 = vector.extract_strided_slice %1001 {offsets = [0, 128], sizes = [2, 64], strides = [1, 1]} : vector<2x192xf32> to vector<2x64xf32>
    %1005 = vector.extract_strided_slice %995 {offsets = [0, 192], sizes = [2, 64], strides = [1, 1]} : vector<2x256xf32> to vector<2x64xf32>
    %1006 = math.tanh %1005 : vector<2x64xf32>
    %1007 = arith.mulf %1003, %973 : vector<2x64xf32>
    %1008 = arith.mulf %1002, %1006 : vector<2x64xf32>
    %1009 = arith.addf %1007, %1008 : vector<2x64xf32>
    %1010 = math.tanh %1009 : vector<2x64xf32>
    %1011 = arith.mulf %1004, %1010 : vector<2x64xf32>
    %1012 = vector.extract_strided_slice %968 {offsets = [2, 0], sizes = [2, 256], strides = [1, 1]} : vector<16x256xf32> to vector<2x256xf32>
    %cst_152 = arith.constant dense<0.000000e+00> : vector<2x256xf32>
    %1013 = tpu.matmul %992, %963, %cst_152 {dimension_numbers = #tpu.dot_dimension_numbers<[1], [0], [0], [1], [0, 0, 1, 1], [], []>} : vector<2x64xf32>, vector<64x256xf32>, vector<2x256xf32> -> vector<2x256xf32>
    %1014 = arith.addf %1013, %1012 : vector<2x256xf32>
    %1015 = vector.extract_strided_slice %1014 {offsets = [0, 0], sizes = [2, 192], strides = [1, 1]} : vector<2x256xf32> to vector<2x192xf32>
    %1016 = arith.negf %1015 : vector<2x192xf32>
    %1017 = math.exp %1016 : vector<2x192xf32>
    %cst_153 = arith.constant 1.000000e+00 : f32
    %1018 = vector.broadcast %cst_153 : f32 to vector<2x192xf32>
    %1019 = arith.addf %1018, %1017 : vector<2x192xf32>
    %1020 = arith.divf %1018, %1019 : vector<2x192xf32>
    %1021 = vector.extract_strided_slice %1020 {offsets = [0, 0], sizes = [2, 64], strides = [1, 1]} : vector<2x192xf32> to vector<2x64xf32>
    %1022 = vector.extract_strided_slice %1020 {offsets = [0, 64], sizes = [2, 64], strides = [1, 1]} : vector<2x192xf32> to vector<2x64xf32>
    %1023 = vector.extract_strided_slice %1020 {offsets = [0, 128], sizes = [2, 64], strides = [1, 1]} : vector<2x192xf32> to vector<2x64xf32>
    %1024 = vector.extract_strided_slice %1014 {offsets = [0, 192], sizes = [2, 64], strides = [1, 1]} : vector<2x256xf32> to vector<2x64xf32>
    %1025 = math.tanh %1024 : vector<2x64xf32>
    %1026 = arith.mulf %1022, %990 : vector<2x64xf32>
    %1027 = arith.mulf %1021, %1025 : vector<2x64xf32>
    %1028 = arith.addf %1026, %1027 : vector<2x64xf32>
    %1029 = math.tanh %1028 : vector<2x64xf32>
    %1030 = arith.mulf %1023, %1029 : vector<2x64xf32>
    %1031 = vector.extract_strided_slice %969 {offsets = [12, 0], sizes = [2, 256], strides = [1, 1]} : vector<16x256xf32> to vector<2x256xf32>
    %cst_154 = arith.constant dense<0.000000e+00> : vector<2x256xf32>
    %1032 = tpu.matmul %1011, %964, %cst_154 {dimension_numbers = #tpu.dot_dimension_numbers<[1], [0], [0], [1], [0, 0, 1, 1], [], []>} : vector<2x64xf32>, vector<64x256xf32>, vector<2x256xf32> -> vector<2x256xf32>
    %1033 = arith.addf %1032, %1031 : vector<2x256xf32>
    %1034 = vector.extract_strided_slice %1033 {offsets = [0, 0], sizes = [2, 192], strides = [1, 1]} : vector<2x256xf32> to vector<2x192xf32>
    %1035 = arith.negf %1034 : vector<2x192xf32>
    %1036 = math.exp %1035 : vector<2x192xf32>
    %cst_155 = arith.constant 1.000000e+00 : f32
    %1037 = vector.broadcast %cst_155 : f32 to vector<2x192xf32>
    %1038 = arith.addf %1037, %1036 : vector<2x192xf32>
    %1039 = arith.divf %1037, %1038 : vector<2x192xf32>
    %1040 = vector.extract_strided_slice %1039 {offsets = [0, 0], sizes = [2, 64], strides = [1, 1]} : vector<2x192xf32> to vector<2x64xf32>
    %1041 = vector.extract_strided_slice %1039 {offsets = [0, 64], sizes = [2, 64], strides = [1, 1]} : vector<2x192xf32> to vector<2x64xf32>
    %1042 = vector.extract_strided_slice %1039 {offsets = [0, 128], sizes = [2, 64], strides = [1, 1]} : vector<2x192xf32> to vector<2x64xf32>
    %1043 = vector.extract_strided_slice %1033 {offsets = [0, 192], sizes = [2, 64], strides = [1, 1]} : vector<2x256xf32> to vector<2x64xf32>
    %1044 = math.tanh %1043 : vector<2x64xf32>
    %1045 = arith.mulf %1041, %1009 : vector<2x64xf32>
    %1046 = arith.mulf %1040, %1044 : vector<2x64xf32>
    %1047 = arith.addf %1045, %1046 : vector<2x64xf32>
    %1048 = math.tanh %1047 : vector<2x64xf32>
    %1049 = arith.mulf %1042, %1048 : vector<2x64xf32>
    %1050 = vector.extract_strided_slice %968 {offsets = [4, 0], sizes = [2, 256], strides = [1, 1]} : vector<16x256xf32> to vector<2x256xf32>
    %cst_156 = arith.constant dense<0.000000e+00> : vector<2x256xf32>
    %1051 = tpu.matmul %1030, %963, %cst_156 {dimension_numbers = #tpu.dot_dimension_numbers<[1], [0], [0], [1], [0, 0, 1, 1], [], []>} : vector<2x64xf32>, vector<64x256xf32>, vector<2x256xf32> -> vector<2x256xf32>
    %1052 = arith.addf %1051, %1050 : vector<2x256xf32>
    %1053 = vector.extract_strided_slice %1052 {offsets = [0, 0], sizes = [2, 192], strides = [1, 1]} : vector<2x256xf32> to vector<2x192xf32>
    %1054 = arith.negf %1053 : vector<2x192xf32>
    %1055 = math.exp %1054 : vector<2x192xf32>
    %cst_157 = arith.constant 1.000000e+00 : f32
    %1056 = vector.broadcast %cst_157 : f32 to vector<2x192xf32>
    %1057 = arith.addf %1056, %1055 : vector<2x192xf32>
    %1058 = arith.divf %1056, %1057 : vector<2x192xf32>
    %1059 = vector.extract_strided_slice %1058 {offsets = [0, 0], sizes = [2, 64], strides = [1, 1]} : vector<2x192xf32> to vector<2x64xf32>
    %1060 = vector.extract_strided_slice %1058 {offsets = [0, 64], sizes = [2, 64], strides = [1, 1]} : vector<2x192xf32> to vector<2x64xf32>
    %1061 = vector.extract_strided_slice %1058 {offsets = [0, 128], sizes = [2, 64], strides = [1, 1]} : vector<2x192xf32> to vector<2x64xf32>
    %1062 = vector.extract_strided_slice %1052 {offsets = [0, 192], sizes = [2, 64], strides = [1, 1]} : vector<2x256xf32> to vector<2x64xf32>
    %1063 = math.tanh %1062 : vector<2x64xf32>
    %1064 = arith.mulf %1060, %1028 : vector<2x64xf32>
    %1065 = arith.mulf %1059, %1063 : vector<2x64xf32>
    %1066 = arith.addf %1064, %1065 : vector<2x64xf32>
    %1067 = math.tanh %1066 : vector<2x64xf32>
    %1068 = arith.mulf %1061, %1067 : vector<2x64xf32>
    %1069 = vector.extract_strided_slice %969 {offsets = [10, 0], sizes = [2, 256], strides = [1, 1]} : vector<16x256xf32> to vector<2x256xf32>
    %cst_158 = arith.constant dense<0.000000e+00> : vector<2x256xf32>
    %1070 = tpu.matmul %1049, %964, %cst_158 {dimension_numbers = #tpu.dot_dimension_numbers<[1], [0], [0], [1], [0, 0, 1, 1], [], []>} : vector<2x64xf32>, vector<64x256xf32>, vector<2x256xf32> -> vector<2x256xf32>
    %1071 = arith.addf %1070, %1069 : vector<2x256xf32>
    %1072 = vector.extract_strided_slice %1071 {offsets = [0, 0], sizes = [2, 192], strides = [1, 1]} : vector<2x256xf32> to vector<2x192xf32>
    %1073 = arith.negf %1072 : vector<2x192xf32>
    %1074 = math.exp %1073 : vector<2x192xf32>
    %cst_159 = arith.constant 1.000000e+00 : f32
    %1075 = vector.broadcast %cst_159 : f32 to vector<2x192xf32>
    %1076 = arith.addf %1075, %1074 : vector<2x192xf32>
    %1077 = arith.divf %1075, %1076 : vector<2x192xf32>
    %1078 = vector.extract_strided_slice %1077 {offsets = [0, 0], sizes = [2, 64], strides = [1, 1]} : vector<2x192xf32> to vector<2x64xf32>
    %1079 = vector.extract_strided_slice %1077 {offsets = [0, 64], sizes = [2, 64], strides = [1, 1]} : vector<2x192xf32> to vector<2x64xf32>
    %1080 = vector.extract_strided_slice %1077 {offsets = [0, 128], sizes = [2, 64], strides = [1, 1]} : vector<2x192xf32> to vector<2x64xf32>
    %1081 = vector.extract_strided_slice %1071 {offsets = [0, 192], sizes = [2, 64], strides = [1, 1]} : vector<2x256xf32> to vector<2x64xf32>
    %1082 = math.tanh %1081 : vector<2x64xf32>
    %1083 = arith.mulf %1079, %1047 : vector<2x64xf32>
    %1084 = arith.mulf %1078, %1082 : vector<2x64xf32>
    %1085 = arith.addf %1083, %1084 : vector<2x64xf32>
    %1086 = math.tanh %1085 : vector<2x64xf32>
    %1087 = arith.mulf %1080, %1086 : vector<2x64xf32>
    %1088 = vector.extract_strided_slice %968 {offsets = [6, 0], sizes = [2, 256], strides = [1, 1]} : vector<16x256xf32> to vector<2x256xf32>
    %cst_160 = arith.constant dense<0.000000e+00> : vector<2x256xf32>
    %1089 = tpu.matmul %1068, %963, %cst_160 {dimension_numbers = #tpu.dot_dimension_numbers<[1], [0], [0], [1], [0, 0, 1, 1], [], []>} : vector<2x64xf32>, vector<64x256xf32>, vector<2x256xf32> -> vector<2x256xf32>
    %1090 = arith.addf %1089, %1088 : vector<2x256xf32>
    %1091 = vector.extract_strided_slice %1090 {offsets = [0, 0], sizes = [2, 192], strides = [1, 1]} : vector<2x256xf32> to vector<2x192xf32>
    %1092 = arith.negf %1091 : vector<2x192xf32>
    %1093 = math.exp %1092 : vector<2x192xf32>
    %cst_161 = arith.constant 1.000000e+00 : f32
    %1094 = vector.broadcast %cst_161 : f32 to vector<2x192xf32>
    %1095 = arith.addf %1094, %1093 : vector<2x192xf32>
    %1096 = arith.divf %1094, %1095 : vector<2x192xf32>
    %1097 = vector.extract_strided_slice %1096 {offsets = [0, 0], sizes = [2, 64], strides = [1, 1]} : vector<2x192xf32> to vector<2x64xf32>
    %1098 = vector.extract_strided_slice %1096 {offsets = [0, 64], sizes = [2, 64], strides = [1, 1]} : vector<2x192xf32> to vector<2x64xf32>
    %1099 = vector.extract_strided_slice %1096 {offsets = [0, 128], sizes = [2, 64], strides = [1, 1]} : vector<2x192xf32> to vector<2x64xf32>
    %1100 = vector.extract_strided_slice %1090 {offsets = [0, 192], sizes = [2, 64], strides = [1, 1]} : vector<2x256xf32> to vector<2x64xf32>
    %1101 = math.tanh %1100 : vector<2x64xf32>
    %1102 = arith.mulf %1098, %1066 : vector<2x64xf32>
    %1103 = arith.mulf %1097, %1101 : vector<2x64xf32>
    %1104 = arith.addf %1102, %1103 : vector<2x64xf32>
    %1105 = math.tanh %1104 : vector<2x64xf32>
    %1106 = arith.mulf %1099, %1105 : vector<2x64xf32>
    %1107 = vector.extract_strided_slice %969 {offsets = [8, 0], sizes = [2, 256], strides = [1, 1]} : vector<16x256xf32> to vector<2x256xf32>
    %cst_162 = arith.constant dense<0.000000e+00> : vector<2x256xf32>
    %1108 = tpu.matmul %1087, %964, %cst_162 {dimension_numbers = #tpu.dot_dimension_numbers<[1], [0], [0], [1], [0, 0, 1, 1], [], []>} : vector<2x64xf32>, vector<64x256xf32>, vector<2x256xf32> -> vector<2x256xf32>
    %1109 = arith.addf %1108, %1107 : vector<2x256xf32>
    %1110 = vector.extract_strided_slice %1109 {offsets = [0, 0], sizes = [2, 192], strides = [1, 1]} : vector<2x256xf32> to vector<2x192xf32>
    %1111 = arith.negf %1110 : vector<2x192xf32>
    %1112 = math.exp %1111 : vector<2x192xf32>
    %cst_163 = arith.constant 1.000000e+00 : f32
    %1113 = vector.broadcast %cst_163 : f32 to vector<2x192xf32>
    %1114 = arith.addf %1113, %1112 : vector<2x192xf32>
    %1115 = arith.divf %1113, %1114 : vector<2x192xf32>
    %1116 = vector.extract_strided_slice %1115 {offsets = [0, 0], sizes = [2, 64], strides = [1, 1]} : vector<2x192xf32> to vector<2x64xf32>
    %1117 = vector.extract_strided_slice %1115 {offsets = [0, 64], sizes = [2, 64], strides = [1, 1]} : vector<2x192xf32> to vector<2x64xf32>
    %1118 = vector.extract_strided_slice %1115 {offsets = [0, 128], sizes = [2, 64], strides = [1, 1]} : vector<2x192xf32> to vector<2x64xf32>
    %1119 = vector.extract_strided_slice %1109 {offsets = [0, 192], sizes = [2, 64], strides = [1, 1]} : vector<2x256xf32> to vector<2x64xf32>
    %1120 = math.tanh %1119 : vector<2x64xf32>
    %1121 = arith.mulf %1117, %1085 : vector<2x64xf32>
    %1122 = arith.mulf %1116, %1120 : vector<2x64xf32>
    %1123 = arith.addf %1121, %1122 : vector<2x64xf32>
    %1124 = math.tanh %1123 : vector<2x64xf32>
    %1125 = arith.mulf %1118, %1124 : vector<2x64xf32>
    %1126 = vector.extract_strided_slice %968 {offsets = [8, 0], sizes = [2, 256], strides = [1, 1]} : vector<16x256xf32> to vector<2x256xf32>
    %cst_164 = arith.constant dense<0.000000e+00> : vector<2x256xf32>
    %1127 = tpu.matmul %1106, %963, %cst_164 {dimension_numbers = #tpu.dot_dimension_numbers<[1], [0], [0], [1], [0, 0, 1, 1], [], []>} : vector<2x64xf32>, vector<64x256xf32>, vector<2x256xf32> -> vector<2x256xf32>
    %1128 = arith.addf %1127, %1126 : vector<2x256xf32>
    %1129 = vector.extract_strided_slice %1128 {offsets = [0, 0], sizes = [2, 192], strides = [1, 1]} : vector<2x256xf32> to vector<2x192xf32>
    %1130 = arith.negf %1129 : vector<2x192xf32>
    %1131 = math.exp %1130 : vector<2x192xf32>
    %cst_165 = arith.constant 1.000000e+00 : f32
    %1132 = vector.broadcast %cst_165 : f32 to vector<2x192xf32>
    %1133 = arith.addf %1132, %1131 : vector<2x192xf32>
    %1134 = arith.divf %1132, %1133 : vector<2x192xf32>
    %1135 = vector.extract_strided_slice %1134 {offsets = [0, 0], sizes = [2, 64], strides = [1, 1]} : vector<2x192xf32> to vector<2x64xf32>
    %1136 = vector.extract_strided_slice %1134 {offsets = [0, 64], sizes = [2, 64], strides = [1, 1]} : vector<2x192xf32> to vector<2x64xf32>
    %1137 = vector.extract_strided_slice %1134 {offsets = [0, 128], sizes = [2, 64], strides = [1, 1]} : vector<2x192xf32> to vector<2x64xf32>
    %1138 = vector.extract_strided_slice %1128 {offsets = [0, 192], sizes = [2, 64], strides = [1, 1]} : vector<2x256xf32> to vector<2x64xf32>
    %1139 = math.tanh %1138 : vector<2x64xf32>
    %1140 = arith.mulf %1136, %1104 : vector<2x64xf32>
    %1141 = arith.mulf %1135, %1139 : vector<2x64xf32>
    %1142 = arith.addf %1140, %1141 : vector<2x64xf32>
    %1143 = math.tanh %1142 : vector<2x64xf32>
    %1144 = arith.mulf %1137, %1143 : vector<2x64xf32>
    %1145 = vector.extract_strided_slice %969 {offsets = [6, 0], sizes = [2, 256], strides = [1, 1]} : vector<16x256xf32> to vector<2x256xf32>
    %cst_166 = arith.constant dense<0.000000e+00> : vector<2x256xf32>
    %1146 = tpu.matmul %1125, %964, %cst_166 {dimension_numbers = #tpu.dot_dimension_numbers<[1], [0], [0], [1], [0, 0, 1, 1], [], []>} : vector<2x64xf32>, vector<64x256xf32>, vector<2x256xf32> -> vector<2x256xf32>
    %1147 = arith.addf %1146, %1145 : vector<2x256xf32>
    %1148 = vector.extract_strided_slice %1147 {offsets = [0, 0], sizes = [2, 192], strides = [1, 1]} : vector<2x256xf32> to vector<2x192xf32>
    %1149 = arith.negf %1148 : vector<2x192xf32>
    %1150 = math.exp %1149 : vector<2x192xf32>
    %cst_167 = arith.constant 1.000000e+00 : f32
    %1151 = vector.broadcast %cst_167 : f32 to vector<2x192xf32>
    %1152 = arith.addf %1151, %1150 : vector<2x192xf32>
    %1153 = arith.divf %1151, %1152 : vector<2x192xf32>
    %1154 = vector.extract_strided_slice %1153 {offsets = [0, 0], sizes = [2, 64], strides = [1, 1]} : vector<2x192xf32> to vector<2x64xf32>
    %1155 = vector.extract_strided_slice %1153 {offsets = [0, 64], sizes = [2, 64], strides = [1, 1]} : vector<2x192xf32> to vector<2x64xf32>
    %1156 = vector.extract_strided_slice %1153 {offsets = [0, 128], sizes = [2, 64], strides = [1, 1]} : vector<2x192xf32> to vector<2x64xf32>
    %1157 = vector.extract_strided_slice %1147 {offsets = [0, 192], sizes = [2, 64], strides = [1, 1]} : vector<2x256xf32> to vector<2x64xf32>
    %1158 = math.tanh %1157 : vector<2x64xf32>
    %1159 = arith.mulf %1155, %1123 : vector<2x64xf32>
    %1160 = arith.mulf %1154, %1158 : vector<2x64xf32>
    %1161 = arith.addf %1159, %1160 : vector<2x64xf32>
    %1162 = math.tanh %1161 : vector<2x64xf32>
    %1163 = arith.mulf %1156, %1162 : vector<2x64xf32>
    %1164 = vector.extract_strided_slice %968 {offsets = [10, 0], sizes = [2, 256], strides = [1, 1]} : vector<16x256xf32> to vector<2x256xf32>
    %cst_168 = arith.constant dense<0.000000e+00> : vector<2x256xf32>
    %1165 = tpu.matmul %1144, %963, %cst_168 {dimension_numbers = #tpu.dot_dimension_numbers<[1], [0], [0], [1], [0, 0, 1, 1], [], []>} : vector<2x64xf32>, vector<64x256xf32>, vector<2x256xf32> -> vector<2x256xf32>
    %1166 = arith.addf %1165, %1164 : vector<2x256xf32>
    %1167 = vector.extract_strided_slice %1166 {offsets = [0, 0], sizes = [2, 192], strides = [1, 1]} : vector<2x256xf32> to vector<2x192xf32>
    %1168 = arith.negf %1167 : vector<2x192xf32>
    %1169 = math.exp %1168 : vector<2x192xf32>
    %cst_169 = arith.constant 1.000000e+00 : f32
    %1170 = vector.broadcast %cst_169 : f32 to vector<2x192xf32>
    %1171 = arith.addf %1170, %1169 : vector<2x192xf32>
    %1172 = arith.divf %1170, %1171 : vector<2x192xf32>
    %1173 = vector.extract_strided_slice %1172 {offsets = [0, 0], sizes = [2, 64], strides = [1, 1]} : vector<2x192xf32> to vector<2x64xf32>
    %1174 = vector.extract_strided_slice %1172 {offsets = [0, 64], sizes = [2, 64], strides = [1, 1]} : vector<2x192xf32> to vector<2x64xf32>
    %1175 = vector.extract_strided_slice %1172 {offsets = [0, 128], sizes = [2, 64], strides = [1, 1]} : vector<2x192xf32> to vector<2x64xf32>
    %1176 = vector.extract_strided_slice %1166 {offsets = [0, 192], sizes = [2, 64], strides = [1, 1]} : vector<2x256xf32> to vector<2x64xf32>
    %1177 = math.tanh %1176 : vector<2x64xf32>
    %1178 = arith.mulf %1174, %1142 : vector<2x64xf32>
    %1179 = arith.mulf %1173, %1177 : vector<2x64xf32>
    %1180 = arith.addf %1178, %1179 : vector<2x64xf32>
    %1181 = math.tanh %1180 : vector<2x64xf32>
    %1182 = arith.mulf %1175, %1181 : vector<2x64xf32>
    %1183 = vector.extract_strided_slice %969 {offsets = [4, 0], sizes = [2, 256], strides = [1, 1]} : vector<16x256xf32> to vector<2x256xf32>
    %cst_170 = arith.constant dense<0.000000e+00> : vector<2x256xf32>
    %1184 = tpu.matmul %1163, %964, %cst_170 {dimension_numbers = #tpu.dot_dimension_numbers<[1], [0], [0], [1], [0, 0, 1, 1], [], []>} : vector<2x64xf32>, vector<64x256xf32>, vector<2x256xf32> -> vector<2x256xf32>
    %1185 = arith.addf %1184, %1183 : vector<2x256xf32>
    %1186 = vector.extract_strided_slice %1185 {offsets = [0, 0], sizes = [2, 192], strides = [1, 1]} : vector<2x256xf32> to vector<2x192xf32>
    %1187 = arith.negf %1186 : vector<2x192xf32>
    %1188 = math.exp %1187 : vector<2x192xf32>
    %cst_171 = arith.constant 1.000000e+00 : f32
    %1189 = vector.broadcast %cst_171 : f32 to vector<2x192xf32>
    %1190 = arith.addf %1189, %1188 : vector<2x192xf32>
    %1191 = arith.divf %1189, %1190 : vector<2x192xf32>
    %1192 = vector.extract_strided_slice %1191 {offsets = [0, 0], sizes = [2, 64], strides = [1, 1]} : vector<2x192xf32> to vector<2x64xf32>
    %1193 = vector.extract_strided_slice %1191 {offsets = [0, 64], sizes = [2, 64], strides = [1, 1]} : vector<2x192xf32> to vector<2x64xf32>
    %1194 = vector.extract_strided_slice %1191 {offsets = [0, 128], sizes = [2, 64], strides = [1, 1]} : vector<2x192xf32> to vector<2x64xf32>
    %1195 = vector.extract_strided_slice %1185 {offsets = [0, 192], sizes = [2, 64], strides = [1, 1]} : vector<2x256xf32> to vector<2x64xf32>
    %1196 = math.tanh %1195 : vector<2x64xf32>
    %1197 = arith.mulf %1193, %1161 : vector<2x64xf32>
    %1198 = arith.mulf %1192, %1196 : vector<2x64xf32>
    %1199 = arith.addf %1197, %1198 : vector<2x64xf32>
    %1200 = math.tanh %1199 : vector<2x64xf32>
    %1201 = arith.mulf %1194, %1200 : vector<2x64xf32>
    %1202 = vector.extract_strided_slice %968 {offsets = [12, 0], sizes = [2, 256], strides = [1, 1]} : vector<16x256xf32> to vector<2x256xf32>
    %cst_172 = arith.constant dense<0.000000e+00> : vector<2x256xf32>
    %1203 = tpu.matmul %1182, %963, %cst_172 {dimension_numbers = #tpu.dot_dimension_numbers<[1], [0], [0], [1], [0, 0, 1, 1], [], []>} : vector<2x64xf32>, vector<64x256xf32>, vector<2x256xf32> -> vector<2x256xf32>
    %1204 = arith.addf %1203, %1202 : vector<2x256xf32>
    %1205 = vector.extract_strided_slice %1204 {offsets = [0, 0], sizes = [2, 192], strides = [1, 1]} : vector<2x256xf32> to vector<2x192xf32>
    %1206 = arith.negf %1205 : vector<2x192xf32>
    %1207 = math.exp %1206 : vector<2x192xf32>
    %cst_173 = arith.constant 1.000000e+00 : f32
    %1208 = vector.broadcast %cst_173 : f32 to vector<2x192xf32>
    %1209 = arith.addf %1208, %1207 : vector<2x192xf32>
    %1210 = arith.divf %1208, %1209 : vector<2x192xf32>
    %1211 = vector.extract_strided_slice %1210 {offsets = [0, 0], sizes = [2, 64], strides = [1, 1]} : vector<2x192xf32> to vector<2x64xf32>
    %1212 = vector.extract_strided_slice %1210 {offsets = [0, 64], sizes = [2, 64], strides = [1, 1]} : vector<2x192xf32> to vector<2x64xf32>
    %1213 = vector.extract_strided_slice %1210 {offsets = [0, 128], sizes = [2, 64], strides = [1, 1]} : vector<2x192xf32> to vector<2x64xf32>
    %1214 = vector.extract_strided_slice %1204 {offsets = [0, 192], sizes = [2, 64], strides = [1, 1]} : vector<2x256xf32> to vector<2x64xf32>
    %1215 = math.tanh %1214 : vector<2x64xf32>
    %1216 = arith.mulf %1212, %1180 : vector<2x64xf32>
    %1217 = arith.mulf %1211, %1215 : vector<2x64xf32>
    %1218 = arith.addf %1216, %1217 : vector<2x64xf32>
    %1219 = math.tanh %1218 : vector<2x64xf32>
    %1220 = arith.mulf %1213, %1219 : vector<2x64xf32>
    %1221 = vector.extract_strided_slice %969 {offsets = [2, 0], sizes = [2, 256], strides = [1, 1]} : vector<16x256xf32> to vector<2x256xf32>
    %cst_174 = arith.constant dense<0.000000e+00> : vector<2x256xf32>
    %1222 = tpu.matmul %1201, %964, %cst_174 {dimension_numbers = #tpu.dot_dimension_numbers<[1], [0], [0], [1], [0, 0, 1, 1], [], []>} : vector<2x64xf32>, vector<64x256xf32>, vector<2x256xf32> -> vector<2x256xf32>
    %1223 = arith.addf %1222, %1221 : vector<2x256xf32>
    %1224 = vector.extract_strided_slice %1223 {offsets = [0, 0], sizes = [2, 192], strides = [1, 1]} : vector<2x256xf32> to vector<2x192xf32>
    %1225 = arith.negf %1224 : vector<2x192xf32>
    %1226 = math.exp %1225 : vector<2x192xf32>
    %cst_175 = arith.constant 1.000000e+00 : f32
    %1227 = vector.broadcast %cst_175 : f32 to vector<2x192xf32>
    %1228 = arith.addf %1227, %1226 : vector<2x192xf32>
    %1229 = arith.divf %1227, %1228 : vector<2x192xf32>
    %1230 = vector.extract_strided_slice %1229 {offsets = [0, 0], sizes = [2, 64], strides = [1, 1]} : vector<2x192xf32> to vector<2x64xf32>
    %1231 = vector.extract_strided_slice %1229 {offsets = [0, 64], sizes = [2, 64], strides = [1, 1]} : vector<2x192xf32> to vector<2x64xf32>
    %1232 = vector.extract_strided_slice %1229 {offsets = [0, 128], sizes = [2, 64], strides = [1, 1]} : vector<2x192xf32> to vector<2x64xf32>
    %1233 = vector.extract_strided_slice %1223 {offsets = [0, 192], sizes = [2, 64], strides = [1, 1]} : vector<2x256xf32> to vector<2x64xf32>
    %1234 = math.tanh %1233 : vector<2x64xf32>
    %1235 = arith.mulf %1231, %1199 : vector<2x64xf32>
    %1236 = arith.mulf %1230, %1234 : vector<2x64xf32>
    %1237 = arith.addf %1235, %1236 : vector<2x64xf32>
    %1238 = math.tanh %1237 : vector<2x64xf32>
    %1239 = arith.mulf %1232, %1238 : vector<2x64xf32>
    %1240 = vector.extract_strided_slice %968 {offsets = [14, 0], sizes = [2, 256], strides = [1, 1]} : vector<16x256xf32> to vector<2x256xf32>
    %cst_176 = arith.constant dense<0.000000e+00> : vector<2x256xf32>
    %1241 = tpu.matmul %1220, %963, %cst_176 {dimension_numbers = #tpu.dot_dimension_numbers<[1], [0], [0], [1], [0, 0, 1, 1], [], []>} : vector<2x64xf32>, vector<64x256xf32>, vector<2x256xf32> -> vector<2x256xf32>
    %1242 = arith.addf %1241, %1240 : vector<2x256xf32>
    %1243 = vector.extract_strided_slice %1242 {offsets = [0, 0], sizes = [2, 192], strides = [1, 1]} : vector<2x256xf32> to vector<2x192xf32>
    %1244 = arith.negf %1243 : vector<2x192xf32>
    %1245 = math.exp %1244 : vector<2x192xf32>
    %cst_177 = arith.constant 1.000000e+00 : f32
    %1246 = vector.broadcast %cst_177 : f32 to vector<2x192xf32>
    %1247 = arith.addf %1246, %1245 : vector<2x192xf32>
    %1248 = arith.divf %1246, %1247 : vector<2x192xf32>
    %1249 = vector.extract_strided_slice %1248 {offsets = [0, 0], sizes = [2, 64], strides = [1, 1]} : vector<2x192xf32> to vector<2x64xf32>
    %1250 = vector.extract_strided_slice %1248 {offsets = [0, 64], sizes = [2, 64], strides = [1, 1]} : vector<2x192xf32> to vector<2x64xf32>
    %1251 = vector.extract_strided_slice %1248 {offsets = [0, 128], sizes = [2, 64], strides = [1, 1]} : vector<2x192xf32> to vector<2x64xf32>
    %1252 = vector.extract_strided_slice %1242 {offsets = [0, 192], sizes = [2, 64], strides = [1, 1]} : vector<2x256xf32> to vector<2x64xf32>
    %1253 = math.tanh %1252 : vector<2x64xf32>
    %1254 = arith.mulf %1250, %1218 : vector<2x64xf32>
    %1255 = arith.mulf %1249, %1253 : vector<2x64xf32>
    %1256 = arith.addf %1254, %1255 : vector<2x64xf32>
    %1257 = math.tanh %1256 : vector<2x64xf32>
    %1258 = arith.mulf %1251, %1257 : vector<2x64xf32>
    %1259 = vector.extract_strided_slice %969 {offsets = [0, 0], sizes = [2, 256], strides = [1, 1]} : vector<16x256xf32> to vector<2x256xf32>
    %cst_178 = arith.constant dense<0.000000e+00> : vector<2x256xf32>
    %1260 = tpu.matmul %1239, %964, %cst_178 {dimension_numbers = #tpu.dot_dimension_numbers<[1], [0], [0], [1], [0, 0, 1, 1], [], []>} : vector<2x64xf32>, vector<64x256xf32>, vector<2x256xf32> -> vector<2x256xf32>
    %1261 = arith.addf %1260, %1259 : vector<2x256xf32>
    %1262 = vector.extract_strided_slice %1261 {offsets = [0, 0], sizes = [2, 192], strides = [1, 1]} : vector<2x256xf32> to vector<2x192xf32>
    %1263 = arith.negf %1262 : vector<2x192xf32>
    %1264 = math.exp %1263 : vector<2x192xf32>
    %cst_179 = arith.constant 1.000000e+00 : f32
    %1265 = vector.broadcast %cst_179 : f32 to vector<2x192xf32>
    %1266 = arith.addf %1265, %1264 : vector<2x192xf32>
    %1267 = arith.divf %1265, %1266 : vector<2x192xf32>
    %1268 = vector.extract_strided_slice %1267 {offsets = [0, 0], sizes = [2, 64], strides = [1, 1]} : vector<2x192xf32> to vector<2x64xf32>
    %1269 = vector.extract_strided_slice %1267 {offsets = [0, 64], sizes = [2, 64], strides = [1, 1]} : vector<2x192xf32> to vector<2x64xf32>
    %1270 = vector.extract_strided_slice %1267 {offsets = [0, 128], sizes = [2, 64], strides = [1, 1]} : vector<2x192xf32> to vector<2x64xf32>
    %1271 = vector.extract_strided_slice %1261 {offsets = [0, 192], sizes = [2, 64], strides = [1, 1]} : vector<2x256xf32> to vector<2x64xf32>
    %1272 = math.tanh %1271 : vector<2x64xf32>
    %1273 = arith.mulf %1269, %1237 : vector<2x64xf32>
    %1274 = arith.mulf %1268, %1272 : vector<2x64xf32>
    %1275 = arith.addf %1273, %1274 : vector<2x64xf32>
    %1276 = math.tanh %1275 : vector<2x64xf32>
    %1277 = arith.mulf %1270, %1276 : vector<2x64xf32>
    %1278 = tpu.concatenate %992, %1030, %1068, %1106, %1144, %1182, %1220, %1258 in 0 : vector<2x64xf32>, vector<2x64xf32>, vector<2x64xf32>, vector<2x64xf32>, vector<2x64xf32>, vector<2x64xf32>, vector<2x64xf32>, vector<2x64xf32> -> vector<16x64xf32>
    %1279 = tpu.concatenate %1277, %1239, %1201, %1163, %1125, %1087, %1049, %1011 in 0 : vector<2x64xf32>, vector<2x64xf32>, vector<2x64xf32>, vector<2x64xf32>, vector<2x64xf32>, vector<2x64xf32>, vector<2x64xf32>, vector<2x64xf32> -> vector<16x64xf32>
    %1280 = tpu.concatenate %1278, %1279 in 1 : vector<16x64xf32>, vector<16x64xf32> -> vector<16x128xf32>
    %c0_180 = arith.constant 0 : index
    %c0_181 = arith.constant 0 : index
    %1281 = vector.load %arg17[%c0_180, %c0_181] : memref<128x512xf32, #tpu.memory_space<vmem>>, vector<128x512xf32>
    %c0_182 = arith.constant 0 : index
    %c0_183 = arith.constant 0 : index
    %1282 = vector.load %arg18[%c0_182, %c0_183] : memref<1x512xf32, #tpu.memory_space<vmem>>, vector<1x512xf32>
    %c0_184 = arith.constant 0 : index
    %c0_185 = arith.constant 0 : index
    %1283 = vector.load %arg19[%c0_184, %c0_185] : memref<64x256xf32, #tpu.memory_space<vmem>>, vector<64x256xf32>
    %c0_186 = arith.constant 0 : index
    %c0_187 = arith.constant 0 : index
    %1284 = vector.load %arg20[%c0_186, %c0_187] : memref<64x256xf32, #tpu.memory_space<vmem>>, vector<64x256xf32>
    %cst_188 = arith.constant dense<0.000000e+00> : vector<16x512xf32>
    %1285 = tpu.matmul %1280, %1281, %cst_188 {dimension_numbers = #tpu.dot_dimension_numbers<[1], [0], [0], [1], [0, 0, 1, 1], [], []>} : vector<16x128xf32>, vector<128x512xf32>, vector<16x512xf32> -> vector<16x512xf32>
    %1286 = vector.broadcast %1282 : vector<1x512xf32> to vector<16x512xf32>
    %1287 = arith.addf %1285, %1286 : vector<16x512xf32>
    %1288 = vector.extract_strided_slice %1287 {offsets = [0, 0], sizes = [16, 256], strides = [1, 1]} : vector<16x512xf32> to vector<16x256xf32>
    %1289 = vector.extract_strided_slice %1287 {offsets = [0, 256], sizes = [16, 256], strides = [1, 1]} : vector<16x512xf32> to vector<16x256xf32>
    %cst_189 = arith.constant 0.000000e+00 : f32
    %1290 = vector.broadcast %cst_189 : f32 to vector<2x64xf32>
    %cst_190 = arith.constant 0.000000e+00 : f32
    %1291 = vector.broadcast %cst_190 : f32 to vector<2x64xf32>
    %cst_191 = arith.constant 0.000000e+00 : f32
    %1292 = vector.broadcast %cst_191 : f32 to vector<2x64xf32>
    %cst_192 = arith.constant 0.000000e+00 : f32
    %1293 = vector.broadcast %cst_192 : f32 to vector<2x64xf32>
    %1294 = vector.extract_strided_slice %1288 {offsets = [0, 0], sizes = [2, 256], strides = [1, 1]} : vector<16x256xf32> to vector<2x256xf32>
    %cst_193 = arith.constant dense<0.000000e+00> : vector<2x256xf32>
    %1295 = tpu.matmul %1290, %1283, %cst_193 {dimension_numbers = #tpu.dot_dimension_numbers<[1], [0], [0], [1], [0, 0, 1, 1], [], []>} : vector<2x64xf32>, vector<64x256xf32>, vector<2x256xf32> -> vector<2x256xf32>
    %1296 = arith.addf %1295, %1294 : vector<2x256xf32>
    %1297 = vector.extract_strided_slice %1296 {offsets = [0, 0], sizes = [2, 192], strides = [1, 1]} : vector<2x256xf32> to vector<2x192xf32>
    %1298 = arith.negf %1297 : vector<2x192xf32>
    %1299 = math.exp %1298 : vector<2x192xf32>
    %cst_194 = arith.constant 1.000000e+00 : f32
    %1300 = vector.broadcast %cst_194 : f32 to vector<2x192xf32>
    %1301 = arith.addf %1300, %1299 : vector<2x192xf32>
    %1302 = arith.divf %1300, %1301 : vector<2x192xf32>
    %1303 = vector.extract_strided_slice %1302 {offsets = [0, 0], sizes = [2, 64], strides = [1, 1]} : vector<2x192xf32> to vector<2x64xf32>
    %1304 = vector.extract_strided_slice %1302 {offsets = [0, 64], sizes = [2, 64], strides = [1, 1]} : vector<2x192xf32> to vector<2x64xf32>
    %1305 = vector.extract_strided_slice %1302 {offsets = [0, 128], sizes = [2, 64], strides = [1, 1]} : vector<2x192xf32> to vector<2x64xf32>
    %1306 = vector.extract_strided_slice %1296 {offsets = [0, 192], sizes = [2, 64], strides = [1, 1]} : vector<2x256xf32> to vector<2x64xf32>
    %1307 = math.tanh %1306 : vector<2x64xf32>
    %1308 = arith.mulf %1304, %1291 : vector<2x64xf32>
    %1309 = arith.mulf %1303, %1307 : vector<2x64xf32>
    %1310 = arith.addf %1308, %1309 : vector<2x64xf32>
    %1311 = math.tanh %1310 : vector<2x64xf32>
    %1312 = arith.mulf %1305, %1311 : vector<2x64xf32>
    %1313 = vector.extract_strided_slice %1289 {offsets = [14, 0], sizes = [2, 256], strides = [1, 1]} : vector<16x256xf32> to vector<2x256xf32>
    %cst_195 = arith.constant dense<0.000000e+00> : vector<2x256xf32>
    %1314 = tpu.matmul %1292, %1284, %cst_195 {dimension_numbers = #tpu.dot_dimension_numbers<[1], [0], [0], [1], [0, 0, 1, 1], [], []>} : vector<2x64xf32>, vector<64x256xf32>, vector<2x256xf32> -> vector<2x256xf32>
    %1315 = arith.addf %1314, %1313 : vector<2x256xf32>
    %1316 = vector.extract_strided_slice %1315 {offsets = [0, 0], sizes = [2, 192], strides = [1, 1]} : vector<2x256xf32> to vector<2x192xf32>
    %1317 = arith.negf %1316 : vector<2x192xf32>
    %1318 = math.exp %1317 : vector<2x192xf32>
    %cst_196 = arith.constant 1.000000e+00 : f32
    %1319 = vector.broadcast %cst_196 : f32 to vector<2x192xf32>
    %1320 = arith.addf %1319, %1318 : vector<2x192xf32>
    %1321 = arith.divf %1319, %1320 : vector<2x192xf32>
    %1322 = vector.extract_strided_slice %1321 {offsets = [0, 0], sizes = [2, 64], strides = [1, 1]} : vector<2x192xf32> to vector<2x64xf32>
    %1323 = vector.extract_strided_slice %1321 {offsets = [0, 64], sizes = [2, 64], strides = [1, 1]} : vector<2x192xf32> to vector<2x64xf32>
    %1324 = vector.extract_strided_slice %1321 {offsets = [0, 128], sizes = [2, 64], strides = [1, 1]} : vector<2x192xf32> to vector<2x64xf32>
    %1325 = vector.extract_strided_slice %1315 {offsets = [0, 192], sizes = [2, 64], strides = [1, 1]} : vector<2x256xf32> to vector<2x64xf32>
    %1326 = math.tanh %1325 : vector<2x64xf32>
    %1327 = arith.mulf %1323, %1293 : vector<2x64xf32>
    %1328 = arith.mulf %1322, %1326 : vector<2x64xf32>
    %1329 = arith.addf %1327, %1328 : vector<2x64xf32>
    %1330 = math.tanh %1329 : vector<2x64xf32>
    %1331 = arith.mulf %1324, %1330 : vector<2x64xf32>
    %1332 = vector.extract_strided_slice %1288 {offsets = [2, 0], sizes = [2, 256], strides = [1, 1]} : vector<16x256xf32> to vector<2x256xf32>
    %cst_197 = arith.constant dense<0.000000e+00> : vector<2x256xf32>
    %1333 = tpu.matmul %1312, %1283, %cst_197 {dimension_numbers = #tpu.dot_dimension_numbers<[1], [0], [0], [1], [0, 0, 1, 1], [], []>} : vector<2x64xf32>, vector<64x256xf32>, vector<2x256xf32> -> vector<2x256xf32>
    %1334 = arith.addf %1333, %1332 : vector<2x256xf32>
    %1335 = vector.extract_strided_slice %1334 {offsets = [0, 0], sizes = [2, 192], strides = [1, 1]} : vector<2x256xf32> to vector<2x192xf32>
    %1336 = arith.negf %1335 : vector<2x192xf32>
    %1337 = math.exp %1336 : vector<2x192xf32>
    %cst_198 = arith.constant 1.000000e+00 : f32
    %1338 = vector.broadcast %cst_198 : f32 to vector<2x192xf32>
    %1339 = arith.addf %1338, %1337 : vector<2x192xf32>
    %1340 = arith.divf %1338, %1339 : vector<2x192xf32>
    %1341 = vector.extract_strided_slice %1340 {offsets = [0, 0], sizes = [2, 64], strides = [1, 1]} : vector<2x192xf32> to vector<2x64xf32>
    %1342 = vector.extract_strided_slice %1340 {offsets = [0, 64], sizes = [2, 64], strides = [1, 1]} : vector<2x192xf32> to vector<2x64xf32>
    %1343 = vector.extract_strided_slice %1340 {offsets = [0, 128], sizes = [2, 64], strides = [1, 1]} : vector<2x192xf32> to vector<2x64xf32>
    %1344 = vector.extract_strided_slice %1334 {offsets = [0, 192], sizes = [2, 64], strides = [1, 1]} : vector<2x256xf32> to vector<2x64xf32>
    %1345 = math.tanh %1344 : vector<2x64xf32>
    %1346 = arith.mulf %1342, %1310 : vector<2x64xf32>
    %1347 = arith.mulf %1341, %1345 : vector<2x64xf32>
    %1348 = arith.addf %1346, %1347 : vector<2x64xf32>
    %1349 = math.tanh %1348 : vector<2x64xf32>
    %1350 = arith.mulf %1343, %1349 : vector<2x64xf32>
    %1351 = vector.extract_strided_slice %1288 {offsets = [4, 0], sizes = [2, 256], strides = [1, 1]} : vector<16x256xf32> to vector<2x256xf32>
    %cst_199 = arith.constant dense<0.000000e+00> : vector<2x256xf32>
    %1352 = tpu.matmul %1350, %1283, %cst_199 {dimension_numbers = #tpu.dot_dimension_numbers<[1], [0], [0], [1], [0, 0, 1, 1], [], []>} : vector<2x64xf32>, vector<64x256xf32>, vector<2x256xf32> -> vector<2x256xf32>
    %1353 = arith.addf %1352, %1351 : vector<2x256xf32>
    %1354 = vector.extract_strided_slice %1353 {offsets = [0, 0], sizes = [2, 192], strides = [1, 1]} : vector<2x256xf32> to vector<2x192xf32>
    %1355 = arith.negf %1354 : vector<2x192xf32>
    %1356 = math.exp %1355 : vector<2x192xf32>
    %cst_200 = arith.constant 1.000000e+00 : f32
    %1357 = vector.broadcast %cst_200 : f32 to vector<2x192xf32>
    %1358 = arith.addf %1357, %1356 : vector<2x192xf32>
    %1359 = arith.divf %1357, %1358 : vector<2x192xf32>
    %1360 = vector.extract_strided_slice %1359 {offsets = [0, 0], sizes = [2, 64], strides = [1, 1]} : vector<2x192xf32> to vector<2x64xf32>
    %1361 = vector.extract_strided_slice %1359 {offsets = [0, 64], sizes = [2, 64], strides = [1, 1]} : vector<2x192xf32> to vector<2x64xf32>
    %1362 = vector.extract_strided_slice %1359 {offsets = [0, 128], sizes = [2, 64], strides = [1, 1]} : vector<2x192xf32> to vector<2x64xf32>
    %1363 = vector.extract_strided_slice %1353 {offsets = [0, 192], sizes = [2, 64], strides = [1, 1]} : vector<2x256xf32> to vector<2x64xf32>
    %1364 = math.tanh %1363 : vector<2x64xf32>
    %1365 = arith.mulf %1361, %1348 : vector<2x64xf32>
    %1366 = arith.mulf %1360, %1364 : vector<2x64xf32>
    %1367 = arith.addf %1365, %1366 : vector<2x64xf32>
    %1368 = math.tanh %1367 : vector<2x64xf32>
    %1369 = arith.mulf %1362, %1368 : vector<2x64xf32>
    %1370 = vector.extract_strided_slice %1288 {offsets = [6, 0], sizes = [2, 256], strides = [1, 1]} : vector<16x256xf32> to vector<2x256xf32>
    %cst_201 = arith.constant dense<0.000000e+00> : vector<2x256xf32>
    %1371 = tpu.matmul %1369, %1283, %cst_201 {dimension_numbers = #tpu.dot_dimension_numbers<[1], [0], [0], [1], [0, 0, 1, 1], [], []>} : vector<2x64xf32>, vector<64x256xf32>, vector<2x256xf32> -> vector<2x256xf32>
    %1372 = arith.addf %1371, %1370 : vector<2x256xf32>
    %1373 = vector.extract_strided_slice %1372 {offsets = [0, 0], sizes = [2, 192], strides = [1, 1]} : vector<2x256xf32> to vector<2x192xf32>
    %1374 = arith.negf %1373 : vector<2x192xf32>
    %1375 = math.exp %1374 : vector<2x192xf32>
    %cst_202 = arith.constant 1.000000e+00 : f32
    %1376 = vector.broadcast %cst_202 : f32 to vector<2x192xf32>
    %1377 = arith.addf %1376, %1375 : vector<2x192xf32>
    %1378 = arith.divf %1376, %1377 : vector<2x192xf32>
    %1379 = vector.extract_strided_slice %1378 {offsets = [0, 0], sizes = [2, 64], strides = [1, 1]} : vector<2x192xf32> to vector<2x64xf32>
    %1380 = vector.extract_strided_slice %1378 {offsets = [0, 64], sizes = [2, 64], strides = [1, 1]} : vector<2x192xf32> to vector<2x64xf32>
    %1381 = vector.extract_strided_slice %1378 {offsets = [0, 128], sizes = [2, 64], strides = [1, 1]} : vector<2x192xf32> to vector<2x64xf32>
    %1382 = vector.extract_strided_slice %1372 {offsets = [0, 192], sizes = [2, 64], strides = [1, 1]} : vector<2x256xf32> to vector<2x64xf32>
    %1383 = math.tanh %1382 : vector<2x64xf32>
    %1384 = arith.mulf %1380, %1367 : vector<2x64xf32>
    %1385 = arith.mulf %1379, %1383 : vector<2x64xf32>
    %1386 = arith.addf %1384, %1385 : vector<2x64xf32>
    %1387 = math.tanh %1386 : vector<2x64xf32>
    %1388 = arith.mulf %1381, %1387 : vector<2x64xf32>
    %1389 = vector.extract_strided_slice %1288 {offsets = [8, 0], sizes = [2, 256], strides = [1, 1]} : vector<16x256xf32> to vector<2x256xf32>
    %cst_203 = arith.constant dense<0.000000e+00> : vector<2x256xf32>
    %1390 = tpu.matmul %1388, %1283, %cst_203 {dimension_numbers = #tpu.dot_dimension_numbers<[1], [0], [0], [1], [0, 0, 1, 1], [], []>} : vector<2x64xf32>, vector<64x256xf32>, vector<2x256xf32> -> vector<2x256xf32>
    %1391 = arith.addf %1390, %1389 : vector<2x256xf32>
    %1392 = vector.extract_strided_slice %1391 {offsets = [0, 0], sizes = [2, 192], strides = [1, 1]} : vector<2x256xf32> to vector<2x192xf32>
    %1393 = arith.negf %1392 : vector<2x192xf32>
    %1394 = math.exp %1393 : vector<2x192xf32>
    %cst_204 = arith.constant 1.000000e+00 : f32
    %1395 = vector.broadcast %cst_204 : f32 to vector<2x192xf32>
    %1396 = arith.addf %1395, %1394 : vector<2x192xf32>
    %1397 = arith.divf %1395, %1396 : vector<2x192xf32>
    %1398 = vector.extract_strided_slice %1397 {offsets = [0, 0], sizes = [2, 64], strides = [1, 1]} : vector<2x192xf32> to vector<2x64xf32>
    %1399 = vector.extract_strided_slice %1397 {offsets = [0, 64], sizes = [2, 64], strides = [1, 1]} : vector<2x192xf32> to vector<2x64xf32>
    %1400 = vector.extract_strided_slice %1397 {offsets = [0, 128], sizes = [2, 64], strides = [1, 1]} : vector<2x192xf32> to vector<2x64xf32>
    %1401 = vector.extract_strided_slice %1391 {offsets = [0, 192], sizes = [2, 64], strides = [1, 1]} : vector<2x256xf32> to vector<2x64xf32>
    %1402 = math.tanh %1401 : vector<2x64xf32>
    %1403 = arith.mulf %1399, %1386 : vector<2x64xf32>
    %1404 = arith.mulf %1398, %1402 : vector<2x64xf32>
    %1405 = arith.addf %1403, %1404 : vector<2x64xf32>
    %1406 = math.tanh %1405 : vector<2x64xf32>
    %1407 = arith.mulf %1400, %1406 : vector<2x64xf32>
    %1408 = vector.extract_strided_slice %1288 {offsets = [10, 0], sizes = [2, 256], strides = [1, 1]} : vector<16x256xf32> to vector<2x256xf32>
    %cst_205 = arith.constant dense<0.000000e+00> : vector<2x256xf32>
    %1409 = tpu.matmul %1407, %1283, %cst_205 {dimension_numbers = #tpu.dot_dimension_numbers<[1], [0], [0], [1], [0, 0, 1, 1], [], []>} : vector<2x64xf32>, vector<64x256xf32>, vector<2x256xf32> -> vector<2x256xf32>
    %1410 = arith.addf %1409, %1408 : vector<2x256xf32>
    %1411 = vector.extract_strided_slice %1410 {offsets = [0, 0], sizes = [2, 192], strides = [1, 1]} : vector<2x256xf32> to vector<2x192xf32>
    %1412 = arith.negf %1411 : vector<2x192xf32>
    %1413 = math.exp %1412 : vector<2x192xf32>
    %cst_206 = arith.constant 1.000000e+00 : f32
    %1414 = vector.broadcast %cst_206 : f32 to vector<2x192xf32>
    %1415 = arith.addf %1414, %1413 : vector<2x192xf32>
    %1416 = arith.divf %1414, %1415 : vector<2x192xf32>
    %1417 = vector.extract_strided_slice %1416 {offsets = [0, 0], sizes = [2, 64], strides = [1, 1]} : vector<2x192xf32> to vector<2x64xf32>
    %1418 = vector.extract_strided_slice %1416 {offsets = [0, 64], sizes = [2, 64], strides = [1, 1]} : vector<2x192xf32> to vector<2x64xf32>
    %1419 = vector.extract_strided_slice %1416 {offsets = [0, 128], sizes = [2, 64], strides = [1, 1]} : vector<2x192xf32> to vector<2x64xf32>
    %1420 = vector.extract_strided_slice %1410 {offsets = [0, 192], sizes = [2, 64], strides = [1, 1]} : vector<2x256xf32> to vector<2x64xf32>
    %1421 = math.tanh %1420 : vector<2x64xf32>
    %1422 = arith.mulf %1418, %1405 : vector<2x64xf32>
    %1423 = arith.mulf %1417, %1421 : vector<2x64xf32>
    %1424 = arith.addf %1422, %1423 : vector<2x64xf32>
    %1425 = math.tanh %1424 : vector<2x64xf32>
    %1426 = arith.mulf %1419, %1425 : vector<2x64xf32>
    %1427 = vector.extract_strided_slice %1288 {offsets = [12, 0], sizes = [2, 256], strides = [1, 1]} : vector<16x256xf32> to vector<2x256xf32>
    %cst_207 = arith.constant dense<0.000000e+00> : vector<2x256xf32>
    %1428 = tpu.matmul %1426, %1283, %cst_207 {dimension_numbers = #tpu.dot_dimension_numbers<[1], [0], [0], [1], [0, 0, 1, 1], [], []>} : vector<2x64xf32>, vector<64x256xf32>, vector<2x256xf32> -> vector<2x256xf32>
    %1429 = arith.addf %1428, %1427 : vector<2x256xf32>
    %1430 = vector.extract_strided_slice %1429 {offsets = [0, 0], sizes = [2, 192], strides = [1, 1]} : vector<2x256xf32> to vector<2x192xf32>
    %1431 = arith.negf %1430 : vector<2x192xf32>
    %1432 = math.exp %1431 : vector<2x192xf32>
    %cst_208 = arith.constant 1.000000e+00 : f32
    %1433 = vector.broadcast %cst_208 : f32 to vector<2x192xf32>
    %1434 = arith.addf %1433, %1432 : vector<2x192xf32>
    %1435 = arith.divf %1433, %1434 : vector<2x192xf32>
    %1436 = vector.extract_strided_slice %1435 {offsets = [0, 0], sizes = [2, 64], strides = [1, 1]} : vector<2x192xf32> to vector<2x64xf32>
    %1437 = vector.extract_strided_slice %1435 {offsets = [0, 64], sizes = [2, 64], strides = [1, 1]} : vector<2x192xf32> to vector<2x64xf32>
    %1438 = vector.extract_strided_slice %1435 {offsets = [0, 128], sizes = [2, 64], strides = [1, 1]} : vector<2x192xf32> to vector<2x64xf32>
    %1439 = vector.extract_strided_slice %1429 {offsets = [0, 192], sizes = [2, 64], strides = [1, 1]} : vector<2x256xf32> to vector<2x64xf32>
    %1440 = math.tanh %1439 : vector<2x64xf32>
    %1441 = arith.mulf %1437, %1424 : vector<2x64xf32>
    %1442 = arith.mulf %1436, %1440 : vector<2x64xf32>
    %1443 = arith.addf %1441, %1442 : vector<2x64xf32>
    %1444 = math.tanh %1443 : vector<2x64xf32>
    %1445 = arith.mulf %1438, %1444 : vector<2x64xf32>
    %1446 = vector.extract_strided_slice %1288 {offsets = [14, 0], sizes = [2, 256], strides = [1, 1]} : vector<16x256xf32> to vector<2x256xf32>
    %cst_209 = arith.constant dense<0.000000e+00> : vector<2x256xf32>
    %1447 = tpu.matmul %1445, %1283, %cst_209 {dimension_numbers = #tpu.dot_dimension_numbers<[1], [0], [0], [1], [0, 0, 1, 1], [], []>} : vector<2x64xf32>, vector<64x256xf32>, vector<2x256xf32> -> vector<2x256xf32>
    %1448 = arith.addf %1447, %1446 : vector<2x256xf32>
    %1449 = vector.extract_strided_slice %1448 {offsets = [0, 0], sizes = [2, 192], strides = [1, 1]} : vector<2x256xf32> to vector<2x192xf32>
    %1450 = arith.negf %1449 : vector<2x192xf32>
    %1451 = math.exp %1450 : vector<2x192xf32>
    %cst_210 = arith.constant 1.000000e+00 : f32
    %1452 = vector.broadcast %cst_210 : f32 to vector<2x192xf32>
    %1453 = arith.addf %1452, %1451 : vector<2x192xf32>
    %1454 = arith.divf %1452, %1453 : vector<2x192xf32>
    %1455 = vector.extract_strided_slice %1454 {offsets = [0, 0], sizes = [2, 64], strides = [1, 1]} : vector<2x192xf32> to vector<2x64xf32>
    %1456 = vector.extract_strided_slice %1454 {offsets = [0, 64], sizes = [2, 64], strides = [1, 1]} : vector<2x192xf32> to vector<2x64xf32>
    %1457 = vector.extract_strided_slice %1454 {offsets = [0, 128], sizes = [2, 64], strides = [1, 1]} : vector<2x192xf32> to vector<2x64xf32>
    %1458 = vector.extract_strided_slice %1448 {offsets = [0, 192], sizes = [2, 64], strides = [1, 1]} : vector<2x256xf32> to vector<2x64xf32>
    %1459 = math.tanh %1458 : vector<2x64xf32>
    %1460 = arith.mulf %1456, %1443 : vector<2x64xf32>
    %1461 = arith.mulf %1455, %1459 : vector<2x64xf32>
    %1462 = arith.addf %1460, %1461 : vector<2x64xf32>
    %1463 = math.tanh %1462 : vector<2x64xf32>
    %1464 = arith.mulf %1457, %1463 : vector<2x64xf32>
    %1465 = tpu.concatenate %1464, %1331 in 1 : vector<2x64xf32>, vector<2x64xf32> -> vector<2x128xf32>
    %c0_211 = arith.constant 0 : index
    %c0_212 = arith.constant 0 : index
    %1466 = vector.load %arg21[%c0_211, %c0_212] : memref<128x8xf32, #tpu.memory_space<vmem>>, vector<128x8xf32>
    %cst_213 = arith.constant dense<0.000000e+00> : vector<2x8xf32>
    %1467 = tpu.matmul %1465, %1466, %cst_213 {dimension_numbers = #tpu.dot_dimension_numbers<[1], [0], [0], [1], [0, 0, 1, 1], [], []>} : vector<2x128xf32>, vector<128x8xf32>, vector<2x8xf32> -> vector<2x8xf32>
    %c0_214 = arith.constant 0 : index
    %c0_215 = arith.constant 0 : index
    %1468 = vector.load %arg22[%c0_214, %c0_215] : memref<1x8xf32, #tpu.memory_space<vmem>>, vector<1x8xf32>
    %1469 = vector.broadcast %1468 : vector<1x8xf32> to vector<2x8xf32>
    %1470 = arith.addf %1467, %1469 : vector<2x8xf32>
    %c0_216 = arith.constant 0 : index
    %c0_217 = arith.constant 0 : index
    %1471 = vector.load %arg23[%c0_216, %c0_217] : memref<2x8xf32, #tpu.memory_space<vmem>>, vector<2x8xf32>
    tpu.vector_store %arg23[%c0_216, %c0_217], %1470 {strides = array<i32>} : memref<2x8xf32, #tpu.memory_space<vmem>>, vector<2x8xf32>,
    return
  }
}

</mosaic_0001>

<llo_original>
// kernel: crime_lstm_forward.1
$region0: #{crime_lstm_forward.1}
  #allocation0 [shape = 'u32[]', space=smem, size = 0x4, offset = 0x4, fixed_abs, tag = 'smem constant byte address 0x4 - core index']
  #allocation1 [shape = 'u32[72,128]{1,0:T(1,128)}', space=vmem, size = 0x9000, scoped, tag = 'internal scratch']
  %s0 = inlined_call_operand.vmem [shape: f32[16,8], index: 0, kind: input, shape index: {}]
  %s1 = inlined_call_operand.vmem [shape: f32[8,512], index: 1, kind: input, shape index: {}]
  %s2 = inlined_call_operand.vmem [shape: f32[1,512], index: 2, kind: input, shape index: {}]
  %s3 = inlined_call_operand.vmem [shape: f32[64,256], index: 3, kind: input, shape index: {}]
  %s4 = inlined_call_operand.vmem [shape: f32[64,256], index: 4, kind: input, shape index: {}]
  %s5 = inlined_call_operand.vmem [shape: f32[128,512], index: 5, kind: input, shape index: {}]
  %s6 = inlined_call_operand.vmem [shape: f32[1,512], index: 6, kind: input, shape index: {}]
  %s7 = inlined_call_operand.vmem [shape: f32[64,256], index: 7, kind: input, shape index: {}]
  %s8 = inlined_call_operand.vmem [shape: f32[64,256], index: 8, kind: input, shape index: {}]
  %s9 = inlined_call_operand.vmem [shape: f32[128,512], index: 9, kind: input, shape index: {}]
  %s10 = inlined_call_operand.vmem [shape: f32[1,512], index: 10, kind: input, shape index: {}]
  %s11 = inlined_call_operand.vmem [shape: f32[64,256], index: 11, kind: input, shape index: {}]
  %s12 = inlined_call_operand.vmem [shape: f32[64,256], index: 12, kind: input, shape index: {}]
  %s13 = inlined_call_operand.vmem [shape: f32[128,512], index: 13, kind: input, shape index: {}]
  %s14 = inlined_call_operand.vmem [shape: f32[1,512], index: 14, kind: input, shape index: {}]
  %s15 = inlined_call_operand.vmem [shape: f32[64,256], index: 15, kind: input, shape index: {}]
  %s16 = inlined_call_operand.vmem [shape: f32[64,256], index: 16, kind: input, shape index: {}]
  %s17 = inlined_call_operand.vmem [shape: f32[128,512], index: 17, kind: input, shape index: {}]
  %s18 = inlined_call_operand.vmem [shape: f32[1,512], index: 18, kind: input, shape index: {}]
  %s19 = inlined_call_operand.vmem [shape: f32[64,256], index: 19, kind: input, shape index: {}]
  %s20 = inlined_call_operand.vmem [shape: f32[64,256], index: 20, kind: input, shape index: {}]
  %s21 = inlined_call_operand.vmem [shape: f32[128,8], index: 21, kind: input, shape index: {}]
  %s22 = inlined_call_operand.vmem [shape: f32[1,8], index: 22, kind: input, shape index: {}]
  %s23 = inlined_call_operand.hbm [shape: f32[2,8], index: 23, kind: output, shape index: {}]
  %s24 = sld [smem:[#allocation0]]
  $region102: #{crime_lstm_forward.1} parent=0
    _
  %s26 = ssub.s32 1, %s24
  %s27 = scalar_select 0, %s26, %s24
  $region1: #{crime_lstm_forward.1} parent=0
    #allocation2 [shape = 'u8[1024]{0}', space=vmem, size = 0x400, scoped, tag = 'output window, operand 0, single buffered']
    #allocation3 [shape = 's32[1]{0}', space=sflag, size = 0x4, scoped, tag = 'scoped memory for crime_lstm_forward.1']
    %28 = vsyncpa [#allocation3], 0
    // Predicated region
    $region2: #{crime_lstm_forward.1} parent=1 // pred_check
      _
    $region3: #{crime_lstm_forward.1} parent=1 // pred_check_branch
      %30 = sbr.rel (0) target = $region5
    $region4: #{crime_lstm_forward.1} parent=1 // pred_region
      _
    $region5: #{crime_lstm_forward.1} parent=1 // pred_fallthru
      _
    // Predicated region
    $region6: #{crime_lstm_forward.1} parent=1 // pred_check
      _
    $region7: #{crime_lstm_forward.1} parent=1 // pred_check_branch
      %32 = sbr.rel (0) target = $region9
    $region8: #{crime_lstm_forward.1} parent=1 // pred_region
      _
    $region9: #{crime_lstm_forward.1} parent=1 // pred_fallthru
      _
    // Predicated region
    $region10: #{crime_lstm_forward.1} parent=1 // pred_check
      _
    $region11: #{crime_lstm_forward.1} parent=1 // pred_check_branch
      %34 = sbr.rel (0) target = $region13
    $region12: #{crime_lstm_forward.1} parent=1 // pred_region
      _
    $region13: #{crime_lstm_forward.1} parent=1 // pred_fallthru
      _
    // Predicated region
    $region14: #{crime_lstm_forward.1} parent=1 // pred_check
      _
    $region15: #{crime_lstm_forward.1} parent=1 // pred_check_branch
      %36 = sbr.rel (0) target = $region17
    $region16: #{crime_lstm_forward.1} parent=1 // pred_region
      _
    $region17: #{crime_lstm_forward.1} parent=1 // pred_fallthru
      _
    // Predicated region
    $region18: #{crime_lstm_forward.1} parent=1 // pred_check
      _
    $region19: #{crime_lstm_forward.1} parent=1 // pred_check_branch
      %38 = sbr.rel (0) target = $region21
    $region20: #{crime_lstm_forward.1} parent=1 // pred_region
      _
    $region21: #{crime_lstm_forward.1} parent=1 // pred_fallthru
      _
    // Predicated region
    $region22: #{crime_lstm_forward.1} parent=1 // pred_check
      _
    $region23: #{crime_lstm_forward.1} parent=1 // pred_check_branch
      %40 = sbr.rel (0) target = $region25
    $region24: #{crime_lstm_forward.1} parent=1 // pred_region
      _
    $region25: #{crime_lstm_forward.1} parent=1 // pred_fallthru
      _
    // Predicated region
    $region26: #{crime_lstm_forward.1} parent=1 // pred_check
      _
    $region27: #{crime_lstm_forward.1} parent=1 // pred_check_branch
      %42 = sbr.rel (0) target = $region29
    $region28: #{crime_lstm_forward.1} parent=1 // pred_region
      _
    $region29: #{crime_lstm_forward.1} parent=1 // pred_fallthru
      _
    // Predicated region
    $region30: #{crime_lstm_forward.1} parent=1 // pred_check
      _
    $region31: #{crime_lstm_forward.1} parent=1 // pred_check_branch
      %44 = sbr.rel (0) target = $region33
    $region32: #{crime_lstm_forward.1} parent=1 // pred_region
      _
    $region33: #{crime_lstm_forward.1} parent=1 // pred_fallthru
      _
    // Predicated region
    $region34: #{crime_lstm_forward.1} parent=1 // pred_check
      _
    $region35: #{crime_lstm_forward.1} parent=1 // pred_check_branch
      %46 = sbr.rel (0) target = $region37
    $region36: #{crime_lstm_forward.1} parent=1 // pred_region
      _
    $region37: #{crime_lstm_forward.1} parent=1 // pred_fallthru
      _
    // Predicated region
    $region38: #{crime_lstm_forward.1} parent=1 // pred_check
      _
    $region39: #{crime_lstm_forward.1} parent=1 // pred_check_branch
      %48 = sbr.rel (0) target = $region41
    $region40: #{crime_lstm_forward.1} parent=1 // pred_region
      _
    $region41: #{crime_lstm_forward.1} parent=1 // pred_fallthru
      _
    // Predicated region
    $region42: #{crime_lstm_forward.1} parent=1 // pred_check
      _
    $region43: #{crime_lstm_forward.1} parent=1 // pred_check_branch
      %50 = sbr.rel (0) target = $region45
    $region44: #{crime_lstm_forward.1} parent=1 // pred_region
      _
    $region45: #{crime_lstm_forward.1} parent=1 // pred_fallthru
      _
    // Predicated region
    $region46: #{crime_lstm_forward.1} parent=1 // pred_check
      _
    $region47: #{crime_lstm_forward.1} parent=1 // pred_check_branch
      %52 = sbr.rel (0) target = $region49
    $region48: #{crime_lstm_forward.1} parent=1 // pred_region
      _
    $region49: #{crime_lstm_forward.1} parent=1 // pred_fallthru
      _
    // Predicated region
    $region50: #{crime_lstm_forward.1} parent=1 // pred_check
      _
    $region51: #{crime_lstm_forward.1} parent=1 // pred_check_branch
      %54 = sbr.rel (0) target = $region53
    $region52: #{crime_lstm_forward.1} parent=1 // pred_region
      _
    $region53: #{crime_lstm_forward.1} parent=1 // pred_fallthru
      _
    // Predicated region
    $region54: #{crime_lstm_forward.1} parent=1 // pred_check
      _
    $region55: #{crime_lstm_forward.1} parent=1 // pred_check_branch
      %56 = sbr.rel (0) target = $region57
    $region56: #{crime_lstm_forward.1} parent=1 // pred_region
      _
    $region57: #{crime_lstm_forward.1} parent=1 // pred_fallthru
      _
    // Predicated region
    $region58: #{crime_lstm_forward.1} parent=1 // pred_check
      _
    $region59: #{crime_lstm_forward.1} parent=1 // pred_check_branch
      %58 = sbr.rel (0) target = $region61
    $region60: #{crime_lstm_forward.1} parent=1 // pred_region
      _
    $region61: #{crime_lstm_forward.1} parent=1 // pred_fallthru
      _
    // Predicated region
    $region62: #{crime_lstm_forward.1} parent=1 // pred_check
      _
    $region63: #{crime_lstm_forward.1} parent=1 // pred_check_branch
      %60 = sbr.rel (0) target = $region65
    $region64: #{crime_lstm_forward.1} parent=1 // pred_region
      _
    $region65: #{crime_lstm_forward.1} parent=1 // pred_fallthru
      _
    // Predicated region
    $region66: #{crime_lstm_forward.1} parent=1 // pred_check
      _
    $region67: #{crime_lstm_forward.1} parent=1 // pred_check_branch
      %62 = sbr.rel (0) target = $region69
    $region68: #{crime_lstm_forward.1} parent=1 // pred_region
      _
    $region69: #{crime_lstm_forward.1} parent=1 // pred_fallthru
      _
    // Predicated region
    $region70: #{crime_lstm_forward.1} parent=1 // pred_check
      _
    $region71: #{crime_lstm_forward.1} parent=1 // pred_check_branch
      %64 = sbr.rel (0) target = $region73
    $region72: #{crime_lstm_forward.1} parent=1 // pred_region
      _
    $region73: #{crime_lstm_forward.1} parent=1 // pred_fallthru
      _
    // Predicated region
    $region74: #{crime_lstm_forward.1} parent=1 // pred_check
      _
    $region75: #{crime_lstm_forward.1} parent=1 // pred_check_branch
      %66 = sbr.rel (0) target = $region77
    $region76: #{crime_lstm_forward.1} parent=1 // pred_region
      _
    $region77: #{crime_lstm_forward.1} parent=1 // pred_fallthru
      _
    // Predicated region
    $region78: #{crime_lstm_forward.1} parent=1 // pred_check
      _
    $region79: #{crime_lstm_forward.1} parent=1 // pred_check_branch
      %68 = sbr.rel (0) target = $region81
    $region80: #{crime_lstm_forward.1} parent=1 // pred_region
      _
    $region81: #{crime_lstm_forward.1} parent=1 // pred_fallthru
      _
    // Predicated region
    $region82: #{crime_lstm_forward.1} parent=1 // pred_check
      _
    $region83: #{crime_lstm_forward.1} parent=1 // pred_check_branch
      %70 = sbr.rel (0) target = $region85
    $region84: #{crime_lstm_forward.1} parent=1 // pred_region
      _
    $region85: #{crime_lstm_forward.1} parent=1 // pred_fallthru
      _
    // Predicated region
    $region86: #{crime_lstm_forward.1} parent=1 // pred_check
      _
    $region87: #{crime_lstm_forward.1} parent=1 // pred_check_branch
      %72 = sbr.rel (0) target = $region89
    $region88: #{crime_lstm_forward.1} parent=1 // pred_region
      _
    $region89: #{crime_lstm_forward.1} parent=1 // pred_fallthru
      _
    // Predicated region
    $region90: #{crime_lstm_forward.1} parent=1 // pred_check
      _
    $region91: #{crime_lstm_forward.1} parent=1 // pred_check_branch
      %74 = sbr.rel (0) target = $region93
    $region92: #{crime_lstm_forward.1} parent=1 // pred_region
      _
    $region93: #{crime_lstm_forward.1} parent=1 // pred_fallthru
      _
    %v75 = vld [vmem:[%s0] sm:$0xff]
    %v76 = vld [vmem:[%s0 + $0x8] sm:$0xff]
    %v77 = vld [vmem:[%s1] sm:$0xff]
    %v78 = vld [vmem:[%s1 + $0x8] sm:$0xff]
    %v79 = vld [vmem:[%s1 + $0x10] sm:$0xff]
    %v80 = vld [vmem:[%s1 + $0x18] sm:$0xff]
    %v81 = vld [vmem:[%s2] sm:$0xf]
    %v82 = vld [vmem:[%s3] sm:$0xff]
    %v83 = vld [vmem:[%s3 + $0x8] sm:$0xff]
    %v84 = vld [vmem:[%s3 + $0x10] sm:$0xff]
    %v85 = vld [vmem:[%s3 + $0x18] sm:$0xff]
    %v86 = vld [vmem:[%s3 + $0x20] sm:$0xff]
    %v87 = vld [vmem:[%s3 + $0x28] sm:$0xff]
    %v88 = vld [vmem:[%s3 + $0x30] sm:$0xff]
    %v89 = vld [vmem:[%s3 + $0x38] sm:$0xff]
    %v90 = vld [vmem:[%s3 + $0x40] sm:$0xff]
    %v91 = vld [vmem:[%s3 + $0x48] sm:$0xff]
    %v92 = vld [vmem:[%s3 + $0x50] sm:$0xff]
    %v93 = vld [vmem:[%s3 + $0x58] sm:$0xff]
    %v94 = vld [vmem:[%s3 + $0x60] sm:$0xff]
    %v95 = vld [vmem:[%s3 + $0x68] sm:$0xff]
    %v96 = vld [vmem:[%s3 + $0x70] sm:$0xff]
    %v97 = vld [vmem:[%s3 + $0x78] sm:$0xff]
    %v98 = vld [vmem:[%s4] sm:$0xff]
    %v99 = vld [vmem:[%s4 + $0x8] sm:$0xff]
    %v100 = vld [vmem:[%s4 + $0x10] sm:$0xff]
    %v101 = vld [vmem:[%s4 + $0x18] sm:$0xff]
    %v102 = vld [vmem:[%s4 + $0x20] sm:$0xff]
    %v103 = vld [vmem:[%s4 + $0x28] sm:$0xff]
    %v104 = vld [vmem:[%s4 + $0x30] sm:$0xff]
    %v105 = vld [vmem:[%s4 + $0x38] sm:$0xff]
    %v106 = vld [vmem:[%s4 + $0x40] sm:$0xff]
    %v107 = vld [vmem:[%s4 + $0x48] sm:$0xff]
    %v108 = vld [vmem:[%s4 + $0x50] sm:$0xff]
    %v109 = vld [vmem:[%s4 + $0x58] sm:$0xff]
    %v110 = vld [vmem:[%s4 + $0x60] sm:$0xff]
    %v111 = vld [vmem:[%s4 + $0x68] sm:$0xff]
    %v112 = vld [vmem:[%s4 + $0x70] sm:$0xff]
    %v113 = vld [vmem:[%s4 + $0x78] sm:$0xff]
    %v115 = vperm.slane %v81, 0
    %v116 = vperm.slane %v81, 1
    %v117 = vperm.slane %v81, 2
    %v118 = vperm.slane %v81, 3
    %vm123 = vcmask 64512
    %v125 = vsel %vm123, %v75, 0
    %v128 = vsel %vm123, %v76, 0
    %130 = vmatpush.msra.mxu0 0.0
    %131 = vmatpush.msra.mxu0 0.0
    %132 = vmatpush.msra.mxu0 0.0
    %133 = vmatpush.msra.mxu0 0.0
    %134 = vmatpush.msra.mxu0 0.0
    %135 = vmatpush.msra.mxu0 0.0
    %136 = vmatpush.msra.mxu0 0.0
    %137 = vmatpush.msra.mxu0 0.0
    %138 = vmatpush.msra.mxu0 0.0
    %139 = vmatpush.msra.mxu0 0.0
    %140 = vmatpush.msra.mxu0 0.0
    %141 = vmatpush.msra.mxu0 0.0
    %142 = vmatpush.msra.mxu0 0.0
    %143 = vmatpush.msra.mxu0 0.0
    %144 = vmatpush.msra.mxu0 0.0
    %145 = vmatpush.msra.mxu0 %v77
    %146 = vmatmul.f32.gmra.mxu0 %v125
    %v147 = vpop.f32.mrf.mxu0
    %v148 = vadd.f32 %v115, %v147
    %149 = vmatmul.f32.gmra.mxu0 %v128
    %v150 = vpop.f32.mrf.mxu0
    %v151 = vadd.f32 %v115, %v150
    %152 = vdwg.mxu0
    %153 = vmatpush.msra.mxu0 0.0
    %154 = vmatpush.msra.mxu0 0.0
    %155 = vmatpush.msra.mxu0 0.0
    %156 = vmatpush.msra.mxu0 0.0
    %157 = vmatpush.msra.mxu0 0.0
    %158 = vmatpush.msra.mxu0 0.0
    %159 = vmatpush.msra.mxu0 0.0
    %160 = vmatpush.msra.mxu0 0.0
    %161 = vmatpush.msra.mxu0 0.0
    %162 = vmatpush.msra.mxu0 0.0
    %163 = vmatpush.msra.mxu0 0.0
    %164 = vmatpush.msra.mxu0 0.0
    %165 = vmatpush.msra.mxu0 0.0
    %166 = vmatpush.msra.mxu0 0.0
    %167 = vmatpush.msra.mxu0 0.0
    %168 = vmatpush.msra.mxu0 %v78
    %169 = vmatmul.f32.gmra.mxu0 %v125
    %v170 = vpop.f32.mrf.mxu0
    %v171 = vadd.f32 %v116, %v170
    %172 = vmatmul.f32.gmra.mxu0 %v128
    %v173 = vpop.f32.mrf.mxu0
    %v174 = vadd.f32 %v116, %v173
    %175 = vdwg.mxu0
    %176 = vmatpush.msra.mxu0 0.0
    %177 = vmatpush.msra.mxu0 0.0
    %178 = vmatpush.msra.mxu0 0.0
    %179 = vmatpush.msra.mxu0 0.0
    %180 = vmatpush.msra.mxu0 0.0
    %181 = vmatpush.msra.mxu0 0.0
    %182 = vmatpush.msra.mxu0 0.0
    %183 = vmatpush.msra.mxu0 0.0
    %184 = vmatpush.msra.mxu0 0.0
    %185 = vmatpush.msra.mxu0 0.0
    %186 = vmatpush.msra.mxu0 0.0
    %187 = vmatpush.msra.mxu0 0.0
    %188 = vmatpush.msra.mxu0 0.0
    %189 = vmatpush.msra.mxu0 0.0
    %190 = vmatpush.msra.mxu0 0.0
    %191 = vmatpush.msra.mxu0 %v79
    %192 = vmatmul.f32.gmra.mxu0 %v125
    %v193 = vpop.f32.mrf.mxu0
    %v194 = vadd.f32 %v117, %v193
    %195 = vmatmul.f32.gmra.mxu0 %v128
    %v196 = vpop.f32.mrf.mxu0
    %v197 = vadd.f32 %v117, %v196
    %198 = vdwg.mxu0
    %199 = vmatpush.msra.mxu0 0.0
    %200 = vmatpush.msra.mxu0 0.0
    %201 = vmatpush.msra.mxu0 0.0
    %202 = vmatpush.msra.mxu0 0.0
    %203 = vmatpush.msra.mxu0 0.0
    %204 = vmatpush.msra.mxu0 0.0
    %205 = vmatpush.msra.mxu0 0.0
    %206 = vmatpush.msra.mxu0 0.0
    %207 = vmatpush.msra.mxu0 0.0
    %208 = vmatpush.msra.mxu0 0.0
    %209 = vmatpush.msra.mxu0 0.0
    %210 = vmatpush.msra.mxu0 0.0
    %211 = vmatpush.msra.mxu0 0.0
    %212 = vmatpush.msra.mxu0 0.0
    %213 = vmatpush.msra.mxu0 0.0
    %214 = vmatpush.msra.mxu0 %v80
    %215 = vmatmul.f32.gmra.mxu0 %v125
    %v216 = vpop.f32.mrf.mxu0
    %v217 = vadd.f32 %v118, %v216
    %218 = vmatmul.f32.gmra.mxu0 %v128
    %v219 = vpop.f32.mrf.mxu0
    %v220 = vadd.f32 %v118, %v219
    %221 = vdwg.mxu0
    %vm222 = vcmask 523264
    %v224 = vsel %vm222, 0.0, 0
    %226 = vmatpush.msra.mxu0 0.0
    %227 = vmatpush.msra.mxu0 0.0
    %228 = vmatpush.msra.mxu0 0.0
    %229 = vmatpush.msra.mxu0 0.0
    %230 = vmatpush.msra.mxu0 0.0
    %231 = vmatpush.msra.mxu0 0.0
    %232 = vmatpush.msra.mxu0 0.0
    %233 = vmatpush.msra.mxu0 0.0
    %234 = vmatpush.msra.mxu0 %v96
    %235 = vmatpush.msra.mxu0 %v94
    %236 = vmatpush.msra.mxu0 %v92
    %237 = vmatpush.msra.mxu0 %v90
    %238 = vmatpush.msra.mxu0 %v88
    %239 = vmatpush.msra.mxu0 %v86
    %240 = vmatpush.msra.mxu0 %v84
    %241 = vmatpush.msra.mxu0 %v82
    %242 = vmatmul.f32.gmra.mxu0 %v224
    %v243 = vpop.f32.mrf.mxu0
    %v244 = vadd.f32 %v148, %v243
    %245 = vdwg.mxu0
    %246 = vmatpush.msra.mxu0 0.0
    %247 = vmatpush.msra.mxu0 0.0
    %248 = vmatpush.msra.mxu0 0.0
    %249 = vmatpush.msra.mxu0 0.0
    %250 = vmatpush.msra.mxu0 0.0
    %251 = vmatpush.msra.mxu0 0.0
    %252 = vmatpush.msra.mxu0 0.0
    %253 = vmatpush.msra.mxu0 0.0
    %254 = vmatpush.msra.mxu0 %v97
    %255 = vmatpush.msra.mxu0 %v95
    %256 = vmatpush.msra.mxu0 %v93
    %257 = vmatpush.msra.mxu0 %v91
    %258 = vmatpush.msra.mxu0 %v89
    %259 = vmatpush.msra.mxu0 %v87
    %260 = vmatpush.msra.mxu0 %v85
    %261 = vmatpush.msra.mxu0 %v83
    %262 = vmatmul.f32.gmra.mxu0 %v224
    %v263 = vpop.f32.mrf.mxu0
    %v264 = vadd.f32 %v171, %v263
    %265 = vdwg.mxu0
    %v266 = vxor.u32 %v244, 2147483648
    %v267 = vxor.u32 %v264, 2147483648
    %v268 = vmul.f32 %v266, 1.442695
    %v269 = vpow.pop %v268
    %v270 = vmul.f32 %v267, 1.442695
    %v271 = vpow.pop %v270
    %v272 = vadd.f32 %v269, 1.0
    %v273 = vadd.f32 %v271, 1.0
    %v274 = vrcp.pop %v272
    %v275 = vmul.f32 %v272, %v274
    %v276 = vsub.f32 1.0, %v275
    %v277 = vmul.f32 %v274, %v276
    %v278 = vadd.f32 %v274, %v277
    %vm279 = vweird.f32 %v272
    %vm280 = vweird.f32 %v274
    %vm281 = vmor %vm279, %vm280
    %v282 = vsel %vm281, %v274, %v278
    %v283 = vand.u32 2147483647, %v272
    %vm284 = vcmp.eq.f32.partialorder %v283, 8.507059e+37
    %v285 = vand.u32 %v272, 2147483648
    %v286 = vor.u32 1.1754944e-38, %v285
    %v287 = vsel %vm284, %v286, %v282
    %v288 = vmul.f32 1.0, %v287
    %v289 = vrcp.pop %v273
    %v290 = vmul.f32 %v273, %v289
    %v291 = vsub.f32 1.0, %v290
    %v292 = vmul.f32 %v289, %v291
    %v293 = vadd.f32 %v289, %v292
    %vm294 = vweird.f32 %v273
    %vm295 = vweird.f32 %v289
    %vm296 = vmor %vm294, %vm295
    %v297 = vsel %vm296, %v289, %v293
    %v298 = vand.u32 2147483647, %v273
    %vm299 = vcmp.eq.f32.partialorder %v298, 8.507059e+37
    %v300 = vand.u32 %v273, 2147483648
    %v301 = vor.u32 1.1754944e-38, %v300
    %v302 = vsel %vm299, %v301, %v297
    %v303 = vmul.f32 1.0, %v302
    %v304 = vtanh.pop %v264
    %v305 = vmul.f32 %v288, 0.0
    %307 = vrot.lane.b32.xlu0 %v304, 64
    %v308 = vpop.permute.xlu0 %307
    %v310 = vmul.f32 %v288, %v308
    %312 = vrot.lane.b32.xlu0 %v310, 64
    %v313 = vpop.permute.xlu0 %312
    %v315 = vadd.f32 %v305, %v313
    %v316 = vtanh.pop %v315
    %318 = vrot.lane.b32.xlu0 %v316, 64
    %v319 = vpop.permute.xlu0 %318
    %v321 = vmul.f32 %v303, %v319
    %v324 = vrot.slane %v197, 6
    %v325 = vrot.slane %v220, 6
    %328 = vmatpush.msra.mxu0 0.0
    %329 = vmatpush.msra.mxu0 0.0
    %330 = vmatpush.msra.mxu0 0.0
    %331 = vmatpush.msra.mxu0 0.0
    %332 = vmatpush.msra.mxu0 0.0
    %333 = vmatpush.msra.mxu0 0.0
    %334 = vmatpush.msra.mxu0 0.0
    %335 = vmatpush.msra.mxu0 0.0
    %336 = vmatpush.msra.mxu0 %v112
    %337 = vmatpush.msra.mxu0 %v110
    %338 = vmatpush.msra.mxu0 %v108
    %339 = vmatpush.msra.mxu0 %v106
    %340 = vmatpush.msra.mxu0 %v104
    %341 = vmatpush.msra.mxu0 %v102
    %342 = vmatpush.msra.mxu0 %v100
    %343 = vmatpush.msra.mxu0 %v98
    %344 = vmatmul.f32.gmra.mxu0 %v224
    %v345 = vpop.f32.mrf.mxu0
    %v346 = vadd.f32 %v324, %v345
    %347 = vdwg.mxu0
    %348 = vmatpush.msra.mxu0 0.0
    %349 = vmatpush.msra.mxu0 0.0
    %350 = vmatpush.msra.mxu0 0.0
    %351 = vmatpush.msra.mxu0 0.0
    %352 = vmatpush.msra.mxu0 0.0
    %353 = vmatpush.msra.mxu0 0.0
    %354 = vmatpush.msra.mxu0 0.0
    %355 = vmatpush.msra.mxu0 0.0
    %356 = vmatpush.msra.mxu0 %v113
    %357 = vmatpush.msra.mxu0 %v111
    %358 = vmatpush.msra.mxu0 %v109
    %359 = vmatpush.msra.mxu0 %v107
    %360 = vmatpush.msra.mxu0 %v105
    %361 = vmatpush.msra.mxu0 %v103
    %362 = vmatpush.msra.mxu0 %v101
    %363 = vmatpush.msra.mxu0 %v99
    %364 = vmatmul.f32.gmra.mxu0 %v224
    %v365 = vpop.f32.mrf.mxu0
    %v366 = vadd.f32 %v325, %v365
    %367 = vdwg.mxu0
    %v368 = vxor.u32 %v346, 2147483648
    %v369 = vxor.u32 %v366, 2147483648
    %v370 = vmul.f32 %v368, 1.442695
    %v371 = vpow.pop %v370
    %v372 = vmul.f32 %v369, 1.442695
    %v373 = vpow.pop %v372
    %v374 = vadd.f32 %v371, 1.0
    %v375 = vadd.f32 %v373, 1.0
    %v376 = vrcp.pop %v374
    %v377 = vmul.f32 %v374, %v376
    %v378 = vsub.f32 1.0, %v377
    %v379 = vmul.f32 %v376, %v378
    %v380 = vadd.f32 %v376, %v379
    %vm381 = vweird.f32 %v374
    %vm382 = vweird.f32 %v376
    %vm383 = vmor %vm381, %vm382
    %v384 = vsel %vm383, %v376, %v380
    %v385 = vand.u32 2147483647, %v374
    %vm386 = vcmp.eq.f32.partialorder %v385, 8.507059e+37
    %v387 = vand.u32 %v374, 2147483648
    %v388 = vor.u32 1.1754944e-38, %v387
    %v389 = vsel %vm386, %v388, %v384
    %v390 = vmul.f32 1.0, %v389
    %v391 = vrcp.pop %v375
    %v392 = vmul.f32 %v375, %v391
    %v393 = vsub.f32 1.0, %v392
    %v394 = vmul.f32 %v391, %v393
    %v395 = vadd.f32 %v391, %v394
    %vm396 = vweird.f32 %v375
    %vm397 = vweird.f32 %v391
    %vm398 = vmor %vm396, %vm397
    %v399 = vsel %vm398, %v391, %v395
    %v400 = vand.u32 2147483647, %v375
    %vm401 = vcmp.eq.f32.partialorder %v400, 8.507059e+37
    %v402 = vand.u32 %v375, 2147483648
    %v403 = vor.u32 1.1754944e-38, %v402
    %v404 = vsel %vm401, %v403, %v399
    %v405 = vmul.f32 1.0, %v404
    %v406 = vtanh.pop %v366
    %v407 = vmul.f32 %v390, 0.0
    %409 = vrot.lane.b32.xlu0 %v406, 64
    %v410 = vpop.permute.xlu0 %409
    %v412 = vmul.f32 %v390, %v410
    %414 = vrot.lane.b32.xlu0 %v412, 64
    %v415 = vpop.permute.xlu0 %414
    %v417 = vadd.f32 %v407, %v415
    %v418 = vtanh.pop %v417
    %420 = vrot.lane.b32.xlu0 %v418, 64
    %v421 = vpop.permute.xlu0 %420
    %v423 = vmul.f32 %v405, %v421
    %v426 = vrot.slane %v148, 2
    %v427 = vrot.slane %v171, 2
    %v431 = vsel %vm222, %v321, 0
    %433 = vmatpush.msra.mxu0 0.0
    %434 = vmatpush.msra.mxu0 0.0
    %435 = vmatpush.msra.mxu0 0.0
    %436 = vmatpush.msra.mxu0 0.0
    %437 = vmatpush.msra.mxu0 0.0
    %438 = vmatpush.msra.mxu0 0.0
    %439 = vmatpush.msra.mxu0 0.0
    %440 = vmatpush.msra.mxu0 0.0
    %441 = vmatpush.msra.mxu0 %v96
    %442 = vmatpush.msra.mxu0 %v94
    %443 = vmatpush.msra.mxu0 %v92
    %444 = vmatpush.msra.mxu0 %v90
    %445 = vmatpush.msra.mxu0 %v88
    %446 = vmatpush.msra.mxu0 %v86
    %447 = vmatpush.msra.mxu0 %v84
    %448 = vmatpush.msra.mxu0 %v82
    %449 = vmatmul.f32.gmra.mxu0 %v431
    %v450 = vpop.f32.mrf.mxu0
    %v451 = vadd.f32 %v426, %v450
    %452 = vdwg.mxu0
    %453 = vmatpush.msra.mxu0 0.0
    %454 = vmatpush.msra.mxu0 0.0
    %455 = vmatpush.msra.mxu0 0.0
    %456 = vmatpush.msra.mxu0 0.0
    %457 = vmatpush.msra.mxu0 0.0
    %458 = vmatpush.msra.mxu0 0.0
    %459 = vmatpush.msra.mxu0 0.0
    %460 = vmatpush.msra.mxu0 0.0
    %461 = vmatpush.msra.mxu0 %v97
    %462 = vmatpush.msra.mxu0 %v95
    %463 = vmatpush.msra.mxu0 %v93
    %464 = vmatpush.msra.mxu0 %v91
    %465 = vmatpush.msra.mxu0 %v89
    %466 = vmatpush.msra.mxu0 %v87
    %467 = vmatpush.msra.mxu0 %v85
    %468 = vmatpush.msra.mxu0 %v83
    %469 = vmatmul.f32.gmra.mxu0 %v431
    %v470 = vpop.f32.mrf.mxu0
    %v471 = vadd.f32 %v427, %v470
    %472 = vdwg.mxu0
    %v473 = vxor.u32 %v451, 2147483648
    %v474 = vxor.u32 %v471, 2147483648
    %v475 = vmul.f32 %v473, 1.442695
    %v476 = vpow.pop %v475
    %v477 = vmul.f32 %v474, 1.442695
    %v478 = vpow.pop %v477
    %v479 = vadd.f32 %v476, 1.0
    %v480 = vadd.f32 %v478, 1.0
    %v481 = vrcp.pop %v479
    %v482 = vmul.f32 %v479, %v481
    %v483 = vsub.f32 1.0, %v482
    %v484 = vmul.f32 %v481, %v483
    %v485 = vadd.f32 %v481, %v484
    %vm486 = vweird.f32 %v479
    %vm487 = vweird.f32 %v481
    %vm488 = vmor %vm486, %vm487
    %v489 = vsel %vm488, %v481, %v485
    %v490 = vand.u32 2147483647, %v479
    %vm491 = vcmp.eq.f32.partialorder %v490, 8.507059e+37
    %v492 = vand.u32 %v479, 2147483648
    %v493 = vor.u32 1.1754944e-38, %v492
    %v494 = vsel %vm491, %v493, %v489
    %v495 = vmul.f32 1.0, %v494
    %v496 = vrcp.pop %v480
    %v497 = vmul.f32 %v480, %v496
    %v498 = vsub.f32 1.0, %v497
    %v499 = vmul.f32 %v496, %v498
    %v500 = vadd.f32 %v496, %v499
    %vm501 = vweird.f32 %v480
    %vm502 = vweird.f32 %v496
    %vm503 = vmor %vm501, %vm502
    %v504 = vsel %vm503, %v496, %v500
    %v505 = vand.u32 2147483647, %v480
    %vm506 = vcmp.eq.f32.partialorder %v505, 8.507059e+37
    %v507 = vand.u32 %v480, 2147483648
    %v508 = vor.u32 1.1754944e-38, %v507
    %v509 = vsel %vm506, %v508, %v504
    %v510 = vmul.f32 1.0, %v509
    %v511 = vtanh.pop %v471
    %v512 = vmul.f32 %v495, %v315
    %514 = vrot.lane.b32.xlu0 %v511, 64
    %v515 = vpop.permute.xlu0 %514
    %v517 = vmul.f32 %v495, %v515
    %519 = vrot.lane.b32.xlu0 %v517, 64
    %v520 = vpop.permute.xlu0 %519
    %v522 = vadd.f32 %v512, %v520
    %v523 = vtanh.pop %v522
    %525 = vrot.lane.b32.xlu0 %v523, 64
    %v526 = vpop.permute.xlu0 %525
    %v528 = vmul.f32 %v510, %v526
    %v529 = vrot.slane %v197, 4
    %v530 = vrot.slane %v220, 4
    %v534 = vsel %vm222, %v423, 0
    %536 = vmatpush.msra.mxu0 0.0
    %537 = vmatpush.msra.mxu0 0.0
    %538 = vmatpush.msra.mxu0 0.0
    %539 = vmatpush.msra.mxu0 0.0
    %540 = vmatpush.msra.mxu0 0.0
    %541 = vmatpush.msra.mxu0 0.0
    %542 = vmatpush.msra.mxu0 0.0
    %543 = vmatpush.msra.mxu0 0.0
    %544 = vmatpush.msra.mxu0 %v112
    %545 = vmatpush.msra.mxu0 %v110
    %546 = vmatpush.msra.mxu0 %v108
    %547 = vmatpush.msra.mxu0 %v106
    %548 = vmatpush.msra.mxu0 %v104
    %549 = vmatpush.msra.mxu0 %v102
    %550 = vmatpush.msra.mxu0 %v100
    %551 = vmatpush.msra.mxu0 %v98
    %552 = vmatmul.f32.gmra.mxu0 %v534
    %v553 = vpop.f32.mrf.mxu0
    %v554 = vadd.f32 %v529, %v553
    %555 = vdwg.mxu0
    %556 = vmatpush.msra.mxu0 0.0
    %557 = vmatpush.msra.mxu0 0.0
    %558 = vmatpush.msra.mxu0 0.0
    %559 = vmatpush.msra.mxu0 0.0
    %560 = vmatpush.msra.mxu0 0.0
    %561 = vmatpush.msra.mxu0 0.0
    %562 = vmatpush.msra.mxu0 0.0
    %563 = vmatpush.msra.mxu0 0.0
    %564 = vmatpush.msra.mxu0 %v113
    %565 = vmatpush.msra.mxu0 %v111
    %566 = vmatpush.msra.mxu0 %v109
    %567 = vmatpush.msra.mxu0 %v107
    %568 = vmatpush.msra.mxu0 %v105
    %569 = vmatpush.msra.mxu0 %v103
    %570 = vmatpush.msra.mxu0 %v101
    %571 = vmatpush.msra.mxu0 %v99
    %572 = vmatmul.f32.gmra.mxu0 %v534
    %v573 = vpop.f32.mrf.mxu0
    %v574 = vadd.f32 %v530, %v573
    %575 = vdwg.mxu0
    %v576 = vxor.u32 %v554, 2147483648
    %v577 = vxor.u32 %v574, 2147483648
    %v578 = vmul.f32 %v576, 1.442695
    %v579 = vpow.pop %v578
    %v580 = vmul.f32 %v577, 1.442695
    %v581 = vpow.pop %v580
    %v582 = vadd.f32 %v579, 1.0
    %v583 = vadd.f32 %v581, 1.0
    %v584 = vrcp.pop %v582
    %v585 = vmul.f32 %v582, %v584
    %v586 = vsub.f32 1.0, %v585
    %v587 = vmul.f32 %v584, %v586
    %v588 = vadd.f32 %v584, %v587
    %vm589 = vweird.f32 %v582
    %vm590 = vweird.f32 %v584
    %vm591 = vmor %vm589, %vm590
    %v592 = vsel %vm591, %v584, %v588
    %v593 = vand.u32 2147483647, %v582
    %vm594 = vcmp.eq.f32.partialorder %v593, 8.507059e+37
    %v595 = vand.u32 %v582, 2147483648
    %v596 = vor.u32 1.1754944e-38, %v595
    %v597 = vsel %vm594, %v596, %v592
    %v598 = vmul.f32 1.0, %v597
    %v599 = vrcp.pop %v583
    %v600 = vmul.f32 %v583, %v599
    %v601 = vsub.f32 1.0, %v600
    %v602 = vmul.f32 %v599, %v601
    %v603 = vadd.f32 %v599, %v602
    %vm604 = vweird.f32 %v583
    %vm605 = vweird.f32 %v599
    %vm606 = vmor %vm604, %vm605
    %v607 = vsel %vm606, %v599, %v603
    %v608 = vand.u32 2147483647, %v583
    %vm609 = vcmp.eq.f32.partialorder %v608, 8.507059e+37
    %v610 = vand.u32 %v583, 2147483648
    %v611 = vor.u32 1.1754944e-38, %v610
    %v612 = vsel %vm609, %v611, %v607
    %v613 = vmul.f32 1.0, %v612
    %v614 = vtanh.pop %v574
    %v615 = vmul.f32 %v598, %v417
    %617 = vrot.lane.b32.xlu0 %v614, 64
    %v618 = vpop.permute.xlu0 %617
    %v620 = vmul.f32 %v598, %v618
    %622 = vrot.lane.b32.xlu0 %v620, 64
    %v623 = vpop.permute.xlu0 %622
    %v625 = vadd.f32 %v615, %v623
    %v626 = vtanh.pop %v625
    %628 = vrot.lane.b32.xlu0 %v626, 64
    %v629 = vpop.permute.xlu0 %628
    %v631 = vmul.f32 %v613, %v629
    %v632 = vrot.slane %v148, 4
    %v633 = vrot.slane %v171, 4
    %v637 = vsel %vm222, %v528, 0
    %639 = vmatpush.msra.mxu0 0.0
    %640 = vmatpush.msra.mxu0 0.0
    %641 = vmatpush.msra.mxu0 0.0
    %642 = vmatpush.msra.mxu0 0.0
    %643 = vmatpush.msra.mxu0 0.0
    %644 = vmatpush.msra.mxu0 0.0
    %645 = vmatpush.msra.mxu0 0.0
    %646 = vmatpush.msra.mxu0 0.0
    %647 = vmatpush.msra.mxu0 %v96
    %648 = vmatpush.msra.mxu0 %v94
    %649 = vmatpush.msra.mxu0 %v92
    %650 = vmatpush.msra.mxu0 %v90
    %651 = vmatpush.msra.mxu0 %v88
    %652 = vmatpush.msra.mxu0 %v86
    %653 = vmatpush.msra.mxu0 %v84
    %654 = vmatpush.msra.mxu0 %v82
    %655 = vmatmul.f32.gmra.mxu0 %v637
    %v656 = vpop.f32.mrf.mxu0
    %v657 = vadd.f32 %v632, %v656
    %658 = vdwg.mxu0
    %659 = vmatpush.msra.mxu0 0.0
    %660 = vmatpush.msra.mxu0 0.0
    %661 = vmatpush.msra.mxu0 0.0
    %662 = vmatpush.msra.mxu0 0.0
    %663 = vmatpush.msra.mxu0 0.0
    %664 = vmatpush.msra.mxu0 0.0
    %665 = vmatpush.msra.mxu0 0.0
    %666 = vmatpush.msra.mxu0 0.0
    %667 = vmatpush.msra.mxu0 %v97
    %668 = vmatpush.msra.mxu0 %v95
    %669 = vmatpush.msra.mxu0 %v93
    %670 = vmatpush.msra.mxu0 %v91
    %671 = vmatpush.msra.mxu0 %v89
    %672 = vmatpush.msra.mxu0 %v87
    %673 = vmatpush.msra.mxu0 %v85
    %674 = vmatpush.msra.mxu0 %v83
    %675 = vmatmul.f32.gmra.mxu0 %v637
    %v676 = vpop.f32.mrf.mxu0
    %v677 = vadd.f32 %v633, %v676
    %678 = vdwg.mxu0
    %v679 = vxor.u32 %v657, 2147483648
    %v680 = vxor.u32 %v677, 2147483648
    %v681 = vmul.f32 %v679, 1.442695
    %v682 = vpow.pop %v681
    %v683 = vmul.f32 %v680, 1.442695
    %v684 = vpow.pop %v683
    %v685 = vadd.f32 %v682, 1.0
    %v686 = vadd.f32 %v684, 1.0
    %v687 = vrcp.pop %v685
    %v688 = vmul.f32 %v685, %v687
    %v689 = vsub.f32 1.0, %v688
    %v690 = vmul.f32 %v687, %v689
    %v691 = vadd.f32 %v687, %v690
    %vm692 = vweird.f32 %v685
    %vm693 = vweird.f32 %v687
    %vm694 = vmor %vm692, %vm693
    %v695 = vsel %vm694, %v687, %v691
    %v696 = vand.u32 2147483647, %v685
    %vm697 = vcmp.eq.f32.partialorder %v696, 8.507059e+37
    %v698 = vand.u32 %v685, 2147483648
    %v699 = vor.u32 1.1754944e-38, %v698
    %v700 = vsel %vm697, %v699, %v695
    %v701 = vmul.f32 1.0, %v700
    %v702 = vrcp.pop %v686
    %v703 = vmul.f32 %v686, %v702
    %v704 = vsub.f32 1.0, %v703
    %v705 = vmul.f32 %v702, %v704
    %v706 = vadd.f32 %v702, %v705
    %vm707 = vweird.f32 %v686
    %vm708 = vweird.f32 %v702
    %vm709 = vmor %vm707, %vm708
    %v710 = vsel %vm709, %v702, %v706
    %v711 = vand.u32 2147483647, %v686
    %vm712 = vcmp.eq.f32.partialorder %v711, 8.507059e+37
    %v713 = vand.u32 %v686, 2147483648
    %v714 = vor.u32 1.1754944e-38, %v713
    %v715 = vsel %vm712, %v714, %v710
    %v716 = vmul.f32 1.0, %v715
    %v717 = vtanh.pop %v677
    %v718 = vmul.f32 %v701, %v522
    %720 = vrot.lane.b32.xlu0 %v717, 64
    %v721 = vpop.permute.xlu0 %720
    %v723 = vmul.f32 %v701, %v721
    %725 = vrot.lane.b32.xlu0 %v723, 64
    %v726 = vpop.permute.xlu0 %725
    %v728 = vadd.f32 %v718, %v726
    %v729 = vtanh.pop %v728
    %731 = vrot.lane.b32.xlu0 %v729, 64
    %v732 = vpop.permute.xlu0 %731
    %v734 = vmul.f32 %v716, %v732
    %v735 = vrot.slane %v197, 2
    %v736 = vrot.slane %v220, 2
    %v740 = vsel %vm222, %v631, 0
    %742 = vmatpush.msra.mxu0 0.0
    %743 = vmatpush.msra.mxu0 0.0
    %744 = vmatpush.msra.mxu0 0.0
    %745 = vmatpush.msra.mxu0 0.0
    %746 = vmatpush.msra.mxu0 0.0
    %747 = vmatpush.msra.mxu0 0.0
    %748 = vmatpush.msra.mxu0 0.0
    %749 = vmatpush.msra.mxu0 0.0
    %750 = vmatpush.msra.mxu0 %v112
    %751 = vmatpush.msra.mxu0 %v110
    %752 = vmatpush.msra.mxu0 %v108
    %753 = vmatpush.msra.mxu0 %v106
    %754 = vmatpush.msra.mxu0 %v104
    %755 = vmatpush.msra.mxu0 %v102
    %756 = vmatpush.msra.mxu0 %v100
    %757 = vmatpush.msra.mxu0 %v98
    %758 = vmatmul.f32.gmra.mxu0 %v740
    %v759 = vpop.f32.mrf.mxu0
    %v760 = vadd.f32 %v735, %v759
    %761 = vdwg.mxu0
    %762 = vmatpush.msra.mxu0 0.0
    %763 = vmatpush.msra.mxu0 0.0
    %764 = vmatpush.msra.mxu0 0.0
    %765 = vmatpush.msra.mxu0 0.0
    %766 = vmatpush.msra.mxu0 0.0
    %767 = vmatpush.msra.mxu0 0.0
    %768 = vmatpush.msra.mxu0 0.0
    %769 = vmatpush.msra.mxu0 0.0
    %770 = vmatpush.msra.mxu0 %v113
    %771 = vmatpush.msra.mxu0 %v111
    %772 = vmatpush.msra.mxu0 %v109
    %773 = vmatpush.msra.mxu0 %v107
    %774 = vmatpush.msra.mxu0 %v105
    %775 = vmatpush.msra.mxu0 %v103
    %776 = vmatpush.msra.mxu0 %v101
    %777 = vmatpush.msra.mxu0 %v99
    %778 = vmatmul.f32.gmra.mxu0 %v740
    %v779 = vpop.f32.mrf.mxu0
    %v780 = vadd.f32 %v736, %v779
    %781 = vdwg.mxu0
    %v782 = vxor.u32 %v760, 2147483648
    %v783 = vxor.u32 %v780, 2147483648
    %v784 = vmul.f32 %v782, 1.442695
    %v785 = vpow.pop %v784
    %v786 = vmul.f32 %v783, 1.442695
    %v787 = vpow.pop %v786
    %v788 = vadd.f32 %v785, 1.0
    %v789 = vadd.f32 %v787, 1.0
    %v790 = vrcp.pop %v788
    %v791 = vmul.f32 %v788, %v790
    %v792 = vsub.f32 1.0, %v791
    %v793 = vmul.f32 %v790, %v792
    %v794 = vadd.f32 %v790, %v793
    %vm795 = vweird.f32 %v788
    %vm796 = vweird.f32 %v790
    %vm797 = vmor %vm795, %vm796
    %v798 = vsel %vm797, %v790, %v794
    %v799 = vand.u32 2147483647, %v788
    %vm800 = vcmp.eq.f32.partialorder %v799, 8.507059e+37
    %v801 = vand.u32 %v788, 2147483648
    %v802 = vor.u32 1.1754944e-38, %v801
    %v803 = vsel %vm800, %v802, %v798
    %v804 = vmul.f32 1.0, %v803
    %v805 = vrcp.pop %v789
    %v806 = vmul.f32 %v789, %v805
    %v807 = vsub.f32 1.0, %v806
    %v808 = vmul.f32 %v805, %v807
    %v809 = vadd.f32 %v805, %v808
    %vm810 = vweird.f32 %v789
    %vm811 = vweird.f32 %v805
    %vm812 = vmor %vm810, %vm811
    %v813 = vsel %vm812, %v805, %v809
    %v814 = vand.u32 2147483647, %v789
    %vm815 = vcmp.eq.f32.partialorder %v814, 8.507059e+37
    %v816 = vand.u32 %v789, 2147483648
    %v817 = vor.u32 1.1754944e-38, %v816
    %v818 = vsel %vm815, %v817, %v813
    %v819 = vmul.f32 1.0, %v818
    %v820 = vtanh.pop %v780
    %v821 = vmul.f32 %v804, %v625
    %823 = vrot.lane.b32.xlu0 %v820, 64
    %v824 = vpop.permute.xlu0 %823
    %v826 = vmul.f32 %v804, %v824
    %828 = vrot.lane.b32.xlu0 %v826, 64
    %v829 = vpop.permute.xlu0 %828
    %v831 = vadd.f32 %v821, %v829
    %v832 = vtanh.pop %v831
    %834 = vrot.lane.b32.xlu0 %v832, 64
    %v835 = vpop.permute.xlu0 %834
    %v837 = vmul.f32 %v819, %v835
    %v838 = vrot.slane %v148, 6
    %v839 = vrot.slane %v171, 6
    %v843 = vsel %vm222, %v734, 0
    %845 = vmatpush.msra.mxu0 0.0
    %846 = vmatpush.msra.mxu0 0.0
    %847 = vmatpush.msra.mxu0 0.0
    %848 = vmatpush.msra.mxu0 0.0
    %849 = vmatpush.msra.mxu0 0.0
    %850 = vmatpush.msra.mxu0 0.0
    %851 = vmatpush.msra.mxu0 0.0
    %852 = vmatpush.msra.mxu0 0.0
    %853 = vmatpush.msra.mxu0 %v96
    %854 = vmatpush.msra.mxu0 %v94
    %855 = vmatpush.msra.mxu0 %v92
    %856 = vmatpush.msra.mxu0 %v90
    %857 = vmatpush.msra.mxu0 %v88
    %858 = vmatpush.msra.mxu0 %v86
    %859 = vmatpush.msra.mxu0 %v84
    %860 = vmatpush.msra.mxu0 %v82
    %861 = vmatmul.f32.gmra.mxu0 %v843
    %v862 = vpop.f32.mrf.mxu0
    %v863 = vadd.f32 %v838, %v862
    %864 = vdwg.mxu0
    %865 = vmatpush.msra.mxu0 0.0
    %866 = vmatpush.msra.mxu0 0.0
    %867 = vmatpush.msra.mxu0 0.0
    %868 = vmatpush.msra.mxu0 0.0
    %869 = vmatpush.msra.mxu0 0.0
    %870 = vmatpush.msra.mxu0 0.0
    %871 = vmatpush.msra.mxu0 0.0
    %872 = vmatpush.msra.mxu0 0.0
    %873 = vmatpush.msra.mxu0 %v97
    %874 = vmatpush.msra.mxu0 %v95
    %875 = vmatpush.msra.mxu0 %v93
    %876 = vmatpush.msra.mxu0 %v91
    %877 = vmatpush.msra.mxu0 %v89
    %878 = vmatpush.msra.mxu0 %v87
    %879 = vmatpush.msra.mxu0 %v85
    %880 = vmatpush.msra.mxu0 %v83
    %881 = vmatmul.f32.gmra.mxu0 %v843
    %v882 = vpop.f32.mrf.mxu0
    %v883 = vadd.f32 %v839, %v882
    %884 = vdwg.mxu0
    %v885 = vxor.u32 %v863, 2147483648
    %v886 = vxor.u32 %v883, 2147483648
    %v887 = vmul.f32 %v885, 1.442695
    %v888 = vpow.pop %v887
    %v889 = vmul.f32 %v886, 1.442695
    %v890 = vpow.pop %v889
    %v891 = vadd.f32 %v888, 1.0
    %v892 = vadd.f32 %v890, 1.0
    %v893 = vrcp.pop %v891
    %v894 = vmul.f32 %v891, %v893
    %v895 = vsub.f32 1.0, %v894
    %v896 = vmul.f32 %v893, %v895
    %v897 = vadd.f32 %v893, %v896
    %vm898 = vweird.f32 %v891
    %vm899 = vweird.f32 %v893
    %vm900 = vmor %vm898, %vm899
    %v901 = vsel %vm900, %v893, %v897
    %v902 = vand.u32 2147483647, %v891
    %vm903 = vcmp.eq.f32.partialorder %v902, 8.507059e+37
    %v904 = vand.u32 %v891, 2147483648
    %v905 = vor.u32 1.1754944e-38, %v904
    %v906 = vsel %vm903, %v905, %v901
    %v907 = vmul.f32 1.0, %v906
    %v908 = vrcp.pop %v892
    %v909 = vmul.f32 %v892, %v908
    %v910 = vsub.f32 1.0, %v909
    %v911 = vmul.f32 %v908, %v910
    %v912 = vadd.f32 %v908, %v911
    %vm913 = vweird.f32 %v892
    %vm914 = vweird.f32 %v908
    %vm915 = vmor %vm913, %vm914
    %v916 = vsel %vm915, %v908, %v912
    %v917 = vand.u32 2147483647, %v892
    %vm918 = vcmp.eq.f32.partialorder %v917, 8.507059e+37
    %v919 = vand.u32 %v892, 2147483648
    %v920 = vor.u32 1.1754944e-38, %v919
    %v921 = vsel %vm918, %v920, %v916
    %v922 = vmul.f32 1.0, %v921
    %v923 = vtanh.pop %v883
    %v924 = vmul.f32 %v907, %v728
    %926 = vrot.lane.b32.xlu0 %v923, 64
    %v927 = vpop.permute.xlu0 %926
    %v929 = vmul.f32 %v907, %v927
    %931 = vrot.lane.b32.xlu0 %v929, 64
    %v932 = vpop.permute.xlu0 %931
    %v934 = vadd.f32 %v924, %v932
    %v935 = vtanh.pop %v934
    %937 = vrot.lane.b32.xlu0 %v935, 64
    %v938 = vpop.permute.xlu0 %937
    %v940 = vmul.f32 %v922, %v938
    %v942 = vsel %vm222, %v837, 0
    %944 = vmatpush.msra.mxu0 0.0
    %945 = vmatpush.msra.mxu0 0.0
    %946 = vmatpush.msra.mxu0 0.0
    %947 = vmatpush.msra.mxu0 0.0
    %948 = vmatpush.msra.mxu0 0.0
    %949 = vmatpush.msra.mxu0 0.0
    %950 = vmatpush.msra.mxu0 0.0
    %951 = vmatpush.msra.mxu0 0.0
    %952 = vmatpush.msra.mxu0 %v112
    %953 = vmatpush.msra.mxu0 %v110
    %954 = vmatpush.msra.mxu0 %v108
    %955 = vmatpush.msra.mxu0 %v106
    %956 = vmatpush.msra.mxu0 %v104
    %957 = vmatpush.msra.mxu0 %v102
    %958 = vmatpush.msra.mxu0 %v100
    %959 = vmatpush.msra.mxu0 %v98
    %960 = vmatmul.f32.gmra.mxu0 %v942
    %v961 = vpop.f32.mrf.mxu0
    %v962 = vadd.f32 %v197, %v961
    %963 = vdwg.mxu0
    %964 = vmatpush.msra.mxu0 0.0
    %965 = vmatpush.msra.mxu0 0.0
    %966 = vmatpush.msra.mxu0 0.0
    %967 = vmatpush.msra.mxu0 0.0
    %968 = vmatpush.msra.mxu0 0.0
    %969 = vmatpush.msra.mxu0 0.0
    %970 = vmatpush.msra.mxu0 0.0
    %971 = vmatpush.msra.mxu0 0.0
    %972 = vmatpush.msra.mxu0 %v113
    %973 = vmatpush.msra.mxu0 %v111
    %974 = vmatpush.msra.mxu0 %v109
    %975 = vmatpush.msra.mxu0 %v107
    %976 = vmatpush.msra.mxu0 %v105
    %977 = vmatpush.msra.mxu0 %v103
    %978 = vmatpush.msra.mxu0 %v101
    %979 = vmatpush.msra.mxu0 %v99
    %980 = vmatmul.f32.gmra.mxu0 %v942
    %v981 = vpop.f32.mrf.mxu0
    %v982 = vadd.f32 %v220, %v981
    %983 = vdwg.mxu0
    %v984 = vxor.u32 %v962, 2147483648
    %v985 = vxor.u32 %v982, 2147483648
    %v986 = vmul.f32 %v984, 1.442695
    %v987 = vpow.pop %v986
    %v988 = vmul.f32 %v985, 1.442695
    %v989 = vpow.pop %v988
    %v990 = vadd.f32 %v987, 1.0
    %v991 = vadd.f32 %v989, 1.0
    %v992 = vrcp.pop %v990
    %v993 = vmul.f32 %v990, %v992
    %v994 = vsub.f32 1.0, %v993
    %v995 = vmul.f32 %v992, %v994
    %v996 = vadd.f32 %v992, %v995
    %vm997 = vweird.f32 %v990
    %vm998 = vweird.f32 %v992
    %vm999 = vmor %vm997, %vm998
    %v1000 = vsel %vm999, %v992, %v996
    %v1001 = vand.u32 2147483647, %v990
    %vm1002 = vcmp.eq.f32.partialorder %v1001, 8.507059e+37
    %v1003 = vand.u32 %v990, 2147483648
    %v1004 = vor.u32 1.1754944e-38, %v1003
    %v1005 = vsel %vm1002, %v1004, %v1000
    %v1006 = vmul.f32 1.0, %v1005
    %v1007 = vrcp.pop %v991
    %v1008 = vmul.f32 %v991, %v1007
    %v1009 = vsub.f32 1.0, %v1008
    %v1010 = vmul.f32 %v1007, %v1009
    %v1011 = vadd.f32 %v1007, %v1010
    %vm1012 = vweird.f32 %v991
    %vm1013 = vweird.f32 %v1007
    %vm1014 = vmor %vm1012, %vm1013
    %v1015 = vsel %vm1014, %v1007, %v1011
    %v1016 = vand.u32 2147483647, %v991
    %vm1017 = vcmp.eq.f32.partialorder %v1016, 8.507059e+37
    %v1018 = vand.u32 %v991, 2147483648
    %v1019 = vor.u32 1.1754944e-38, %v1018
    %v1020 = vsel %vm1017, %v1019, %v1015
    %v1021 = vmul.f32 1.0, %v1020
    %v1022 = vtanh.pop %v982
    %v1023 = vmul.f32 %v1006, %v831
    %1025 = vrot.lane.b32.xlu0 %v1022, 64
    %v1026 = vpop.permute.xlu0 %1025
    %v1028 = vmul.f32 %v1006, %v1026
    %1030 = vrot.lane.b32.xlu0 %v1028, 64
    %v1031 = vpop.permute.xlu0 %1030
    %v1033 = vadd.f32 %v1023, %v1031
    %v1034 = vtanh.pop %v1033
    %1036 = vrot.lane.b32.xlu0 %v1034, 64
    %v1037 = vpop.permute.xlu0 %1036
    %v1039 = vmul.f32 %v1021, %v1037
    %v1041 = vsel %vm222, %v940, 0
    %1043 = vmatpush.msra.mxu0 0.0
    %1044 = vmatpush.msra.mxu0 0.0
    %1045 = vmatpush.msra.mxu0 0.0
    %1046 = vmatpush.msra.mxu0 0.0
    %1047 = vmatpush.msra.mxu0 0.0
    %1048 = vmatpush.msra.mxu0 0.0
    %1049 = vmatpush.msra.mxu0 0.0
    %1050 = vmatpush.msra.mxu0 0.0
    %1051 = vmatpush.msra.mxu0 %v96
    %1052 = vmatpush.msra.mxu0 %v94
    %1053 = vmatpush.msra.mxu0 %v92
    %1054 = vmatpush.msra.mxu0 %v90
    %1055 = vmatpush.msra.mxu0 %v88
    %1056 = vmatpush.msra.mxu0 %v86
    %1057 = vmatpush.msra.mxu0 %v84
    %1058 = vmatpush.msra.mxu0 %v82
    %1059 = vmatmul.f32.gmra.mxu0 %v1041
    %v1060 = vpop.f32.mrf.mxu0
    %v1061 = vadd.f32 %v151, %v1060
    %1062 = vdwg.mxu0
    %1063 = vmatpush.msra.mxu0 0.0
    %1064 = vmatpush.msra.mxu0 0.0
    %1065 = vmatpush.msra.mxu0 0.0
    %1066 = vmatpush.msra.mxu0 0.0
    %1067 = vmatpush.msra.mxu0 0.0
    %1068 = vmatpush.msra.mxu0 0.0
    %1069 = vmatpush.msra.mxu0 0.0
    %1070 = vmatpush.msra.mxu0 0.0
    %1071 = vmatpush.msra.mxu0 %v97
    %1072 = vmatpush.msra.mxu0 %v95
    %1073 = vmatpush.msra.mxu0 %v93
    %1074 = vmatpush.msra.mxu0 %v91
    %1075 = vmatpush.msra.mxu0 %v89
    %1076 = vmatpush.msra.mxu0 %v87
    %1077 = vmatpush.msra.mxu0 %v85
    %1078 = vmatpush.msra.mxu0 %v83
    %1079 = vmatmul.f32.gmra.mxu0 %v1041
    %v1080 = vpop.f32.mrf.mxu0
    %v1081 = vadd.f32 %v174, %v1080
    %1082 = vdwg.mxu0
    %v1083 = vxor.u32 %v1061, 2147483648
    %v1084 = vxor.u32 %v1081, 2147483648
    %v1085 = vmul.f32 %v1083, 1.442695
    %v1086 = vpow.pop %v1085
    %v1087 = vmul.f32 %v1084, 1.442695
    %v1088 = vpow.pop %v1087
    %v1089 = vadd.f32 %v1086, 1.0
    %v1090 = vadd.f32 %v1088, 1.0
    %v1091 = vrcp.pop %v1089
    %v1092 = vmul.f32 %v1089, %v1091
    %v1093 = vsub.f32 1.0, %v1092
    %v1094 = vmul.f32 %v1091, %v1093
    %v1095 = vadd.f32 %v1091, %v1094
    %vm1096 = vweird.f32 %v1089
    %vm1097 = vweird.f32 %v1091
    %vm1098 = vmor %vm1096, %vm1097
    %v1099 = vsel %vm1098, %v1091, %v1095
    %v1100 = vand.u32 2147483647, %v1089
    %vm1101 = vcmp.eq.f32.partialorder %v1100, 8.507059e+37
    %v1102 = vand.u32 %v1089, 2147483648
    %v1103 = vor.u32 1.1754944e-38, %v1102
    %v1104 = vsel %vm1101, %v1103, %v1099
    %v1105 = vmul.f32 1.0, %v1104
    %v1106 = vrcp.pop %v1090
    %v1107 = vmul.f32 %v1090, %v1106
    %v1108 = vsub.f32 1.0, %v1107
    %v1109 = vmul.f32 %v1106, %v1108
    %v1110 = vadd.f32 %v1106, %v1109
    %vm1111 = vweird.f32 %v1090
    %vm1112 = vweird.f32 %v1106
    %vm1113 = vmor %vm1111, %vm1112
    %v1114 = vsel %vm1113, %v1106, %v1110
    %v1115 = vand.u32 2147483647, %v1090
    %vm1116 = vcmp.eq.f32.partialorder %v1115, 8.507059e+37
    %v1117 = vand.u32 %v1090, 2147483648
    %v1118 = vor.u32 1.1754944e-38, %v1117
    %v1119 = vsel %vm1116, %v1118, %v1114
    %v1120 = vmul.f32 1.0, %v1119
    %v1121 = vtanh.pop %v1081
    %v1122 = vmul.f32 %v1105, %v934
    %1124 = vrot.lane.b32.xlu0 %v1121, 64
    %v1125 = vpop.permute.xlu0 %1124
    %v1127 = vmul.f32 %v1105, %v1125
    %1129 = vrot.lane.b32.xlu0 %v1127, 64
    %v1130 = vpop.permute.xlu0 %1129
    %v1132 = vadd.f32 %v1122, %v1130
    %v1133 = vtanh.pop %v1132
    %1135 = vrot.lane.b32.xlu0 %v1133, 64
    %v1136 = vpop.permute.xlu0 %1135
    %v1138 = vmul.f32 %v1120, %v1136
    %v1141 = vrot.slane %v194, 6
    %v1142 = vrot.slane %v217, 6
    %v1146 = vsel %vm222, %v1039, 0
    %1148 = vmatpush.msra.mxu0 0.0
    %1149 = vmatpush.msra.mxu0 0.0
    %1150 = vmatpush.msra.mxu0 0.0
    %1151 = vmatpush.msra.mxu0 0.0
    %1152 = vmatpush.msra.mxu0 0.0
    %1153 = vmatpush.msra.mxu0 0.0
    %1154 = vmatpush.msra.mxu0 0.0
    %1155 = vmatpush.msra.mxu0 0.0
    %1156 = vmatpush.msra.mxu0 %v112
    %1157 = vmatpush.msra.mxu0 %v110
    %1158 = vmatpush.msra.mxu0 %v108
    %1159 = vmatpush.msra.mxu0 %v106
    %1160 = vmatpush.msra.mxu0 %v104
    %1161 = vmatpush.msra.mxu0 %v102
    %1162 = vmatpush.msra.mxu0 %v100
    %1163 = vmatpush.msra.mxu0 %v98
    %1164 = vmatmul.f32.gmra.mxu0 %v1146
    %v1165 = vpop.f32.mrf.mxu0
    %v1166 = vadd.f32 %v1141, %v1165
    %1167 = vdwg.mxu0
    %1168 = vmatpush.msra.mxu0 0.0
    %1169 = vmatpush.msra.mxu0 0.0
    %1170 = vmatpush.msra.mxu0 0.0
    %1171 = vmatpush.msra.mxu0 0.0
    %1172 = vmatpush.msra.mxu0 0.0
    %1173 = vmatpush.msra.mxu0 0.0
    %1174 = vmatpush.msra.mxu0 0.0
    %1175 = vmatpush.msra.mxu0 0.0
    %1176 = vmatpush.msra.mxu0 %v113
    %1177 = vmatpush.msra.mxu0 %v111
    %1178 = vmatpush.msra.mxu0 %v109
    %1179 = vmatpush.msra.mxu0 %v107
    %1180 = vmatpush.msra.mxu0 %v105
    %1181 = vmatpush.msra.mxu0 %v103
    %1182 = vmatpush.msra.mxu0 %v101
    %1183 = vmatpush.msra.mxu0 %v99
    %1184 = vmatmul.f32.gmra.mxu0 %v1146
    %v1185 = vpop.f32.mrf.mxu0
    %v1186 = vadd.f32 %v1142, %v1185
    %1187 = vdwg.mxu0
    %v1188 = vxor.u32 %v1166, 2147483648
    %v1189 = vxor.u32 %v1186, 2147483648
    %v1190 = vmul.f32 %v1188, 1.442695
    %v1191 = vpow.pop %v1190
    %v1192 = vmul.f32 %v1189, 1.442695
    %v1193 = vpow.pop %v1192
    %v1194 = vadd.f32 %v1191, 1.0
    %v1195 = vadd.f32 %v1193, 1.0
    %v1196 = vrcp.pop %v1194
    %v1197 = vmul.f32 %v1194, %v1196
    %v1198 = vsub.f32 1.0, %v1197
    %v1199 = vmul.f32 %v1196, %v1198
    %v1200 = vadd.f32 %v1196, %v1199
    %vm1201 = vweird.f32 %v1194
    %vm1202 = vweird.f32 %v1196
    %vm1203 = vmor %vm1201, %vm1202
    %v1204 = vsel %vm1203, %v1196, %v1200
    %v1205 = vand.u32 2147483647, %v1194
    %vm1206 = vcmp.eq.f32.partialorder %v1205, 8.507059e+37
    %v1207 = vand.u32 %v1194, 2147483648
    %v1208 = vor.u32 1.1754944e-38, %v1207
    %v1209 = vsel %vm1206, %v1208, %v1204
    %v1210 = vmul.f32 1.0, %v1209
    %v1211 = vrcp.pop %v1195
    %v1212 = vmul.f32 %v1195, %v1211
    %v1213 = vsub.f32 1.0, %v1212
    %v1214 = vmul.f32 %v1211, %v1213
    %v1215 = vadd.f32 %v1211, %v1214
    %vm1216 = vweird.f32 %v1195
    %vm1217 = vweird.f32 %v1211
    %vm1218 = vmor %vm1216, %vm1217
    %v1219 = vsel %vm1218, %v1211, %v1215
    %v1220 = vand.u32 2147483647, %v1195
    %vm1221 = vcmp.eq.f32.partialorder %v1220, 8.507059e+37
    %v1222 = vand.u32 %v1195, 2147483648
    %v1223 = vor.u32 1.1754944e-38, %v1222
    %v1224 = vsel %vm1221, %v1223, %v1219
    %v1225 = vmul.f32 1.0, %v1224
    %v1226 = vtanh.pop %v1186
    %v1227 = vmul.f32 %v1210, %v1033
    %1229 = vrot.lane.b32.xlu0 %v1226, 64
    %v1230 = vpop.permute.xlu0 %1229
    %v1232 = vmul.f32 %v1210, %v1230
    %1234 = vrot.lane.b32.xlu0 %v1232, 64
    %v1235 = vpop.permute.xlu0 %1234
    %v1237 = vadd.f32 %v1227, %v1235
    %v1238 = vtanh.pop %v1237
    %1240 = vrot.lane.b32.xlu0 %v1238, 64
    %v1241 = vpop.permute.xlu0 %1240
    %v1243 = vmul.f32 %v1225, %v1241
    %v1246 = vrot.slane %v151, 2
    %v1247 = vrot.slane %v174, 2
    %v1251 = vsel %vm222, %v1138, 0
    %1253 = vmatpush.msra.mxu0 0.0
    %1254 = vmatpush.msra.mxu0 0.0
    %1255 = vmatpush.msra.mxu0 0.0
    %1256 = vmatpush.msra.mxu0 0.0
    %1257 = vmatpush.msra.mxu0 0.0
    %1258 = vmatpush.msra.mxu0 0.0
    %1259 = vmatpush.msra.mxu0 0.0
    %1260 = vmatpush.msra.mxu0 0.0
    %1261 = vmatpush.msra.mxu0 %v96
    %1262 = vmatpush.msra.mxu0 %v94
    %1263 = vmatpush.msra.mxu0 %v92
    %1264 = vmatpush.msra.mxu0 %v90
    %1265 = vmatpush.msra.mxu0 %v88
    %1266 = vmatpush.msra.mxu0 %v86
    %1267 = vmatpush.msra.mxu0 %v84
    %1268 = vmatpush.msra.mxu0 %v82
    %1269 = vmatmul.f32.gmra.mxu0 %v1251
    %v1270 = vpop.f32.mrf.mxu0
    %v1271 = vadd.f32 %v1246, %v1270
    %1272 = vdwg.mxu0
    %1273 = vmatpush.msra.mxu0 0.0
    %1274 = vmatpush.msra.mxu0 0.0
    %1275 = vmatpush.msra.mxu0 0.0
    %1276 = vmatpush.msra.mxu0 0.0
    %1277 = vmatpush.msra.mxu0 0.0
    %1278 = vmatpush.msra.mxu0 0.0
    %1279 = vmatpush.msra.mxu0 0.0
    %1280 = vmatpush.msra.mxu0 0.0
    %1281 = vmatpush.msra.mxu0 %v97
    %1282 = vmatpush.msra.mxu0 %v95
    %1283 = vmatpush.msra.mxu0 %v93
    %1284 = vmatpush.msra.mxu0 %v91
    %1285 = vmatpush.msra.mxu0 %v89
    %1286 = vmatpush.msra.mxu0 %v87
    %1287 = vmatpush.msra.mxu0 %v85
    %1288 = vmatpush.msra.mxu0 %v83
    %1289 = vmatmul.f32.gmra.mxu0 %v1251
    %v1290 = vpop.f32.mrf.mxu0
    %v1291 = vadd.f32 %v1247, %v1290
    %1292 = vdwg.mxu0
    %v1293 = vxor.u32 %v1271, 2147483648
    %v1294 = vxor.u32 %v1291, 2147483648
    %v1295 = vmul.f32 %v1293, 1.442695
    %v1296 = vpow.pop %v1295
    %v1297 = vmul.f32 %v1294, 1.442695
    %v1298 = vpow.pop %v1297
    %v1299 = vadd.f32 %v1296, 1.0
    %v1300 = vadd.f32 %v1298, 1.0
    %v1301 = vrcp.pop %v1299
    %v1302 = vmul.f32 %v1299, %v1301
    %v1303 = vsub.f32 1.0, %v1302
    %v1304 = vmul.f32 %v1301, %v1303
    %v1305 = vadd.f32 %v1301, %v1304
    %vm1306 = vweird.f32 %v1299
    %vm1307 = vweird.f32 %v1301
    %vm1308 = vmor %vm1306, %vm1307
    %v1309 = vsel %vm1308, %v1301, %v1305
    %v1310 = vand.u32 2147483647, %v1299
    %vm1311 = vcmp.eq.f32.partialorder %v1310, 8.507059e+37
    %v1312 = vand.u32 %v1299, 2147483648
    %v1313 = vor.u32 1.1754944e-38, %v1312
    %v1314 = vsel %vm1311, %v1313, %v1309
    %v1315 = vmul.f32 1.0, %v1314
    %v1316 = vrcp.pop %v1300
    %v1317 = vmul.f32 %v1300, %v1316
    %v1318 = vsub.f32 1.0, %v1317
    %v1319 = vmul.f32 %v1316, %v1318
    %v1320 = vadd.f32 %v1316, %v1319
    %vm1321 = vweird.f32 %v1300
    %vm1322 = vweird.f32 %v1316
    %vm1323 = vmor %vm1321, %vm1322
    %v1324 = vsel %vm1323, %v1316, %v1320
    %v1325 = vand.u32 2147483647, %v1300
    %vm1326 = vcmp.eq.f32.partialorder %v1325, 8.507059e+37
    %v1327 = vand.u32 %v1300, 2147483648
    %v1328 = vor.u32 1.1754944e-38, %v1327
    %v1329 = vsel %vm1326, %v1328, %v1324
    %v1330 = vmul.f32 1.0, %v1329
    %v1331 = vtanh.pop %v1291
    %v1332 = vmul.f32 %v1315, %v1132
    %1334 = vrot.lane.b32.xlu0 %v1331, 64
    %v1335 = vpop.permute.xlu0 %1334
    %v1337 = vmul.f32 %v1315, %v1335
    %1339 = vrot.lane.b32.xlu0 %v1337, 64
    %v1340 = vpop.permute.xlu0 %1339
    %v1342 = vadd.f32 %v1332, %v1340
    %v1343 = vtanh.pop %v1342
    %1345 = vrot.lane.b32.xlu0 %v1343, 64
    %v1346 = vpop.permute.xlu0 %1345
    %v1348 = vmul.f32 %v1330, %v1346
    %v1349 = vrot.slane %v194, 4
    %v1350 = vrot.slane %v217, 4
    %v1354 = vsel %vm222, %v1243, 0
    %1356 = vmatpush.msra.mxu0 0.0
    %1357 = vmatpush.msra.mxu0 0.0
    %1358 = vmatpush.msra.mxu0 0.0
    %1359 = vmatpush.msra.mxu0 0.0
    %1360 = vmatpush.msra.mxu0 0.0
    %1361 = vmatpush.msra.mxu0 0.0
    %1362 = vmatpush.msra.mxu0 0.0
    %1363 = vmatpush.msra.mxu0 0.0
    %1364 = vmatpush.msra.mxu0 %v112
    %1365 = vmatpush.msra.mxu0 %v110
    %1366 = vmatpush.msra.mxu0 %v108
    %1367 = vmatpush.msra.mxu0 %v106
    %1368 = vmatpush.msra.mxu0 %v104
    %1369 = vmatpush.msra.mxu0 %v102
    %1370 = vmatpush.msra.mxu0 %v100
    %1371 = vmatpush.msra.mxu0 %v98
    %1372 = vmatmul.f32.gmra.mxu0 %v1354
    %v1373 = vpop.f32.mrf.mxu0
    %v1374 = vadd.f32 %v1349, %v1373
    %1375 = vdwg.mxu0
    %1376 = vmatpush.msra.mxu0 0.0
    %1377 = vmatpush.msra.mxu0 0.0
    %1378 = vmatpush.msra.mxu0 0.0
    %1379 = vmatpush.msra.mxu0 0.0
    %1380 = vmatpush.msra.mxu0 0.0
    %1381 = vmatpush.msra.mxu0 0.0
    %1382 = vmatpush.msra.mxu0 0.0
    %1383 = vmatpush.msra.mxu0 0.0
    %1384 = vmatpush.msra.mxu0 %v113
    %1385 = vmatpush.msra.mxu0 %v111
    %1386 = vmatpush.msra.mxu0 %v109
    %1387 = vmatpush.msra.mxu0 %v107
    %1388 = vmatpush.msra.mxu0 %v105
    %1389 = vmatpush.msra.mxu0 %v103
    %1390 = vmatpush.msra.mxu0 %v101
    %1391 = vmatpush.msra.mxu0 %v99
    %1392 = vmatmul.f32.gmra.mxu0 %v1354
    %v1393 = vpop.f32.mrf.mxu0
    %v1394 = vadd.f32 %v1350, %v1393
    %1395 = vdwg.mxu0
    %v1396 = vxor.u32 %v1374, 2147483648
    %v1397 = vxor.u32 %v1394, 2147483648
    %v1398 = vmul.f32 %v1396, 1.442695
    %v1399 = vpow.pop %v1398
    %v1400 = vmul.f32 %v1397, 1.442695
    %v1401 = vpow.pop %v1400
    %v1402 = vadd.f32 %v1399, 1.0
    %v1403 = vadd.f32 %v1401, 1.0
    %v1404 = vrcp.pop %v1402
    %v1405 = vmul.f32 %v1402, %v1404
    %v1406 = vsub.f32 1.0, %v1405
    %v1407 = vmul.f32 %v1404, %v1406
    %v1408 = vadd.f32 %v1404, %v1407
    %vm1409 = vweird.f32 %v1402
    %vm1410 = vweird.f32 %v1404
    %vm1411 = vmor %vm1409, %vm1410
    %v1412 = vsel %vm1411, %v1404, %v1408
    %v1413 = vand.u32 2147483647, %v1402
    %vm1414 = vcmp.eq.f32.partialorder %v1413, 8.507059e+37
    %v1415 = vand.u32 %v1402, 2147483648
    %v1416 = vor.u32 1.1754944e-38, %v1415
    %v1417 = vsel %vm1414, %v1416, %v1412
    %v1418 = vmul.f32 1.0, %v1417
    %v1419 = vrcp.pop %v1403
    %v1420 = vmul.f32 %v1403, %v1419
    %v1421 = vsub.f32 1.0, %v1420
    %v1422 = vmul.f32 %v1419, %v1421
    %v1423 = vadd.f32 %v1419, %v1422
    %vm1424 = vweird.f32 %v1403
    %vm1425 = vweird.f32 %v1419
    %vm1426 = vmor %vm1424, %vm1425
    %v1427 = vsel %vm1426, %v1419, %v1423
    %v1428 = vand.u32 2147483647, %v1403
    %vm1429 = vcmp.eq.f32.partialorder %v1428, 8.507059e+37
    %v1430 = vand.u32 %v1403, 2147483648
    %v1431 = vor.u32 1.1754944e-38, %v1430
    %v1432 = vsel %vm1429, %v1431, %v1427
    %v1433 = vmul.f32 1.0, %v1432
    %v1434 = vtanh.pop %v1394
    %v1435 = vmul.f32 %v1418, %v1237
    %1437 = vrot.lane.b32.xlu0 %v1434, 64
    %v1438 = vpop.permute.xlu0 %1437
    %v1440 = vmul.f32 %v1418, %v1438
    %1442 = vrot.lane.b32.xlu0 %v1440, 64
    %v1443 = vpop.permute.xlu0 %1442
    %v1445 = vadd.f32 %v1435, %v1443
    %v1446 = vtanh.pop %v1445
    %1448 = vrot.lane.b32.xlu0 %v1446, 64
    %v1449 = vpop.permute.xlu0 %1448
    %v1451 = vmul.f32 %v1433, %v1449
    %v1452 = vrot.slane %v151, 4
    %v1453 = vrot.slane %v174, 4
    %v1457 = vsel %vm222, %v1348, 0
    %1459 = vmatpush.msra.mxu0 0.0
    %1460 = vmatpush.msra.mxu0 0.0
    %1461 = vmatpush.msra.mxu0 0.0
    %1462 = vmatpush.msra.mxu0 0.0
    %1463 = vmatpush.msra.mxu0 0.0
    %1464 = vmatpush.msra.mxu0 0.0
    %1465 = vmatpush.msra.mxu0 0.0
    %1466 = vmatpush.msra.mxu0 0.0
    %1467 = vmatpush.msra.mxu0 %v96
    %1468 = vmatpush.msra.mxu0 %v94
    %1469 = vmatpush.msra.mxu0 %v92
    %1470 = vmatpush.msra.mxu0 %v90
    %1471 = vmatpush.msra.mxu0 %v88
    %1472 = vmatpush.msra.mxu0 %v86
    %1473 = vmatpush.msra.mxu0 %v84
    %1474 = vmatpush.msra.mxu0 %v82
    %1475 = vmatmul.f32.gmra.mxu0 %v1457
    %v1476 = vpop.f32.mrf.mxu0
    %v1477 = vadd.f32 %v1452, %v1476
    %1478 = vdwg.mxu0
    %1479 = vmatpush.msra.mxu0 0.0
    %1480 = vmatpush.msra.mxu0 0.0
    %1481 = vmatpush.msra.mxu0 0.0
    %1482 = vmatpush.msra.mxu0 0.0
    %1483 = vmatpush.msra.mxu0 0.0
    %1484 = vmatpush.msra.mxu0 0.0
    %1485 = vmatpush.msra.mxu0 0.0
    %1486 = vmatpush.msra.mxu0 0.0
    %1487 = vmatpush.msra.mxu0 %v97
    %1488 = vmatpush.msra.mxu0 %v95
    %1489 = vmatpush.msra.mxu0 %v93
    %1490 = vmatpush.msra.mxu0 %v91
    %1491 = vmatpush.msra.mxu0 %v89
    %1492 = vmatpush.msra.mxu0 %v87
    %1493 = vmatpush.msra.mxu0 %v85
    %1494 = vmatpush.msra.mxu0 %v83
    %1495 = vmatmul.f32.gmra.mxu0 %v1457
    %v1496 = vpop.f32.mrf.mxu0
    %v1497 = vadd.f32 %v1453, %v1496
    %1498 = vdwg.mxu0
    %v1499 = vxor.u32 %v1477, 2147483648
    %v1500 = vxor.u32 %v1497, 2147483648
    %v1501 = vmul.f32 %v1499, 1.442695
    %v1502 = vpow.pop %v1501
    %v1503 = vmul.f32 %v1500, 1.442695
    %v1504 = vpow.pop %v1503
    %v1505 = vadd.f32 %v1502, 1.0
    %v1506 = vadd.f32 %v1504, 1.0
    %v1507 = vrcp.pop %v1505
    %v1508 = vmul.f32 %v1505, %v1507
    %v1509 = vsub.f32 1.0, %v1508
    %v1510 = vmul.f32 %v1507, %v1509
    %v1511 = vadd.f32 %v1507, %v1510
    %vm1512 = vweird.f32 %v1505
    %vm1513 = vweird.f32 %v1507
    %vm1514 = vmor %vm1512, %vm1513
    %v1515 = vsel %vm1514, %v1507, %v1511
    %v1516 = vand.u32 2147483647, %v1505
    %vm1517 = vcmp.eq.f32.partialorder %v1516, 8.507059e+37
    %v1518 = vand.u32 %v1505, 2147483648
    %v1519 = vor.u32 1.1754944e-38, %v1518
    %v1520 = vsel %vm1517, %v1519, %v1515
    %v1521 = vmul.f32 1.0, %v1520
    %v1522 = vrcp.pop %v1506
    %v1523 = vmul.f32 %v1506, %v1522
    %v1524 = vsub.f32 1.0, %v1523
    %v1525 = vmul.f32 %v1522, %v1524
    %v1526 = vadd.f32 %v1522, %v1525
    %vm1527 = vweird.f32 %v1506
    %vm1528 = vweird.f32 %v1522
    %vm1529 = vmor %vm1527, %vm1528
    %v1530 = vsel %vm1529, %v1522, %v1526
    %v1531 = vand.u32 2147483647, %v1506
    %vm1532 = vcmp.eq.f32.partialorder %v1531, 8.507059e+37
    %v1533 = vand.u32 %v1506, 2147483648
    %v1534 = vor.u32 1.1754944e-38, %v1533
    %v1535 = vsel %vm1532, %v1534, %v1530
    %v1536 = vmul.f32 1.0, %v1535
    %v1537 = vtanh.pop %v1497
    %v1538 = vmul.f32 %v1521, %v1342
    %1540 = vrot.lane.b32.xlu0 %v1537, 64
    %v1541 = vpop.permute.xlu0 %1540
    %v1543 = vmul.f32 %v1521, %v1541
    %1545 = vrot.lane.b32.xlu0 %v1543, 64
    %v1546 = vpop.permute.xlu0 %1545
    %v1548 = vadd.f32 %v1538, %v1546
    %v1549 = vtanh.pop %v1548
    %1551 = vrot.lane.b32.xlu0 %v1549, 64
    %v1552 = vpop.permute.xlu0 %1551
    %v1554 = vmul.f32 %v1536, %v1552
    %v1555 = vrot.slane %v194, 2
    %v1556 = vrot.slane %v217, 2
    %v1560 = vsel %vm222, %v1451, 0
    %1562 = vmatpush.msra.mxu0 0.0
    %1563 = vmatpush.msra.mxu0 0.0
    %1564 = vmatpush.msra.mxu0 0.0
    %1565 = vmatpush.msra.mxu0 0.0
    %1566 = vmatpush.msra.mxu0 0.0
    %1567 = vmatpush.msra.mxu0 0.0
    %1568 = vmatpush.msra.mxu0 0.0
    %1569 = vmatpush.msra.mxu0 0.0
    %1570 = vmatpush.msra.mxu0 %v112
    %1571 = vmatpush.msra.mxu0 %v110
    %1572 = vmatpush.msra.mxu0 %v108
    %1573 = vmatpush.msra.mxu0 %v106
    %1574 = vmatpush.msra.mxu0 %v104
    %1575 = vmatpush.msra.mxu0 %v102
    %1576 = vmatpush.msra.mxu0 %v100
    %1577 = vmatpush.msra.mxu0 %v98
    %1578 = vmatmul.f32.gmra.mxu0 %v1560
    %v1579 = vpop.f32.mrf.mxu0
    %v1580 = vadd.f32 %v1555, %v1579
    %1581 = vdwg.mxu0
    %1582 = vmatpush.msra.mxu0 0.0
    %1583 = vmatpush.msra.mxu0 0.0
    %1584 = vmatpush.msra.mxu0 0.0
    %1585 = vmatpush.msra.mxu0 0.0
    %1586 = vmatpush.msra.mxu0 0.0
    %1587 = vmatpush.msra.mxu0 0.0
    %1588 = vmatpush.msra.mxu0 0.0
    %1589 = vmatpush.msra.mxu0 0.0
    %1590 = vmatpush.msra.mxu0 %v113
    %1591 = vmatpush.msra.mxu0 %v111
    %1592 = vmatpush.msra.mxu0 %v109
    %1593 = vmatpush.msra.mxu0 %v107
    %1594 = vmatpush.msra.mxu0 %v105
    %1595 = vmatpush.msra.mxu0 %v103
    %1596 = vmatpush.msra.mxu0 %v101
    %1597 = vmatpush.msra.mxu0 %v99
    %1598 = vmatmul.f32.gmra.mxu0 %v1560
    %v1599 = vpop.f32.mrf.mxu0
    %v1600 = vadd.f32 %v1556, %v1599
    %1601 = vdwg.mxu0
    %v1602 = vxor.u32 %v1580, 2147483648
    %v1603 = vxor.u32 %v1600, 2147483648
    %v1604 = vmul.f32 %v1602, 1.442695
    %v1605 = vpow.pop %v1604
    %v1606 = vmul.f32 %v1603, 1.442695
    %v1607 = vpow.pop %v1606
    %v1608 = vadd.f32 %v1605, 1.0
    %v1609 = vadd.f32 %v1607, 1.0
    %v1610 = vrcp.pop %v1608
    %v1611 = vmul.f32 %v1608, %v1610
    %v1612 = vsub.f32 1.0, %v1611
    %v1613 = vmul.f32 %v1610, %v1612
    %v1614 = vadd.f32 %v1610, %v1613
    %vm1615 = vweird.f32 %v1608
    %vm1616 = vweird.f32 %v1610
    %vm1617 = vmor %vm1615, %vm1616
    %v1618 = vsel %vm1617, %v1610, %v1614
    %v1619 = vand.u32 2147483647, %v1608
    %vm1620 = vcmp.eq.f32.partialorder %v1619, 8.507059e+37
    %v1621 = vand.u32 %v1608, 2147483648
    %v1622 = vor.u32 1.1754944e-38, %v1621
    %v1623 = vsel %vm1620, %v1622, %v1618
    %v1624 = vmul.f32 1.0, %v1623
    %v1625 = vrcp.pop %v1609
    %v1626 = vmul.f32 %v1609, %v1625
    %v1627 = vsub.f32 1.0, %v1626
    %v1628 = vmul.f32 %v1625, %v1627
    %v1629 = vadd.f32 %v1625, %v1628
    %vm1630 = vweird.f32 %v1609
    %vm1631 = vweird.f32 %v1625
    %vm1632 = vmor %vm1630, %vm1631
    %v1633 = vsel %vm1632, %v1625, %v1629
    %v1634 = vand.u32 2147483647, %v1609
    %vm1635 = vcmp.eq.f32.partialorder %v1634, 8.507059e+37
    %v1636 = vand.u32 %v1609, 2147483648
    %v1637 = vor.u32 1.1754944e-38, %v1636
    %v1638 = vsel %vm1635, %v1637, %v1633
    %v1639 = vmul.f32 1.0, %v1638
    %v1640 = vtanh.pop %v1600
    %v1641 = vmul.f32 %v1624, %v1445
    %1643 = vrot.lane.b32.xlu0 %v1640, 64
    %v1644 = vpop.permute.xlu0 %1643
    %v1646 = vmul.f32 %v1624, %v1644
    %1648 = vrot.lane.b32.xlu0 %v1646, 64
    %v1649 = vpop.permute.xlu0 %1648
    %v1651 = vadd.f32 %v1641, %v1649
    %v1652 = vtanh.pop %v1651
    %1654 = vrot.lane.b32.xlu0 %v1652, 64
    %v1655 = vpop.permute.xlu0 %1654
    %v1657 = vmul.f32 %v1639, %v1655
    %v1658 = vrot.slane %v151, 6
    %v1659 = vrot.slane %v174, 6
    %v1663 = vsel %vm222, %v1554, 0
    %1665 = vmatpush.msra.mxu0 0.0
    %1666 = vmatpush.msra.mxu0 0.0
    %1667 = vmatpush.msra.mxu0 0.0
    %1668 = vmatpush.msra.mxu0 0.0
    %1669 = vmatpush.msra.mxu0 0.0
    %1670 = vmatpush.msra.mxu0 0.0
    %1671 = vmatpush.msra.mxu0 0.0
    %1672 = vmatpush.msra.mxu0 0.0
    %1673 = vmatpush.msra.mxu0 %v96
    %1674 = vmatpush.msra.mxu0 %v94
    %1675 = vmatpush.msra.mxu0 %v92
    %1676 = vmatpush.msra.mxu0 %v90
    %1677 = vmatpush.msra.mxu0 %v88
    %1678 = vmatpush.msra.mxu0 %v86
    %1679 = vmatpush.msra.mxu0 %v84
    %1680 = vmatpush.msra.mxu0 %v82
    %1681 = vmatmul.f32.gmra.mxu0 %v1663
    %v1682 = vpop.f32.mrf.mxu0
    %v1683 = vadd.f32 %v1658, %v1682
    %1684 = vdwg.mxu0
    %1685 = vmatpush.msra.mxu0 0.0
    %1686 = vmatpush.msra.mxu0 0.0
    %1687 = vmatpush.msra.mxu0 0.0
    %1688 = vmatpush.msra.mxu0 0.0
    %1689 = vmatpush.msra.mxu0 0.0
    %1690 = vmatpush.msra.mxu0 0.0
    %1691 = vmatpush.msra.mxu0 0.0
    %1692 = vmatpush.msra.mxu0 0.0
    %1693 = vmatpush.msra.mxu0 %v97
    %1694 = vmatpush.msra.mxu0 %v95
    %1695 = vmatpush.msra.mxu0 %v93
    %1696 = vmatpush.msra.mxu0 %v91
    %1697 = vmatpush.msra.mxu0 %v89
    %1698 = vmatpush.msra.mxu0 %v87
    %1699 = vmatpush.msra.mxu0 %v85
    %1700 = vmatpush.msra.mxu0 %v83
    %1701 = vmatmul.f32.gmra.mxu0 %v1663
    %v1702 = vpop.f32.mrf.mxu0
    %v1703 = vadd.f32 %v1659, %v1702
    %1704 = vdwg.mxu0
    %v1705 = vxor.u32 %v1683, 2147483648
    %v1706 = vxor.u32 %v1703, 2147483648
    %v1707 = vmul.f32 %v1705, 1.442695
    %v1708 = vpow.pop %v1707
    %v1709 = vmul.f32 %v1706, 1.442695
    %v1710 = vpow.pop %v1709
    %v1711 = vadd.f32 %v1708, 1.0
    %v1712 = vadd.f32 %v1710, 1.0
    %v1713 = vrcp.pop %v1711
    %v1714 = vmul.f32 %v1711, %v1713
    %v1715 = vsub.f32 1.0, %v1714
    %v1716 = vmul.f32 %v1713, %v1715
    %v1717 = vadd.f32 %v1713, %v1716
    %vm1718 = vweird.f32 %v1711
    %vm1719 = vweird.f32 %v1713
    %vm1720 = vmor %vm1718, %vm1719
    %v1721 = vsel %vm1720, %v1713, %v1717
    %v1722 = vand.u32 2147483647, %v1711
    %vm1723 = vcmp.eq.f32.partialorder %v1722, 8.507059e+37
    %v1724 = vand.u32 %v1711, 2147483648
    %v1725 = vor.u32 1.1754944e-38, %v1724
    %v1726 = vsel %vm1723, %v1725, %v1721
    %v1727 = vmul.f32 1.0, %v1726
    %v1728 = vrcp.pop %v1712
    %v1729 = vmul.f32 %v1712, %v1728
    %v1730 = vsub.f32 1.0, %v1729
    %v1731 = vmul.f32 %v1728, %v1730
    %v1732 = vadd.f32 %v1728, %v1731
    %vm1733 = vweird.f32 %v1712
    %vm1734 = vweird.f32 %v1728
    %vm1735 = vmor %vm1733, %vm1734
    %v1736 = vsel %vm1735, %v1728, %v1732
    %v1737 = vand.u32 2147483647, %v1712
    %vm1738 = vcmp.eq.f32.partialorder %v1737, 8.507059e+37
    %v1739 = vand.u32 %v1712, 2147483648
    %v1740 = vor.u32 1.1754944e-38, %v1739
    %v1741 = vsel %vm1738, %v1740, %v1736
    %v1742 = vmul.f32 1.0, %v1741
    %v1743 = vtanh.pop %v1703
    %v1744 = vmul.f32 %v1727, %v1548
    %1746 = vrot.lane.b32.xlu0 %v1743, 64
    %v1747 = vpop.permute.xlu0 %1746
    %v1749 = vmul.f32 %v1727, %v1747
    %1751 = vrot.lane.b32.xlu0 %v1749, 64
    %v1752 = vpop.permute.xlu0 %1751
    %v1754 = vadd.f32 %v1744, %v1752
    %v1755 = vtanh.pop %v1754
    %1757 = vrot.lane.b32.xlu0 %v1755, 64
    %v1758 = vpop.permute.xlu0 %1757
    %v1760 = vmul.f32 %v1742, %v1758
    %v1762 = vsel %vm222, %v1657, 0
    %1764 = vmatpush.msra.mxu0 0.0
    %1765 = vmatpush.msra.mxu0 0.0
    %1766 = vmatpush.msra.mxu0 0.0
    %1767 = vmatpush.msra.mxu0 0.0
    %1768 = vmatpush.msra.mxu0 0.0
    %1769 = vmatpush.msra.mxu0 0.0
    %1770 = vmatpush.msra.mxu0 0.0
    %1771 = vmatpush.msra.mxu0 0.0
    %1772 = vmatpush.msra.mxu0 %v112
    %1773 = vmatpush.msra.mxu0 %v110
    %1774 = vmatpush.msra.mxu0 %v108
    %1775 = vmatpush.msra.mxu0 %v106
    %1776 = vmatpush.msra.mxu0 %v104
    %1777 = vmatpush.msra.mxu0 %v102
    %1778 = vmatpush.msra.mxu0 %v100
    %1779 = vmatpush.msra.mxu0 %v98
    %1780 = vmatmul.f32.gmra.mxu0 %v1762
    %v1781 = vpop.f32.mrf.mxu0
    %v1782 = vadd.f32 %v194, %v1781
    %1783 = vdwg.mxu0
    %1784 = vmatpush.msra.mxu0 0.0
    %1785 = vmatpush.msra.mxu0 0.0
    %1786 = vmatpush.msra.mxu0 0.0
    %1787 = vmatpush.msra.mxu0 0.0
    %1788 = vmatpush.msra.mxu0 0.0
    %1789 = vmatpush.msra.mxu0 0.0
    %1790 = vmatpush.msra.mxu0 0.0
    %1791 = vmatpush.msra.mxu0 0.0
    %1792 = vmatpush.msra.mxu0 %v113
    %1793 = vmatpush.msra.mxu0 %v111
    %1794 = vmatpush.msra.mxu0 %v109
    %1795 = vmatpush.msra.mxu0 %v107
    %1796 = vmatpush.msra.mxu0 %v105
    %1797 = vmatpush.msra.mxu0 %v103
    %1798 = vmatpush.msra.mxu0 %v101
    %1799 = vmatpush.msra.mxu0 %v99
    %1800 = vmatmul.f32.gmra.mxu0 %v1762
    %v1801 = vpop.f32.mrf.mxu0
    %v1802 = vadd.f32 %v217, %v1801
    %1803 = vdwg.mxu0
    %v1804 = vxor.u32 %v1782, 2147483648
    %v1805 = vxor.u32 %v1802, 2147483648
    %v1806 = vmul.f32 %v1804, 1.442695
    %v1807 = vpow.pop %v1806
    %v1808 = vmul.f32 %v1805, 1.442695
    %v1809 = vpow.pop %v1808
    %v1810 = vadd.f32 %v1807, 1.0
    %v1811 = vadd.f32 %v1809, 1.0
    %v1812 = vrcp.pop %v1810
    %v1813 = vmul.f32 %v1810, %v1812
    %v1814 = vsub.f32 1.0, %v1813
    %v1815 = vmul.f32 %v1812, %v1814
    %v1816 = vadd.f32 %v1812, %v1815
    %vm1817 = vweird.f32 %v1810
    %vm1818 = vweird.f32 %v1812
    %vm1819 = vmor %vm1817, %vm1818
    %v1820 = vsel %vm1819, %v1812, %v1816
    %v1821 = vand.u32 2147483647, %v1810
    %vm1822 = vcmp.eq.f32.partialorder %v1821, 8.507059e+37
    %v1823 = vand.u32 %v1810, 2147483648
    %v1824 = vor.u32 1.1754944e-38, %v1823
    %v1825 = vsel %vm1822, %v1824, %v1820
    %v1826 = vmul.f32 1.0, %v1825
    %v1827 = vrcp.pop %v1811
    %v1828 = vmul.f32 %v1811, %v1827
    %v1829 = vsub.f32 1.0, %v1828
    %v1830 = vmul.f32 %v1827, %v1829
    %v1831 = vadd.f32 %v1827, %v1830
    %vm1832 = vweird.f32 %v1811
    %vm1833 = vweird.f32 %v1827
    %vm1834 = vmor %vm1832, %vm1833
    %v1835 = vsel %vm1834, %v1827, %v1831
    %v1836 = vand.u32 2147483647, %v1811
    %vm1837 = vcmp.eq.f32.partialorder %v1836, 8.507059e+37
    %v1838 = vand.u32 %v1811, 2147483648
    %v1839 = vor.u32 1.1754944e-38, %v1838
    %v1840 = vsel %vm1837, %v1839, %v1835
    %v1841 = vmul.f32 1.0, %v1840
    %v1842 = vtanh.pop %v1802
    %v1843 = vmul.f32 %v1826, %v1651
    %1845 = vrot.lane.b32.xlu0 %v1842, 64
    %v1846 = vpop.permute.xlu0 %1845
    %v1848 = vmul.f32 %v1826, %v1846
    %1850 = vrot.lane.b32.xlu0 %v1848, 64
    %v1851 = vpop.permute.xlu0 %1850
    %v1853 = vadd.f32 %v1843, %v1851
    %v1854 = vtanh.pop %v1853
    %1856 = vrot.lane.b32.xlu0 %v1854, 64
    %v1857 = vpop.permute.xlu0 %1856
    %v1859 = vmul.f32 %v1841, %v1857
    %v1860 = vrot.slane %v528, 6
    %v1862 = vrot.slane %v734, 4
    %v1864 = vrot.slane %v940, 2
    %v1866 = vrot.slane %v1348, 6
    %v1868 = vrot.slane %v1554, 4
    %v1871 = vrot.slane %v1760, 2
    %vm1873 = vcmask 1041408
    %v1874 = vsel %vm1873, %v321, %v1860
    %vm1875 = vcmask 1043456
    %v1876 = vsel %vm1875, %v1874, %v1862
    %vm1877 = vcmask 1045504
    %v1878 = vsel %vm1877, %v1876, %v1864
    %v1879 = vsel %vm1873, %v1138, %v1866
    %v1880 = vsel %vm1875, %v1879, %v1868
    %v1881 = vsel %vm1877, %v1880, %v1871
    %v1882 = vrot.slane %v1657, 6
    %v1884 = vrot.slane %v1451, 4
    %v1886 = vrot.slane %v1243, 2
    %v1888 = vrot.slane %v837, 6
    %v1890 = vrot.slane %v631, 4
    %v1892 = vrot.slane %v423, 2
    %v1894 = vsel %vm1873, %v1859, %v1882
    %v1895 = vsel %vm1875, %v1894, %v1884
    %v1896 = vsel %vm1877, %v1895, %v1886
    %v1897 = vsel %vm1873, %v1039, %v1888
    %v1898 = vsel %vm1875, %v1897, %v1890
    %v1899 = vsel %vm1877, %v1898, %v1892
    %1902 = vrot.lane.b32.xlu0 %v1896, 64
    %v1903 = vpop.permute.xlu0 %1902
    %1904 = vrot.lane.b32.xlu0 %v1899, 64
    %v1905 = vpop.permute.xlu0 %1904
    %v1908 = vsel %vm222, %v1878, %v1903
    %v1909 = vsel %vm222, %v1881, %v1905
    %v1910 = vld [vmem:[%s5] sm:$0xff]
    %v1911 = vld [vmem:[%s5 + $0x8] sm:$0xff]
    %v1912 = vld [vmem:[%s5 + $0x10] sm:$0xff]
    %v1913 = vld [vmem:[%s5 + $0x18] sm:$0xff]
    %v1914 = vld [vmem:[%s5 + $0x20] sm:$0xff]
    %v1915 = vld [vmem:[%s5 + $0x28] sm:$0xff]
    %v1916 = vld [vmem:[%s5 + $0x30] sm:$0xff]
    %v1917 = vld [vmem:[%s5 + $0x38] sm:$0xff]
    %v1918 = vld [vmem:[%s5 + $0x40] sm:$0xff]
    %v1919 = vld [vmem:[%s5 + $0x48] sm:$0xff]
    %v1920 = vld [vmem:[%s5 + $0x50] sm:$0xff]
    %v1921 = vld [vmem:[%s5 + $0x58] sm:$0xff]
    %v1922 = vld [vmem:[%s5 + $0x60] sm:$0xff]
    %v1923 = vld [vmem:[%s5 + $0x68] sm:$0xff]
    %v1924 = vld [vmem:[%s5 + $0x70] sm:$0xff]
    %v1925 = vld [vmem:[%s5 + $0x78] sm:$0xff]
    %v1926 = vld [vmem:[%s5 + $0x80] sm:$0xff]
    %v1927 = vld [vmem:[%s5 + $0x88] sm:$0xff]
    %v1928 = vld [vmem:[%s5 + $0x90] sm:$0xff]
    %v1929 = vld [vmem:[%s5 + $0x98] sm:$0xff]
    %v1930 = vld [vmem:[%s5 + $0xa0] sm:$0xff]
    %v1931 = vld [vmem:[%s5 + $0xa8] sm:$0xff]
    %v1932 = vld [vmem:[%s5 + $0xb0] sm:$0xff]
    %v1933 = vld [vmem:[%s5 + $0xb8] sm:$0xff]
    %v1934 = vld [vmem:[%s5 + $0xc0] sm:$0xff]
    %v1935 = vld [vmem:[%s5 + $0xc8] sm:$0xff]
    %v1936 = vld [vmem:[%s5 + $0xd0] sm:$0xff]
    %v1937 = vld [vmem:[%s5 + $0xd8] sm:$0xff]
    %v1938 = vld [vmem:[%s5 + $0xe0] sm:$0xff]
    %v1939 = vld [vmem:[%s5 + $0xe8] sm:$0xff]
    %v1940 = vld [vmem:[%s5 + $0xf0] sm:$0xff]
    %v1941 = vld [vmem:[%s5 + $0xf8] sm:$0xff]
    %v1942 = vld [vmem:[%s5 + $0x100] sm:$0xff]
    %v1943 = vld [vmem:[%s5 + $0x108] sm:$0xff]
    %v1944 = vld [vmem:[%s5 + $0x110] sm:$0xff]
    %v1945 = vld [vmem:[%s5 + $0x118] sm:$0xff]
    %v1946 = vld [vmem:[%s5 + $0x120] sm:$0xff]
    %v1947 = vld [vmem:[%s5 + $0x128] sm:$0xff]
    %v1948 = vld [vmem:[%s5 + $0x130] sm:$0xff]
    %v1949 = vld [vmem:[%s5 + $0x138] sm:$0xff]
    %v1950 = vld [vmem:[%s5 + $0x140] sm:$0xff]
    %v1951 = vld [vmem:[%s5 + $0x148] sm:$0xff]
    %v1952 = vld [vmem:[%s5 + $0x150] sm:$0xff]
    %v1953 = vld [vmem:[%s5 + $0x158] sm:$0xff]
    %v1954 = vld [vmem:[%s5 + $0x160] sm:$0xff]
    %v1955 = vld [vmem:[%s5 + $0x168] sm:$0xff]
    %v1956 = vld [vmem:[%s5 + $0x170] sm:$0xff]
    %v1957 = vld [vmem:[%s5 + $0x178] sm:$0xff]
    %v1958 = vld [vmem:[%s5 + $0x180] sm:$0xff]
    %v1959 = vld [vmem:[%s5 + $0x188] sm:$0xff]
    %v1960 = vld [vmem:[%s5 + $0x190] sm:$0xff]
    %v1961 = vld [vmem:[%s5 + $0x198] sm:$0xff]
    %v1962 = vld [vmem:[%s5 + $0x1a0] sm:$0xff]
    %v1963 = vld [vmem:[%s5 + $0x1a8] sm:$0xff]
    %v1964 = vld [vmem:[%s5 + $0x1b0] sm:$0xff]
    %v1965 = vld [vmem:[%s5 + $0x1b8] sm:$0xff]
    %v1966 = vld [vmem:[%s5 + $0x1c0] sm:$0xff]
    %v1967 = vld [vmem:[%s5 + $0x1c8] sm:$0xff]
    %v1968 = vld [vmem:[%s5 + $0x1d0] sm:$0xff]
    %v1969 = vld [vmem:[%s5 + $0x1d8] sm:$0xff]
    %v1970 = vld [vmem:[%s5 + $0x1e0] sm:$0xff]
    %v1971 = vld [vmem:[%s5 + $0x1e8] sm:$0xff]
    %v1972 = vld [vmem:[%s5 + $0x1f0] sm:$0xff]
    %v1973 = vld [vmem:[%s5 + $0x1f8] sm:$0xff]
    %v1974 = vld [vmem:[%s6] sm:$0xf]
    %v1975 = vld [vmem:[%s7] sm:$0xff]
    %v1976 = vld [vmem:[%s7 + $0x8] sm:$0xff]
    %v1977 = vld [vmem:[%s7 + $0x10] sm:$0xff]
    %v1978 = vld [vmem:[%s7 + $0x18] sm:$0xff]
    %v1979 = vld [vmem:[%s7 + $0x20] sm:$0xff]
    %v1980 = vld [vmem:[%s7 + $0x28] sm:$0xff]
    %v1981 = vld [vmem:[%s7 + $0x30] sm:$0xff]
    %v1982 = vld [vmem:[%s7 + $0x38] sm:$0xff]
    %v1983 = vld [vmem:[%s7 + $0x40] sm:$0xff]
    %v1984 = vld [vmem:[%s7 + $0x48] sm:$0xff]
    %v1985 = vld [vmem:[%s7 + $0x50] sm:$0xff]
    %v1986 = vld [vmem:[%s7 + $0x58] sm:$0xff]
    %v1987 = vld [vmem:[%s7 + $0x60] sm:$0xff]
    %v1988 = vld [vmem:[%s7 + $0x68] sm:$0xff]
    %v1989 = vld [vmem:[%s7 + $0x70] sm:$0xff]
    %v1990 = vld [vmem:[%s7 + $0x78] sm:$0xff]
    %v1991 = vld [vmem:[%s8] sm:$0xff]
    %v1992 = vld [vmem:[%s8 + $0x8] sm:$0xff]
    %v1993 = vld [vmem:[%s8 + $0x10] sm:$0xff]
    %v1994 = vld [vmem:[%s8 + $0x18] sm:$0xff]
    %v1995 = vld [vmem:[%s8 + $0x20] sm:$0xff]
    %v1996 = vld [vmem:[%s8 + $0x28] sm:$0xff]
    %v1997 = vld [vmem:[%s8 + $0x30] sm:$0xff]
    %v1998 = vld [vmem:[%s8 + $0x38] sm:$0xff]
    %v1999 = vld [vmem:[%s8 + $0x40] sm:$0xff]
    %v2000 = vld [vmem:[%s8 + $0x48] sm:$0xff]
    %v2001 = vld [vmem:[%s8 + $0x50] sm:$0xff]
    %v2002 = vld [vmem:[%s8 + $0x58] sm:$0xff]
    %v2003 = vld [vmem:[%s8 + $0x60] sm:$0xff]
    %v2004 = vld [vmem:[%s8 + $0x68] sm:$0xff]
    %v2005 = vld [vmem:[%s8 + $0x70] sm:$0xff]
    %v2006 = vld [vmem:[%s8 + $0x78] sm:$0xff]
    %v2008 = vperm.slane %v1974, 0
    %v2009 = vperm.slane %v1974, 1
    %v2010 = vperm.slane %v1974, 2
    %v2011 = vperm.slane %v1974, 3
    %2016 = vmatpush.msra.mxu0 %v1970
    %2017 = vmatpush.msra.mxu0 %v1966
    %2018 = vmatpush.msra.mxu0 %v1962
    %2019 = vmatpush.msra.mxu0 %v1958
    %2020 = vmatpush.msra.mxu0 %v1954
    %2021 = vmatpush.msra.mxu0 %v1950
    %2022 = vmatpush.msra.mxu0 %v1946
    %2023 = vmatpush.msra.mxu0 %v1942
    %2024 = vmatpush.msra.mxu0 %v1938
    %2025 = vmatpush.msra.mxu0 %v1934
    %2026 = vmatpush.msra.mxu0 %v1930
    %2027 = vmatpush.msra.mxu0 %v1926
    %2028 = vmatpush.msra.mxu0 %v1922
    %2029 = vmatpush.msra.mxu0 %v1918
    %2030 = vmatpush.msra.mxu0 %v1914
    %2031 = vmatpush.msra.mxu0 %v1910
    %2032 = vmatmul.f32.gmra.mxu0 %v1908
    %v2033 = vpop.f32.mrf.mxu0
    %v2034 = vadd.f32 %v2008, %v2033
    %2035 = vmatmul.f32.gmra.mxu0 %v1909
    %v2036 = vpop.f32.mrf.mxu0
    %v2037 = vadd.f32 %v2008, %v2036
    %2038 = vdwg.mxu0
    %2039 = vmatpush.msra.mxu0 %v1971
    %2040 = vmatpush.msra.mxu0 %v1967
    %2041 = vmatpush.msra.mxu0 %v1963
    %2042 = vmatpush.msra.mxu0 %v1959
    %2043 = vmatpush.msra.mxu0 %v1955
    %2044 = vmatpush.msra.mxu0 %v1951
    %2045 = vmatpush.msra.mxu0 %v1947
    %2046 = vmatpush.msra.mxu0 %v1943
    %2047 = vmatpush.msra.mxu0 %v1939
    %2048 = vmatpush.msra.mxu0 %v1935
    %2049 = vmatpush.msra.mxu0 %v1931
    %2050 = vmatpush.msra.mxu0 %v1927
    %2051 = vmatpush.msra.mxu0 %v1923
    %2052 = vmatpush.msra.mxu0 %v1919
    %2053 = vmatpush.msra.mxu0 %v1915
    %2054 = vmatpush.msra.mxu0 %v1911
    %2055 = vmatmul.f32.gmra.mxu0 %v1908
    %v2056 = vpop.f32.mrf.mxu0
    %v2057 = vadd.f32 %v2009, %v2056
    %2058 = vmatmul.f32.gmra.mxu0 %v1909
    %v2059 = vpop.f32.mrf.mxu0
    %v2060 = vadd.f32 %v2009, %v2059
    %2061 = vdwg.mxu0
    %2062 = vmatpush.msra.mxu0 %v1972
    %2063 = vmatpush.msra.mxu0 %v1968
    %2064 = vmatpush.msra.mxu0 %v1964
    %2065 = vmatpush.msra.mxu0 %v1960
    %2066 = vmatpush.msra.mxu0 %v1956
    %2067 = vmatpush.msra.mxu0 %v1952
    %2068 = vmatpush.msra.mxu0 %v1948
    %2069 = vmatpush.msra.mxu0 %v1944
    %2070 = vmatpush.msra.mxu0 %v1940
    %2071 = vmatpush.msra.mxu0 %v1936
    %2072 = vmatpush.msra.mxu0 %v1932
    %2073 = vmatpush.msra.mxu0 %v1928
    %2074 = vmatpush.msra.mxu0 %v1924
    %2075 = vmatpush.msra.mxu0 %v1920
    %2076 = vmatpush.msra.mxu0 %v1916
    %2077 = vmatpush.msra.mxu0 %v1912
    %2078 = vmatmul.f32.gmra.mxu0 %v1908
    %v2079 = vpop.f32.mrf.mxu0
    %v2080 = vadd.f32 %v2010, %v2079
    %2081 = vmatmul.f32.gmra.mxu0 %v1909
    %v2082 = vpop.f32.mrf.mxu0
    %v2083 = vadd.f32 %v2010, %v2082
    %2084 = vdwg.mxu0
    %2085 = vmatpush.msra.mxu0 %v1973
    %2086 = vmatpush.msra.mxu0 %v1969
    %2087 = vmatpush.msra.mxu0 %v1965
    %2088 = vmatpush.msra.mxu0 %v1961
    %2089 = vmatpush.msra.mxu0 %v1957
    %2090 = vmatpush.msra.mxu0 %v1953
    %2091 = vmatpush.msra.mxu0 %v1949
    %2092 = vmatpush.msra.mxu0 %v1945
    %2093 = vmatpush.msra.mxu0 %v1941
    %2094 = vmatpush.msra.mxu0 %v1937
    %2095 = vmatpush.msra.mxu0 %v1933
    %2096 = vmatpush.msra.mxu0 %v1929
    %2097 = vmatpush.msra.mxu0 %v1925
    %2098 = vmatpush.msra.mxu0 %v1921
    %2099 = vmatpush.msra.mxu0 %v1917
    %2100 = vmatpush.msra.mxu0 %v1913
    %2101 = vmatmul.f32.gmra.mxu0 %v1908
    %v2102 = vpop.f32.mrf.mxu0
    %v2103 = vadd.f32 %v2011, %v2102
    %2104 = vmatmul.f32.gmra.mxu0 %v1909
    %v2105 = vpop.f32.mrf.mxu0
    %v2106 = vadd.f32 %v2011, %v2105
    %2107 = vdwg.mxu0
    %2108 = vmatpush.msra.mxu0 0.0
    %2109 = vmatpush.msra.mxu0 0.0
    %2110 = vmatpush.msra.mxu0 0.0
    %2111 = vmatpush.msra.mxu0 0.0
    %2112 = vmatpush.msra.mxu0 0.0
    %2113 = vmatpush.msra.mxu0 0.0
    %2114 = vmatpush.msra.mxu0 0.0
    %2115 = vmatpush.msra.mxu0 0.0
    %2116 = vmatpush.msra.mxu0 %v1989
    %2117 = vmatpush.msra.mxu0 %v1987
    %2118 = vmatpush.msra.mxu0 %v1985
    %2119 = vmatpush.msra.mxu0 %v1983
    %2120 = vmatpush.msra.mxu0 %v1981
    %2121 = vmatpush.msra.mxu0 %v1979
    %2122 = vmatpush.msra.mxu0 %v1977
    %2123 = vmatpush.msra.mxu0 %v1975
    %2124 = vmatmul.f32.gmra.mxu0 %v224
    %v2125 = vpop.f32.mrf.mxu0
    %v2126 = vadd.f32 %v2034, %v2125
    %2127 = vdwg.mxu0
    %2128 = vmatpush.msra.mxu0 0.0
    %2129 = vmatpush.msra.mxu0 0.0
    %2130 = vmatpush.msra.mxu0 0.0
    %2131 = vmatpush.msra.mxu0 0.0
    %2132 = vmatpush.msra.mxu0 0.0
    %2133 = vmatpush.msra.mxu0 0.0
    %2134 = vmatpush.msra.mxu0 0.0
    %2135 = vmatpush.msra.mxu0 0.0
    %2136 = vmatpush.msra.mxu0 %v1990
    %2137 = vmatpush.msra.mxu0 %v1988
    %2138 = vmatpush.msra.mxu0 %v1986
    %2139 = vmatpush.msra.mxu0 %v1984
    %2140 = vmatpush.msra.mxu0 %v1982
    %2141 = vmatpush.msra.mxu0 %v1980
    %2142 = vmatpush.msra.mxu0 %v1978
    %2143 = vmatpush.msra.mxu0 %v1976
    %2144 = vmatmul.f32.gmra.mxu0 %v224
    %v2145 = vpop.f32.mrf.mxu0
    %v2146 = vadd.f32 %v2057, %v2145
    %2147 = vdwg.mxu0
    %v2148 = vxor.u32 %v2126, 2147483648
    %v2149 = vxor.u32 %v2146, 2147483648
    %v2150 = vmul.f32 %v2148, 1.442695
    %v2151 = vpow.pop %v2150
    %v2152 = vmul.f32 %v2149, 1.442695
    %v2153 = vpow.pop %v2152
    %v2154 = vadd.f32 %v2151, 1.0
    %v2155 = vadd.f32 %v2153, 1.0
    %v2156 = vrcp.pop %v2154
    %v2157 = vmul.f32 %v2154, %v2156
    %v2158 = vsub.f32 1.0, %v2157
    %v2159 = vmul.f32 %v2156, %v2158
    %v2160 = vadd.f32 %v2156, %v2159
    %vm2161 = vweird.f32 %v2154
    %vm2162 = vweird.f32 %v2156
    %vm2163 = vmor %vm2161, %vm2162
    %v2164 = vsel %vm2163, %v2156, %v2160
    %v2165 = vand.u32 2147483647, %v2154
    %vm2166 = vcmp.eq.f32.partialorder %v2165, 8.507059e+37
    %v2167 = vand.u32 %v2154, 2147483648
    %v2168 = vor.u32 1.1754944e-38, %v2167
    %v2169 = vsel %vm2166, %v2168, %v2164
    %v2170 = vmul.f32 1.0, %v2169
    %v2171 = vrcp.pop %v2155
    %v2172 = vmul.f32 %v2155, %v2171
    %v2173 = vsub.f32 1.0, %v2172
    %v2174 = vmul.f32 %v2171, %v2173
    %v2175 = vadd.f32 %v2171, %v2174
    %vm2176 = vweird.f32 %v2155
    %vm2177 = vweird.f32 %v2171
    %vm2178 = vmor %vm2176, %vm2177
    %v2179 = vsel %vm2178, %v2171, %v2175
    %v2180 = vand.u32 2147483647, %v2155
    %vm2181 = vcmp.eq.f32.partialorder %v2180, 8.507059e+37
    %v2182 = vand.u32 %v2155, 2147483648
    %v2183 = vor.u32 1.1754944e-38, %v2182
    %v2184 = vsel %vm2181, %v2183, %v2179
    %v2185 = vmul.f32 1.0, %v2184
    %v2186 = vtanh.pop %v2146
    %v2187 = vmul.f32 %v2170, 0.0
    %2189 = vrot.lane.b32.xlu0 %v2186, 64
    %v2190 = vpop.permute.xlu0 %2189
    %v2192 = vmul.f32 %v2170, %v2190
    %2194 = vrot.lane.b32.xlu0 %v2192, 64
    %v2195 = vpop.permute.xlu0 %2194
    %v2197 = vadd.f32 %v2187, %v2195
    %v2198 = vtanh.pop %v2197
    %2200 = vrot.lane.b32.xlu0 %v2198, 64
    %v2201 = vpop.permute.xlu0 %2200
    %v2203 = vmul.f32 %v2185, %v2201
    %v2206 = vrot.slane %v2083, 6
    %v2207 = vrot.slane %v2106, 6
    %2210 = vmatpush.msra.mxu0 0.0
    %2211 = vmatpush.msra.mxu0 0.0
    %2212 = vmatpush.msra.mxu0 0.0
    %2213 = vmatpush.msra.mxu0 0.0
    %2214 = vmatpush.msra.mxu0 0.0
    %2215 = vmatpush.msra.mxu0 0.0
    %2216 = vmatpush.msra.mxu0 0.0
    %2217 = vmatpush.msra.mxu0 0.0
    %2218 = vmatpush.msra.mxu0 %v2005
    %2219 = vmatpush.msra.mxu0 %v2003
    %2220 = vmatpush.msra.mxu0 %v2001
    %2221 = vmatpush.msra.mxu0 %v1999
    %2222 = vmatpush.msra.mxu0 %v1997
    %2223 = vmatpush.msra.mxu0 %v1995
    %2224 = vmatpush.msra.mxu0 %v1993
    %2225 = vmatpush.msra.mxu0 %v1991
    %2226 = vmatmul.f32.gmra.mxu0 %v224
    %v2227 = vpop.f32.mrf.mxu0
    %v2228 = vadd.f32 %v2206, %v2227
    %2229 = vdwg.mxu0
    %2230 = vmatpush.msra.mxu0 0.0
    %2231 = vmatpush.msra.mxu0 0.0
    %2232 = vmatpush.msra.mxu0 0.0
    %2233 = vmatpush.msra.mxu0 0.0
    %2234 = vmatpush.msra.mxu0 0.0
    %2235 = vmatpush.msra.mxu0 0.0
    %2236 = vmatpush.msra.mxu0 0.0
    %2237 = vmatpush.msra.mxu0 0.0
    %2238 = vmatpush.msra.mxu0 %v2006
    %2239 = vmatpush.msra.mxu0 %v2004
    %2240 = vmatpush.msra.mxu0 %v2002
    %2241 = vmatpush.msra.mxu0 %v2000
    %2242 = vmatpush.msra.mxu0 %v1998
    %2243 = vmatpush.msra.mxu0 %v1996
    %2244 = vmatpush.msra.mxu0 %v1994
    %2245 = vmatpush.msra.mxu0 %v1992
    %2246 = vmatmul.f32.gmra.mxu0 %v224
    %v2247 = vpop.f32.mrf.mxu0
    %v2248 = vadd.f32 %v2207, %v2247
    %2249 = vdwg.mxu0
    %v2250 = vxor.u32 %v2228, 2147483648
    %v2251 = vxor.u32 %v2248, 2147483648
    %v2252 = vmul.f32 %v2250, 1.442695
    %v2253 = vpow.pop %v2252
    %v2254 = vmul.f32 %v2251, 1.442695
    %v2255 = vpow.pop %v2254
    %v2256 = vadd.f32 %v2253, 1.0
    %v2257 = vadd.f32 %v2255, 1.0
    %v2258 = vrcp.pop %v2256
    %v2259 = vmul.f32 %v2256, %v2258
    %v2260 = vsub.f32 1.0, %v2259
    %v2261 = vmul.f32 %v2258, %v2260
    %v2262 = vadd.f32 %v2258, %v2261
    %vm2263 = vweird.f32 %v2256
    %vm2264 = vweird.f32 %v2258
    %vm2265 = vmor %vm2263, %vm2264
    %v2266 = vsel %vm2265, %v2258, %v2262
    %v2267 = vand.u32 2147483647, %v2256
    %vm2268 = vcmp.eq.f32.partialorder %v2267, 8.507059e+37
    %v2269 = vand.u32 %v2256, 2147483648
    %v2270 = vor.u32 1.1754944e-38, %v2269
    %v2271 = vsel %vm2268, %v2270, %v2266
    %v2272 = vmul.f32 1.0, %v2271
    %v2273 = vrcp.pop %v2257
    %v2274 = vmul.f32 %v2257, %v2273
    %v2275 = vsub.f32 1.0, %v2274
    %v2276 = vmul.f32 %v2273, %v2275
    %v2277 = vadd.f32 %v2273, %v2276
    %vm2278 = vweird.f32 %v2257
    %vm2279 = vweird.f32 %v2273
    %vm2280 = vmor %vm2278, %vm2279
    %v2281 = vsel %vm2280, %v2273, %v2277
    %v2282 = vand.u32 2147483647, %v2257
    %vm2283 = vcmp.eq.f32.partialorder %v2282, 8.507059e+37
    %v2284 = vand.u32 %v2257, 2147483648
    %v2285 = vor.u32 1.1754944e-38, %v2284
    %v2286 = vsel %vm2283, %v2285, %v2281
    %v2287 = vmul.f32 1.0, %v2286
    %v2288 = vtanh.pop %v2248
    %v2289 = vmul.f32 %v2272, 0.0
    %2291 = vrot.lane.b32.xlu0 %v2288, 64
    %v2292 = vpop.permute.xlu0 %2291
    %v2294 = vmul.f32 %v2272, %v2292
    %2296 = vrot.lane.b32.xlu0 %v2294, 64
    %v2297 = vpop.permute.xlu0 %2296
    %v2299 = vadd.f32 %v2289, %v2297
    %v2300 = vtanh.pop %v2299
    %2302 = vrot.lane.b32.xlu0 %v2300, 64
    %v2303 = vpop.permute.xlu0 %2302
    %v2305 = vmul.f32 %v2287, %v2303
    %v2308 = vrot.slane %v2034, 2
    %v2309 = vrot.slane %v2057, 2
    %v2313 = vsel %vm222, %v2203, 0
    %2315 = vmatpush.msra.mxu0 0.0
    %2316 = vmatpush.msra.mxu0 0.0
    %2317 = vmatpush.msra.mxu0 0.0
    %2318 = vmatpush.msra.mxu0 0.0
    %2319 = vmatpush.msra.mxu0 0.0
    %2320 = vmatpush.msra.mxu0 0.0
    %2321 = vmatpush.msra.mxu0 0.0
    %2322 = vmatpush.msra.mxu0 0.0
    %2323 = vmatpush.msra.mxu0 %v1989
    %2324 = vmatpush.msra.mxu0 %v1987
    %2325 = vmatpush.msra.mxu0 %v1985
    %2326 = vmatpush.msra.mxu0 %v1983
    %2327 = vmatpush.msra.mxu0 %v1981
    %2328 = vmatpush.msra.mxu0 %v1979
    %2329 = vmatpush.msra.mxu0 %v1977
    %2330 = vmatpush.msra.mxu0 %v1975
    %2331 = vmatmul.f32.gmra.mxu0 %v2313
    %v2332 = vpop.f32.mrf.mxu0
    %v2333 = vadd.f32 %v2308, %v2332
    %2334 = vdwg.mxu0
    %2335 = vmatpush.msra.mxu0 0.0
    %2336 = vmatpush.msra.mxu0 0.0
    %2337 = vmatpush.msra.mxu0 0.0
    %2338 = vmatpush.msra.mxu0 0.0
    %2339 = vmatpush.msra.mxu0 0.0
    %2340 = vmatpush.msra.mxu0 0.0
    %2341 = vmatpush.msra.mxu0 0.0
    %2342 = vmatpush.msra.mxu0 0.0
    %2343 = vmatpush.msra.mxu0 %v1990
    %2344 = vmatpush.msra.mxu0 %v1988
    %2345 = vmatpush.msra.mxu0 %v1986
    %2346 = vmatpush.msra.mxu0 %v1984
    %2347 = vmatpush.msra.mxu0 %v1982
    %2348 = vmatpush.msra.mxu0 %v1980
    %2349 = vmatpush.msra.mxu0 %v1978
    %2350 = vmatpush.msra.mxu0 %v1976
    %2351 = vmatmul.f32.gmra.mxu0 %v2313
    %v2352 = vpop.f32.mrf.mxu0
    %v2353 = vadd.f32 %v2309, %v2352
    %2354 = vdwg.mxu0
    %v2355 = vxor.u32 %v2333, 2147483648
    %v2356 = vxor.u32 %v2353, 2147483648
    %v2357 = vmul.f32 %v2355, 1.442695
    %v2358 = vpow.pop %v2357
    %v2359 = vmul.f32 %v2356, 1.442695
    %v2360 = vpow.pop %v2359
    %v2361 = vadd.f32 %v2358, 1.0
    %v2362 = vadd.f32 %v2360, 1.0
    %v2363 = vrcp.pop %v2361
    %v2364 = vmul.f32 %v2361, %v2363
    %v2365 = vsub.f32 1.0, %v2364
    %v2366 = vmul.f32 %v2363, %v2365
    %v2367 = vadd.f32 %v2363, %v2366
    %vm2368 = vweird.f32 %v2361
    %vm2369 = vweird.f32 %v2363
    %vm2370 = vmor %vm2368, %vm2369
    %v2371 = vsel %vm2370, %v2363, %v2367
    %v2372 = vand.u32 2147483647, %v2361
    %vm2373 = vcmp.eq.f32.partialorder %v2372, 8.507059e+37
    %v2374 = vand.u32 %v2361, 2147483648
    %v2375 = vor.u32 1.1754944e-38, %v2374
    %v2376 = vsel %vm2373, %v2375, %v2371
    %v2377 = vmul.f32 1.0, %v2376
    %v2378 = vrcp.pop %v2362
    %v2379 = vmul.f32 %v2362, %v2378
    %v2380 = vsub.f32 1.0, %v2379
    %v2381 = vmul.f32 %v2378, %v2380
    %v2382 = vadd.f32 %v2378, %v2381
    %vm2383 = vweird.f32 %v2362
    %vm2384 = vweird.f32 %v2378
    %vm2385 = vmor %vm2383, %vm2384
    %v2386 = vsel %vm2385, %v2378, %v2382
    %v2387 = vand.u32 2147483647, %v2362
    %vm2388 = vcmp.eq.f32.partialorder %v2387, 8.507059e+37
    %v2389 = vand.u32 %v2362, 2147483648
    %v2390 = vor.u32 1.1754944e-38, %v2389
    %v2391 = vsel %vm2388, %v2390, %v2386
    %v2392 = vmul.f32 1.0, %v2391
    %v2393 = vtanh.pop %v2353
    %v2394 = vmul.f32 %v2377, %v2197
    %2396 = vrot.lane.b32.xlu0 %v2393, 64
    %v2397 = vpop.permute.xlu0 %2396
    %v2399 = vmul.f32 %v2377, %v2397
    %2401 = vrot.lane.b32.xlu0 %v2399, 64
    %v2402 = vpop.permute.xlu0 %2401
    %v2404 = vadd.f32 %v2394, %v2402
    %v2405 = vtanh.pop %v2404
    %2407 = vrot.lane.b32.xlu0 %v2405, 64
    %v2408 = vpop.permute.xlu0 %2407
    %v2410 = vmul.f32 %v2392, %v2408
    %v2411 = vrot.slane %v2083, 4
    %v2412 = vrot.slane %v2106, 4
    %v2416 = vsel %vm222, %v2305, 0
    %2418 = vmatpush.msra.mxu0 0.0
    %2419 = vmatpush.msra.mxu0 0.0
    %2420 = vmatpush.msra.mxu0 0.0
    %2421 = vmatpush.msra.mxu0 0.0
    %2422 = vmatpush.msra.mxu0 0.0
    %2423 = vmatpush.msra.mxu0 0.0
    %2424 = vmatpush.msra.mxu0 0.0
    %2425 = vmatpush.msra.mxu0 0.0
    %2426 = vmatpush.msra.mxu0 %v2005
    %2427 = vmatpush.msra.mxu0 %v2003
    %2428 = vmatpush.msra.mxu0 %v2001
    %2429 = vmatpush.msra.mxu0 %v1999
    %2430 = vmatpush.msra.mxu0 %v1997
    %2431 = vmatpush.msra.mxu0 %v1995
    %2432 = vmatpush.msra.mxu0 %v1993
    %2433 = vmatpush.msra.mxu0 %v1991
    %2434 = vmatmul.f32.gmra.mxu0 %v2416
    %v2435 = vpop.f32.mrf.mxu0
    %v2436 = vadd.f32 %v2411, %v2435
    %2437 = vdwg.mxu0
    %2438 = vmatpush.msra.mxu0 0.0
    %2439 = vmatpush.msra.mxu0 0.0
    %2440 = vmatpush.msra.mxu0 0.0
    %2441 = vmatpush.msra.mxu0 0.0
    %2442 = vmatpush.msra.mxu0 0.0
    %2443 = vmatpush.msra.mxu0 0.0
    %2444 = vmatpush.msra.mxu0 0.0
    %2445 = vmatpush.msra.mxu0 0.0
    %2446 = vmatpush.msra.mxu0 %v2006
    %2447 = vmatpush.msra.mxu0 %v2004
    %2448 = vmatpush.msra.mxu0 %v2002
    %2449 = vmatpush.msra.mxu0 %v2000
    %2450 = vmatpush.msra.mxu0 %v1998
    %2451 = vmatpush.msra.mxu0 %v1996
    %2452 = vmatpush.msra.mxu0 %v1994
    %2453 = vmatpush.msra.mxu0 %v1992
    %2454 = vmatmul.f32.gmra.mxu0 %v2416
    %v2455 = vpop.f32.mrf.mxu0
    %v2456 = vadd.f32 %v2412, %v2455
    %2457 = vdwg.mxu0
    %v2458 = vxor.u32 %v2436, 2147483648
    %v2459 = vxor.u32 %v2456, 2147483648
    %v2460 = vmul.f32 %v2458, 1.442695
    %v2461 = vpow.pop %v2460
    %v2462 = vmul.f32 %v2459, 1.442695
    %v2463 = vpow.pop %v2462
    %v2464 = vadd.f32 %v2461, 1.0
    %v2465 = vadd.f32 %v2463, 1.0
    %v2466 = vrcp.pop %v2464
    %v2467 = vmul.f32 %v2464, %v2466
    %v2468 = vsub.f32 1.0, %v2467
    %v2469 = vmul.f32 %v2466, %v2468
    %v2470 = vadd.f32 %v2466, %v2469
    %vm2471 = vweird.f32 %v2464
    %vm2472 = vweird.f32 %v2466
    %vm2473 = vmor %vm2471, %vm2472
    %v2474 = vsel %vm2473, %v2466, %v2470
    %v2475 = vand.u32 2147483647, %v2464
    %vm2476 = vcmp.eq.f32.partialorder %v2475, 8.507059e+37
    %v2477 = vand.u32 %v2464, 2147483648
    %v2478 = vor.u32 1.1754944e-38, %v2477
    %v2479 = vsel %vm2476, %v2478, %v2474
    %v2480 = vmul.f32 1.0, %v2479
    %v2481 = vrcp.pop %v2465
    %v2482 = vmul.f32 %v2465, %v2481
    %v2483 = vsub.f32 1.0, %v2482
    %v2484 = vmul.f32 %v2481, %v2483
    %v2485 = vadd.f32 %v2481, %v2484
    %vm2486 = vweird.f32 %v2465
    %vm2487 = vweird.f32 %v2481
    %vm2488 = vmor %vm2486, %vm2487
    %v2489 = vsel %vm2488, %v2481, %v2485
    %v2490 = vand.u32 2147483647, %v2465
    %vm2491 = vcmp.eq.f32.partialorder %v2490, 8.507059e+37
    %v2492 = vand.u32 %v2465, 2147483648
    %v2493 = vor.u32 1.1754944e-38, %v2492
    %v2494 = vsel %vm2491, %v2493, %v2489
    %v2495 = vmul.f32 1.0, %v2494
    %v2496 = vtanh.pop %v2456
    %v2497 = vmul.f32 %v2480, %v2299
    %2499 = vrot.lane.b32.xlu0 %v2496, 64
    %v2500 = vpop.permute.xlu0 %2499
    %v2502 = vmul.f32 %v2480, %v2500
    %2504 = vrot.lane.b32.xlu0 %v2502, 64
    %v2505 = vpop.permute.xlu0 %2504
    %v2507 = vadd.f32 %v2497, %v2505
    %v2508 = vtanh.pop %v2507
    %2510 = vrot.lane.b32.xlu0 %v2508, 64
    %v2511 = vpop.permute.xlu0 %2510
    %v2513 = vmul.f32 %v2495, %v2511
    %v2514 = vrot.slane %v2034, 4
    %v2515 = vrot.slane %v2057, 4
    %v2519 = vsel %vm222, %v2410, 0
    %2521 = vmatpush.msra.mxu0 0.0
    %2522 = vmatpush.msra.mxu0 0.0
    %2523 = vmatpush.msra.mxu0 0.0
    %2524 = vmatpush.msra.mxu0 0.0
    %2525 = vmatpush.msra.mxu0 0.0
    %2526 = vmatpush.msra.mxu0 0.0
    %2527 = vmatpush.msra.mxu0 0.0
    %2528 = vmatpush.msra.mxu0 0.0
    %2529 = vmatpush.msra.mxu0 %v1989
    %2530 = vmatpush.msra.mxu0 %v1987
    %2531 = vmatpush.msra.mxu0 %v1985
    %2532 = vmatpush.msra.mxu0 %v1983
    %2533 = vmatpush.msra.mxu0 %v1981
    %2534 = vmatpush.msra.mxu0 %v1979
    %2535 = vmatpush.msra.mxu0 %v1977
    %2536 = vmatpush.msra.mxu0 %v1975
    %2537 = vmatmul.f32.gmra.mxu0 %v2519
    %v2538 = vpop.f32.mrf.mxu0
    %v2539 = vadd.f32 %v2514, %v2538
    %2540 = vdwg.mxu0
    %2541 = vmatpush.msra.mxu0 0.0
    %2542 = vmatpush.msra.mxu0 0.0
    %2543 = vmatpush.msra.mxu0 0.0
    %2544 = vmatpush.msra.mxu0 0.0
    %2545 = vmatpush.msra.mxu0 0.0
    %2546 = vmatpush.msra.mxu0 0.0
    %2547 = vmatpush.msra.mxu0 0.0
    %2548 = vmatpush.msra.mxu0 0.0
    %2549 = vmatpush.msra.mxu0 %v1990
    %2550 = vmatpush.msra.mxu0 %v1988
    %2551 = vmatpush.msra.mxu0 %v1986
    %2552 = vmatpush.msra.mxu0 %v1984
    %2553 = vmatpush.msra.mxu0 %v1982
    %2554 = vmatpush.msra.mxu0 %v1980
    %2555 = vmatpush.msra.mxu0 %v1978
    %2556 = vmatpush.msra.mxu0 %v1976
    %2557 = vmatmul.f32.gmra.mxu0 %v2519
    %v2558 = vpop.f32.mrf.mxu0
    %v2559 = vadd.f32 %v2515, %v2558
    %2560 = vdwg.mxu0
    %v2561 = vxor.u32 %v2539, 2147483648
    %v2562 = vxor.u32 %v2559, 2147483648
    %v2563 = vmul.f32 %v2561, 1.442695
    %v2564 = vpow.pop %v2563
    %v2565 = vmul.f32 %v2562, 1.442695
    %v2566 = vpow.pop %v2565
    %v2567 = vadd.f32 %v2564, 1.0
    %v2568 = vadd.f32 %v2566, 1.0
    %v2569 = vrcp.pop %v2567
    %v2570 = vmul.f32 %v2567, %v2569
    %v2571 = vsub.f32 1.0, %v2570
    %v2572 = vmul.f32 %v2569, %v2571
    %v2573 = vadd.f32 %v2569, %v2572
    %vm2574 = vweird.f32 %v2567
    %vm2575 = vweird.f32 %v2569
    %vm2576 = vmor %vm2574, %vm2575
    %v2577 = vsel %vm2576, %v2569, %v2573
    %v2578 = vand.u32 2147483647, %v2567
    %vm2579 = vcmp.eq.f32.partialorder %v2578, 8.507059e+37
    %v2580 = vand.u32 %v2567, 2147483648
    %v2581 = vor.u32 1.1754944e-38, %v2580
    %v2582 = vsel %vm2579, %v2581, %v2577
    %v2583 = vmul.f32 1.0, %v2582
    %v2584 = vrcp.pop %v2568
    %v2585 = vmul.f32 %v2568, %v2584
    %v2586 = vsub.f32 1.0, %v2585
    %v2587 = vmul.f32 %v2584, %v2586
    %v2588 = vadd.f32 %v2584, %v2587
    %vm2589 = vweird.f32 %v2568
    %vm2590 = vweird.f32 %v2584
    %vm2591 = vmor %vm2589, %vm2590
    %v2592 = vsel %vm2591, %v2584, %v2588
    %v2593 = vand.u32 2147483647, %v2568
    %vm2594 = vcmp.eq.f32.partialorder %v2593, 8.507059e+37
    %v2595 = vand.u32 %v2568, 2147483648
    %v2596 = vor.u32 1.1754944e-38, %v2595
    %v2597 = vsel %vm2594, %v2596, %v2592
    %v2598 = vmul.f32 1.0, %v2597
    %v2599 = vtanh.pop %v2559
    %v2600 = vmul.f32 %v2583, %v2404
    %2602 = vrot.lane.b32.xlu0 %v2599, 64
    %v2603 = vpop.permute.xlu0 %2602
    %v2605 = vmul.f32 %v2583, %v2603
    %2607 = vrot.lane.b32.xlu0 %v2605, 64
    %v2608 = vpop.permute.xlu0 %2607
    %v2610 = vadd.f32 %v2600, %v2608
    %v2611 = vtanh.pop %v2610
    %2613 = vrot.lane.b32.xlu0 %v2611, 64
    %v2614 = vpop.permute.xlu0 %2613
    %v2616 = vmul.f32 %v2598, %v2614
    %v2617 = vrot.slane %v2083, 2
    %v2618 = vrot.slane %v2106, 2
    %v2622 = vsel %vm222, %v2513, 0
    %2624 = vmatpush.msra.mxu0 0.0
    %2625 = vmatpush.msra.mxu0 0.0
    %2626 = vmatpush.msra.mxu0 0.0
    %2627 = vmatpush.msra.mxu0 0.0
    %2628 = vmatpush.msra.mxu0 0.0
    %2629 = vmatpush.msra.mxu0 0.0
    %2630 = vmatpush.msra.mxu0 0.0
    %2631 = vmatpush.msra.mxu0 0.0
    %2632 = vmatpush.msra.mxu0 %v2005
    %2633 = vmatpush.msra.mxu0 %v2003
    %2634 = vmatpush.msra.mxu0 %v2001
    %2635 = vmatpush.msra.mxu0 %v1999
    %2636 = vmatpush.msra.mxu0 %v1997
    %2637 = vmatpush.msra.mxu0 %v1995
    %2638 = vmatpush.msra.mxu0 %v1993
    %2639 = vmatpush.msra.mxu0 %v1991
    %2640 = vmatmul.f32.gmra.mxu0 %v2622
    %v2641 = vpop.f32.mrf.mxu0
    %v2642 = vadd.f32 %v2617, %v2641
    %2643 = vdwg.mxu0
    %2644 = vmatpush.msra.mxu0 0.0
    %2645 = vmatpush.msra.mxu0 0.0
    %2646 = vmatpush.msra.mxu0 0.0
    %2647 = vmatpush.msra.mxu0 0.0
    %2648 = vmatpush.msra.mxu0 0.0
    %2649 = vmatpush.msra.mxu0 0.0
    %2650 = vmatpush.msra.mxu0 0.0
    %2651 = vmatpush.msra.mxu0 0.0
    %2652 = vmatpush.msra.mxu0 %v2006
    %2653 = vmatpush.msra.mxu0 %v2004
    %2654 = vmatpush.msra.mxu0 %v2002
    %2655 = vmatpush.msra.mxu0 %v2000
    %2656 = vmatpush.msra.mxu0 %v1998
    %2657 = vmatpush.msra.mxu0 %v1996
    %2658 = vmatpush.msra.mxu0 %v1994
    %2659 = vmatpush.msra.mxu0 %v1992
    %2660 = vmatmul.f32.gmra.mxu0 %v2622
    %v2661 = vpop.f32.mrf.mxu0
    %v2662 = vadd.f32 %v2618, %v2661
    %2663 = vdwg.mxu0
    %v2664 = vxor.u32 %v2642, 2147483648
    %v2665 = vxor.u32 %v2662, 2147483648
    %v2666 = vmul.f32 %v2664, 1.442695
    %v2667 = vpow.pop %v2666
    %v2668 = vmul.f32 %v2665, 1.442695
    %v2669 = vpow.pop %v2668
    %v2670 = vadd.f32 %v2667, 1.0
    %v2671 = vadd.f32 %v2669, 1.0
    %v2672 = vrcp.pop %v2670
    %v2673 = vmul.f32 %v2670, %v2672
    %v2674 = vsub.f32 1.0, %v2673
    %v2675 = vmul.f32 %v2672, %v2674
    %v2676 = vadd.f32 %v2672, %v2675
    %vm2677 = vweird.f32 %v2670
    %vm2678 = vweird.f32 %v2672
    %vm2679 = vmor %vm2677, %vm2678
    %v2680 = vsel %vm2679, %v2672, %v2676
    %v2681 = vand.u32 2147483647, %v2670
    %vm2682 = vcmp.eq.f32.partialorder %v2681, 8.507059e+37
    %v2683 = vand.u32 %v2670, 2147483648
    %v2684 = vor.u32 1.1754944e-38, %v2683
    %v2685 = vsel %vm2682, %v2684, %v2680
    %v2686 = vmul.f32 1.0, %v2685
    %v2687 = vrcp.pop %v2671
    %v2688 = vmul.f32 %v2671, %v2687
    %v2689 = vsub.f32 1.0, %v2688
    %v2690 = vmul.f32 %v2687, %v2689
    %v2691 = vadd.f32 %v2687, %v2690
    %vm2692 = vweird.f32 %v2671
    %vm2693 = vweird.f32 %v2687
    %vm2694 = vmor %vm2692, %vm2693
    %v2695 = vsel %vm2694, %v2687, %v2691
    %v2696 = vand.u32 2147483647, %v2671
    %vm2697 = vcmp.eq.f32.partialorder %v2696, 8.507059e+37
    %v2698 = vand.u32 %v2671, 2147483648
    %v2699 = vor.u32 1.1754944e-38, %v2698
    %v2700 = vsel %vm2697, %v2699, %v2695
    %v2701 = vmul.f32 1.0, %v2700
    %v2702 = vtanh.pop %v2662
    %v2703 = vmul.f32 %v2686, %v2507
    %2705 = vrot.lane.b32.xlu0 %v2702, 64
    %v2706 = vpop.permute.xlu0 %2705
    %v2708 = vmul.f32 %v2686, %v2706
    %2710 = vrot.lane.b32.xlu0 %v2708, 64
    %v2711 = vpop.permute.xlu0 %2710
    %v2713 = vadd.f32 %v2703, %v2711
    %v2714 = vtanh.pop %v2713
    %2716 = vrot.lane.b32.xlu0 %v2714, 64
    %v2717 = vpop.permute.xlu0 %2716
    %v2719 = vmul.f32 %v2701, %v2717
    %v2720 = vrot.slane %v2034, 6
    %v2721 = vrot.slane %v2057, 6
    %v2725 = vsel %vm222, %v2616, 0
    %2727 = vmatpush.msra.mxu0 0.0
    %2728 = vmatpush.msra.mxu0 0.0
    %2729 = vmatpush.msra.mxu0 0.0
    %2730 = vmatpush.msra.mxu0 0.0
    %2731 = vmatpush.msra.mxu0 0.0
    %2732 = vmatpush.msra.mxu0 0.0
    %2733 = vmatpush.msra.mxu0 0.0
    %2734 = vmatpush.msra.mxu0 0.0
    %2735 = vmatpush.msra.mxu0 %v1989
    %2736 = vmatpush.msra.mxu0 %v1987
    %2737 = vmatpush.msra.mxu0 %v1985
    %2738 = vmatpush.msra.mxu0 %v1983
    %2739 = vmatpush.msra.mxu0 %v1981
    %2740 = vmatpush.msra.mxu0 %v1979
    %2741 = vmatpush.msra.mxu0 %v1977
    %2742 = vmatpush.msra.mxu0 %v1975
    %2743 = vmatmul.f32.gmra.mxu0 %v2725
    %v2744 = vpop.f32.mrf.mxu0
    %v2745 = vadd.f32 %v2720, %v2744
    %2746 = vdwg.mxu0
    %2747 = vmatpush.msra.mxu0 0.0
    %2748 = vmatpush.msra.mxu0 0.0
    %2749 = vmatpush.msra.mxu0 0.0
    %2750 = vmatpush.msra.mxu0 0.0
    %2751 = vmatpush.msra.mxu0 0.0
    %2752 = vmatpush.msra.mxu0 0.0
    %2753 = vmatpush.msra.mxu0 0.0
    %2754 = vmatpush.msra.mxu0 0.0
    %2755 = vmatpush.msra.mxu0 %v1990
    %2756 = vmatpush.msra.mxu0 %v1988
    %2757 = vmatpush.msra.mxu0 %v1986
    %2758 = vmatpush.msra.mxu0 %v1984
    %2759 = vmatpush.msra.mxu0 %v1982
    %2760 = vmatpush.msra.mxu0 %v1980
    %2761 = vmatpush.msra.mxu0 %v1978
    %2762 = vmatpush.msra.mxu0 %v1976
    %2763 = vmatmul.f32.gmra.mxu0 %v2725
    %v2764 = vpop.f32.mrf.mxu0
    %v2765 = vadd.f32 %v2721, %v2764
    %2766 = vdwg.mxu0
    %v2767 = vxor.u32 %v2745, 2147483648
    %v2768 = vxor.u32 %v2765, 2147483648
    %v2769 = vmul.f32 %v2767, 1.442695
    %v2770 = vpow.pop %v2769
    %v2771 = vmul.f32 %v2768, 1.442695
    %v2772 = vpow.pop %v2771
    %v2773 = vadd.f32 %v2770, 1.0
    %v2774 = vadd.f32 %v2772, 1.0
    %v2775 = vrcp.pop %v2773
    %v2776 = vmul.f32 %v2773, %v2775
    %v2777 = vsub.f32 1.0, %v2776
    %v2778 = vmul.f32 %v2775, %v2777
    %v2779 = vadd.f32 %v2775, %v2778
    %vm2780 = vweird.f32 %v2773
    %vm2781 = vweird.f32 %v2775
    %vm2782 = vmor %vm2780, %vm2781
    %v2783 = vsel %vm2782, %v2775, %v2779
    %v2784 = vand.u32 2147483647, %v2773
    %vm2785 = vcmp.eq.f32.partialorder %v2784, 8.507059e+37
    %v2786 = vand.u32 %v2773, 2147483648
    %v2787 = vor.u32 1.1754944e-38, %v2786
    %v2788 = vsel %vm2785, %v2787, %v2783
    %v2789 = vmul.f32 1.0, %v2788
    %v2790 = vrcp.pop %v2774
    %v2791 = vmul.f32 %v2774, %v2790
    %v2792 = vsub.f32 1.0, %v2791
    %v2793 = vmul.f32 %v2790, %v2792
    %v2794 = vadd.f32 %v2790, %v2793
    %vm2795 = vweird.f32 %v2774
    %vm2796 = vweird.f32 %v2790
    %vm2797 = vmor %vm2795, %vm2796
    %v2798 = vsel %vm2797, %v2790, %v2794
    %v2799 = vand.u32 2147483647, %v2774
    %vm2800 = vcmp.eq.f32.partialorder %v2799, 8.507059e+37
    %v2801 = vand.u32 %v2774, 2147483648
    %v2802 = vor.u32 1.1754944e-38, %v2801
    %v2803 = vsel %vm2800, %v2802, %v2798
    %v2804 = vmul.f32 1.0, %v2803
    %v2805 = vtanh.pop %v2765
    %v2806 = vmul.f32 %v2789, %v2610
    %2808 = vrot.lane.b32.xlu0 %v2805, 64
    %v2809 = vpop.permute.xlu0 %2808
    %v2811 = vmul.f32 %v2789, %v2809
    %2813 = vrot.lane.b32.xlu0 %v2811, 64
    %v2814 = vpop.permute.xlu0 %2813
    %v2816 = vadd.f32 %v2806, %v2814
    %v2817 = vtanh.pop %v2816
    %2819 = vrot.lane.b32.xlu0 %v2817, 64
    %v2820 = vpop.permute.xlu0 %2819
    %v2822 = vmul.f32 %v2804, %v2820
    %v2824 = vsel %vm222, %v2719, 0
    %2826 = vmatpush.msra.mxu0 0.0
    %2827 = vmatpush.msra.mxu0 0.0
    %2828 = vmatpush.msra.mxu0 0.0
    %2829 = vmatpush.msra.mxu0 0.0
    %2830 = vmatpush.msra.mxu0 0.0
    %2831 = vmatpush.msra.mxu0 0.0
    %2832 = vmatpush.msra.mxu0 0.0
    %2833 = vmatpush.msra.mxu0 0.0
    %2834 = vmatpush.msra.mxu0 %v2005
    %2835 = vmatpush.msra.mxu0 %v2003
    %2836 = vmatpush.msra.mxu0 %v2001
    %2837 = vmatpush.msra.mxu0 %v1999
    %2838 = vmatpush.msra.mxu0 %v1997
    %2839 = vmatpush.msra.mxu0 %v1995
    %2840 = vmatpush.msra.mxu0 %v1993
    %2841 = vmatpush.msra.mxu0 %v1991
    %2842 = vmatmul.f32.gmra.mxu0 %v2824
    %v2843 = vpop.f32.mrf.mxu0
    %v2844 = vadd.f32 %v2083, %v2843
    %2845 = vdwg.mxu0
    %2846 = vmatpush.msra.mxu0 0.0
    %2847 = vmatpush.msra.mxu0 0.0
    %2848 = vmatpush.msra.mxu0 0.0
    %2849 = vmatpush.msra.mxu0 0.0
    %2850 = vmatpush.msra.mxu0 0.0
    %2851 = vmatpush.msra.mxu0 0.0
    %2852 = vmatpush.msra.mxu0 0.0
    %2853 = vmatpush.msra.mxu0 0.0
    %2854 = vmatpush.msra.mxu0 %v2006
    %2855 = vmatpush.msra.mxu0 %v2004
    %2856 = vmatpush.msra.mxu0 %v2002
    %2857 = vmatpush.msra.mxu0 %v2000
    %2858 = vmatpush.msra.mxu0 %v1998
    %2859 = vmatpush.msra.mxu0 %v1996
    %2860 = vmatpush.msra.mxu0 %v1994
    %2861 = vmatpush.msra.mxu0 %v1992
    %2862 = vmatmul.f32.gmra.mxu0 %v2824
    %v2863 = vpop.f32.mrf.mxu0
    %v2864 = vadd.f32 %v2106, %v2863
    %2865 = vdwg.mxu0
    %v2866 = vxor.u32 %v2844, 2147483648
    %v2867 = vxor.u32 %v2864, 2147483648
    %v2868 = vmul.f32 %v2866, 1.442695
    %v2869 = vpow.pop %v2868
    %v2870 = vmul.f32 %v2867, 1.442695
    %v2871 = vpow.pop %v2870
    %v2872 = vadd.f32 %v2869, 1.0
    %v2873 = vadd.f32 %v2871, 1.0
    %v2874 = vrcp.pop %v2872
    %v2875 = vmul.f32 %v2872, %v2874
    %v2876 = vsub.f32 1.0, %v2875
    %v2877 = vmul.f32 %v2874, %v2876
    %v2878 = vadd.f32 %v2874, %v2877
    %vm2879 = vweird.f32 %v2872
    %vm2880 = vweird.f32 %v2874
    %vm2881 = vmor %vm2879, %vm2880
    %v2882 = vsel %vm2881, %v2874, %v2878
    %v2883 = vand.u32 2147483647, %v2872
    %vm2884 = vcmp.eq.f32.partialorder %v2883, 8.507059e+37
    %v2885 = vand.u32 %v2872, 2147483648
    %v2886 = vor.u32 1.1754944e-38, %v2885
    %v2887 = vsel %vm2884, %v2886, %v2882
    %v2888 = vmul.f32 1.0, %v2887
    %v2889 = vrcp.pop %v2873
    %v2890 = vmul.f32 %v2873, %v2889
    %v2891 = vsub.f32 1.0, %v2890
    %v2892 = vmul.f32 %v2889, %v2891
    %v2893 = vadd.f32 %v2889, %v2892
    %vm2894 = vweird.f32 %v2873
    %vm2895 = vweird.f32 %v2889
    %vm2896 = vmor %vm2894, %vm2895
    %v2897 = vsel %vm2896, %v2889, %v2893
    %v2898 = vand.u32 2147483647, %v2873
    %vm2899 = vcmp.eq.f32.partialorder %v2898, 8.507059e+37
    %v2900 = vand.u32 %v2873, 2147483648
    %v2901 = vor.u32 1.1754944e-38, %v2900
    %v2902 = vsel %vm2899, %v2901, %v2897
    %v2903 = vmul.f32 1.0, %v2902
    %v2904 = vtanh.pop %v2864
    %v2905 = vmul.f32 %v2888, %v2713
    %2907 = vrot.lane.b32.xlu0 %v2904, 64
    %v2908 = vpop.permute.xlu0 %2907
    %v2910 = vmul.f32 %v2888, %v2908
    %2912 = vrot.lane.b32.xlu0 %v2910, 64
    %v2913 = vpop.permute.xlu0 %2912
    %v2915 = vadd.f32 %v2905, %v2913
    %v2916 = vtanh.pop %v2915
    %2918 = vrot.lane.b32.xlu0 %v2916, 64
    %v2919 = vpop.permute.xlu0 %2918
    %v2921 = vmul.f32 %v2903, %v2919
    %v2923 = vsel %vm222, %v2822, 0
    %2925 = vmatpush.msra.mxu0 0.0
    %2926 = vmatpush.msra.mxu0 0.0
    %2927 = vmatpush.msra.mxu0 0.0
    %2928 = vmatpush.msra.mxu0 0.0
    %2929 = vmatpush.msra.mxu0 0.0
    %2930 = vmatpush.msra.mxu0 0.0
    %2931 = vmatpush.msra.mxu0 0.0
    %2932 = vmatpush.msra.mxu0 0.0
    %2933 = vmatpush.msra.mxu0 %v1989
    %2934 = vmatpush.msra.mxu0 %v1987
    %2935 = vmatpush.msra.mxu0 %v1985
    %2936 = vmatpush.msra.mxu0 %v1983
    %2937 = vmatpush.msra.mxu0 %v1981
    %2938 = vmatpush.msra.mxu0 %v1979
    %2939 = vmatpush.msra.mxu0 %v1977
    %2940 = vmatpush.msra.mxu0 %v1975
    %2941 = vmatmul.f32.gmra.mxu0 %v2923
    %v2942 = vpop.f32.mrf.mxu0
    %v2943 = vadd.f32 %v2037, %v2942
    %2944 = vdwg.mxu0
    %2945 = vmatpush.msra.mxu0 0.0
    %2946 = vmatpush.msra.mxu0 0.0
    %2947 = vmatpush.msra.mxu0 0.0
    %2948 = vmatpush.msra.mxu0 0.0
    %2949 = vmatpush.msra.mxu0 0.0
    %2950 = vmatpush.msra.mxu0 0.0
    %2951 = vmatpush.msra.mxu0 0.0
    %2952 = vmatpush.msra.mxu0 0.0
    %2953 = vmatpush.msra.mxu0 %v1990
    %2954 = vmatpush.msra.mxu0 %v1988
    %2955 = vmatpush.msra.mxu0 %v1986
    %2956 = vmatpush.msra.mxu0 %v1984
    %2957 = vmatpush.msra.mxu0 %v1982
    %2958 = vmatpush.msra.mxu0 %v1980
    %2959 = vmatpush.msra.mxu0 %v1978
    %2960 = vmatpush.msra.mxu0 %v1976
    %2961 = vmatmul.f32.gmra.mxu0 %v2923
    %v2962 = vpop.f32.mrf.mxu0
    %v2963 = vadd.f32 %v2060, %v2962
    %2964 = vdwg.mxu0
    %v2965 = vxor.u32 %v2943, 2147483648
    %v2966 = vxor.u32 %v2963, 2147483648
    %v2967 = vmul.f32 %v2965, 1.442695
    %v2968 = vpow.pop %v2967
    %v2969 = vmul.f32 %v2966, 1.442695
    %v2970 = vpow.pop %v2969
    %v2971 = vadd.f32 %v2968, 1.0
    %v2972 = vadd.f32 %v2970, 1.0
    %v2973 = vrcp.pop %v2971
    %v2974 = vmul.f32 %v2971, %v2973
    %v2975 = vsub.f32 1.0, %v2974
    %v2976 = vmul.f32 %v2973, %v2975
    %v2977 = vadd.f32 %v2973, %v2976
    %vm2978 = vweird.f32 %v2971
    %vm2979 = vweird.f32 %v2973
    %vm2980 = vmor %vm2978, %vm2979
    %v2981 = vsel %vm2980, %v2973, %v2977
    %v2982 = vand.u32 2147483647, %v2971
    %vm2983 = vcmp.eq.f32.partialorder %v2982, 8.507059e+37
    %v2984 = vand.u32 %v2971, 2147483648
    %v2985 = vor.u32 1.1754944e-38, %v2984
    %v2986 = vsel %vm2983, %v2985, %v2981
    %v2987 = vmul.f32 1.0, %v2986
    %v2988 = vrcp.pop %v2972
    %v2989 = vmul.f32 %v2972, %v2988
    %v2990 = vsub.f32 1.0, %v2989
    %v2991 = vmul.f32 %v2988, %v2990
    %v2992 = vadd.f32 %v2988, %v2991
    %vm2993 = vweird.f32 %v2972
    %vm2994 = vweird.f32 %v2988
    %vm2995 = vmor %vm2993, %vm2994
    %v2996 = vsel %vm2995, %v2988, %v2992
    %v2997 = vand.u32 2147483647, %v2972
    %vm2998 = vcmp.eq.f32.partialorder %v2997, 8.507059e+37
    %v2999 = vand.u32 %v2972, 2147483648
    %v3000 = vor.u32 1.1754944e-38, %v2999
    %v3001 = vsel %vm2998, %v3000, %v2996
    %v3002 = vmul.f32 1.0, %v3001
    %v3003 = vtanh.pop %v2963
    %v3004 = vmul.f32 %v2987, %v2816
    %3006 = vrot.lane.b32.xlu0 %v3003, 64
    %v3007 = vpop.permute.xlu0 %3006
    %v3009 = vmul.f32 %v2987, %v3007
    %3011 = vrot.lane.b32.xlu0 %v3009, 64
    %v3012 = vpop.permute.xlu0 %3011
    %v3014 = vadd.f32 %v3004, %v3012
    %v3015 = vtanh.pop %v3014
    %3017 = vrot.lane.b32.xlu0 %v3015, 64
    %v3018 = vpop.permute.xlu0 %3017
    %v3020 = vmul.f32 %v3002, %v3018
    %v3023 = vrot.slane %v2080, 6
    %v3024 = vrot.slane %v2103, 6
    %v3028 = vsel %vm222, %v2921, 0
    %3030 = vmatpush.msra.mxu0 0.0
    %3031 = vmatpush.msra.mxu0 0.0
    %3032 = vmatpush.msra.mxu0 0.0
    %3033 = vmatpush.msra.mxu0 0.0
    %3034 = vmatpush.msra.mxu0 0.0
    %3035 = vmatpush.msra.mxu0 0.0
    %3036 = vmatpush.msra.mxu0 0.0
    %3037 = vmatpush.msra.mxu0 0.0
    %3038 = vmatpush.msra.mxu0 %v2005
    %3039 = vmatpush.msra.mxu0 %v2003
    %3040 = vmatpush.msra.mxu0 %v2001
    %3041 = vmatpush.msra.mxu0 %v1999
    %3042 = vmatpush.msra.mxu0 %v1997
    %3043 = vmatpush.msra.mxu0 %v1995
    %3044 = vmatpush.msra.mxu0 %v1993
    %3045 = vmatpush.msra.mxu0 %v1991
    %3046 = vmatmul.f32.gmra.mxu0 %v3028
    %v3047 = vpop.f32.mrf.mxu0
    %v3048 = vadd.f32 %v3023, %v3047
    %3049 = vdwg.mxu0
    %3050 = vmatpush.msra.mxu0 0.0
    %3051 = vmatpush.msra.mxu0 0.0
    %3052 = vmatpush.msra.mxu0 0.0
    %3053 = vmatpush.msra.mxu0 0.0
    %3054 = vmatpush.msra.mxu0 0.0
    %3055 = vmatpush.msra.mxu0 0.0
    %3056 = vmatpush.msra.mxu0 0.0
    %3057 = vmatpush.msra.mxu0 0.0
    %3058 = vmatpush.msra.mxu0 %v2006
    %3059 = vmatpush.msra.mxu0 %v2004
    %3060 = vmatpush.msra.mxu0 %v2002
    %3061 = vmatpush.msra.mxu0 %v2000
    %3062 = vmatpush.msra.mxu0 %v1998
    %3063 = vmatpush.msra.mxu0 %v1996
    %3064 = vmatpush.msra.mxu0 %v1994
    %3065 = vmatpush.msra.mxu0 %v1992
    %3066 = vmatmul.f32.gmra.mxu0 %v3028
    %v3067 = vpop.f32.mrf.mxu0
    %v3068 = vadd.f32 %v3024, %v3067
    %3069 = vdwg.mxu0
    %v3070 = vxor.u32 %v3048, 2147483648
    %v3071 = vxor.u32 %v3068, 2147483648
    %v3072 = vmul.f32 %v3070, 1.442695
    %v3073 = vpow.pop %v3072
    %v3074 = vmul.f32 %v3071, 1.442695
    %v3075 = vpow.pop %v3074
    %v3076 = vadd.f32 %v3073, 1.0
    %v3077 = vadd.f32 %v3075, 1.0
    %v3078 = vrcp.pop %v3076
    %v3079 = vmul.f32 %v3076, %v3078
    %v3080 = vsub.f32 1.0, %v3079
    %v3081 = vmul.f32 %v3078, %v3080
    %v3082 = vadd.f32 %v3078, %v3081
    %vm3083 = vweird.f32 %v3076
    %vm3084 = vweird.f32 %v3078
    %vm3085 = vmor %vm3083, %vm3084
    %v3086 = vsel %vm3085, %v3078, %v3082
    %v3087 = vand.u32 2147483647, %v3076
    %vm3088 = vcmp.eq.f32.partialorder %v3087, 8.507059e+37
    %v3089 = vand.u32 %v3076, 2147483648
    %v3090 = vor.u32 1.1754944e-38, %v3089
    %v3091 = vsel %vm3088, %v3090, %v3086
    %v3092 = vmul.f32 1.0, %v3091
    %v3093 = vrcp.pop %v3077
    %v3094 = vmul.f32 %v3077, %v3093
    %v3095 = vsub.f32 1.0, %v3094
    %v3096 = vmul.f32 %v3093, %v3095
    %v3097 = vadd.f32 %v3093, %v3096
    %vm3098 = vweird.f32 %v3077
    %vm3099 = vweird.f32 %v3093
    %vm3100 = vmor %vm3098, %vm3099
    %v3101 = vsel %vm3100, %v3093, %v3097
    %v3102 = vand.u32 2147483647, %v3077
    %vm3103 = vcmp.eq.f32.partialorder %v3102, 8.507059e+37
    %v3104 = vand.u32 %v3077, 2147483648
    %v3105 = vor.u32 1.1754944e-38, %v3104
    %v3106 = vsel %vm3103, %v3105, %v3101
    %v3107 = vmul.f32 1.0, %v3106
    %v3108 = vtanh.pop %v3068
    %v3109 = vmul.f32 %v3092, %v2915
    %3111 = vrot.lane.b32.xlu0 %v3108, 64
    %v3112 = vpop.permute.xlu0 %3111
    %v3114 = vmul.f32 %v3092, %v3112
    %3116 = vrot.lane.b32.xlu0 %v3114, 64
    %v3117 = vpop.permute.xlu0 %3116
    %v3119 = vadd.f32 %v3109, %v3117
    %v3120 = vtanh.pop %v3119
    %3122 = vrot.lane.b32.xlu0 %v3120, 64
    %v3123 = vpop.permute.xlu0 %3122
    %v3125 = vmul.f32 %v3107, %v3123
    %v3128 = vrot.slane %v2037, 2
    %v3129 = vrot.slane %v2060, 2
    %v3133 = vsel %vm222, %v3020, 0
    %3135 = vmatpush.msra.mxu0 0.0
    %3136 = vmatpush.msra.mxu0 0.0
    %3137 = vmatpush.msra.mxu0 0.0
    %3138 = vmatpush.msra.mxu0 0.0
    %3139 = vmatpush.msra.mxu0 0.0
    %3140 = vmatpush.msra.mxu0 0.0
    %3141 = vmatpush.msra.mxu0 0.0
    %3142 = vmatpush.msra.mxu0 0.0
    %3143 = vmatpush.msra.mxu0 %v1989
    %3144 = vmatpush.msra.mxu0 %v1987
    %3145 = vmatpush.msra.mxu0 %v1985
    %3146 = vmatpush.msra.mxu0 %v1983
    %3147 = vmatpush.msra.mxu0 %v1981
    %3148 = vmatpush.msra.mxu0 %v1979
    %3149 = vmatpush.msra.mxu0 %v1977
    %3150 = vmatpush.msra.mxu0 %v1975
    %3151 = vmatmul.f32.gmra.mxu0 %v3133
    %v3152 = vpop.f32.mrf.mxu0
    %v3153 = vadd.f32 %v3128, %v3152
    %3154 = vdwg.mxu0
    %3155 = vmatpush.msra.mxu0 0.0
    %3156 = vmatpush.msra.mxu0 0.0
    %3157 = vmatpush.msra.mxu0 0.0
    %3158 = vmatpush.msra.mxu0 0.0
    %3159 = vmatpush.msra.mxu0 0.0
    %3160 = vmatpush.msra.mxu0 0.0
    %3161 = vmatpush.msra.mxu0 0.0
    %3162 = vmatpush.msra.mxu0 0.0
    %3163 = vmatpush.msra.mxu0 %v1990
    %3164 = vmatpush.msra.mxu0 %v1988
    %3165 = vmatpush.msra.mxu0 %v1986
    %3166 = vmatpush.msra.mxu0 %v1984
    %3167 = vmatpush.msra.mxu0 %v1982
    %3168 = vmatpush.msra.mxu0 %v1980
    %3169 = vmatpush.msra.mxu0 %v1978
    %3170 = vmatpush.msra.mxu0 %v1976
    %3171 = vmatmul.f32.gmra.mxu0 %v3133
    %v3172 = vpop.f32.mrf.mxu0
    %v3173 = vadd.f32 %v3129, %v3172
    %3174 = vdwg.mxu0
    %v3175 = vxor.u32 %v3153, 2147483648
    %v3176 = vxor.u32 %v3173, 2147483648
    %v3177 = vmul.f32 %v3175, 1.442695
    %v3178 = vpow.pop %v3177
    %v3179 = vmul.f32 %v3176, 1.442695
    %v3180 = vpow.pop %v3179
    %v3181 = vadd.f32 %v3178, 1.0
    %v3182 = vadd.f32 %v3180, 1.0
    %v3183 = vrcp.pop %v3181
    %v3184 = vmul.f32 %v3181, %v3183
    %v3185 = vsub.f32 1.0, %v3184
    %v3186 = vmul.f32 %v3183, %v3185
    %v3187 = vadd.f32 %v3183, %v3186
    %vm3188 = vweird.f32 %v3181
    %vm3189 = vweird.f32 %v3183
    %vm3190 = vmor %vm3188, %vm3189
    %v3191 = vsel %vm3190, %v3183, %v3187
    %v3192 = vand.u32 2147483647, %v3181
    %vm3193 = vcmp.eq.f32.partialorder %v3192, 8.507059e+37
    %v3194 = vand.u32 %v3181, 2147483648
    %v3195 = vor.u32 1.1754944e-38, %v3194
    %v3196 = vsel %vm3193, %v3195, %v3191
    %v3197 = vmul.f32 1.0, %v3196
    %v3198 = vrcp.pop %v3182
    %v3199 = vmul.f32 %v3182, %v3198
    %v3200 = vsub.f32 1.0, %v3199
    %v3201 = vmul.f32 %v3198, %v3200
    %v3202 = vadd.f32 %v3198, %v3201
    %vm3203 = vweird.f32 %v3182
    %vm3204 = vweird.f32 %v3198
    %vm3205 = vmor %vm3203, %vm3204
    %v3206 = vsel %vm3205, %v3198, %v3202
    %v3207 = vand.u32 2147483647, %v3182
    %vm3208 = vcmp.eq.f32.partialorder %v3207, 8.507059e+37
    %v3209 = vand.u32 %v3182, 2147483648
    %v3210 = vor.u32 1.1754944e-38, %v3209
    %v3211 = vsel %vm3208, %v3210, %v3206
    %v3212 = vmul.f32 1.0, %v3211
    %v3213 = vtanh.pop %v3173
    %v3214 = vmul.f32 %v3197, %v3014
    %3216 = vrot.lane.b32.xlu0 %v3213, 64
    %v3217 = vpop.permute.xlu0 %3216
    %v3219 = vmul.f32 %v3197, %v3217
    %3221 = vrot.lane.b32.xlu0 %v3219, 64
    %v3222 = vpop.permute.xlu0 %3221
    %v3224 = vadd.f32 %v3214, %v3222
    %v3225 = vtanh.pop %v3224
    %3227 = vrot.lane.b32.xlu0 %v3225, 64
    %v3228 = vpop.permute.xlu0 %3227
    %v3230 = vmul.f32 %v3212, %v3228
    %v3231 = vrot.slane %v2080, 4
    %v3232 = vrot.slane %v2103, 4
    %v3236 = vsel %vm222, %v3125, 0
    %3238 = vmatpush.msra.mxu0 0.0
    %3239 = vmatpush.msra.mxu0 0.0
    %3240 = vmatpush.msra.mxu0 0.0
    %3241 = vmatpush.msra.mxu0 0.0
    %3242 = vmatpush.msra.mxu0 0.0
    %3243 = vmatpush.msra.mxu0 0.0
    %3244 = vmatpush.msra.mxu0 0.0
    %3245 = vmatpush.msra.mxu0 0.0
    %3246 = vmatpush.msra.mxu0 %v2005
    %3247 = vmatpush.msra.mxu0 %v2003
    %3248 = vmatpush.msra.mxu0 %v2001
    %3249 = vmatpush.msra.mxu0 %v1999
    %3250 = vmatpush.msra.mxu0 %v1997
    %3251 = vmatpush.msra.mxu0 %v1995
    %3252 = vmatpush.msra.mxu0 %v1993
    %3253 = vmatpush.msra.mxu0 %v1991
    %3254 = vmatmul.f32.gmra.mxu0 %v3236
    %v3255 = vpop.f32.mrf.mxu0
    %v3256 = vadd.f32 %v3231, %v3255
    %3257 = vdwg.mxu0
    %3258 = vmatpush.msra.mxu0 0.0
    %3259 = vmatpush.msra.mxu0 0.0
    %3260 = vmatpush.msra.mxu0 0.0
    %3261 = vmatpush.msra.mxu0 0.0
    %3262 = vmatpush.msra.mxu0 0.0
    %3263 = vmatpush.msra.mxu0 0.0
    %3264 = vmatpush.msra.mxu0 0.0
    %3265 = vmatpush.msra.mxu0 0.0
    %3266 = vmatpush.msra.mxu0 %v2006
    %3267 = vmatpush.msra.mxu0 %v2004
    %3268 = vmatpush.msra.mxu0 %v2002
    %3269 = vmatpush.msra.mxu0 %v2000
    %3270 = vmatpush.msra.mxu0 %v1998
    %3271 = vmatpush.msra.mxu0 %v1996
    %3272 = vmatpush.msra.mxu0 %v1994
    %3273 = vmatpush.msra.mxu0 %v1992
    %3274 = vmatmul.f32.gmra.mxu0 %v3236
    %v3275 = vpop.f32.mrf.mxu0
    %v3276 = vadd.f32 %v3232, %v3275
    %3277 = vdwg.mxu0
    %v3278 = vxor.u32 %v3256, 2147483648
    %v3279 = vxor.u32 %v3276, 2147483648
    %v3280 = vmul.f32 %v3278, 1.442695
    %v3281 = vpow.pop %v3280
    %v3282 = vmul.f32 %v3279, 1.442695
    %v3283 = vpow.pop %v3282
    %v3284 = vadd.f32 %v3281, 1.0
    %v3285 = vadd.f32 %v3283, 1.0
    %v3286 = vrcp.pop %v3284
    %v3287 = vmul.f32 %v3284, %v3286
    %v3288 = vsub.f32 1.0, %v3287
    %v3289 = vmul.f32 %v3286, %v3288
    %v3290 = vadd.f32 %v3286, %v3289
    %vm3291 = vweird.f32 %v3284
    %vm3292 = vweird.f32 %v3286
    %vm3293 = vmor %vm3291, %vm3292
    %v3294 = vsel %vm3293, %v3286, %v3290
    %v3295 = vand.u32 2147483647, %v3284
    %vm3296 = vcmp.eq.f32.partialorder %v3295, 8.507059e+37
    %v3297 = vand.u32 %v3284, 2147483648
    %v3298 = vor.u32 1.1754944e-38, %v3297
    %v3299 = vsel %vm3296, %v3298, %v3294
    %v3300 = vmul.f32 1.0, %v3299
    %v3301 = vrcp.pop %v3285
    %v3302 = vmul.f32 %v3285, %v3301
    %v3303 = vsub.f32 1.0, %v3302
    %v3304 = vmul.f32 %v3301, %v3303
    %v3305 = vadd.f32 %v3301, %v3304
    %vm3306 = vweird.f32 %v3285
    %vm3307 = vweird.f32 %v3301
    %vm3308 = vmor %vm3306, %vm3307
    %v3309 = vsel %vm3308, %v3301, %v3305
    %v3310 = vand.u32 2147483647, %v3285
    %vm3311 = vcmp.eq.f32.partialorder %v3310, 8.507059e+37
    %v3312 = vand.u32 %v3285, 2147483648
    %v3313 = vor.u32 1.1754944e-38, %v3312
    %v3314 = vsel %vm3311, %v3313, %v3309
    %v3315 = vmul.f32 1.0, %v3314
    %v3316 = vtanh.pop %v3276
    %v3317 = vmul.f32 %v3300, %v3119
    %3319 = vrot.lane.b32.xlu0 %v3316, 64
    %v3320 = vpop.permute.xlu0 %3319
    %v3322 = vmul.f32 %v3300, %v3320
    %3324 = vrot.lane.b32.xlu0 %v3322, 64
    %v3325 = vpop.permute.xlu0 %3324
    %v3327 = vadd.f32 %v3317, %v3325
    %v3328 = vtanh.pop %v3327
    %3330 = vrot.lane.b32.xlu0 %v3328, 64
    %v3331 = vpop.permute.xlu0 %3330
    %v3333 = vmul.f32 %v3315, %v3331
    %v3334 = vrot.slane %v2037, 4
    %v3335 = vrot.slane %v2060, 4
    %v3339 = vsel %vm222, %v3230, 0
    %3341 = vmatpush.msra.mxu0 0.0
    %3342 = vmatpush.msra.mxu0 0.0
    %3343 = vmatpush.msra.mxu0 0.0
    %3344 = vmatpush.msra.mxu0 0.0
    %3345 = vmatpush.msra.mxu0 0.0
    %3346 = vmatpush.msra.mxu0 0.0
    %3347 = vmatpush.msra.mxu0 0.0
    %3348 = vmatpush.msra.mxu0 0.0
    %3349 = vmatpush.msra.mxu0 %v1989
    %3350 = vmatpush.msra.mxu0 %v1987
    %3351 = vmatpush.msra.mxu0 %v1985
    %3352 = vmatpush.msra.mxu0 %v1983
    %3353 = vmatpush.msra.mxu0 %v1981
    %3354 = vmatpush.msra.mxu0 %v1979
    %3355 = vmatpush.msra.mxu0 %v1977
    %3356 = vmatpush.msra.mxu0 %v1975
    %3357 = vmatmul.f32.gmra.mxu0 %v3339
    %v3358 = vpop.f32.mrf.mxu0
    %v3359 = vadd.f32 %v3334, %v3358
    %3360 = vdwg.mxu0
    %3361 = vmatpush.msra.mxu0 0.0
    %3362 = vmatpush.msra.mxu0 0.0
    %3363 = vmatpush.msra.mxu0 0.0
    %3364 = vmatpush.msra.mxu0 0.0
    %3365 = vmatpush.msra.mxu0 0.0
    %3366 = vmatpush.msra.mxu0 0.0
    %3367 = vmatpush.msra.mxu0 0.0
    %3368 = vmatpush.msra.mxu0 0.0
    %3369 = vmatpush.msra.mxu0 %v1990
    %3370 = vmatpush.msra.mxu0 %v1988
    %3371 = vmatpush.msra.mxu0 %v1986
    %3372 = vmatpush.msra.mxu0 %v1984
    %3373 = vmatpush.msra.mxu0 %v1982
    %3374 = vmatpush.msra.mxu0 %v1980
    %3375 = vmatpush.msra.mxu0 %v1978
    %3376 = vmatpush.msra.mxu0 %v1976
    %3377 = vmatmul.f32.gmra.mxu0 %v3339
    %v3378 = vpop.f32.mrf.mxu0
    %v3379 = vadd.f32 %v3335, %v3378
    %3380 = vdwg.mxu0
    %v3381 = vxor.u32 %v3359, 2147483648
    %v3382 = vxor.u32 %v3379, 2147483648
    %v3383 = vmul.f32 %v3381, 1.442695
    %v3384 = vpow.pop %v3383
    %v3385 = vmul.f32 %v3382, 1.442695
    %v3386 = vpow.pop %v3385
    %v3387 = vadd.f32 %v3384, 1.0
    %v3388 = vadd.f32 %v3386, 1.0
    %v3389 = vrcp.pop %v3387
    %v3390 = vmul.f32 %v3387, %v3389
    %v3391 = vsub.f32 1.0, %v3390
    %v3392 = vmul.f32 %v3389, %v3391
    %v3393 = vadd.f32 %v3389, %v3392
    %vm3394 = vweird.f32 %v3387
    %vm3395 = vweird.f32 %v3389
    %vm3396 = vmor %vm3394, %vm3395
    %v3397 = vsel %vm3396, %v3389, %v3393
    %v3398 = vand.u32 2147483647, %v3387
    %vm3399 = vcmp.eq.f32.partialorder %v3398, 8.507059e+37
    %v3400 = vand.u32 %v3387, 2147483648
    %v3401 = vor.u32 1.1754944e-38, %v3400
    %v3402 = vsel %vm3399, %v3401, %v3397
    %v3403 = vmul.f32 1.0, %v3402
    %v3404 = vrcp.pop %v3388
    %v3405 = vmul.f32 %v3388, %v3404
    %v3406 = vsub.f32 1.0, %v3405
    %v3407 = vmul.f32 %v3404, %v3406
    %v3408 = vadd.f32 %v3404, %v3407
    %vm3409 = vweird.f32 %v3388
    %vm3410 = vweird.f32 %v3404
    %vm3411 = vmor %vm3409, %vm3410
    %v3412 = vsel %vm3411, %v3404, %v3408
    %v3413 = vand.u32 2147483647, %v3388
    %vm3414 = vcmp.eq.f32.partialorder %v3413, 8.507059e+37
    %v3415 = vand.u32 %v3388, 2147483648
    %v3416 = vor.u32 1.1754944e-38, %v3415
    %v3417 = vsel %vm3414, %v3416, %v3412
    %v3418 = vmul.f32 1.0, %v3417
    %v3419 = vtanh.pop %v3379
    %v3420 = vmul.f32 %v3403, %v3224
    %3422 = vrot.lane.b32.xlu0 %v3419, 64
    %v3423 = vpop.permute.xlu0 %3422
    %v3425 = vmul.f32 %v3403, %v3423
    %3427 = vrot.lane.b32.xlu0 %v3425, 64
    %v3428 = vpop.permute.xlu0 %3427
    %v3430 = vadd.f32 %v3420, %v3428
    %v3431 = vtanh.pop %v3430
    %3433 = vrot.lane.b32.xlu0 %v3431, 64
    %v3434 = vpop.permute.xlu0 %3433
    %v3436 = vmul.f32 %v3418, %v3434
    %v3437 = vrot.slane %v2080, 2
    %v3438 = vrot.slane %v2103, 2
    %v3442 = vsel %vm222, %v3333, 0
    %3444 = vmatpush.msra.mxu0 0.0
    %3445 = vmatpush.msra.mxu0 0.0
    %3446 = vmatpush.msra.mxu0 0.0
    %3447 = vmatpush.msra.mxu0 0.0
    %3448 = vmatpush.msra.mxu0 0.0
    %3449 = vmatpush.msra.mxu0 0.0
    %3450 = vmatpush.msra.mxu0 0.0
    %3451 = vmatpush.msra.mxu0 0.0
    %3452 = vmatpush.msra.mxu0 %v2005
    %3453 = vmatpush.msra.mxu0 %v2003
    %3454 = vmatpush.msra.mxu0 %v2001
    %3455 = vmatpush.msra.mxu0 %v1999
    %3456 = vmatpush.msra.mxu0 %v1997
    %3457 = vmatpush.msra.mxu0 %v1995
    %3458 = vmatpush.msra.mxu0 %v1993
    %3459 = vmatpush.msra.mxu0 %v1991
    %3460 = vmatmul.f32.gmra.mxu0 %v3442
    %v3461 = vpop.f32.mrf.mxu0
    %v3462 = vadd.f32 %v3437, %v3461
    %3463 = vdwg.mxu0
    %3464 = vmatpush.msra.mxu0 0.0
    %3465 = vmatpush.msra.mxu0 0.0
    %3466 = vmatpush.msra.mxu0 0.0
    %3467 = vmatpush.msra.mxu0 0.0
    %3468 = vmatpush.msra.mxu0 0.0
    %3469 = vmatpush.msra.mxu0 0.0
    %3470 = vmatpush.msra.mxu0 0.0
    %3471 = vmatpush.msra.mxu0 0.0
    %3472 = vmatpush.msra.mxu0 %v2006
    %3473 = vmatpush.msra.mxu0 %v2004
    %3474 = vmatpush.msra.mxu0 %v2002
    %3475 = vmatpush.msra.mxu0 %v2000
    %3476 = vmatpush.msra.mxu0 %v1998
    %3477 = vmatpush.msra.mxu0 %v1996
    %3478 = vmatpush.msra.mxu0 %v1994
    %3479 = vmatpush.msra.mxu0 %v1992
    %3480 = vmatmul.f32.gmra.mxu0 %v3442
    %v3481 = vpop.f32.mrf.mxu0
    %v3482 = vadd.f32 %v3438, %v3481
    %3483 = vdwg.mxu0
    %v3484 = vxor.u32 %v3462, 2147483648
    %v3485 = vxor.u32 %v3482, 2147483648
    %v3486 = vmul.f32 %v3484, 1.442695
    %v3487 = vpow.pop %v3486
    %v3488 = vmul.f32 %v3485, 1.442695
    %v3489 = vpow.pop %v3488
    %v3490 = vadd.f32 %v3487, 1.0
    %v3491 = vadd.f32 %v3489, 1.0
    %v3492 = vrcp.pop %v3490
    %v3493 = vmul.f32 %v3490, %v3492
    %v3494 = vsub.f32 1.0, %v3493
    %v3495 = vmul.f32 %v3492, %v3494
    %v3496 = vadd.f32 %v3492, %v3495
    %vm3497 = vweird.f32 %v3490
    %vm3498 = vweird.f32 %v3492
    %vm3499 = vmor %vm3497, %vm3498
    %v3500 = vsel %vm3499, %v3492, %v3496
    %v3501 = vand.u32 2147483647, %v3490
    %vm3502 = vcmp.eq.f32.partialorder %v3501, 8.507059e+37
    %v3503 = vand.u32 %v3490, 2147483648
    %v3504 = vor.u32 1.1754944e-38, %v3503
    %v3505 = vsel %vm3502, %v3504, %v3500
    %v3506 = vmul.f32 1.0, %v3505
    %v3507 = vrcp.pop %v3491
    %v3508 = vmul.f32 %v3491, %v3507
    %v3509 = vsub.f32 1.0, %v3508
    %v3510 = vmul.f32 %v3507, %v3509
    %v3511 = vadd.f32 %v3507, %v3510
    %vm3512 = vweird.f32 %v3491
    %vm3513 = vweird.f32 %v3507
    %vm3514 = vmor %vm3512, %vm3513
    %v3515 = vsel %vm3514, %v3507, %v3511
    %v3516 = vand.u32 2147483647, %v3491
    %vm3517 = vcmp.eq.f32.partialorder %v3516, 8.507059e+37
    %v3518 = vand.u32 %v3491, 2147483648
    %v3519 = vor.u32 1.1754944e-38, %v3518
    %v3520 = vsel %vm3517, %v3519, %v3515
    %v3521 = vmul.f32 1.0, %v3520
    %v3522 = vtanh.pop %v3482
    %v3523 = vmul.f32 %v3506, %v3327
    %3525 = vrot.lane.b32.xlu0 %v3522, 64
    %v3526 = vpop.permute.xlu0 %3525
    %v3528 = vmul.f32 %v3506, %v3526
    %3530 = vrot.lane.b32.xlu0 %v3528, 64
    %v3531 = vpop.permute.xlu0 %3530
    %v3533 = vadd.f32 %v3523, %v3531
    %v3534 = vtanh.pop %v3533
    %3536 = vrot.lane.b32.xlu0 %v3534, 64
    %v3537 = vpop.permute.xlu0 %3536
    %v3539 = vmul.f32 %v3521, %v3537
    %v3540 = vrot.slane %v2037, 6
    %v3541 = vrot.slane %v2060, 6
    %v3545 = vsel %vm222, %v3436, 0
    %3547 = vmatpush.msra.mxu0 0.0
    %3548 = vmatpush.msra.mxu0 0.0
    %3549 = vmatpush.msra.mxu0 0.0
    %3550 = vmatpush.msra.mxu0 0.0
    %3551 = vmatpush.msra.mxu0 0.0
    %3552 = vmatpush.msra.mxu0 0.0
    %3553 = vmatpush.msra.mxu0 0.0
    %3554 = vmatpush.msra.mxu0 0.0
    %3555 = vmatpush.msra.mxu0 %v1989
    %3556 = vmatpush.msra.mxu0 %v1987
    %3557 = vmatpush.msra.mxu0 %v1985
    %3558 = vmatpush.msra.mxu0 %v1983
    %3559 = vmatpush.msra.mxu0 %v1981
    %3560 = vmatpush.msra.mxu0 %v1979
    %3561 = vmatpush.msra.mxu0 %v1977
    %3562 = vmatpush.msra.mxu0 %v1975
    %3563 = vmatmul.f32.gmra.mxu0 %v3545
    %v3564 = vpop.f32.mrf.mxu0
    %v3565 = vadd.f32 %v3540, %v3564
    %3566 = vdwg.mxu0
    %3567 = vmatpush.msra.mxu0 0.0
    %3568 = vmatpush.msra.mxu0 0.0
    %3569 = vmatpush.msra.mxu0 0.0
    %3570 = vmatpush.msra.mxu0 0.0
    %3571 = vmatpush.msra.mxu0 0.0
    %3572 = vmatpush.msra.mxu0 0.0
    %3573 = vmatpush.msra.mxu0 0.0
    %3574 = vmatpush.msra.mxu0 0.0
    %3575 = vmatpush.msra.mxu0 %v1990
    %3576 = vmatpush.msra.mxu0 %v1988
    %3577 = vmatpush.msra.mxu0 %v1986
    %3578 = vmatpush.msra.mxu0 %v1984
    %3579 = vmatpush.msra.mxu0 %v1982
    %3580 = vmatpush.msra.mxu0 %v1980
    %3581 = vmatpush.msra.mxu0 %v1978
    %3582 = vmatpush.msra.mxu0 %v1976
    %3583 = vmatmul.f32.gmra.mxu0 %v3545
    %v3584 = vpop.f32.mrf.mxu0
    %v3585 = vadd.f32 %v3541, %v3584
    %3586 = vdwg.mxu0
    %v3587 = vxor.u32 %v3565, 2147483648
    %v3588 = vxor.u32 %v3585, 2147483648
    %v3589 = vmul.f32 %v3587, 1.442695
    %v3590 = vpow.pop %v3589
    %v3591 = vmul.f32 %v3588, 1.442695
    %v3592 = vpow.pop %v3591
    %v3593 = vadd.f32 %v3590, 1.0
    %v3594 = vadd.f32 %v3592, 1.0
    %v3595 = vrcp.pop %v3593
    %v3596 = vmul.f32 %v3593, %v3595
    %v3597 = vsub.f32 1.0, %v3596
    %v3598 = vmul.f32 %v3595, %v3597
    %v3599 = vadd.f32 %v3595, %v3598
    %vm3600 = vweird.f32 %v3593
    %vm3601 = vweird.f32 %v3595
    %vm3602 = vmor %vm3600, %vm3601
    %v3603 = vsel %vm3602, %v3595, %v3599
    %v3604 = vand.u32 2147483647, %v3593
    %vm3605 = vcmp.eq.f32.partialorder %v3604, 8.507059e+37
    %v3606 = vand.u32 %v3593, 2147483648
    %v3607 = vor.u32 1.1754944e-38, %v3606
    %v3608 = vsel %vm3605, %v3607, %v3603
    %v3609 = vmul.f32 1.0, %v3608
    %v3610 = vrcp.pop %v3594
    %v3611 = vmul.f32 %v3594, %v3610
    %v3612 = vsub.f32 1.0, %v3611
    %v3613 = vmul.f32 %v3610, %v3612
    %v3614 = vadd.f32 %v3610, %v3613
    %vm3615 = vweird.f32 %v3594
    %vm3616 = vweird.f32 %v3610
    %vm3617 = vmor %vm3615, %vm3616
    %v3618 = vsel %vm3617, %v3610, %v3614
    %v3619 = vand.u32 2147483647, %v3594
    %vm3620 = vcmp.eq.f32.partialorder %v3619, 8.507059e+37
    %v3621 = vand.u32 %v3594, 2147483648
    %v3622 = vor.u32 1.1754944e-38, %v3621
    %v3623 = vsel %vm3620, %v3622, %v3618
    %v3624 = vmul.f32 1.0, %v3623
    %v3625 = vtanh.pop %v3585
    %v3626 = vmul.f32 %v3609, %v3430
    %3628 = vrot.lane.b32.xlu0 %v3625, 64
    %v3629 = vpop.permute.xlu0 %3628
    %v3631 = vmul.f32 %v3609, %v3629
    %3633 = vrot.lane.b32.xlu0 %v3631, 64
    %v3634 = vpop.permute.xlu0 %3633
    %v3636 = vadd.f32 %v3626, %v3634
    %v3637 = vtanh.pop %v3636
    %3639 = vrot.lane.b32.xlu0 %v3637, 64
    %v3640 = vpop.permute.xlu0 %3639
    %v3642 = vmul.f32 %v3624, %v3640
    %v3644 = vsel %vm222, %v3539, 0
    %3646 = vmatpush.msra.mxu0 0.0
    %3647 = vmatpush.msra.mxu0 0.0
    %3648 = vmatpush.msra.mxu0 0.0
    %3649 = vmatpush.msra.mxu0 0.0
    %3650 = vmatpush.msra.mxu0 0.0
    %3651 = vmatpush.msra.mxu0 0.0
    %3652 = vmatpush.msra.mxu0 0.0
    %3653 = vmatpush.msra.mxu0 0.0
    %3654 = vmatpush.msra.mxu0 %v2005
    %3655 = vmatpush.msra.mxu0 %v2003
    %3656 = vmatpush.msra.mxu0 %v2001
    %3657 = vmatpush.msra.mxu0 %v1999
    %3658 = vmatpush.msra.mxu0 %v1997
    %3659 = vmatpush.msra.mxu0 %v1995
    %3660 = vmatpush.msra.mxu0 %v1993
    %3661 = vmatpush.msra.mxu0 %v1991
    %3662 = vmatmul.f32.gmra.mxu0 %v3644
    %v3663 = vpop.f32.mrf.mxu0
    %v3664 = vadd.f32 %v2080, %v3663
    %3665 = vdwg.mxu0
    %3666 = vmatpush.msra.mxu0 0.0
    %3667 = vmatpush.msra.mxu0 0.0
    %3668 = vmatpush.msra.mxu0 0.0
    %3669 = vmatpush.msra.mxu0 0.0
    %3670 = vmatpush.msra.mxu0 0.0
    %3671 = vmatpush.msra.mxu0 0.0
    %3672 = vmatpush.msra.mxu0 0.0
    %3673 = vmatpush.msra.mxu0 0.0
    %3674 = vmatpush.msra.mxu0 %v2006
    %3675 = vmatpush.msra.mxu0 %v2004
    %3676 = vmatpush.msra.mxu0 %v2002
    %3677 = vmatpush.msra.mxu0 %v2000
    %3678 = vmatpush.msra.mxu0 %v1998
    %3679 = vmatpush.msra.mxu0 %v1996
    %3680 = vmatpush.msra.mxu0 %v1994
    %3681 = vmatpush.msra.mxu0 %v1992
    %3682 = vmatmul.f32.gmra.mxu0 %v3644
    %v3683 = vpop.f32.mrf.mxu0
    %v3684 = vadd.f32 %v2103, %v3683
    %3685 = vdwg.mxu0
    %v3686 = vxor.u32 %v3664, 2147483648
    %v3687 = vxor.u32 %v3684, 2147483648
    %v3688 = vmul.f32 %v3686, 1.442695
    %v3689 = vpow.pop %v3688
    %v3690 = vmul.f32 %v3687, 1.442695
    %v3691 = vpow.pop %v3690
    %v3692 = vadd.f32 %v3689, 1.0
    %v3693 = vadd.f32 %v3691, 1.0
    %v3694 = vrcp.pop %v3692
    %v3695 = vmul.f32 %v3692, %v3694
    %v3696 = vsub.f32 1.0, %v3695
    %v3697 = vmul.f32 %v3694, %v3696
    %v3698 = vadd.f32 %v3694, %v3697
    %vm3699 = vweird.f32 %v3692
    %vm3700 = vweird.f32 %v3694
    %vm3701 = vmor %vm3699, %vm3700
    %v3702 = vsel %vm3701, %v3694, %v3698
    %v3703 = vand.u32 2147483647, %v3692
    %vm3704 = vcmp.eq.f32.partialorder %v3703, 8.507059e+37
    %v3705 = vand.u32 %v3692, 2147483648
    %v3706 = vor.u32 1.1754944e-38, %v3705
    %v3707 = vsel %vm3704, %v3706, %v3702
    %v3708 = vmul.f32 1.0, %v3707
    %v3709 = vrcp.pop %v3693
    %v3710 = vmul.f32 %v3693, %v3709
    %v3711 = vsub.f32 1.0, %v3710
    %v3712 = vmul.f32 %v3709, %v3711
    %v3713 = vadd.f32 %v3709, %v3712
    %vm3714 = vweird.f32 %v3693
    %vm3715 = vweird.f32 %v3709
    %vm3716 = vmor %vm3714, %vm3715
    %v3717 = vsel %vm3716, %v3709, %v3713
    %v3718 = vand.u32 2147483647, %v3693
    %vm3719 = vcmp.eq.f32.partialorder %v3718, 8.507059e+37
    %v3720 = vand.u32 %v3693, 2147483648
    %v3721 = vor.u32 1.1754944e-38, %v3720
    %v3722 = vsel %vm3719, %v3721, %v3717
    %v3723 = vmul.f32 1.0, %v3722
    %v3724 = vtanh.pop %v3684
    %v3725 = vmul.f32 %v3708, %v3533
    %3727 = vrot.lane.b32.xlu0 %v3724, 64
    %v3728 = vpop.permute.xlu0 %3727
    %v3730 = vmul.f32 %v3708, %v3728
    %3732 = vrot.lane.b32.xlu0 %v3730, 64
    %v3733 = vpop.permute.xlu0 %3732
    %v3735 = vadd.f32 %v3725, %v3733
    %v3736 = vtanh.pop %v3735
    %3738 = vrot.lane.b32.xlu0 %v3736, 64
    %v3739 = vpop.permute.xlu0 %3738
    %v3741 = vmul.f32 %v3723, %v3739
    %v3742 = vrot.slane %v2410, 6
    %v3744 = vrot.slane %v2616, 4
    %v3746 = vrot.slane %v2822, 2
    %v3748 = vrot.slane %v3230, 6
    %v3750 = vrot.slane %v3436, 4
    %v3753 = vrot.slane %v3642, 2
    %v3755 = vsel %vm1873, %v2203, %v3742
    %v3756 = vsel %vm1875, %v3755, %v3744
    %v3757 = vsel %vm1877, %v3756, %v3746
    %v3758 = vsel %vm1873, %v3020, %v3748
    %v3759 = vsel %vm1875, %v3758, %v3750
    %v3760 = vsel %vm1877, %v3759, %v3753
    %v3761 = vrot.slane %v3539, 6
    %v3763 = vrot.slane %v3333, 4
    %v3765 = vrot.slane %v3125, 2
    %v3767 = vrot.slane %v2719, 6
    %v3769 = vrot.slane %v2513, 4
    %v3771 = vrot.slane %v2305, 2
    %v3773 = vsel %vm1873, %v3741, %v3761
    %v3774 = vsel %vm1875, %v3773, %v3763
    %v3775 = vsel %vm1877, %v3774, %v3765
    %v3776 = vsel %vm1873, %v2921, %v3767
    %v3777 = vsel %vm1875, %v3776, %v3769
    %v3778 = vsel %vm1877, %v3777, %v3771
    %3781 = vrot.lane.b32.xlu0 %v3775, 64
    %v3782 = vpop.permute.xlu0 %3781
    %3783 = vrot.lane.b32.xlu0 %v3778, 64
    %v3784 = vpop.permute.xlu0 %3783
    %v3787 = vsel %vm222, %v3757, %v3782
    %v3788 = vsel %vm222, %v3760, %v3784
    %v3789 = vld [vmem:[%s9] sm:$0xff]
    %v3790 = vld [vmem:[%s9 + $0x8] sm:$0xff]
    %v3791 = vld [vmem:[%s9 + $0x10] sm:$0xff]
    %v3792 = vld [vmem:[%s9 + $0x18] sm:$0xff]
    %v3793 = vld [vmem:[%s9 + $0x20] sm:$0xff]
    %v3794 = vld [vmem:[%s9 + $0x28] sm:$0xff]
    %v3795 = vld [vmem:[%s9 + $0x30] sm:$0xff]
    %v3796 = vld [vmem:[%s9 + $0x38] sm:$0xff]
    %v3797 = vld [vmem:[%s9 + $0x40] sm:$0xff]
    %v3798 = vld [vmem:[%s9 + $0x48] sm:$0xff]
    %v3799 = vld [vmem:[%s9 + $0x50] sm:$0xff]
    %v3800 = vld [vmem:[%s9 + $0x58] sm:$0xff]
    %v3801 = vld [vmem:[%s9 + $0x60] sm:$0xff]
    %v3802 = vld [vmem:[%s9 + $0x68] sm:$0xff]
    %v3803 = vld [vmem:[%s9 + $0x70] sm:$0xff]
    %v3804 = vld [vmem:[%s9 + $0x78] sm:$0xff]
    %v3805 = vld [vmem:[%s9 + $0x80] sm:$0xff]
    %v3806 = vld [vmem:[%s9 + $0x88] sm:$0xff]
    %v3807 = vld [vmem:[%s9 + $0x90] sm:$0xff]
    %v3808 = vld [vmem:[%s9 + $0x98] sm:$0xff]
    %v3809 = vld [vmem:[%s9 + $0xa0] sm:$0xff]
    %v3810 = vld [vmem:[%s9 + $0xa8] sm:$0xff]
    %v3811 = vld [vmem:[%s9 + $0xb0] sm:$0xff]
    %v3812 = vld [vmem:[%s9 + $0xb8] sm:$0xff]
    %v3813 = vld [vmem:[%s9 + $0xc0] sm:$0xff]
    %v3814 = vld [vmem:[%s9 + $0xc8] sm:$0xff]
    %v3815 = vld [vmem:[%s9 + $0xd0] sm:$0xff]
    %v3816 = vld [vmem:[%s9 + $0xd8] sm:$0xff]
    %v3817 = vld [vmem:[%s9 + $0xe0] sm:$0xff]
    %v3818 = vld [vmem:[%s9 + $0xe8] sm:$0xff]
    %v3819 = vld [vmem:[%s9 + $0xf0] sm:$0xff]
    %v3820 = vld [vmem:[%s9 + $0xf8] sm:$0xff]
    %v3821 = vld [vmem:[%s9 + $0x100] sm:$0xff]
    %v3822 = vld [vmem:[%s9 + $0x108] sm:$0xff]
    %v3823 = vld [vmem:[%s9 + $0x110] sm:$0xff]
    %v3824 = vld [vmem:[%s9 + $0x118] sm:$0xff]
    %v3825 = vld [vmem:[%s9 + $0x120] sm:$0xff]
    %v3826 = vld [vmem:[%s9 + $0x128] sm:$0xff]
    %v3827 = vld [vmem:[%s9 + $0x130] sm:$0xff]
    %v3828 = vld [vmem:[%s9 + $0x138] sm:$0xff]
    %v3829 = vld [vmem:[%s9 + $0x140] sm:$0xff]
    %v3830 = vld [vmem:[%s9 + $0x148] sm:$0xff]
    %v3831 = vld [vmem:[%s9 + $0x150] sm:$0xff]
    %v3832 = vld [vmem:[%s9 + $0x158] sm:$0xff]
    %v3833 = vld [vmem:[%s9 + $0x160] sm:$0xff]
    %v3834 = vld [vmem:[%s9 + $0x168] sm:$0xff]
    %v3835 = vld [vmem:[%s9 + $0x170] sm:$0xff]
    %v3836 = vld [vmem:[%s9 + $0x178] sm:$0xff]
    %v3837 = vld [vmem:[%s9 + $0x180] sm:$0xff]
    %v3838 = vld [vmem:[%s9 + $0x188] sm:$0xff]
    %v3839 = vld [vmem:[%s9 + $0x190] sm:$0xff]
    %v3840 = vld [vmem:[%s9 + $0x198] sm:$0xff]
    %v3841 = vld [vmem:[%s9 + $0x1a0] sm:$0xff]
    %v3842 = vld [vmem:[%s9 + $0x1a8] sm:$0xff]
    %v3843 = vld [vmem:[%s9 + $0x1b0] sm:$0xff]
    %v3844 = vld [vmem:[%s9 + $0x1b8] sm:$0xff]
    %v3845 = vld [vmem:[%s9 + $0x1c0] sm:$0xff]
    %v3846 = vld [vmem:[%s9 + $0x1c8] sm:$0xff]
    %v3847 = vld [vmem:[%s9 + $0x1d0] sm:$0xff]
    %v3848 = vld [vmem:[%s9 + $0x1d8] sm:$0xff]
    %v3849 = vld [vmem:[%s9 + $0x1e0] sm:$0xff]
    %v3850 = vld [vmem:[%s9 + $0x1e8] sm:$0xff]
    %v3851 = vld [vmem:[%s9 + $0x1f0] sm:$0xff]
    %v3852 = vld [vmem:[%s9 + $0x1f8] sm:$0xff]
    %v3853 = vld [vmem:[%s10] sm:$0xf]
    %v3854 = vld [vmem:[%s11] sm:$0xff]
    %v3855 = vld [vmem:[%s11 + $0x8] sm:$0xff]
    %v3856 = vld [vmem:[%s11 + $0x10] sm:$0xff]
    %v3857 = vld [vmem:[%s11 + $0x18] sm:$0xff]
    %v3858 = vld [vmem:[%s11 + $0x20] sm:$0xff]
    %v3859 = vld [vmem:[%s11 + $0x28] sm:$0xff]
    %v3860 = vld [vmem:[%s11 + $0x30] sm:$0xff]
    %v3861 = vld [vmem:[%s11 + $0x38] sm:$0xff]
    %v3862 = vld [vmem:[%s11 + $0x40] sm:$0xff]
    %v3863 = vld [vmem:[%s11 + $0x48] sm:$0xff]
    %v3864 = vld [vmem:[%s11 + $0x50] sm:$0xff]
    %v3865 = vld [vmem:[%s11 + $0x58] sm:$0xff]
    %v3866 = vld [vmem:[%s11 + $0x60] sm:$0xff]
    %v3867 = vld [vmem:[%s11 + $0x68] sm:$0xff]
    %v3868 = vld [vmem:[%s11 + $0x70] sm:$0xff]
    %v3869 = vld [vmem:[%s11 + $0x78] sm:$0xff]
    %v3870 = vld [vmem:[%s12] sm:$0xff]
    %v3871 = vld [vmem:[%s12 + $0x8] sm:$0xff]
    %v3872 = vld [vmem:[%s12 + $0x10] sm:$0xff]
    %v3873 = vld [vmem:[%s12 + $0x18] sm:$0xff]
    %v3874 = vld [vmem:[%s12 + $0x20] sm:$0xff]
    %v3875 = vld [vmem:[%s12 + $0x28] sm:$0xff]
    %v3876 = vld [vmem:[%s12 + $0x30] sm:$0xff]
    %v3877 = vld [vmem:[%s12 + $0x38] sm:$0xff]
    %v3878 = vld [vmem:[%s12 + $0x40] sm:$0xff]
    %v3879 = vld [vmem:[%s12 + $0x48] sm:$0xff]
    %v3880 = vld [vmem:[%s12 + $0x50] sm:$0xff]
    %v3881 = vld [vmem:[%s12 + $0x58] sm:$0xff]
    %v3882 = vld [vmem:[%s12 + $0x60] sm:$0xff]
    %v3883 = vld [vmem:[%s12 + $0x68] sm:$0xff]
    %v3884 = vld [vmem:[%s12 + $0x70] sm:$0xff]
    %v3885 = vld [vmem:[%s12 + $0x78] sm:$0xff]
    %v3887 = vperm.slane %v3853, 0
    %v3888 = vperm.slane %v3853, 1
    %v3889 = vperm.slane %v3853, 2
    %v3890 = vperm.slane %v3853, 3
    %3895 = vmatpush.msra.mxu0 %v3849
    %3896 = vmatpush.msra.mxu0 %v3845
    %3897 = vmatpush.msra.mxu0 %v3841
    %3898 = vmatpush.msra.mxu0 %v3837
    %3899 = vmatpush.msra.mxu0 %v3833
    %3900 = vmatpush.msra.mxu0 %v3829
    %3901 = vmatpush.msra.mxu0 %v3825
    %3902 = vmatpush.msra.mxu0 %v3821
    %3903 = vmatpush.msra.mxu0 %v3817
    %3904 = vmatpush.msra.mxu0 %v3813
    %3905 = vmatpush.msra.mxu0 %v3809
    %3906 = vmatpush.msra.mxu0 %v3805
    %3907 = vmatpush.msra.mxu0 %v3801
    %3908 = vmatpush.msra.mxu0 %v3797
    %3909 = vmatpush.msra.mxu0 %v3793
    %3910 = vmatpush.msra.mxu0 %v3789
    %3911 = vmatmul.f32.gmra.mxu0 %v3787
    %v3912 = vpop.f32.mrf.mxu0
    %v3913 = vadd.f32 %v3887, %v3912
    %3914 = vmatmul.f32.gmra.mxu0 %v3788
    %v3915 = vpop.f32.mrf.mxu0
    %v3916 = vadd.f32 %v3887, %v3915
    %3917 = vdwg.mxu0
    %3918 = vmatpush.msra.mxu0 %v3850
    %3919 = vmatpush.msra.mxu0 %v3846
    %3920 = vmatpush.msra.mxu0 %v3842
    %3921 = vmatpush.msra.mxu0 %v3838
    %3922 = vmatpush.msra.mxu0 %v3834
    %3923 = vmatpush.msra.mxu0 %v3830
    %3924 = vmatpush.msra.mxu0 %v3826
    %3925 = vmatpush.msra.mxu0 %v3822
    %3926 = vmatpush.msra.mxu0 %v3818
    %3927 = vmatpush.msra.mxu0 %v3814
    %3928 = vmatpush.msra.mxu0 %v3810
    %3929 = vmatpush.msra.mxu0 %v3806
    %3930 = vmatpush.msra.mxu0 %v3802
    %3931 = vmatpush.msra.mxu0 %v3798
    %3932 = vmatpush.msra.mxu0 %v3794
    %3933 = vmatpush.msra.mxu0 %v3790
    %3934 = vmatmul.f32.gmra.mxu0 %v3787
    %v3935 = vpop.f32.mrf.mxu0
    %v3936 = vadd.f32 %v3888, %v3935
    %3937 = vmatmul.f32.gmra.mxu0 %v3788
    %v3938 = vpop.f32.mrf.mxu0
    %v3939 = vadd.f32 %v3888, %v3938
    %3940 = vdwg.mxu0
    %3941 = vmatpush.msra.mxu0 %v3851
    %3942 = vmatpush.msra.mxu0 %v3847
    %3943 = vmatpush.msra.mxu0 %v3843
    %3944 = vmatpush.msra.mxu0 %v3839
    %3945 = vmatpush.msra.mxu0 %v3835
    %3946 = vmatpush.msra.mxu0 %v3831
    %3947 = vmatpush.msra.mxu0 %v3827
    %3948 = vmatpush.msra.mxu0 %v3823
    %3949 = vmatpush.msra.mxu0 %v3819
    %3950 = vmatpush.msra.mxu0 %v3815
    %3951 = vmatpush.msra.mxu0 %v3811
    %3952 = vmatpush.msra.mxu0 %v3807
    %3953 = vmatpush.msra.mxu0 %v3803
    %3954 = vmatpush.msra.mxu0 %v3799
    %3955 = vmatpush.msra.mxu0 %v3795
    %3956 = vmatpush.msra.mxu0 %v3791
    %3957 = vmatmul.f32.gmra.mxu0 %v3787
    %v3958 = vpop.f32.mrf.mxu0
    %v3959 = vadd.f32 %v3889, %v3958
    %3960 = vmatmul.f32.gmra.mxu0 %v3788
    %v3961 = vpop.f32.mrf.mxu0
    %v3962 = vadd.f32 %v3889, %v3961
    %3963 = vdwg.mxu0
    %3964 = vmatpush.msra.mxu0 %v3852
    %3965 = vmatpush.msra.mxu0 %v3848
    %3966 = vmatpush.msra.mxu0 %v3844
    %3967 = vmatpush.msra.mxu0 %v3840
    %3968 = vmatpush.msra.mxu0 %v3836
    %3969 = vmatpush.msra.mxu0 %v3832
    %3970 = vmatpush.msra.mxu0 %v3828
    %3971 = vmatpush.msra.mxu0 %v3824
    %3972 = vmatpush.msra.mxu0 %v3820
    %3973 = vmatpush.msra.mxu0 %v3816
    %3974 = vmatpush.msra.mxu0 %v3812
    %3975 = vmatpush.msra.mxu0 %v3808
    %3976 = vmatpush.msra.mxu0 %v3804
    %3977 = vmatpush.msra.mxu0 %v3800
    %3978 = vmatpush.msra.mxu0 %v3796
    %3979 = vmatpush.msra.mxu0 %v3792
    %3980 = vmatmul.f32.gmra.mxu0 %v3787
    %v3981 = vpop.f32.mrf.mxu0
    %v3982 = vadd.f32 %v3890, %v3981
    %3983 = vmatmul.f32.gmra.mxu0 %v3788
    %v3984 = vpop.f32.mrf.mxu0
    %v3985 = vadd.f32 %v3890, %v3984
    %3986 = vdwg.mxu0
    %3987 = vmatpush.msra.mxu0 0.0
    %3988 = vmatpush.msra.mxu0 0.0
    %3989 = vmatpush.msra.mxu0 0.0
    %3990 = vmatpush.msra.mxu0 0.0
    %3991 = vmatpush.msra.mxu0 0.0
    %3992 = vmatpush.msra.mxu0 0.0
    %3993 = vmatpush.msra.mxu0 0.0
    %3994 = vmatpush.msra.mxu0 0.0
    %3995 = vmatpush.msra.mxu0 %v3868
    %3996 = vmatpush.msra.mxu0 %v3866
    %3997 = vmatpush.msra.mxu0 %v3864
    %3998 = vmatpush.msra.mxu0 %v3862
    %3999 = vmatpush.msra.mxu0 %v3860
    %4000 = vmatpush.msra.mxu0 %v3858
    %4001 = vmatpush.msra.mxu0 %v3856
    %4002 = vmatpush.msra.mxu0 %v3854
    %4003 = vmatmul.f32.gmra.mxu0 %v224
    %v4004 = vpop.f32.mrf.mxu0
    %v4005 = vadd.f32 %v3913, %v4004
    %4006 = vdwg.mxu0
    %4007 = vmatpush.msra.mxu0 0.0
    %4008 = vmatpush.msra.mxu0 0.0
    %4009 = vmatpush.msra.mxu0 0.0
    %4010 = vmatpush.msra.mxu0 0.0
    %4011 = vmatpush.msra.mxu0 0.0
    %4012 = vmatpush.msra.mxu0 0.0
    %4013 = vmatpush.msra.mxu0 0.0
    %4014 = vmatpush.msra.mxu0 0.0
    %4015 = vmatpush.msra.mxu0 %v3869
    %4016 = vmatpush.msra.mxu0 %v3867
    %4017 = vmatpush.msra.mxu0 %v3865
    %4018 = vmatpush.msra.mxu0 %v3863
    %4019 = vmatpush.msra.mxu0 %v3861
    %4020 = vmatpush.msra.mxu0 %v3859
    %4021 = vmatpush.msra.mxu0 %v3857
    %4022 = vmatpush.msra.mxu0 %v3855
    %4023 = vmatmul.f32.gmra.mxu0 %v224
    %v4024 = vpop.f32.mrf.mxu0
    %v4025 = vadd.f32 %v3936, %v4024
    %4026 = vdwg.mxu0
    %v4027 = vxor.u32 %v4005, 2147483648
    %v4028 = vxor.u32 %v4025, 2147483648
    %v4029 = vmul.f32 %v4027, 1.442695
    %v4030 = vpow.pop %v4029
    %v4031 = vmul.f32 %v4028, 1.442695
    %v4032 = vpow.pop %v4031
    %v4033 = vadd.f32 %v4030, 1.0
    %v4034 = vadd.f32 %v4032, 1.0
    %v4035 = vrcp.pop %v4033
    %v4036 = vmul.f32 %v4033, %v4035
    %v4037 = vsub.f32 1.0, %v4036
    %v4038 = vmul.f32 %v4035, %v4037
    %v4039 = vadd.f32 %v4035, %v4038
    %vm4040 = vweird.f32 %v4033
    %vm4041 = vweird.f32 %v4035
    %vm4042 = vmor %vm4040, %vm4041
    %v4043 = vsel %vm4042, %v4035, %v4039
    %v4044 = vand.u32 2147483647, %v4033
    %vm4045 = vcmp.eq.f32.partialorder %v4044, 8.507059e+37
    %v4046 = vand.u32 %v4033, 2147483648
    %v4047 = vor.u32 1.1754944e-38, %v4046
    %v4048 = vsel %vm4045, %v4047, %v4043
    %v4049 = vmul.f32 1.0, %v4048
    %v4050 = vrcp.pop %v4034
    %v4051 = vmul.f32 %v4034, %v4050
    %v4052 = vsub.f32 1.0, %v4051
    %v4053 = vmul.f32 %v4050, %v4052
    %v4054 = vadd.f32 %v4050, %v4053
    %vm4055 = vweird.f32 %v4034
    %vm4056 = vweird.f32 %v4050
    %vm4057 = vmor %vm4055, %vm4056
    %v4058 = vsel %vm4057, %v4050, %v4054
    %v4059 = vand.u32 2147483647, %v4034
    %vm4060 = vcmp.eq.f32.partialorder %v4059, 8.507059e+37
    %v4061 = vand.u32 %v4034, 2147483648
    %v4062 = vor.u32 1.1754944e-38, %v4061
    %v4063 = vsel %vm4060, %v4062, %v4058
    %v4064 = vmul.f32 1.0, %v4063
    %v4065 = vtanh.pop %v4025
    %v4066 = vmul.f32 %v4049, 0.0
    %4068 = vrot.lane.b32.xlu0 %v4065, 64
    %v4069 = vpop.permute.xlu0 %4068
    %v4071 = vmul.f32 %v4049, %v4069
    %4073 = vrot.lane.b32.xlu0 %v4071, 64
    %v4074 = vpop.permute.xlu0 %4073
    %v4076 = vadd.f32 %v4066, %v4074
    %v4077 = vtanh.pop %v4076
    %4079 = vrot.lane.b32.xlu0 %v4077, 64
    %v4080 = vpop.permute.xlu0 %4079
    %v4082 = vmul.f32 %v4064, %v4080
    %v4085 = vrot.slane %v3962, 6
    %v4086 = vrot.slane %v3985, 6
    %4089 = vmatpush.msra.mxu0 0.0
    %4090 = vmatpush.msra.mxu0 0.0
    %4091 = vmatpush.msra.mxu0 0.0
    %4092 = vmatpush.msra.mxu0 0.0
    %4093 = vmatpush.msra.mxu0 0.0
    %4094 = vmatpush.msra.mxu0 0.0
    %4095 = vmatpush.msra.mxu0 0.0
    %4096 = vmatpush.msra.mxu0 0.0
    %4097 = vmatpush.msra.mxu0 %v3884
    %4098 = vmatpush.msra.mxu0 %v3882
    %4099 = vmatpush.msra.mxu0 %v3880
    %4100 = vmatpush.msra.mxu0 %v3878
    %4101 = vmatpush.msra.mxu0 %v3876
    %4102 = vmatpush.msra.mxu0 %v3874
    %4103 = vmatpush.msra.mxu0 %v3872
    %4104 = vmatpush.msra.mxu0 %v3870
    %4105 = vmatmul.f32.gmra.mxu0 %v224
    %v4106 = vpop.f32.mrf.mxu0
    %v4107 = vadd.f32 %v4085, %v4106
    %4108 = vdwg.mxu0
    %4109 = vmatpush.msra.mxu0 0.0
    %4110 = vmatpush.msra.mxu0 0.0
    %4111 = vmatpush.msra.mxu0 0.0
    %4112 = vmatpush.msra.mxu0 0.0
    %4113 = vmatpush.msra.mxu0 0.0
    %4114 = vmatpush.msra.mxu0 0.0
    %4115 = vmatpush.msra.mxu0 0.0
    %4116 = vmatpush.msra.mxu0 0.0
    %4117 = vmatpush.msra.mxu0 %v3885
    %4118 = vmatpush.msra.mxu0 %v3883
    %4119 = vmatpush.msra.mxu0 %v3881
    %4120 = vmatpush.msra.mxu0 %v3879
    %4121 = vmatpush.msra.mxu0 %v3877
    %4122 = vmatpush.msra.mxu0 %v3875
    %4123 = vmatpush.msra.mxu0 %v3873
    %4124 = vmatpush.msra.mxu0 %v3871
    %4125 = vmatmul.f32.gmra.mxu0 %v224
    %v4126 = vpop.f32.mrf.mxu0
    %v4127 = vadd.f32 %v4086, %v4126
    %4128 = vdwg.mxu0
    %v4129 = vxor.u32 %v4107, 2147483648
    %v4130 = vxor.u32 %v4127, 2147483648
    %v4131 = vmul.f32 %v4129, 1.442695
    %v4132 = vpow.pop %v4131
    %v4133 = vmul.f32 %v4130, 1.442695
    %v4134 = vpow.pop %v4133
    %v4135 = vadd.f32 %v4132, 1.0
    %v4136 = vadd.f32 %v4134, 1.0
    %v4137 = vrcp.pop %v4135
    %v4138 = vmul.f32 %v4135, %v4137
    %v4139 = vsub.f32 1.0, %v4138
    %v4140 = vmul.f32 %v4137, %v4139
    %v4141 = vadd.f32 %v4137, %v4140
    %vm4142 = vweird.f32 %v4135
    %vm4143 = vweird.f32 %v4137
    %vm4144 = vmor %vm4142, %vm4143
    %v4145 = vsel %vm4144, %v4137, %v4141
    %v4146 = vand.u32 2147483647, %v4135
    %vm4147 = vcmp.eq.f32.partialorder %v4146, 8.507059e+37
    %v4148 = vand.u32 %v4135, 2147483648
    %v4149 = vor.u32 1.1754944e-38, %v4148
    %v4150 = vsel %vm4147, %v4149, %v4145
    %v4151 = vmul.f32 1.0, %v4150
    %v4152 = vrcp.pop %v4136
    %v4153 = vmul.f32 %v4136, %v4152
    %v4154 = vsub.f32 1.0, %v4153
    %v4155 = vmul.f32 %v4152, %v4154
    %v4156 = vadd.f32 %v4152, %v4155
    %vm4157 = vweird.f32 %v4136
    %vm4158 = vweird.f32 %v4152
    %vm4159 = vmor %vm4157, %vm4158
    %v4160 = vsel %vm4159, %v4152, %v4156
    %v4161 = vand.u32 2147483647, %v4136
    %vm4162 = vcmp.eq.f32.partialorder %v4161, 8.507059e+37
    %v4163 = vand.u32 %v4136, 2147483648
    %v4164 = vor.u32 1.1754944e-38, %v4163
    %v4165 = vsel %vm4162, %v4164, %v4160
    %v4166 = vmul.f32 1.0, %v4165
    %v4167 = vtanh.pop %v4127
    %v4168 = vmul.f32 %v4151, 0.0
    %4170 = vrot.lane.b32.xlu0 %v4167, 64
    %v4171 = vpop.permute.xlu0 %4170
    %v4173 = vmul.f32 %v4151, %v4171
    %4175 = vrot.lane.b32.xlu0 %v4173, 64
    %v4176 = vpop.permute.xlu0 %4175
    %v4178 = vadd.f32 %v4168, %v4176
    %v4179 = vtanh.pop %v4178
    %4181 = vrot.lane.b32.xlu0 %v4179, 64
    %v4182 = vpop.permute.xlu0 %4181
    %v4184 = vmul.f32 %v4166, %v4182
    %v4187 = vrot.slane %v3913, 2
    %v4188 = vrot.slane %v3936, 2
    %v4192 = vsel %vm222, %v4082, 0
    %4194 = vmatpush.msra.mxu0 0.0
    %4195 = vmatpush.msra.mxu0 0.0
    %4196 = vmatpush.msra.mxu0 0.0
    %4197 = vmatpush.msra.mxu0 0.0
    %4198 = vmatpush.msra.mxu0 0.0
    %4199 = vmatpush.msra.mxu0 0.0
    %4200 = vmatpush.msra.mxu0 0.0
    %4201 = vmatpush.msra.mxu0 0.0
    %4202 = vmatpush.msra.mxu0 %v3868
    %4203 = vmatpush.msra.mxu0 %v3866
    %4204 = vmatpush.msra.mxu0 %v3864
    %4205 = vmatpush.msra.mxu0 %v3862
    %4206 = vmatpush.msra.mxu0 %v3860
    %4207 = vmatpush.msra.mxu0 %v3858
    %4208 = vmatpush.msra.mxu0 %v3856
    %4209 = vmatpush.msra.mxu0 %v3854
    %4210 = vmatmul.f32.gmra.mxu0 %v4192
    %v4211 = vpop.f32.mrf.mxu0
    %v4212 = vadd.f32 %v4187, %v4211
    %4213 = vdwg.mxu0
    %4214 = vmatpush.msra.mxu0 0.0
    %4215 = vmatpush.msra.mxu0 0.0
    %4216 = vmatpush.msra.mxu0 0.0
    %4217 = vmatpush.msra.mxu0 0.0
    %4218 = vmatpush.msra.mxu0 0.0
    %4219 = vmatpush.msra.mxu0 0.0
    %4220 = vmatpush.msra.mxu0 0.0
    %4221 = vmatpush.msra.mxu0 0.0
    %4222 = vmatpush.msra.mxu0 %v3869
    %4223 = vmatpush.msra.mxu0 %v3867
    %4224 = vmatpush.msra.mxu0 %v3865
    %4225 = vmatpush.msra.mxu0 %v3863
    %4226 = vmatpush.msra.mxu0 %v3861
    %4227 = vmatpush.msra.mxu0 %v3859
    %4228 = vmatpush.msra.mxu0 %v3857
    %4229 = vmatpush.msra.mxu0 %v3855
    %4230 = vmatmul.f32.gmra.mxu0 %v4192
    %v4231 = vpop.f32.mrf.mxu0
    %v4232 = vadd.f32 %v4188, %v4231
    %4233 = vdwg.mxu0
    %v4234 = vxor.u32 %v4212, 2147483648
    %v4235 = vxor.u32 %v4232, 2147483648
    %v4236 = vmul.f32 %v4234, 1.442695
    %v4237 = vpow.pop %v4236
    %v4238 = vmul.f32 %v4235, 1.442695
    %v4239 = vpow.pop %v4238
    %v4240 = vadd.f32 %v4237, 1.0
    %v4241 = vadd.f32 %v4239, 1.0
    %v4242 = vrcp.pop %v4240
    %v4243 = vmul.f32 %v4240, %v4242
    %v4244 = vsub.f32 1.0, %v4243
    %v4245 = vmul.f32 %v4242, %v4244
    %v4246 = vadd.f32 %v4242, %v4245
    %vm4247 = vweird.f32 %v4240
    %vm4248 = vweird.f32 %v4242
    %vm4249 = vmor %vm4247, %vm4248
    %v4250 = vsel %vm4249, %v4242, %v4246
    %v4251 = vand.u32 2147483647, %v4240
    %vm4252 = vcmp.eq.f32.partialorder %v4251, 8.507059e+37
    %v4253 = vand.u32 %v4240, 2147483648
    %v4254 = vor.u32 1.1754944e-38, %v4253
    %v4255 = vsel %vm4252, %v4254, %v4250
    %v4256 = vmul.f32 1.0, %v4255
    %v4257 = vrcp.pop %v4241
    %v4258 = vmul.f32 %v4241, %v4257
    %v4259 = vsub.f32 1.0, %v4258
    %v4260 = vmul.f32 %v4257, %v4259
    %v4261 = vadd.f32 %v4257, %v4260
    %vm4262 = vweird.f32 %v4241
    %vm4263 = vweird.f32 %v4257
    %vm4264 = vmor %vm4262, %vm4263
    %v4265 = vsel %vm4264, %v4257, %v4261
    %v4266 = vand.u32 2147483647, %v4241
    %vm4267 = vcmp.eq.f32.partialorder %v4266, 8.507059e+37
    %v4268 = vand.u32 %v4241, 2147483648
    %v4269 = vor.u32 1.1754944e-38, %v4268
    %v4270 = vsel %vm4267, %v4269, %v4265
    %v4271 = vmul.f32 1.0, %v4270
    %v4272 = vtanh.pop %v4232
    %v4273 = vmul.f32 %v4256, %v4076
    %4275 = vrot.lane.b32.xlu0 %v4272, 64
    %v4276 = vpop.permute.xlu0 %4275
    %v4278 = vmul.f32 %v4256, %v4276
    %4280 = vrot.lane.b32.xlu0 %v4278, 64
    %v4281 = vpop.permute.xlu0 %4280
    %v4283 = vadd.f32 %v4273, %v4281
    %v4284 = vtanh.pop %v4283
    %4286 = vrot.lane.b32.xlu0 %v4284, 64
    %v4287 = vpop.permute.xlu0 %4286
    %v4289 = vmul.f32 %v4271, %v4287
    %v4290 = vrot.slane %v3962, 4
    %v4291 = vrot.slane %v3985, 4
    %v4295 = vsel %vm222, %v4184, 0
    %4297 = vmatpush.msra.mxu0 0.0
    %4298 = vmatpush.msra.mxu0 0.0
    %4299 = vmatpush.msra.mxu0 0.0
    %4300 = vmatpush.msra.mxu0 0.0
    %4301 = vmatpush.msra.mxu0 0.0
    %4302 = vmatpush.msra.mxu0 0.0
    %4303 = vmatpush.msra.mxu0 0.0
    %4304 = vmatpush.msra.mxu0 0.0
    %4305 = vmatpush.msra.mxu0 %v3884
    %4306 = vmatpush.msra.mxu0 %v3882
    %4307 = vmatpush.msra.mxu0 %v3880
    %4308 = vmatpush.msra.mxu0 %v3878
    %4309 = vmatpush.msra.mxu0 %v3876
    %4310 = vmatpush.msra.mxu0 %v3874
    %4311 = vmatpush.msra.mxu0 %v3872
    %4312 = vmatpush.msra.mxu0 %v3870
    %4313 = vmatmul.f32.gmra.mxu0 %v4295
    %v4314 = vpop.f32.mrf.mxu0
    %v4315 = vadd.f32 %v4290, %v4314
    %4316 = vdwg.mxu0
    %4317 = vmatpush.msra.mxu0 0.0
    %4318 = vmatpush.msra.mxu0 0.0
    %4319 = vmatpush.msra.mxu0 0.0
    %4320 = vmatpush.msra.mxu0 0.0
    %4321 = vmatpush.msra.mxu0 0.0
    %4322 = vmatpush.msra.mxu0 0.0
    %4323 = vmatpush.msra.mxu0 0.0
    %4324 = vmatpush.msra.mxu0 0.0
    %4325 = vmatpush.msra.mxu0 %v3885
    %4326 = vmatpush.msra.mxu0 %v3883
    %4327 = vmatpush.msra.mxu0 %v3881
    %4328 = vmatpush.msra.mxu0 %v3879
    %4329 = vmatpush.msra.mxu0 %v3877
    %4330 = vmatpush.msra.mxu0 %v3875
    %4331 = vmatpush.msra.mxu0 %v3873
    %4332 = vmatpush.msra.mxu0 %v3871
    %4333 = vmatmul.f32.gmra.mxu0 %v4295
    %v4334 = vpop.f32.mrf.mxu0
    %v4335 = vadd.f32 %v4291, %v4334
    %4336 = vdwg.mxu0
    %v4337 = vxor.u32 %v4315, 2147483648
    %v4338 = vxor.u32 %v4335, 2147483648
    %v4339 = vmul.f32 %v4337, 1.442695
    %v4340 = vpow.pop %v4339
    %v4341 = vmul.f32 %v4338, 1.442695
    %v4342 = vpow.pop %v4341
    %v4343 = vadd.f32 %v4340, 1.0
    %v4344 = vadd.f32 %v4342, 1.0
    %v4345 = vrcp.pop %v4343
    %v4346 = vmul.f32 %v4343, %v4345
    %v4347 = vsub.f32 1.0, %v4346
    %v4348 = vmul.f32 %v4345, %v4347
    %v4349 = vadd.f32 %v4345, %v4348
    %vm4350 = vweird.f32 %v4343
    %vm4351 = vweird.f32 %v4345
    %vm4352 = vmor %vm4350, %vm4351
    %v4353 = vsel %vm4352, %v4345, %v4349
    %v4354 = vand.u32 2147483647, %v4343
    %vm4355 = vcmp.eq.f32.partialorder %v4354, 8.507059e+37
    %v4356 = vand.u32 %v4343, 2147483648
    %v4357 = vor.u32 1.1754944e-38, %v4356
    %v4358 = vsel %vm4355, %v4357, %v4353
    %v4359 = vmul.f32 1.0, %v4358
    %v4360 = vrcp.pop %v4344
    %v4361 = vmul.f32 %v4344, %v4360
    %v4362 = vsub.f32 1.0, %v4361
    %v4363 = vmul.f32 %v4360, %v4362
    %v4364 = vadd.f32 %v4360, %v4363
    %vm4365 = vweird.f32 %v4344
    %vm4366 = vweird.f32 %v4360
    %vm4367 = vmor %vm4365, %vm4366
    %v4368 = vsel %vm4367, %v4360, %v4364
    %v4369 = vand.u32 2147483647, %v4344
    %vm4370 = vcmp.eq.f32.partialorder %v4369, 8.507059e+37
    %v4371 = vand.u32 %v4344, 2147483648
    %v4372 = vor.u32 1.1754944e-38, %v4371
    %v4373 = vsel %vm4370, %v4372, %v4368
    %v4374 = vmul.f32 1.0, %v4373
    %v4375 = vtanh.pop %v4335
    %v4376 = vmul.f32 %v4359, %v4178
    %4378 = vrot.lane.b32.xlu0 %v4375, 64
    %v4379 = vpop.permute.xlu0 %4378
    %v4381 = vmul.f32 %v4359, %v4379
    %4383 = vrot.lane.b32.xlu0 %v4381, 64
    %v4384 = vpop.permute.xlu0 %4383
    %v4386 = vadd.f32 %v4376, %v4384
    %v4387 = vtanh.pop %v4386
    %4389 = vrot.lane.b32.xlu0 %v4387, 64
    %v4390 = vpop.permute.xlu0 %4389
    %v4392 = vmul.f32 %v4374, %v4390
    %v4393 = vrot.slane %v3913, 4
    %v4394 = vrot.slane %v3936, 4
    %v4398 = vsel %vm222, %v4289, 0
    %4400 = vmatpush.msra.mxu0 0.0
    %4401 = vmatpush.msra.mxu0 0.0
    %4402 = vmatpush.msra.mxu0 0.0
    %4403 = vmatpush.msra.mxu0 0.0
    %4404 = vmatpush.msra.mxu0 0.0
    %4405 = vmatpush.msra.mxu0 0.0
    %4406 = vmatpush.msra.mxu0 0.0
    %4407 = vmatpush.msra.mxu0 0.0
    %4408 = vmatpush.msra.mxu0 %v3868
    %4409 = vmatpush.msra.mxu0 %v3866
    %4410 = vmatpush.msra.mxu0 %v3864
    %4411 = vmatpush.msra.mxu0 %v3862
    %4412 = vmatpush.msra.mxu0 %v3860
    %4413 = vmatpush.msra.mxu0 %v3858
    %4414 = vmatpush.msra.mxu0 %v3856
    %4415 = vmatpush.msra.mxu0 %v3854
    %4416 = vmatmul.f32.gmra.mxu0 %v4398
    %v4417 = vpop.f32.mrf.mxu0
    %v4418 = vadd.f32 %v4393, %v4417
    %4419 = vdwg.mxu0
    %4420 = vmatpush.msra.mxu0 0.0
    %4421 = vmatpush.msra.mxu0 0.0
    %4422 = vmatpush.msra.mxu0 0.0
    %4423 = vmatpush.msra.mxu0 0.0
    %4424 = vmatpush.msra.mxu0 0.0
    %4425 = vmatpush.msra.mxu0 0.0
    %4426 = vmatpush.msra.mxu0 0.0
    %4427 = vmatpush.msra.mxu0 0.0
    %4428 = vmatpush.msra.mxu0 %v3869
    %4429 = vmatpush.msra.mxu0 %v3867
    %4430 = vmatpush.msra.mxu0 %v3865
    %4431 = vmatpush.msra.mxu0 %v3863
    %4432 = vmatpush.msra.mxu0 %v3861
    %4433 = vmatpush.msra.mxu0 %v3859
    %4434 = vmatpush.msra.mxu0 %v3857
    %4435 = vmatpush.msra.mxu0 %v3855
    %4436 = vmatmul.f32.gmra.mxu0 %v4398
    %v4437 = vpop.f32.mrf.mxu0
    %v4438 = vadd.f32 %v4394, %v4437
    %4439 = vdwg.mxu0
    %v4440 = vxor.u32 %v4418, 2147483648
    %v4441 = vxor.u32 %v4438, 2147483648
    %v4442 = vmul.f32 %v4440, 1.442695
    %v4443 = vpow.pop %v4442
    %v4444 = vmul.f32 %v4441, 1.442695
    %v4445 = vpow.pop %v4444
    %v4446 = vadd.f32 %v4443, 1.0
    %v4447 = vadd.f32 %v4445, 1.0
    %v4448 = vrcp.pop %v4446
    %v4449 = vmul.f32 %v4446, %v4448
    %v4450 = vsub.f32 1.0, %v4449
    %v4451 = vmul.f32 %v4448, %v4450
    %v4452 = vadd.f32 %v4448, %v4451
    %vm4453 = vweird.f32 %v4446
    %vm4454 = vweird.f32 %v4448
    %vm4455 = vmor %vm4453, %vm4454
    %v4456 = vsel %vm4455, %v4448, %v4452
    %v4457 = vand.u32 2147483647, %v4446
    %vm4458 = vcmp.eq.f32.partialorder %v4457, 8.507059e+37
    %v4459 = vand.u32 %v4446, 2147483648
    %v4460 = vor.u32 1.1754944e-38, %v4459
    %v4461 = vsel %vm4458, %v4460, %v4456
    %v4462 = vmul.f32 1.0, %v4461
    %v4463 = vrcp.pop %v4447
    %v4464 = vmul.f32 %v4447, %v4463
    %v4465 = vsub.f32 1.0, %v4464
    %v4466 = vmul.f32 %v4463, %v4465
    %v4467 = vadd.f32 %v4463, %v4466
    %vm4468 = vweird.f32 %v4447
    %vm4469 = vweird.f32 %v4463
    %vm4470 = vmor %vm4468, %vm4469
    %v4471 = vsel %vm4470, %v4463, %v4467
    %v4472 = vand.u32 2147483647, %v4447
    %vm4473 = vcmp.eq.f32.partialorder %v4472, 8.507059e+37
    %v4474 = vand.u32 %v4447, 2147483648
    %v4475 = vor.u32 1.1754944e-38, %v4474
    %v4476 = vsel %vm4473, %v4475, %v4471
    %v4477 = vmul.f32 1.0, %v4476
    %v4478 = vtanh.pop %v4438
    %v4479 = vmul.f32 %v4462, %v4283
    %4481 = vrot.lane.b32.xlu0 %v4478, 64
    %v4482 = vpop.permute.xlu0 %4481
    %v4484 = vmul.f32 %v4462, %v4482
    %4486 = vrot.lane.b32.xlu0 %v4484, 64
    %v4487 = vpop.permute.xlu0 %4486
    %v4489 = vadd.f32 %v4479, %v4487
    %v4490 = vtanh.pop %v4489
    %4492 = vrot.lane.b32.xlu0 %v4490, 64
    %v4493 = vpop.permute.xlu0 %4492
    %v4495 = vmul.f32 %v4477, %v4493
    %v4496 = vrot.slane %v3962, 2
    %v4497 = vrot.slane %v3985, 2
    %v4501 = vsel %vm222, %v4392, 0
    %4503 = vmatpush.msra.mxu0 0.0
    %4504 = vmatpush.msra.mxu0 0.0
    %4505 = vmatpush.msra.mxu0 0.0
    %4506 = vmatpush.msra.mxu0 0.0
    %4507 = vmatpush.msra.mxu0 0.0
    %4508 = vmatpush.msra.mxu0 0.0
    %4509 = vmatpush.msra.mxu0 0.0
    %4510 = vmatpush.msra.mxu0 0.0
    %4511 = vmatpush.msra.mxu0 %v3884
    %4512 = vmatpush.msra.mxu0 %v3882
    %4513 = vmatpush.msra.mxu0 %v3880
    %4514 = vmatpush.msra.mxu0 %v3878
    %4515 = vmatpush.msra.mxu0 %v3876
    %4516 = vmatpush.msra.mxu0 %v3874
    %4517 = vmatpush.msra.mxu0 %v3872
    %4518 = vmatpush.msra.mxu0 %v3870
    %4519 = vmatmul.f32.gmra.mxu0 %v4501
    %v4520 = vpop.f32.mrf.mxu0
    %v4521 = vadd.f32 %v4496, %v4520
    %4522 = vdwg.mxu0
    %4523 = vmatpush.msra.mxu0 0.0
    %4524 = vmatpush.msra.mxu0 0.0
    %4525 = vmatpush.msra.mxu0 0.0
    %4526 = vmatpush.msra.mxu0 0.0
    %4527 = vmatpush.msra.mxu0 0.0
    %4528 = vmatpush.msra.mxu0 0.0
    %4529 = vmatpush.msra.mxu0 0.0
    %4530 = vmatpush.msra.mxu0 0.0
    %4531 = vmatpush.msra.mxu0 %v3885
    %4532 = vmatpush.msra.mxu0 %v3883
    %4533 = vmatpush.msra.mxu0 %v3881
    %4534 = vmatpush.msra.mxu0 %v3879
    %4535 = vmatpush.msra.mxu0 %v3877
    %4536 = vmatpush.msra.mxu0 %v3875
    %4537 = vmatpush.msra.mxu0 %v3873
    %4538 = vmatpush.msra.mxu0 %v3871
    %4539 = vmatmul.f32.gmra.mxu0 %v4501
    %v4540 = vpop.f32.mrf.mxu0
    %v4541 = vadd.f32 %v4497, %v4540
    %4542 = vdwg.mxu0
    %v4543 = vxor.u32 %v4521, 2147483648
    %v4544 = vxor.u32 %v4541, 2147483648
    %v4545 = vmul.f32 %v4543, 1.442695
    %v4546 = vpow.pop %v4545
    %v4547 = vmul.f32 %v4544, 1.442695
    %v4548 = vpow.pop %v4547
    %v4549 = vadd.f32 %v4546, 1.0
    %v4550 = vadd.f32 %v4548, 1.0
    %v4551 = vrcp.pop %v4549
    %v4552 = vmul.f32 %v4549, %v4551
    %v4553 = vsub.f32 1.0, %v4552
    %v4554 = vmul.f32 %v4551, %v4553
    %v4555 = vadd.f32 %v4551, %v4554
    %vm4556 = vweird.f32 %v4549
    %vm4557 = vweird.f32 %v4551
    %vm4558 = vmor %vm4556, %vm4557
    %v4559 = vsel %vm4558, %v4551, %v4555
    %v4560 = vand.u32 2147483647, %v4549
    %vm4561 = vcmp.eq.f32.partialorder %v4560, 8.507059e+37
    %v4562 = vand.u32 %v4549, 2147483648
    %v4563 = vor.u32 1.1754944e-38, %v4562
    %v4564 = vsel %vm4561, %v4563, %v4559
    %v4565 = vmul.f32 1.0, %v4564
    %v4566 = vrcp.pop %v4550
    %v4567 = vmul.f32 %v4550, %v4566
    %v4568 = vsub.f32 1.0, %v4567
    %v4569 = vmul.f32 %v4566, %v4568
    %v4570 = vadd.f32 %v4566, %v4569
    %vm4571 = vweird.f32 %v4550
    %vm4572 = vweird.f32 %v4566
    %vm4573 = vmor %vm4571, %vm4572
    %v4574 = vsel %vm4573, %v4566, %v4570
    %v4575 = vand.u32 2147483647, %v4550
    %vm4576 = vcmp.eq.f32.partialorder %v4575, 8.507059e+37
    %v4577 = vand.u32 %v4550, 2147483648
    %v4578 = vor.u32 1.1754944e-38, %v4577
    %v4579 = vsel %vm4576, %v4578, %v4574
    %v4580 = vmul.f32 1.0, %v4579
    %v4581 = vtanh.pop %v4541
    %v4582 = vmul.f32 %v4565, %v4386
    %4584 = vrot.lane.b32.xlu0 %v4581, 64
    %v4585 = vpop.permute.xlu0 %4584
    %v4587 = vmul.f32 %v4565, %v4585
    %4589 = vrot.lane.b32.xlu0 %v4587, 64
    %v4590 = vpop.permute.xlu0 %4589
    %v4592 = vadd.f32 %v4582, %v4590
    %v4593 = vtanh.pop %v4592
    %4595 = vrot.lane.b32.xlu0 %v4593, 64
    %v4596 = vpop.permute.xlu0 %4595
    %v4598 = vmul.f32 %v4580, %v4596
    %v4599 = vrot.slane %v3913, 6
    %v4600 = vrot.slane %v3936, 6
    %v4604 = vsel %vm222, %v4495, 0
    %4606 = vmatpush.msra.mxu0 0.0
    %4607 = vmatpush.msra.mxu0 0.0
    %4608 = vmatpush.msra.mxu0 0.0
    %4609 = vmatpush.msra.mxu0 0.0
    %4610 = vmatpush.msra.mxu0 0.0
    %4611 = vmatpush.msra.mxu0 0.0
    %4612 = vmatpush.msra.mxu0 0.0
    %4613 = vmatpush.msra.mxu0 0.0
    %4614 = vmatpush.msra.mxu0 %v3868
    %4615 = vmatpush.msra.mxu0 %v3866
    %4616 = vmatpush.msra.mxu0 %v3864
    %4617 = vmatpush.msra.mxu0 %v3862
    %4618 = vmatpush.msra.mxu0 %v3860
    %4619 = vmatpush.msra.mxu0 %v3858
    %4620 = vmatpush.msra.mxu0 %v3856
    %4621 = vmatpush.msra.mxu0 %v3854
    %4622 = vmatmul.f32.gmra.mxu0 %v4604
    %v4623 = vpop.f32.mrf.mxu0
    %v4624 = vadd.f32 %v4599, %v4623
    %4625 = vdwg.mxu0
    %4626 = vmatpush.msra.mxu0 0.0
    %4627 = vmatpush.msra.mxu0 0.0
    %4628 = vmatpush.msra.mxu0 0.0
    %4629 = vmatpush.msra.mxu0 0.0
    %4630 = vmatpush.msra.mxu0 0.0
    %4631 = vmatpush.msra.mxu0 0.0
    %4632 = vmatpush.msra.mxu0 0.0
    %4633 = vmatpush.msra.mxu0 0.0
    %4634 = vmatpush.msra.mxu0 %v3869
    %4635 = vmatpush.msra.mxu0 %v3867
    %4636 = vmatpush.msra.mxu0 %v3865
    %4637 = vmatpush.msra.mxu0 %v3863
    %4638 = vmatpush.msra.mxu0 %v3861
    %4639 = vmatpush.msra.mxu0 %v3859
    %4640 = vmatpush.msra.mxu0 %v3857
    %4641 = vmatpush.msra.mxu0 %v3855
    %4642 = vmatmul.f32.gmra.mxu0 %v4604
    %v4643 = vpop.f32.mrf.mxu0
    %v4644 = vadd.f32 %v4600, %v4643
    %4645 = vdwg.mxu0
    %v4646 = vxor.u32 %v4624, 2147483648
    %v4647 = vxor.u32 %v4644, 2147483648
    %v4648 = vmul.f32 %v4646, 1.442695
    %v4649 = vpow.pop %v4648
    %v4650 = vmul.f32 %v4647, 1.442695
    %v4651 = vpow.pop %v4650
    %v4652 = vadd.f32 %v4649, 1.0
    %v4653 = vadd.f32 %v4651, 1.0
    %v4654 = vrcp.pop %v4652
    %v4655 = vmul.f32 %v4652, %v4654
    %v4656 = vsub.f32 1.0, %v4655
    %v4657 = vmul.f32 %v4654, %v4656
    %v4658 = vadd.f32 %v4654, %v4657
    %vm4659 = vweird.f32 %v4652
    %vm4660 = vweird.f32 %v4654
    %vm4661 = vmor %vm4659, %vm4660
    %v4662 = vsel %vm4661, %v4654, %v4658
    %v4663 = vand.u32 2147483647, %v4652
    %vm4664 = vcmp.eq.f32.partialorder %v4663, 8.507059e+37
    %v4665 = vand.u32 %v4652, 2147483648
    %v4666 = vor.u32 1.1754944e-38, %v4665
    %v4667 = vsel %vm4664, %v4666, %v4662
    %v4668 = vmul.f32 1.0, %v4667
    %v4669 = vrcp.pop %v4653
    %v4670 = vmul.f32 %v4653, %v4669
    %v4671 = vsub.f32 1.0, %v4670
    %v4672 = vmul.f32 %v4669, %v4671
    %v4673 = vadd.f32 %v4669, %v4672
    %vm4674 = vweird.f32 %v4653
    %vm4675 = vweird.f32 %v4669
    %vm4676 = vmor %vm4674, %vm4675
    %v4677 = vsel %vm4676, %v4669, %v4673
    %v4678 = vand.u32 2147483647, %v4653
    %vm4679 = vcmp.eq.f32.partialorder %v4678, 8.507059e+37
    %v4680 = vand.u32 %v4653, 2147483648
    %v4681 = vor.u32 1.1754944e-38, %v4680
    %v4682 = vsel %vm4679, %v4681, %v4677
    %v4683 = vmul.f32 1.0, %v4682
    %v4684 = vtanh.pop %v4644
    %v4685 = vmul.f32 %v4668, %v4489
    %4687 = vrot.lane.b32.xlu0 %v4684, 64
    %v4688 = vpop.permute.xlu0 %4687
    %v4690 = vmul.f32 %v4668, %v4688
    %4692 = vrot.lane.b32.xlu0 %v4690, 64
    %v4693 = vpop.permute.xlu0 %4692
    %v4695 = vadd.f32 %v4685, %v4693
    %v4696 = vtanh.pop %v4695
    %4698 = vrot.lane.b32.xlu0 %v4696, 64
    %v4699 = vpop.permute.xlu0 %4698
    %v4701 = vmul.f32 %v4683, %v4699
    %v4703 = vsel %vm222, %v4598, 0
    %4705 = vmatpush.msra.mxu0 0.0
    %4706 = vmatpush.msra.mxu0 0.0
    %4707 = vmatpush.msra.mxu0 0.0
    %4708 = vmatpush.msra.mxu0 0.0
    %4709 = vmatpush.msra.mxu0 0.0
    %4710 = vmatpush.msra.mxu0 0.0
    %4711 = vmatpush.msra.mxu0 0.0
    %4712 = vmatpush.msra.mxu0 0.0
    %4713 = vmatpush.msra.mxu0 %v3884
    %4714 = vmatpush.msra.mxu0 %v3882
    %4715 = vmatpush.msra.mxu0 %v3880
    %4716 = vmatpush.msra.mxu0 %v3878
    %4717 = vmatpush.msra.mxu0 %v3876
    %4718 = vmatpush.msra.mxu0 %v3874
    %4719 = vmatpush.msra.mxu0 %v3872
    %4720 = vmatpush.msra.mxu0 %v3870
    %4721 = vmatmul.f32.gmra.mxu0 %v4703
    %v4722 = vpop.f32.mrf.mxu0
    %v4723 = vadd.f32 %v3962, %v4722
    %4724 = vdwg.mxu0
    %4725 = vmatpush.msra.mxu0 0.0
    %4726 = vmatpush.msra.mxu0 0.0
    %4727 = vmatpush.msra.mxu0 0.0
    %4728 = vmatpush.msra.mxu0 0.0
    %4729 = vmatpush.msra.mxu0 0.0
    %4730 = vmatpush.msra.mxu0 0.0
    %4731 = vmatpush.msra.mxu0 0.0
    %4732 = vmatpush.msra.mxu0 0.0
    %4733 = vmatpush.msra.mxu0 %v3885
    %4734 = vmatpush.msra.mxu0 %v3883
    %4735 = vmatpush.msra.mxu0 %v3881
    %4736 = vmatpush.msra.mxu0 %v3879
    %4737 = vmatpush.msra.mxu0 %v3877
    %4738 = vmatpush.msra.mxu0 %v3875
    %4739 = vmatpush.msra.mxu0 %v3873
    %4740 = vmatpush.msra.mxu0 %v3871
    %4741 = vmatmul.f32.gmra.mxu0 %v4703
    %v4742 = vpop.f32.mrf.mxu0
    %v4743 = vadd.f32 %v3985, %v4742
    %4744 = vdwg.mxu0
    %v4745 = vxor.u32 %v4723, 2147483648
    %v4746 = vxor.u32 %v4743, 2147483648
    %v4747 = vmul.f32 %v4745, 1.442695
    %v4748 = vpow.pop %v4747
    %v4749 = vmul.f32 %v4746, 1.442695
    %v4750 = vpow.pop %v4749
    %v4751 = vadd.f32 %v4748, 1.0
    %v4752 = vadd.f32 %v4750, 1.0
    %v4753 = vrcp.pop %v4751
    %v4754 = vmul.f32 %v4751, %v4753
    %v4755 = vsub.f32 1.0, %v4754
    %v4756 = vmul.f32 %v4753, %v4755
    %v4757 = vadd.f32 %v4753, %v4756
    %vm4758 = vweird.f32 %v4751
    %vm4759 = vweird.f32 %v4753
    %vm4760 = vmor %vm4758, %vm4759
    %v4761 = vsel %vm4760, %v4753, %v4757
    %v4762 = vand.u32 2147483647, %v4751
    %vm4763 = vcmp.eq.f32.partialorder %v4762, 8.507059e+37
    %v4764 = vand.u32 %v4751, 2147483648
    %v4765 = vor.u32 1.1754944e-38, %v4764
    %v4766 = vsel %vm4763, %v4765, %v4761
    %v4767 = vmul.f32 1.0, %v4766
    %v4768 = vrcp.pop %v4752
    %v4769 = vmul.f32 %v4752, %v4768
    %v4770 = vsub.f32 1.0, %v4769
    %v4771 = vmul.f32 %v4768, %v4770
    %v4772 = vadd.f32 %v4768, %v4771
    %vm4773 = vweird.f32 %v4752
    %vm4774 = vweird.f32 %v4768
    %vm4775 = vmor %vm4773, %vm4774
    %v4776 = vsel %vm4775, %v4768, %v4772
    %v4777 = vand.u32 2147483647, %v4752
    %vm4778 = vcmp.eq.f32.partialorder %v4777, 8.507059e+37
    %v4779 = vand.u32 %v4752, 2147483648
    %v4780 = vor.u32 1.1754944e-38, %v4779
    %v4781 = vsel %vm4778, %v4780, %v4776
    %v4782 = vmul.f32 1.0, %v4781
    %v4783 = vtanh.pop %v4743
    %v4784 = vmul.f32 %v4767, %v4592
    %4786 = vrot.lane.b32.xlu0 %v4783, 64
    %v4787 = vpop.permute.xlu0 %4786
    %v4789 = vmul.f32 %v4767, %v4787
    %4791 = vrot.lane.b32.xlu0 %v4789, 64
    %v4792 = vpop.permute.xlu0 %4791
    %v4794 = vadd.f32 %v4784, %v4792
    %v4795 = vtanh.pop %v4794
    %4797 = vrot.lane.b32.xlu0 %v4795, 64
    %v4798 = vpop.permute.xlu0 %4797
    %v4800 = vmul.f32 %v4782, %v4798
    %v4802 = vsel %vm222, %v4701, 0
    %4804 = vmatpush.msra.mxu0 0.0
    %4805 = vmatpush.msra.mxu0 0.0
    %4806 = vmatpush.msra.mxu0 0.0
    %4807 = vmatpush.msra.mxu0 0.0
    %4808 = vmatpush.msra.mxu0 0.0
    %4809 = vmatpush.msra.mxu0 0.0
    %4810 = vmatpush.msra.mxu0 0.0
    %4811 = vmatpush.msra.mxu0 0.0
    %4812 = vmatpush.msra.mxu0 %v3868
    %4813 = vmatpush.msra.mxu0 %v3866
    %4814 = vmatpush.msra.mxu0 %v3864
    %4815 = vmatpush.msra.mxu0 %v3862
    %4816 = vmatpush.msra.mxu0 %v3860
    %4817 = vmatpush.msra.mxu0 %v3858
    %4818 = vmatpush.msra.mxu0 %v3856
    %4819 = vmatpush.msra.mxu0 %v3854
    %4820 = vmatmul.f32.gmra.mxu0 %v4802
    %v4821 = vpop.f32.mrf.mxu0
    %v4822 = vadd.f32 %v3916, %v4821
    %4823 = vdwg.mxu0
    %4824 = vmatpush.msra.mxu0 0.0
    %4825 = vmatpush.msra.mxu0 0.0
    %4826 = vmatpush.msra.mxu0 0.0
    %4827 = vmatpush.msra.mxu0 0.0
    %4828 = vmatpush.msra.mxu0 0.0
    %4829 = vmatpush.msra.mxu0 0.0
    %4830 = vmatpush.msra.mxu0 0.0
    %4831 = vmatpush.msra.mxu0 0.0
    %4832 = vmatpush.msra.mxu0 %v3869
    %4833 = vmatpush.msra.mxu0 %v3867
    %4834 = vmatpush.msra.mxu0 %v3865
    %4835 = vmatpush.msra.mxu0 %v3863
    %4836 = vmatpush.msra.mxu0 %v3861
    %4837 = vmatpush.msra.mxu0 %v3859
    %4838 = vmatpush.msra.mxu0 %v3857
    %4839 = vmatpush.msra.mxu0 %v3855
    %4840 = vmatmul.f32.gmra.mxu0 %v4802
    %v4841 = vpop.f32.mrf.mxu0
    %v4842 = vadd.f32 %v3939, %v4841
    %4843 = vdwg.mxu0
    %v4844 = vxor.u32 %v4822, 2147483648
    %v4845 = vxor.u32 %v4842, 2147483648
    %v4846 = vmul.f32 %v4844, 1.442695
    %v4847 = vpow.pop %v4846
    %v4848 = vmul.f32 %v4845, 1.442695
    %v4849 = vpow.pop %v4848
    %v4850 = vadd.f32 %v4847, 1.0
    %v4851 = vadd.f32 %v4849, 1.0
    %v4852 = vrcp.pop %v4850
    %v4853 = vmul.f32 %v4850, %v4852
    %v4854 = vsub.f32 1.0, %v4853
    %v4855 = vmul.f32 %v4852, %v4854
    %v4856 = vadd.f32 %v4852, %v4855
    %vm4857 = vweird.f32 %v4850
    %vm4858 = vweird.f32 %v4852
    %vm4859 = vmor %vm4857, %vm4858
    %v4860 = vsel %vm4859, %v4852, %v4856
    %v4861 = vand.u32 2147483647, %v4850
    %vm4862 = vcmp.eq.f32.partialorder %v4861, 8.507059e+37
    %v4863 = vand.u32 %v4850, 2147483648
    %v4864 = vor.u32 1.1754944e-38, %v4863
    %v4865 = vsel %vm4862, %v4864, %v4860
    %v4866 = vmul.f32 1.0, %v4865
    %v4867 = vrcp.pop %v4851
    %v4868 = vmul.f32 %v4851, %v4867
    %v4869 = vsub.f32 1.0, %v4868
    %v4870 = vmul.f32 %v4867, %v4869
    %v4871 = vadd.f32 %v4867, %v4870
    %vm4872 = vweird.f32 %v4851
    %vm4873 = vweird.f32 %v4867
    %vm4874 = vmor %vm4872, %vm4873
    %v4875 = vsel %vm4874, %v4867, %v4871
    %v4876 = vand.u32 2147483647, %v4851
    %vm4877 = vcmp.eq.f32.partialorder %v4876, 8.507059e+37
    %v4878 = vand.u32 %v4851, 2147483648
    %v4879 = vor.u32 1.1754944e-38, %v4878
    %v4880 = vsel %vm4877, %v4879, %v4875
    %v4881 = vmul.f32 1.0, %v4880
    %v4882 = vtanh.pop %v4842
    %v4883 = vmul.f32 %v4866, %v4695
    %4885 = vrot.lane.b32.xlu0 %v4882, 64
    %v4886 = vpop.permute.xlu0 %4885
    %v4888 = vmul.f32 %v4866, %v4886
    %4890 = vrot.lane.b32.xlu0 %v4888, 64
    %v4891 = vpop.permute.xlu0 %4890
    %v4893 = vadd.f32 %v4883, %v4891
    %v4894 = vtanh.pop %v4893
    %4896 = vrot.lane.b32.xlu0 %v4894, 64
    %v4897 = vpop.permute.xlu0 %4896
    %v4899 = vmul.f32 %v4881, %v4897
    %v4902 = vrot.slane %v3959, 6
    %v4903 = vrot.slane %v3982, 6
    %v4907 = vsel %vm222, %v4800, 0
    %4909 = vmatpush.msra.mxu0 0.0
    %4910 = vmatpush.msra.mxu0 0.0
    %4911 = vmatpush.msra.mxu0 0.0
    %4912 = vmatpush.msra.mxu0 0.0
    %4913 = vmatpush.msra.mxu0 0.0
    %4914 = vmatpush.msra.mxu0 0.0
    %4915 = vmatpush.msra.mxu0 0.0
    %4916 = vmatpush.msra.mxu0 0.0
    %4917 = vmatpush.msra.mxu0 %v3884
    %4918 = vmatpush.msra.mxu0 %v3882
    %4919 = vmatpush.msra.mxu0 %v3880
    %4920 = vmatpush.msra.mxu0 %v3878
    %4921 = vmatpush.msra.mxu0 %v3876
    %4922 = vmatpush.msra.mxu0 %v3874
    %4923 = vmatpush.msra.mxu0 %v3872
    %4924 = vmatpush.msra.mxu0 %v3870
    %4925 = vmatmul.f32.gmra.mxu0 %v4907
    %v4926 = vpop.f32.mrf.mxu0
    %v4927 = vadd.f32 %v4902, %v4926
    %4928 = vdwg.mxu0
    %4929 = vmatpush.msra.mxu0 0.0
    %4930 = vmatpush.msra.mxu0 0.0
    %4931 = vmatpush.msra.mxu0 0.0
    %4932 = vmatpush.msra.mxu0 0.0
    %4933 = vmatpush.msra.mxu0 0.0
    %4934 = vmatpush.msra.mxu0 0.0
    %4935 = vmatpush.msra.mxu0 0.0
    %4936 = vmatpush.msra.mxu0 0.0
    %4937 = vmatpush.msra.mxu0 %v3885
    %4938 = vmatpush.msra.mxu0 %v3883
    %4939 = vmatpush.msra.mxu0 %v3881
    %4940 = vmatpush.msra.mxu0 %v3879
    %4941 = vmatpush.msra.mxu0 %v3877
    %4942 = vmatpush.msra.mxu0 %v3875
    %4943 = vmatpush.msra.mxu0 %v3873
    %4944 = vmatpush.msra.mxu0 %v3871
    %4945 = vmatmul.f32.gmra.mxu0 %v4907
    %v4946 = vpop.f32.mrf.mxu0
    %v4947 = vadd.f32 %v4903, %v4946
    %4948 = vdwg.mxu0
    %v4949 = vxor.u32 %v4927, 2147483648
    %v4950 = vxor.u32 %v4947, 2147483648
    %v4951 = vmul.f32 %v4949, 1.442695
    %v4952 = vpow.pop %v4951
    %v4953 = vmul.f32 %v4950, 1.442695
    %v4954 = vpow.pop %v4953
    %v4955 = vadd.f32 %v4952, 1.0
    %v4956 = vadd.f32 %v4954, 1.0
    %v4957 = vrcp.pop %v4955
    %v4958 = vmul.f32 %v4955, %v4957
    %v4959 = vsub.f32 1.0, %v4958
    %v4960 = vmul.f32 %v4957, %v4959
    %v4961 = vadd.f32 %v4957, %v4960
    %vm4962 = vweird.f32 %v4955
    %vm4963 = vweird.f32 %v4957
    %vm4964 = vmor %vm4962, %vm4963
    %v4965 = vsel %vm4964, %v4957, %v4961
    %v4966 = vand.u32 2147483647, %v4955
    %vm4967 = vcmp.eq.f32.partialorder %v4966, 8.507059e+37
    %v4968 = vand.u32 %v4955, 2147483648
    %v4969 = vor.u32 1.1754944e-38, %v4968
    %v4970 = vsel %vm4967, %v4969, %v4965
    %v4971 = vmul.f32 1.0, %v4970
    %v4972 = vrcp.pop %v4956
    %v4973 = vmul.f32 %v4956, %v4972
    %v4974 = vsub.f32 1.0, %v4973
    %v4975 = vmul.f32 %v4972, %v4974
    %v4976 = vadd.f32 %v4972, %v4975
    %vm4977 = vweird.f32 %v4956
    %vm4978 = vweird.f32 %v4972
    %vm4979 = vmor %vm4977, %vm4978
    %v4980 = vsel %vm4979, %v4972, %v4976
    %v4981 = vand.u32 2147483647, %v4956
    %vm4982 = vcmp.eq.f32.partialorder %v4981, 8.507059e+37
    %v4983 = vand.u32 %v4956, 2147483648
    %v4984 = vor.u32 1.1754944e-38, %v4983
    %v4985 = vsel %vm4982, %v4984, %v4980
    %v4986 = vmul.f32 1.0, %v4985
    %v4987 = vtanh.pop %v4947
    %v4988 = vmul.f32 %v4971, %v4794
    %4990 = vrot.lane.b32.xlu0 %v4987, 64
    %v4991 = vpop.permute.xlu0 %4990
    %v4993 = vmul.f32 %v4971, %v4991
    %4995 = vrot.lane.b32.xlu0 %v4993, 64
    %v4996 = vpop.permute.xlu0 %4995
    %v4998 = vadd.f32 %v4988, %v4996
    %v4999 = vtanh.pop %v4998
    %5001 = vrot.lane.b32.xlu0 %v4999, 64
    %v5002 = vpop.permute.xlu0 %5001
    %v5004 = vmul.f32 %v4986, %v5002
    %v5007 = vrot.slane %v3916, 2
    %v5008 = vrot.slane %v3939, 2
    %v5012 = vsel %vm222, %v4899, 0
    %5014 = vmatpush.msra.mxu0 0.0
    %5015 = vmatpush.msra.mxu0 0.0
    %5016 = vmatpush.msra.mxu0 0.0
    %5017 = vmatpush.msra.mxu0 0.0
    %5018 = vmatpush.msra.mxu0 0.0
    %5019 = vmatpush.msra.mxu0 0.0
    %5020 = vmatpush.msra.mxu0 0.0
    %5021 = vmatpush.msra.mxu0 0.0
    %5022 = vmatpush.msra.mxu0 %v3868
    %5023 = vmatpush.msra.mxu0 %v3866
    %5024 = vmatpush.msra.mxu0 %v3864
    %5025 = vmatpush.msra.mxu0 %v3862
    %5026 = vmatpush.msra.mxu0 %v3860
    %5027 = vmatpush.msra.mxu0 %v3858
    %5028 = vmatpush.msra.mxu0 %v3856
    %5029 = vmatpush.msra.mxu0 %v3854
    %5030 = vmatmul.f32.gmra.mxu0 %v5012
    %v5031 = vpop.f32.mrf.mxu0
    %v5032 = vadd.f32 %v5007, %v5031
    %5033 = vdwg.mxu0
    %5034 = vmatpush.msra.mxu0 0.0
    %5035 = vmatpush.msra.mxu0 0.0
    %5036 = vmatpush.msra.mxu0 0.0
    %5037 = vmatpush.msra.mxu0 0.0
    %5038 = vmatpush.msra.mxu0 0.0
    %5039 = vmatpush.msra.mxu0 0.0
    %5040 = vmatpush.msra.mxu0 0.0
    %5041 = vmatpush.msra.mxu0 0.0
    %5042 = vmatpush.msra.mxu0 %v3869
    %5043 = vmatpush.msra.mxu0 %v3867
    %5044 = vmatpush.msra.mxu0 %v3865
    %5045 = vmatpush.msra.mxu0 %v3863
    %5046 = vmatpush.msra.mxu0 %v3861
    %5047 = vmatpush.msra.mxu0 %v3859
    %5048 = vmatpush.msra.mxu0 %v3857
    %5049 = vmatpush.msra.mxu0 %v3855
    %5050 = vmatmul.f32.gmra.mxu0 %v5012
    %v5051 = vpop.f32.mrf.mxu0
    %v5052 = vadd.f32 %v5008, %v5051
    %5053 = vdwg.mxu0
    %v5054 = vxor.u32 %v5032, 2147483648
    %v5055 = vxor.u32 %v5052, 2147483648
    %v5056 = vmul.f32 %v5054, 1.442695
    %v5057 = vpow.pop %v5056
    %v5058 = vmul.f32 %v5055, 1.442695
    %v5059 = vpow.pop %v5058
    %v5060 = vadd.f32 %v5057, 1.0
    %v5061 = vadd.f32 %v5059, 1.0
    %v5062 = vrcp.pop %v5060
    %v5063 = vmul.f32 %v5060, %v5062
    %v5064 = vsub.f32 1.0, %v5063
    %v5065 = vmul.f32 %v5062, %v5064
    %v5066 = vadd.f32 %v5062, %v5065
    %vm5067 = vweird.f32 %v5060
    %vm5068 = vweird.f32 %v5062
    %vm5069 = vmor %vm5067, %vm5068
    %v5070 = vsel %vm5069, %v5062, %v5066
    %v5071 = vand.u32 2147483647, %v5060
    %vm5072 = vcmp.eq.f32.partialorder %v5071, 8.507059e+37
    %v5073 = vand.u32 %v5060, 2147483648
    %v5074 = vor.u32 1.1754944e-38, %v5073
    %v5075 = vsel %vm5072, %v5074, %v5070
    %v5076 = vmul.f32 1.0, %v5075
    %v5077 = vrcp.pop %v5061
    %v5078 = vmul.f32 %v5061, %v5077
    %v5079 = vsub.f32 1.0, %v5078
    %v5080 = vmul.f32 %v5077, %v5079
    %v5081 = vadd.f32 %v5077, %v5080
    %vm5082 = vweird.f32 %v5061
    %vm5083 = vweird.f32 %v5077
    %vm5084 = vmor %vm5082, %vm5083
    %v5085 = vsel %vm5084, %v5077, %v5081
    %v5086 = vand.u32 2147483647, %v5061
    %vm5087 = vcmp.eq.f32.partialorder %v5086, 8.507059e+37
    %v5088 = vand.u32 %v5061, 2147483648
    %v5089 = vor.u32 1.1754944e-38, %v5088
    %v5090 = vsel %vm5087, %v5089, %v5085
    %v5091 = vmul.f32 1.0, %v5090
    %v5092 = vtanh.pop %v5052
    %v5093 = vmul.f32 %v5076, %v4893
    %5095 = vrot.lane.b32.xlu0 %v5092, 64
    %v5096 = vpop.permute.xlu0 %5095
    %v5098 = vmul.f32 %v5076, %v5096
    %5100 = vrot.lane.b32.xlu0 %v5098, 64
    %v5101 = vpop.permute.xlu0 %5100
    %v5103 = vadd.f32 %v5093, %v5101
    %v5104 = vtanh.pop %v5103
    %5106 = vrot.lane.b32.xlu0 %v5104, 64
    %v5107 = vpop.permute.xlu0 %5106
    %v5109 = vmul.f32 %v5091, %v5107
    %v5110 = vrot.slane %v3959, 4
    %v5111 = vrot.slane %v3982, 4
    %v5115 = vsel %vm222, %v5004, 0
    %5117 = vmatpush.msra.mxu0 0.0
    %5118 = vmatpush.msra.mxu0 0.0
    %5119 = vmatpush.msra.mxu0 0.0
    %5120 = vmatpush.msra.mxu0 0.0
    %5121 = vmatpush.msra.mxu0 0.0
    %5122 = vmatpush.msra.mxu0 0.0
    %5123 = vmatpush.msra.mxu0 0.0
    %5124 = vmatpush.msra.mxu0 0.0
    %5125 = vmatpush.msra.mxu0 %v3884
    %5126 = vmatpush.msra.mxu0 %v3882
    %5127 = vmatpush.msra.mxu0 %v3880
    %5128 = vmatpush.msra.mxu0 %v3878
    %5129 = vmatpush.msra.mxu0 %v3876
    %5130 = vmatpush.msra.mxu0 %v3874
    %5131 = vmatpush.msra.mxu0 %v3872
    %5132 = vmatpush.msra.mxu0 %v3870
    %5133 = vmatmul.f32.gmra.mxu0 %v5115
    %v5134 = vpop.f32.mrf.mxu0
    %v5135 = vadd.f32 %v5110, %v5134
    %5136 = vdwg.mxu0
    %5137 = vmatpush.msra.mxu0 0.0
    %5138 = vmatpush.msra.mxu0 0.0
    %5139 = vmatpush.msra.mxu0 0.0
    %5140 = vmatpush.msra.mxu0 0.0
    %5141 = vmatpush.msra.mxu0 0.0
    %5142 = vmatpush.msra.mxu0 0.0
    %5143 = vmatpush.msra.mxu0 0.0
    %5144 = vmatpush.msra.mxu0 0.0
    %5145 = vmatpush.msra.mxu0 %v3885
    %5146 = vmatpush.msra.mxu0 %v3883
    %5147 = vmatpush.msra.mxu0 %v3881
    %5148 = vmatpush.msra.mxu0 %v3879
    %5149 = vmatpush.msra.mxu0 %v3877
    %5150 = vmatpush.msra.mxu0 %v3875
    %5151 = vmatpush.msra.mxu0 %v3873
    %5152 = vmatpush.msra.mxu0 %v3871
    %5153 = vmatmul.f32.gmra.mxu0 %v5115
    %v5154 = vpop.f32.mrf.mxu0
    %v5155 = vadd.f32 %v5111, %v5154
    %5156 = vdwg.mxu0
    %v5157 = vxor.u32 %v5135, 2147483648
    %v5158 = vxor.u32 %v5155, 2147483648
    %v5159 = vmul.f32 %v5157, 1.442695
    %v5160 = vpow.pop %v5159
    %v5161 = vmul.f32 %v5158, 1.442695
    %v5162 = vpow.pop %v5161
    %v5163 = vadd.f32 %v5160, 1.0
    %v5164 = vadd.f32 %v5162, 1.0
    %v5165 = vrcp.pop %v5163
    %v5166 = vmul.f32 %v5163, %v5165
    %v5167 = vsub.f32 1.0, %v5166
    %v5168 = vmul.f32 %v5165, %v5167
    %v5169 = vadd.f32 %v5165, %v5168
    %vm5170 = vweird.f32 %v5163
    %vm5171 = vweird.f32 %v5165
    %vm5172 = vmor %vm5170, %vm5171
    %v5173 = vsel %vm5172, %v5165, %v5169
    %v5174 = vand.u32 2147483647, %v5163
    %vm5175 = vcmp.eq.f32.partialorder %v5174, 8.507059e+37
    %v5176 = vand.u32 %v5163, 2147483648
    %v5177 = vor.u32 1.1754944e-38, %v5176
    %v5178 = vsel %vm5175, %v5177, %v5173
    %v5179 = vmul.f32 1.0, %v5178
    %v5180 = vrcp.pop %v5164
    %v5181 = vmul.f32 %v5164, %v5180
    %v5182 = vsub.f32 1.0, %v5181
    %v5183 = vmul.f32 %v5180, %v5182
    %v5184 = vadd.f32 %v5180, %v5183
    %vm5185 = vweird.f32 %v5164
    %vm5186 = vweird.f32 %v5180
    %vm5187 = vmor %vm5185, %vm5186
    %v5188 = vsel %vm5187, %v5180, %v5184
    %v5189 = vand.u32 2147483647, %v5164
    %vm5190 = vcmp.eq.f32.partialorder %v5189, 8.507059e+37
    %v5191 = vand.u32 %v5164, 2147483648
    %v5192 = vor.u32 1.1754944e-38, %v5191
    %v5193 = vsel %vm5190, %v5192, %v5188
    %v5194 = vmul.f32 1.0, %v5193
    %v5195 = vtanh.pop %v5155
    %v5196 = vmul.f32 %v5179, %v4998
    %5198 = vrot.lane.b32.xlu0 %v5195, 64
    %v5199 = vpop.permute.xlu0 %5198
    %v5201 = vmul.f32 %v5179, %v5199
    %5203 = vrot.lane.b32.xlu0 %v5201, 64
    %v5204 = vpop.permute.xlu0 %5203
    %v5206 = vadd.f32 %v5196, %v5204
    %v5207 = vtanh.pop %v5206
    %5209 = vrot.lane.b32.xlu0 %v5207, 64
    %v5210 = vpop.permute.xlu0 %5209
    %v5212 = vmul.f32 %v5194, %v5210
    %v5213 = vrot.slane %v3916, 4
    %v5214 = vrot.slane %v3939, 4
    %v5218 = vsel %vm222, %v5109, 0
    %5220 = vmatpush.msra.mxu0 0.0
    %5221 = vmatpush.msra.mxu0 0.0
    %5222 = vmatpush.msra.mxu0 0.0
    %5223 = vmatpush.msra.mxu0 0.0
    %5224 = vmatpush.msra.mxu0 0.0
    %5225 = vmatpush.msra.mxu0 0.0
    %5226 = vmatpush.msra.mxu0 0.0
    %5227 = vmatpush.msra.mxu0 0.0
    %5228 = vmatpush.msra.mxu0 %v3868
    %5229 = vmatpush.msra.mxu0 %v3866
    %5230 = vmatpush.msra.mxu0 %v3864
    %5231 = vmatpush.msra.mxu0 %v3862
    %5232 = vmatpush.msra.mxu0 %v3860
    %5233 = vmatpush.msra.mxu0 %v3858
    %5234 = vmatpush.msra.mxu0 %v3856
    %5235 = vmatpush.msra.mxu0 %v3854
    %5236 = vmatmul.f32.gmra.mxu0 %v5218
    %v5237 = vpop.f32.mrf.mxu0
    %v5238 = vadd.f32 %v5213, %v5237
    %5239 = vdwg.mxu0
    %5240 = vmatpush.msra.mxu0 0.0
    %5241 = vmatpush.msra.mxu0 0.0
    %5242 = vmatpush.msra.mxu0 0.0
    %5243 = vmatpush.msra.mxu0 0.0
    %5244 = vmatpush.msra.mxu0 0.0
    %5245 = vmatpush.msra.mxu0 0.0
    %5246 = vmatpush.msra.mxu0 0.0
    %5247 = vmatpush.msra.mxu0 0.0
    %5248 = vmatpush.msra.mxu0 %v3869
    %5249 = vmatpush.msra.mxu0 %v3867
    %5250 = vmatpush.msra.mxu0 %v3865
    %5251 = vmatpush.msra.mxu0 %v3863
    %5252 = vmatpush.msra.mxu0 %v3861
    %5253 = vmatpush.msra.mxu0 %v3859
    %5254 = vmatpush.msra.mxu0 %v3857
    %5255 = vmatpush.msra.mxu0 %v3855
    %5256 = vmatmul.f32.gmra.mxu0 %v5218
    %v5257 = vpop.f32.mrf.mxu0
    %v5258 = vadd.f32 %v5214, %v5257
    %5259 = vdwg.mxu0
    %v5260 = vxor.u32 %v5238, 2147483648
    %v5261 = vxor.u32 %v5258, 2147483648
    %v5262 = vmul.f32 %v5260, 1.442695
    %v5263 = vpow.pop %v5262
    %v5264 = vmul.f32 %v5261, 1.442695
    %v5265 = vpow.pop %v5264
    %v5266 = vadd.f32 %v5263, 1.0
    %v5267 = vadd.f32 %v5265, 1.0
    %v5268 = vrcp.pop %v5266
    %v5269 = vmul.f32 %v5266, %v5268
    %v5270 = vsub.f32 1.0, %v5269
    %v5271 = vmul.f32 %v5268, %v5270
    %v5272 = vadd.f32 %v5268, %v5271
    %vm5273 = vweird.f32 %v5266
    %vm5274 = vweird.f32 %v5268
    %vm5275 = vmor %vm5273, %vm5274
    %v5276 = vsel %vm5275, %v5268, %v5272
    %v5277 = vand.u32 2147483647, %v5266
    %vm5278 = vcmp.eq.f32.partialorder %v5277, 8.507059e+37
    %v5279 = vand.u32 %v5266, 2147483648
    %v5280 = vor.u32 1.1754944e-38, %v5279
    %v5281 = vsel %vm5278, %v5280, %v5276
    %v5282 = vmul.f32 1.0, %v5281
    %v5283 = vrcp.pop %v5267
    %v5284 = vmul.f32 %v5267, %v5283
    %v5285 = vsub.f32 1.0, %v5284
    %v5286 = vmul.f32 %v5283, %v5285
    %v5287 = vadd.f32 %v5283, %v5286
    %vm5288 = vweird.f32 %v5267
    %vm5289 = vweird.f32 %v5283
    %vm5290 = vmor %vm5288, %vm5289
    %v5291 = vsel %vm5290, %v5283, %v5287
    %v5292 = vand.u32 2147483647, %v5267
    %vm5293 = vcmp.eq.f32.partialorder %v5292, 8.507059e+37
    %v5294 = vand.u32 %v5267, 2147483648
    %v5295 = vor.u32 1.1754944e-38, %v5294
    %v5296 = vsel %vm5293, %v5295, %v5291
    %v5297 = vmul.f32 1.0, %v5296
    %v5298 = vtanh.pop %v5258
    %v5299 = vmul.f32 %v5282, %v5103
    %5301 = vrot.lane.b32.xlu0 %v5298, 64
    %v5302 = vpop.permute.xlu0 %5301
    %v5304 = vmul.f32 %v5282, %v5302
    %5306 = vrot.lane.b32.xlu0 %v5304, 64
    %v5307 = vpop.permute.xlu0 %5306
    %v5309 = vadd.f32 %v5299, %v5307
    %v5310 = vtanh.pop %v5309
    %5312 = vrot.lane.b32.xlu0 %v5310, 64
    %v5313 = vpop.permute.xlu0 %5312
    %v5315 = vmul.f32 %v5297, %v5313
    %v5316 = vrot.slane %v3959, 2
    %v5317 = vrot.slane %v3982, 2
    %v5321 = vsel %vm222, %v5212, 0
    %5323 = vmatpush.msra.mxu0 0.0
    %5324 = vmatpush.msra.mxu0 0.0
    %5325 = vmatpush.msra.mxu0 0.0
    %5326 = vmatpush.msra.mxu0 0.0
    %5327 = vmatpush.msra.mxu0 0.0
    %5328 = vmatpush.msra.mxu0 0.0
    %5329 = vmatpush.msra.mxu0 0.0
    %5330 = vmatpush.msra.mxu0 0.0
    %5331 = vmatpush.msra.mxu0 %v3884
    %5332 = vmatpush.msra.mxu0 %v3882
    %5333 = vmatpush.msra.mxu0 %v3880
    %5334 = vmatpush.msra.mxu0 %v3878
    %5335 = vmatpush.msra.mxu0 %v3876
    %5336 = vmatpush.msra.mxu0 %v3874
    %5337 = vmatpush.msra.mxu0 %v3872
    %5338 = vmatpush.msra.mxu0 %v3870
    %5339 = vmatmul.f32.gmra.mxu0 %v5321
    %v5340 = vpop.f32.mrf.mxu0
    %v5341 = vadd.f32 %v5316, %v5340
    %5342 = vdwg.mxu0
    %5343 = vmatpush.msra.mxu0 0.0
    %5344 = vmatpush.msra.mxu0 0.0
    %5345 = vmatpush.msra.mxu0 0.0
    %5346 = vmatpush.msra.mxu0 0.0
    %5347 = vmatpush.msra.mxu0 0.0
    %5348 = vmatpush.msra.mxu0 0.0
    %5349 = vmatpush.msra.mxu0 0.0
    %5350 = vmatpush.msra.mxu0 0.0
    %5351 = vmatpush.msra.mxu0 %v3885
    %5352 = vmatpush.msra.mxu0 %v3883
    %5353 = vmatpush.msra.mxu0 %v3881
    %5354 = vmatpush.msra.mxu0 %v3879
    %5355 = vmatpush.msra.mxu0 %v3877
    %5356 = vmatpush.msra.mxu0 %v3875
    %5357 = vmatpush.msra.mxu0 %v3873
    %5358 = vmatpush.msra.mxu0 %v3871
    %5359 = vmatmul.f32.gmra.mxu0 %v5321
    %v5360 = vpop.f32.mrf.mxu0
    %v5361 = vadd.f32 %v5317, %v5360
    %5362 = vdwg.mxu0
    %v5363 = vxor.u32 %v5341, 2147483648
    %v5364 = vxor.u32 %v5361, 2147483648
    %v5365 = vmul.f32 %v5363, 1.442695
    %v5366 = vpow.pop %v5365
    %v5367 = vmul.f32 %v5364, 1.442695
    %v5368 = vpow.pop %v5367
    %v5369 = vadd.f32 %v5366, 1.0
    %v5370 = vadd.f32 %v5368, 1.0
    %v5371 = vrcp.pop %v5369
    %v5372 = vmul.f32 %v5369, %v5371
    %v5373 = vsub.f32 1.0, %v5372
    %v5374 = vmul.f32 %v5371, %v5373
    %v5375 = vadd.f32 %v5371, %v5374
    %vm5376 = vweird.f32 %v5369
    %vm5377 = vweird.f32 %v5371
    %vm5378 = vmor %vm5376, %vm5377
    %v5379 = vsel %vm5378, %v5371, %v5375
    %v5380 = vand.u32 2147483647, %v5369
    %vm5381 = vcmp.eq.f32.partialorder %v5380, 8.507059e+37
    %v5382 = vand.u32 %v5369, 2147483648
    %v5383 = vor.u32 1.1754944e-38, %v5382
    %v5384 = vsel %vm5381, %v5383, %v5379
    %v5385 = vmul.f32 1.0, %v5384
    %v5386 = vrcp.pop %v5370
    %v5387 = vmul.f32 %v5370, %v5386
    %v5388 = vsub.f32 1.0, %v5387
    %v5389 = vmul.f32 %v5386, %v5388
    %v5390 = vadd.f32 %v5386, %v5389
    %vm5391 = vweird.f32 %v5370
    %vm5392 = vweird.f32 %v5386
    %vm5393 = vmor %vm5391, %vm5392
    %v5394 = vsel %vm5393, %v5386, %v5390
    %v5395 = vand.u32 2147483647, %v5370
    %vm5396 = vcmp.eq.f32.partialorder %v5395, 8.507059e+37
    %v5397 = vand.u32 %v5370, 2147483648
    %v5398 = vor.u32 1.1754944e-38, %v5397
    %v5399 = vsel %vm5396, %v5398, %v5394
    %v5400 = vmul.f32 1.0, %v5399
    %v5401 = vtanh.pop %v5361
    %v5402 = vmul.f32 %v5385, %v5206
    %5404 = vrot.lane.b32.xlu0 %v5401, 64
    %v5405 = vpop.permute.xlu0 %5404
    %v5407 = vmul.f32 %v5385, %v5405
    %5409 = vrot.lane.b32.xlu0 %v5407, 64
    %v5410 = vpop.permute.xlu0 %5409
    %v5412 = vadd.f32 %v5402, %v5410
    %v5413 = vtanh.pop %v5412
    %5415 = vrot.lane.b32.xlu0 %v5413, 64
    %v5416 = vpop.permute.xlu0 %5415
    %v5418 = vmul.f32 %v5400, %v5416
    %v5419 = vrot.slane %v3916, 6
    %v5420 = vrot.slane %v3939, 6
    %v5424 = vsel %vm222, %v5315, 0
    %5426 = vmatpush.msra.mxu0 0.0
    %5427 = vmatpush.msra.mxu0 0.0
    %5428 = vmatpush.msra.mxu0 0.0
    %5429 = vmatpush.msra.mxu0 0.0
    %5430 = vmatpush.msra.mxu0 0.0
    %5431 = vmatpush.msra.mxu0 0.0
    %5432 = vmatpush.msra.mxu0 0.0
    %5433 = vmatpush.msra.mxu0 0.0
    %5434 = vmatpush.msra.mxu0 %v3868
    %5435 = vmatpush.msra.mxu0 %v3866
    %5436 = vmatpush.msra.mxu0 %v3864
    %5437 = vmatpush.msra.mxu0 %v3862
    %5438 = vmatpush.msra.mxu0 %v3860
    %5439 = vmatpush.msra.mxu0 %v3858
    %5440 = vmatpush.msra.mxu0 %v3856
    %5441 = vmatpush.msra.mxu0 %v3854
    %5442 = vmatmul.f32.gmra.mxu0 %v5424
    %v5443 = vpop.f32.mrf.mxu0
    %v5444 = vadd.f32 %v5419, %v5443
    %5445 = vdwg.mxu0
    %5446 = vmatpush.msra.mxu0 0.0
    %5447 = vmatpush.msra.mxu0 0.0
    %5448 = vmatpush.msra.mxu0 0.0
    %5449 = vmatpush.msra.mxu0 0.0
    %5450 = vmatpush.msra.mxu0 0.0
    %5451 = vmatpush.msra.mxu0 0.0
    %5452 = vmatpush.msra.mxu0 0.0
    %5453 = vmatpush.msra.mxu0 0.0
    %5454 = vmatpush.msra.mxu0 %v3869
    %5455 = vmatpush.msra.mxu0 %v3867
    %5456 = vmatpush.msra.mxu0 %v3865
    %5457 = vmatpush.msra.mxu0 %v3863
    %5458 = vmatpush.msra.mxu0 %v3861
    %5459 = vmatpush.msra.mxu0 %v3859
    %5460 = vmatpush.msra.mxu0 %v3857
    %5461 = vmatpush.msra.mxu0 %v3855
    %5462 = vmatmul.f32.gmra.mxu0 %v5424
    %v5463 = vpop.f32.mrf.mxu0
    %v5464 = vadd.f32 %v5420, %v5463
    %5465 = vdwg.mxu0
    %v5466 = vxor.u32 %v5444, 2147483648
    %v5467 = vxor.u32 %v5464, 2147483648
    %v5468 = vmul.f32 %v5466, 1.442695
    %v5469 = vpow.pop %v5468
    %v5470 = vmul.f32 %v5467, 1.442695
    %v5471 = vpow.pop %v5470
    %v5472 = vadd.f32 %v5469, 1.0
    %v5473 = vadd.f32 %v5471, 1.0
    %v5474 = vrcp.pop %v5472
    %v5475 = vmul.f32 %v5472, %v5474
    %v5476 = vsub.f32 1.0, %v5475
    %v5477 = vmul.f32 %v5474, %v5476
    %v5478 = vadd.f32 %v5474, %v5477
    %vm5479 = vweird.f32 %v5472
    %vm5480 = vweird.f32 %v5474
    %vm5481 = vmor %vm5479, %vm5480
    %v5482 = vsel %vm5481, %v5474, %v5478
    %v5483 = vand.u32 2147483647, %v5472
    %vm5484 = vcmp.eq.f32.partialorder %v5483, 8.507059e+37
    %v5485 = vand.u32 %v5472, 2147483648
    %v5486 = vor.u32 1.1754944e-38, %v5485
    %v5487 = vsel %vm5484, %v5486, %v5482
    %v5488 = vmul.f32 1.0, %v5487
    %v5489 = vrcp.pop %v5473
    %v5490 = vmul.f32 %v5473, %v5489
    %v5491 = vsub.f32 1.0, %v5490
    %v5492 = vmul.f32 %v5489, %v5491
    %v5493 = vadd.f32 %v5489, %v5492
    %vm5494 = vweird.f32 %v5473
    %vm5495 = vweird.f32 %v5489
    %vm5496 = vmor %vm5494, %vm5495
    %v5497 = vsel %vm5496, %v5489, %v5493
    %v5498 = vand.u32 2147483647, %v5473
    %vm5499 = vcmp.eq.f32.partialorder %v5498, 8.507059e+37
    %v5500 = vand.u32 %v5473, 2147483648
    %v5501 = vor.u32 1.1754944e-38, %v5500
    %v5502 = vsel %vm5499, %v5501, %v5497
    %v5503 = vmul.f32 1.0, %v5502
    %v5504 = vtanh.pop %v5464
    %v5505 = vmul.f32 %v5488, %v5309
    %5507 = vrot.lane.b32.xlu0 %v5504, 64
    %v5508 = vpop.permute.xlu0 %5507
    %v5510 = vmul.f32 %v5488, %v5508
    %5512 = vrot.lane.b32.xlu0 %v5510, 64
    %v5513 = vpop.permute.xlu0 %5512
    %v5515 = vadd.f32 %v5505, %v5513
    %v5516 = vtanh.pop %v5515
    %5518 = vrot.lane.b32.xlu0 %v5516, 64
    %v5519 = vpop.permute.xlu0 %5518
    %v5521 = vmul.f32 %v5503, %v5519
    %v5523 = vsel %vm222, %v5418, 0
    %5525 = vmatpush.msra.mxu0 0.0
    %5526 = vmatpush.msra.mxu0 0.0
    %5527 = vmatpush.msra.mxu0 0.0
    %5528 = vmatpush.msra.mxu0 0.0
    %5529 = vmatpush.msra.mxu0 0.0
    %5530 = vmatpush.msra.mxu0 0.0
    %5531 = vmatpush.msra.mxu0 0.0
    %5532 = vmatpush.msra.mxu0 0.0
    %5533 = vmatpush.msra.mxu0 %v3884
    %5534 = vmatpush.msra.mxu0 %v3882
    %5535 = vmatpush.msra.mxu0 %v3880
    %5536 = vmatpush.msra.mxu0 %v3878
    %5537 = vmatpush.msra.mxu0 %v3876
    %5538 = vmatpush.msra.mxu0 %v3874
    %5539 = vmatpush.msra.mxu0 %v3872
    %5540 = vmatpush.msra.mxu0 %v3870
    %5541 = vmatmul.f32.gmra.mxu0 %v5523
    %v5542 = vpop.f32.mrf.mxu0
    %v5543 = vadd.f32 %v3959, %v5542
    %5544 = vdwg.mxu0
    %5545 = vmatpush.msra.mxu0 0.0
    %5546 = vmatpush.msra.mxu0 0.0
    %5547 = vmatpush.msra.mxu0 0.0
    %5548 = vmatpush.msra.mxu0 0.0
    %5549 = vmatpush.msra.mxu0 0.0
    %5550 = vmatpush.msra.mxu0 0.0
    %5551 = vmatpush.msra.mxu0 0.0
    %5552 = vmatpush.msra.mxu0 0.0
    %5553 = vmatpush.msra.mxu0 %v3885
    %5554 = vmatpush.msra.mxu0 %v3883
    %5555 = vmatpush.msra.mxu0 %v3881
    %5556 = vmatpush.msra.mxu0 %v3879
    %5557 = vmatpush.msra.mxu0 %v3877
    %5558 = vmatpush.msra.mxu0 %v3875
    %5559 = vmatpush.msra.mxu0 %v3873
    %5560 = vmatpush.msra.mxu0 %v3871
    %5561 = vmatmul.f32.gmra.mxu0 %v5523
    %v5562 = vpop.f32.mrf.mxu0
    %v5563 = vadd.f32 %v3982, %v5562
    %5564 = vdwg.mxu0
    %v5565 = vxor.u32 %v5543, 2147483648
    %v5566 = vxor.u32 %v5563, 2147483648
    %v5567 = vmul.f32 %v5565, 1.442695
    %v5568 = vpow.pop %v5567
    %v5569 = vmul.f32 %v5566, 1.442695
    %v5570 = vpow.pop %v5569
    %v5571 = vadd.f32 %v5568, 1.0
    %v5572 = vadd.f32 %v5570, 1.0
    %v5573 = vrcp.pop %v5571
    %v5574 = vmul.f32 %v5571, %v5573
    %v5575 = vsub.f32 1.0, %v5574
    %v5576 = vmul.f32 %v5573, %v5575
    %v5577 = vadd.f32 %v5573, %v5576
    %vm5578 = vweird.f32 %v5571
    %vm5579 = vweird.f32 %v5573
    %vm5580 = vmor %vm5578, %vm5579
    %v5581 = vsel %vm5580, %v5573, %v5577
    %v5582 = vand.u32 2147483647, %v5571
    %vm5583 = vcmp.eq.f32.partialorder %v5582, 8.507059e+37
    %v5584 = vand.u32 %v5571, 2147483648
    %v5585 = vor.u32 1.1754944e-38, %v5584
    %v5586 = vsel %vm5583, %v5585, %v5581
    %v5587 = vmul.f32 1.0, %v5586
    %v5588 = vrcp.pop %v5572
    %v5589 = vmul.f32 %v5572, %v5588
    %v5590 = vsub.f32 1.0, %v5589
    %v5591 = vmul.f32 %v5588, %v5590
    %v5592 = vadd.f32 %v5588, %v5591
    %vm5593 = vweird.f32 %v5572
    %vm5594 = vweird.f32 %v5588
    %vm5595 = vmor %vm5593, %vm5594
    %v5596 = vsel %vm5595, %v5588, %v5592
    %v5597 = vand.u32 2147483647, %v5572
    %vm5598 = vcmp.eq.f32.partialorder %v5597, 8.507059e+37
    %v5599 = vand.u32 %v5572, 2147483648
    %v5600 = vor.u32 1.1754944e-38, %v5599
    %v5601 = vsel %vm5598, %v5600, %v5596
    %v5602 = vmul.f32 1.0, %v5601
    %v5603 = vtanh.pop %v5563
    %v5604 = vmul.f32 %v5587, %v5412
    %5606 = vrot.lane.b32.xlu0 %v5603, 64
    %v5607 = vpop.permute.xlu0 %5606
    %v5609 = vmul.f32 %v5587, %v5607
    %5611 = vrot.lane.b32.xlu0 %v5609, 64
    %v5612 = vpop.permute.xlu0 %5611
    %v5614 = vadd.f32 %v5604, %v5612
    %v5615 = vtanh.pop %v5614
    %5617 = vrot.lane.b32.xlu0 %v5615, 64
    %v5618 = vpop.permute.xlu0 %5617
    %v5620 = vmul.f32 %v5602, %v5618
    %v5621 = vrot.slane %v4289, 6
    %v5623 = vrot.slane %v4495, 4
    %v5625 = vrot.slane %v4701, 2
    %v5627 = vrot.slane %v5109, 6
    %v5629 = vrot.slane %v5315, 4
    %v5632 = vrot.slane %v5521, 2
    %v5634 = vsel %vm1873, %v4082, %v5621
    %v5635 = vsel %vm1875, %v5634, %v5623
    %v5636 = vsel %vm1877, %v5635, %v5625
    %v5637 = vsel %vm1873, %v4899, %v5627
    %v5638 = vsel %vm1875, %v5637, %v5629
    %v5639 = vsel %vm1877, %v5638, %v5632
    %v5640 = vrot.slane %v5418, 6
    %v5642 = vrot.slane %v5212, 4
    %v5644 = vrot.slane %v5004, 2
    %v5646 = vrot.slane %v4598, 6
    %v5648 = vrot.slane %v4392, 4
    %v5650 = vrot.slane %v4184, 2
    %v5652 = vsel %vm1873, %v5620, %v5640
    %v5653 = vsel %vm1875, %v5652, %v5642
    %v5654 = vsel %vm1877, %v5653, %v5644
    %v5655 = vsel %vm1873, %v4800, %v5646
    %v5656 = vsel %vm1875, %v5655, %v5648
    %v5657 = vsel %vm1877, %v5656, %v5650
    %5660 = vrot.lane.b32.xlu0 %v5654, 64
    %v5661 = vpop.permute.xlu0 %5660
    %5662 = vrot.lane.b32.xlu0 %v5657, 64
    %v5663 = vpop.permute.xlu0 %5662
    %v5666 = vsel %vm222, %v5636, %v5661
    %v5667 = vsel %vm222, %v5639, %v5663
    %v5668 = vld [vmem:[%s13] sm:$0xff]
    %v5669 = vld [vmem:[%s13 + $0x8] sm:$0xff]
    %v5670 = vld [vmem:[%s13 + $0x10] sm:$0xff]
    %v5671 = vld [vmem:[%s13 + $0x18] sm:$0xff]
    %v5672 = vld [vmem:[%s13 + $0x20] sm:$0xff]
    %v5673 = vld [vmem:[%s13 + $0x28] sm:$0xff]
    %v5674 = vld [vmem:[%s13 + $0x30] sm:$0xff]
    %v5675 = vld [vmem:[%s13 + $0x38] sm:$0xff]
    %v5676 = vld [vmem:[%s13 + $0x40] sm:$0xff]
    %v5677 = vld [vmem:[%s13 + $0x48] sm:$0xff]
    %v5678 = vld [vmem:[%s13 + $0x50] sm:$0xff]
    %v5679 = vld [vmem:[%s13 + $0x58] sm:$0xff]
    %v5680 = vld [vmem:[%s13 + $0x60] sm:$0xff]
    %v5681 = vld [vmem:[%s13 + $0x68] sm:$0xff]
    %v5682 = vld [vmem:[%s13 + $0x70] sm:$0xff]
    %v5683 = vld [vmem:[%s13 + $0x78] sm:$0xff]
    %v5684 = vld [vmem:[%s13 + $0x80] sm:$0xff]
    %v5685 = vld [vmem:[%s13 + $0x88] sm:$0xff]
    %v5686 = vld [vmem:[%s13 + $0x90] sm:$0xff]
    %v5687 = vld [vmem:[%s13 + $0x98] sm:$0xff]
    %v5688 = vld [vmem:[%s13 + $0xa0] sm:$0xff]
    %v5689 = vld [vmem:[%s13 + $0xa8] sm:$0xff]
    %v5690 = vld [vmem:[%s13 + $0xb0] sm:$0xff]
    %v5691 = vld [vmem:[%s13 + $0xb8] sm:$0xff]
    %v5692 = vld [vmem:[%s13 + $0xc0] sm:$0xff]
    %v5693 = vld [vmem:[%s13 + $0xc8] sm:$0xff]
    %v5694 = vld [vmem:[%s13 + $0xd0] sm:$0xff]
    %v5695 = vld [vmem:[%s13 + $0xd8] sm:$0xff]
    %v5696 = vld [vmem:[%s13 + $0xe0] sm:$0xff]
    %v5697 = vld [vmem:[%s13 + $0xe8] sm:$0xff]
    %v5698 = vld [vmem:[%s13 + $0xf0] sm:$0xff]
    %v5699 = vld [vmem:[%s13 + $0xf8] sm:$0xff]
    %v5700 = vld [vmem:[%s13 + $0x100] sm:$0xff]
    %v5701 = vld [vmem:[%s13 + $0x108] sm:$0xff]
    %v5702 = vld [vmem:[%s13 + $0x110] sm:$0xff]
    %v5703 = vld [vmem:[%s13 + $0x118] sm:$0xff]
    %v5704 = vld [vmem:[%s13 + $0x120] sm:$0xff]
    %v5705 = vld [vmem:[%s13 + $0x128] sm:$0xff]
    %v5706 = vld [vmem:[%s13 + $0x130] sm:$0xff]
    %v5707 = vld [vmem:[%s13 + $0x138] sm:$0xff]
    %v5708 = vld [vmem:[%s13 + $0x140] sm:$0xff]
    %v5709 = vld [vmem:[%s13 + $0x148] sm:$0xff]
    %v5710 = vld [vmem:[%s13 + $0x150] sm:$0xff]
    %v5711 = vld [vmem:[%s13 + $0x158] sm:$0xff]
    %v5712 = vld [vmem:[%s13 + $0x160] sm:$0xff]
    %v5713 = vld [vmem:[%s13 + $0x168] sm:$0xff]
    %v5714 = vld [vmem:[%s13 + $0x170] sm:$0xff]
    %v5715 = vld [vmem:[%s13 + $0x178] sm:$0xff]
    %v5716 = vld [vmem:[%s13 + $0x180] sm:$0xff]
    %v5717 = vld [vmem:[%s13 + $0x188] sm:$0xff]
    %v5718 = vld [vmem:[%s13 + $0x190] sm:$0xff]
    %v5719 = vld [vmem:[%s13 + $0x198] sm:$0xff]
    %v5720 = vld [vmem:[%s13 + $0x1a0] sm:$0xff]
    %v5721 = vld [vmem:[%s13 + $0x1a8] sm:$0xff]
    %v5722 = vld [vmem:[%s13 + $0x1b0] sm:$0xff]
    %v5723 = vld [vmem:[%s13 + $0x1b8] sm:$0xff]
    %v5724 = vld [vmem:[%s13 + $0x1c0] sm:$0xff]
    %v5725 = vld [vmem:[%s13 + $0x1c8] sm:$0xff]
    %v5726 = vld [vmem:[%s13 + $0x1d0] sm:$0xff]
    %v5727 = vld [vmem:[%s13 + $0x1d8] sm:$0xff]
    %v5728 = vld [vmem:[%s13 + $0x1e0] sm:$0xff]
    %v5729 = vld [vmem:[%s13 + $0x1e8] sm:$0xff]
    %v5730 = vld [vmem:[%s13 + $0x1f0] sm:$0xff]
    %v5731 = vld [vmem:[%s13 + $0x1f8] sm:$0xff]
    %v5732 = vld [vmem:[%s14] sm:$0xf]
    %v5733 = vld [vmem:[%s15] sm:$0xff]
    %v5734 = vld [vmem:[%s15 + $0x8] sm:$0xff]
    %v5735 = vld [vmem:[%s15 + $0x10] sm:$0xff]
    %v5736 = vld [vmem:[%s15 + $0x18] sm:$0xff]
    %v5737 = vld [vmem:[%s15 + $0x20] sm:$0xff]
    %v5738 = vld [vmem:[%s15 + $0x28] sm:$0xff]
    %v5739 = vld [vmem:[%s15 + $0x30] sm:$0xff]
    %v5740 = vld [vmem:[%s15 + $0x38] sm:$0xff]
    %v5741 = vld [vmem:[%s15 + $0x40] sm:$0xff]
    %v5742 = vld [vmem:[%s15 + $0x48] sm:$0xff]
    %v5743 = vld [vmem:[%s15 + $0x50] sm:$0xff]
    %v5744 = vld [vmem:[%s15 + $0x58] sm:$0xff]
    %v5745 = vld [vmem:[%s15 + $0x60] sm:$0xff]
    %v5746 = vld [vmem:[%s15 + $0x68] sm:$0xff]
    %v5747 = vld [vmem:[%s15 + $0x70] sm:$0xff]
    %v5748 = vld [vmem:[%s15 + $0x78] sm:$0xff]
    %v5749 = vld [vmem:[%s16] sm:$0xff]
    %v5750 = vld [vmem:[%s16 + $0x8] sm:$0xff]
    %v5751 = vld [vmem:[%s16 + $0x10] sm:$0xff]
    %v5752 = vld [vmem:[%s16 + $0x18] sm:$0xff]
    %v5753 = vld [vmem:[%s16 + $0x20] sm:$0xff]
    %v5754 = vld [vmem:[%s16 + $0x28] sm:$0xff]
    %v5755 = vld [vmem:[%s16 + $0x30] sm:$0xff]
    %v5756 = vld [vmem:[%s16 + $0x38] sm:$0xff]
    %v5757 = vld [vmem:[%s16 + $0x40] sm:$0xff]
    %v5758 = vld [vmem:[%s16 + $0x48] sm:$0xff]
    %v5759 = vld [vmem:[%s16 + $0x50] sm:$0xff]
    %v5760 = vld [vmem:[%s16 + $0x58] sm:$0xff]
    %v5761 = vld [vmem:[%s16 + $0x60] sm:$0xff]
    %v5762 = vld [vmem:[%s16 + $0x68] sm:$0xff]
    %v5763 = vld [vmem:[%s16 + $0x70] sm:$0xff]
    %v5764 = vld [vmem:[%s16 + $0x78] sm:$0xff]
    %v5766 = vperm.slane %v5732, 0
    %v5767 = vperm.slane %v5732, 1
    %v5768 = vperm.slane %v5732, 2
    %v5769 = vperm.slane %v5732, 3
    %5774 = vmatpush.msra.mxu0 %v5728
    %5775 = vmatpush.msra.mxu0 %v5724
    %5776 = vmatpush.msra.mxu0 %v5720
    %5777 = vmatpush.msra.mxu0 %v5716
    %5778 = vmatpush.msra.mxu0 %v5712
    %5779 = vmatpush.msra.mxu0 %v5708
    %5780 = vmatpush.msra.mxu0 %v5704
    %5781 = vmatpush.msra.mxu0 %v5700
    %5782 = vmatpush.msra.mxu0 %v5696
    %5783 = vmatpush.msra.mxu0 %v5692
    %5784 = vmatpush.msra.mxu0 %v5688
    %5785 = vmatpush.msra.mxu0 %v5684
    %5786 = vmatpush.msra.mxu0 %v5680
    %5787 = vmatpush.msra.mxu0 %v5676
    %5788 = vmatpush.msra.mxu0 %v5672
    %5789 = vmatpush.msra.mxu0 %v5668
    %5790 = vmatmul.f32.gmra.mxu0 %v5666
    %v5791 = vpop.f32.mrf.mxu0
    %v5792 = vadd.f32 %v5766, %v5791
    %5793 = vmatmul.f32.gmra.mxu0 %v5667
    %v5794 = vpop.f32.mrf.mxu0
    %v5795 = vadd.f32 %v5766, %v5794
    %5796 = vdwg.mxu0
    %5797 = vmatpush.msra.mxu0 %v5729
    %5798 = vmatpush.msra.mxu0 %v5725
    %5799 = vmatpush.msra.mxu0 %v5721
    %5800 = vmatpush.msra.mxu0 %v5717
    %5801 = vmatpush.msra.mxu0 %v5713
    %5802 = vmatpush.msra.mxu0 %v5709
    %5803 = vmatpush.msra.mxu0 %v5705
    %5804 = vmatpush.msra.mxu0 %v5701
    %5805 = vmatpush.msra.mxu0 %v5697
    %5806 = vmatpush.msra.mxu0 %v5693
    %5807 = vmatpush.msra.mxu0 %v5689
    %5808 = vmatpush.msra.mxu0 %v5685
    %5809 = vmatpush.msra.mxu0 %v5681
    %5810 = vmatpush.msra.mxu0 %v5677
    %5811 = vmatpush.msra.mxu0 %v5673
    %5812 = vmatpush.msra.mxu0 %v5669
    %5813 = vmatmul.f32.gmra.mxu0 %v5666
    %v5814 = vpop.f32.mrf.mxu0
    %v5815 = vadd.f32 %v5767, %v5814
    %5816 = vmatmul.f32.gmra.mxu0 %v5667
    %v5817 = vpop.f32.mrf.mxu0
    %v5818 = vadd.f32 %v5767, %v5817
    %5819 = vdwg.mxu0
    %5820 = vmatpush.msra.mxu0 %v5730
    %5821 = vmatpush.msra.mxu0 %v5726
    %5822 = vmatpush.msra.mxu0 %v5722
    %5823 = vmatpush.msra.mxu0 %v5718
    %5824 = vmatpush.msra.mxu0 %v5714
    %5825 = vmatpush.msra.mxu0 %v5710
    %5826 = vmatpush.msra.mxu0 %v5706
    %5827 = vmatpush.msra.mxu0 %v5702
    %5828 = vmatpush.msra.mxu0 %v5698
    %5829 = vmatpush.msra.mxu0 %v5694
    %5830 = vmatpush.msra.mxu0 %v5690
    %5831 = vmatpush.msra.mxu0 %v5686
    %5832 = vmatpush.msra.mxu0 %v5682
    %5833 = vmatpush.msra.mxu0 %v5678
    %5834 = vmatpush.msra.mxu0 %v5674
    %5835 = vmatpush.msra.mxu0 %v5670
    %5836 = vmatmul.f32.gmra.mxu0 %v5666
    %v5837 = vpop.f32.mrf.mxu0
    %v5838 = vadd.f32 %v5768, %v5837
    %5839 = vmatmul.f32.gmra.mxu0 %v5667
    %v5840 = vpop.f32.mrf.mxu0
    %v5841 = vadd.f32 %v5768, %v5840
    %5842 = vdwg.mxu0
    %5843 = vmatpush.msra.mxu0 %v5731
    %5844 = vmatpush.msra.mxu0 %v5727
    %5845 = vmatpush.msra.mxu0 %v5723
    %5846 = vmatpush.msra.mxu0 %v5719
    %5847 = vmatpush.msra.mxu0 %v5715
    %5848 = vmatpush.msra.mxu0 %v5711
    %5849 = vmatpush.msra.mxu0 %v5707
    %5850 = vmatpush.msra.mxu0 %v5703
    %5851 = vmatpush.msra.mxu0 %v5699
    %5852 = vmatpush.msra.mxu0 %v5695
    %5853 = vmatpush.msra.mxu0 %v5691
    %5854 = vmatpush.msra.mxu0 %v5687
    %5855 = vmatpush.msra.mxu0 %v5683
    %5856 = vmatpush.msra.mxu0 %v5679
    %5857 = vmatpush.msra.mxu0 %v5675
    %5858 = vmatpush.msra.mxu0 %v5671
    %5859 = vmatmul.f32.gmra.mxu0 %v5666
    %v5860 = vpop.f32.mrf.mxu0
    %v5861 = vadd.f32 %v5769, %v5860
    %5862 = vmatmul.f32.gmra.mxu0 %v5667
    %v5863 = vpop.f32.mrf.mxu0
    %v5864 = vadd.f32 %v5769, %v5863
    %5865 = vdwg.mxu0
    %5866 = vmatpush.msra.mxu0 0.0
    %5867 = vmatpush.msra.mxu0 0.0
    %5868 = vmatpush.msra.mxu0 0.0
    %5869 = vmatpush.msra.mxu0 0.0
    %5870 = vmatpush.msra.mxu0 0.0
    %5871 = vmatpush.msra.mxu0 0.0
    %5872 = vmatpush.msra.mxu0 0.0
    %5873 = vmatpush.msra.mxu0 0.0
    %5874 = vmatpush.msra.mxu0 %v5747
    %5875 = vmatpush.msra.mxu0 %v5745
    %5876 = vmatpush.msra.mxu0 %v5743
    %5877 = vmatpush.msra.mxu0 %v5741
    %5878 = vmatpush.msra.mxu0 %v5739
    %5879 = vmatpush.msra.mxu0 %v5737
    %5880 = vmatpush.msra.mxu0 %v5735
    %5881 = vmatpush.msra.mxu0 %v5733
    %5882 = vmatmul.f32.gmra.mxu0 %v224
    %v5883 = vpop.f32.mrf.mxu0
    %v5884 = vadd.f32 %v5792, %v5883
    %5885 = vdwg.mxu0
    %5886 = vmatpush.msra.mxu0 0.0
    %5887 = vmatpush.msra.mxu0 0.0
    %5888 = vmatpush.msra.mxu0 0.0
    %5889 = vmatpush.msra.mxu0 0.0
    %5890 = vmatpush.msra.mxu0 0.0
    %5891 = vmatpush.msra.mxu0 0.0
    %5892 = vmatpush.msra.mxu0 0.0
    %5893 = vmatpush.msra.mxu0 0.0
    %5894 = vmatpush.msra.mxu0 %v5748
    %5895 = vmatpush.msra.mxu0 %v5746
    %5896 = vmatpush.msra.mxu0 %v5744
    %5897 = vmatpush.msra.mxu0 %v5742
    %5898 = vmatpush.msra.mxu0 %v5740
    %5899 = vmatpush.msra.mxu0 %v5738
    %5900 = vmatpush.msra.mxu0 %v5736
    %5901 = vmatpush.msra.mxu0 %v5734
    %5902 = vmatmul.f32.gmra.mxu0 %v224
    %v5903 = vpop.f32.mrf.mxu0
    %v5904 = vadd.f32 %v5815, %v5903
    %5905 = vdwg.mxu0
    %v5906 = vxor.u32 %v5884, 2147483648
    %v5907 = vxor.u32 %v5904, 2147483648
    %v5908 = vmul.f32 %v5906, 1.442695
    %v5909 = vpow.pop %v5908
    %v5910 = vmul.f32 %v5907, 1.442695
    %v5911 = vpow.pop %v5910
    %v5912 = vadd.f32 %v5909, 1.0
    %v5913 = vadd.f32 %v5911, 1.0
    %v5914 = vrcp.pop %v5912
    %v5915 = vmul.f32 %v5912, %v5914
    %v5916 = vsub.f32 1.0, %v5915
    %v5917 = vmul.f32 %v5914, %v5916
    %v5918 = vadd.f32 %v5914, %v5917
    %vm5919 = vweird.f32 %v5912
    %vm5920 = vweird.f32 %v5914
    %vm5921 = vmor %vm5919, %vm5920
    %v5922 = vsel %vm5921, %v5914, %v5918
    %v5923 = vand.u32 2147483647, %v5912
    %vm5924 = vcmp.eq.f32.partialorder %v5923, 8.507059e+37
    %v5925 = vand.u32 %v5912, 2147483648
    %v5926 = vor.u32 1.1754944e-38, %v5925
    %v5927 = vsel %vm5924, %v5926, %v5922
    %v5928 = vmul.f32 1.0, %v5927
    %v5929 = vrcp.pop %v5913
    %v5930 = vmul.f32 %v5913, %v5929
    %v5931 = vsub.f32 1.0, %v5930
    %v5932 = vmul.f32 %v5929, %v5931
    %v5933 = vadd.f32 %v5929, %v5932
    %vm5934 = vweird.f32 %v5913
    %vm5935 = vweird.f32 %v5929
    %vm5936 = vmor %vm5934, %vm5935
    %v5937 = vsel %vm5936, %v5929, %v5933
    %v5938 = vand.u32 2147483647, %v5913
    %vm5939 = vcmp.eq.f32.partialorder %v5938, 8.507059e+37
    %v5940 = vand.u32 %v5913, 2147483648
    %v5941 = vor.u32 1.1754944e-38, %v5940
    %v5942 = vsel %vm5939, %v5941, %v5937
    %v5943 = vmul.f32 1.0, %v5942
    %v5944 = vtanh.pop %v5904
    %v5945 = vmul.f32 %v5928, 0.0
    %5947 = vrot.lane.b32.xlu0 %v5944, 64
    %v5948 = vpop.permute.xlu0 %5947
    %v5950 = vmul.f32 %v5928, %v5948
    %5952 = vrot.lane.b32.xlu0 %v5950, 64
    %v5953 = vpop.permute.xlu0 %5952
    %v5955 = vadd.f32 %v5945, %v5953
    %v5956 = vtanh.pop %v5955
    %5958 = vrot.lane.b32.xlu0 %v5956, 64
    %v5959 = vpop.permute.xlu0 %5958
    %v5961 = vmul.f32 %v5943, %v5959
    %v5964 = vrot.slane %v5841, 6
    %v5965 = vrot.slane %v5864, 6
    %5968 = vmatpush.msra.mxu0 0.0
    %5969 = vmatpush.msra.mxu0 0.0
    %5970 = vmatpush.msra.mxu0 0.0
    %5971 = vmatpush.msra.mxu0 0.0
    %5972 = vmatpush.msra.mxu0 0.0
    %5973 = vmatpush.msra.mxu0 0.0
    %5974 = vmatpush.msra.mxu0 0.0
    %5975 = vmatpush.msra.mxu0 0.0
    %5976 = vmatpush.msra.mxu0 %v5763
    %5977 = vmatpush.msra.mxu0 %v5761
    %5978 = vmatpush.msra.mxu0 %v5759
    %5979 = vmatpush.msra.mxu0 %v5757
    %5980 = vmatpush.msra.mxu0 %v5755
    %5981 = vmatpush.msra.mxu0 %v5753
    %5982 = vmatpush.msra.mxu0 %v5751
    %5983 = vmatpush.msra.mxu0 %v5749
    %5984 = vmatmul.f32.gmra.mxu0 %v224
    %v5985 = vpop.f32.mrf.mxu0
    %v5986 = vadd.f32 %v5964, %v5985
    %5987 = vdwg.mxu0
    %5988 = vmatpush.msra.mxu0 0.0
    %5989 = vmatpush.msra.mxu0 0.0
    %5990 = vmatpush.msra.mxu0 0.0
    %5991 = vmatpush.msra.mxu0 0.0
    %5992 = vmatpush.msra.mxu0 0.0
    %5993 = vmatpush.msra.mxu0 0.0
    %5994 = vmatpush.msra.mxu0 0.0
    %5995 = vmatpush.msra.mxu0 0.0
    %5996 = vmatpush.msra.mxu0 %v5764
    %5997 = vmatpush.msra.mxu0 %v5762
    %5998 = vmatpush.msra.mxu0 %v5760
    %5999 = vmatpush.msra.mxu0 %v5758
    %6000 = vmatpush.msra.mxu0 %v5756
    %6001 = vmatpush.msra.mxu0 %v5754
    %6002 = vmatpush.msra.mxu0 %v5752
    %6003 = vmatpush.msra.mxu0 %v5750
    %6004 = vmatmul.f32.gmra.mxu0 %v224
    %v6005 = vpop.f32.mrf.mxu0
    %v6006 = vadd.f32 %v5965, %v6005
    %6007 = vdwg.mxu0
    %v6008 = vxor.u32 %v5986, 2147483648
    %v6009 = vxor.u32 %v6006, 2147483648
    %v6010 = vmul.f32 %v6008, 1.442695
    %v6011 = vpow.pop %v6010
    %v6012 = vmul.f32 %v6009, 1.442695
    %v6013 = vpow.pop %v6012
    %v6014 = vadd.f32 %v6011, 1.0
    %v6015 = vadd.f32 %v6013, 1.0
    %v6016 = vrcp.pop %v6014
    %v6017 = vmul.f32 %v6014, %v6016
    %v6018 = vsub.f32 1.0, %v6017
    %v6019 = vmul.f32 %v6016, %v6018
    %v6020 = vadd.f32 %v6016, %v6019
    %vm6021 = vweird.f32 %v6014
    %vm6022 = vweird.f32 %v6016
    %vm6023 = vmor %vm6021, %vm6022
    %v6024 = vsel %vm6023, %v6016, %v6020
    %v6025 = vand.u32 2147483647, %v6014
    %vm6026 = vcmp.eq.f32.partialorder %v6025, 8.507059e+37
    %v6027 = vand.u32 %v6014, 2147483648
    %v6028 = vor.u32 1.1754944e-38, %v6027
    %v6029 = vsel %vm6026, %v6028, %v6024
    %v6030 = vmul.f32 1.0, %v6029
    %v6031 = vrcp.pop %v6015
    %v6032 = vmul.f32 %v6015, %v6031
    %v6033 = vsub.f32 1.0, %v6032
    %v6034 = vmul.f32 %v6031, %v6033
    %v6035 = vadd.f32 %v6031, %v6034
    %vm6036 = vweird.f32 %v6015
    %vm6037 = vweird.f32 %v6031
    %vm6038 = vmor %vm6036, %vm6037
    %v6039 = vsel %vm6038, %v6031, %v6035
    %v6040 = vand.u32 2147483647, %v6015
    %vm6041 = vcmp.eq.f32.partialorder %v6040, 8.507059e+37
    %v6042 = vand.u32 %v6015, 2147483648
    %v6043 = vor.u32 1.1754944e-38, %v6042
    %v6044 = vsel %vm6041, %v6043, %v6039
    %v6045 = vmul.f32 1.0, %v6044
    %v6046 = vtanh.pop %v6006
    %v6047 = vmul.f32 %v6030, 0.0
    %6049 = vrot.lane.b32.xlu0 %v6046, 64
    %v6050 = vpop.permute.xlu0 %6049
    %v6052 = vmul.f32 %v6030, %v6050
    %6054 = vrot.lane.b32.xlu0 %v6052, 64
    %v6055 = vpop.permute.xlu0 %6054
    %v6057 = vadd.f32 %v6047, %v6055
    %v6058 = vtanh.pop %v6057
    %6060 = vrot.lane.b32.xlu0 %v6058, 64
    %v6061 = vpop.permute.xlu0 %6060
    %v6063 = vmul.f32 %v6045, %v6061
    %v6066 = vrot.slane %v5792, 2
    %v6067 = vrot.slane %v5815, 2
    %v6071 = vsel %vm222, %v5961, 0
    %6073 = vmatpush.msra.mxu0 0.0
    %6074 = vmatpush.msra.mxu0 0.0
    %6075 = vmatpush.msra.mxu0 0.0
    %6076 = vmatpush.msra.mxu0 0.0
    %6077 = vmatpush.msra.mxu0 0.0
    %6078 = vmatpush.msra.mxu0 0.0
    %6079 = vmatpush.msra.mxu0 0.0
    %6080 = vmatpush.msra.mxu0 0.0
    %6081 = vmatpush.msra.mxu0 %v5747
    %6082 = vmatpush.msra.mxu0 %v5745
    %6083 = vmatpush.msra.mxu0 %v5743
    %6084 = vmatpush.msra.mxu0 %v5741
    %6085 = vmatpush.msra.mxu0 %v5739
    %6086 = vmatpush.msra.mxu0 %v5737
    %6087 = vmatpush.msra.mxu0 %v5735
    %6088 = vmatpush.msra.mxu0 %v5733
    %6089 = vmatmul.f32.gmra.mxu0 %v6071
    %v6090 = vpop.f32.mrf.mxu0
    %v6091 = vadd.f32 %v6066, %v6090
    %6092 = vdwg.mxu0
    %6093 = vmatpush.msra.mxu0 0.0
    %6094 = vmatpush.msra.mxu0 0.0
    %6095 = vmatpush.msra.mxu0 0.0
    %6096 = vmatpush.msra.mxu0 0.0
    %6097 = vmatpush.msra.mxu0 0.0
    %6098 = vmatpush.msra.mxu0 0.0
    %6099 = vmatpush.msra.mxu0 0.0
    %6100 = vmatpush.msra.mxu0 0.0
    %6101 = vmatpush.msra.mxu0 %v5748
    %6102 = vmatpush.msra.mxu0 %v5746
    %6103 = vmatpush.msra.mxu0 %v5744
    %6104 = vmatpush.msra.mxu0 %v5742
    %6105 = vmatpush.msra.mxu0 %v5740
    %6106 = vmatpush.msra.mxu0 %v5738
    %6107 = vmatpush.msra.mxu0 %v5736
    %6108 = vmatpush.msra.mxu0 %v5734
    %6109 = vmatmul.f32.gmra.mxu0 %v6071
    %v6110 = vpop.f32.mrf.mxu0
    %v6111 = vadd.f32 %v6067, %v6110
    %6112 = vdwg.mxu0
    %v6113 = vxor.u32 %v6091, 2147483648
    %v6114 = vxor.u32 %v6111, 2147483648
    %v6115 = vmul.f32 %v6113, 1.442695
    %v6116 = vpow.pop %v6115
    %v6117 = vmul.f32 %v6114, 1.442695
    %v6118 = vpow.pop %v6117
    %v6119 = vadd.f32 %v6116, 1.0
    %v6120 = vadd.f32 %v6118, 1.0
    %v6121 = vrcp.pop %v6119
    %v6122 = vmul.f32 %v6119, %v6121
    %v6123 = vsub.f32 1.0, %v6122
    %v6124 = vmul.f32 %v6121, %v6123
    %v6125 = vadd.f32 %v6121, %v6124
    %vm6126 = vweird.f32 %v6119
    %vm6127 = vweird.f32 %v6121
    %vm6128 = vmor %vm6126, %vm6127
    %v6129 = vsel %vm6128, %v6121, %v6125
    %v6130 = vand.u32 2147483647, %v6119
    %vm6131 = vcmp.eq.f32.partialorder %v6130, 8.507059e+37
    %v6132 = vand.u32 %v6119, 2147483648
    %v6133 = vor.u32 1.1754944e-38, %v6132
    %v6134 = vsel %vm6131, %v6133, %v6129
    %v6135 = vmul.f32 1.0, %v6134
    %v6136 = vrcp.pop %v6120
    %v6137 = vmul.f32 %v6120, %v6136
    %v6138 = vsub.f32 1.0, %v6137
    %v6139 = vmul.f32 %v6136, %v6138
    %v6140 = vadd.f32 %v6136, %v6139
    %vm6141 = vweird.f32 %v6120
    %vm6142 = vweird.f32 %v6136
    %vm6143 = vmor %vm6141, %vm6142
    %v6144 = vsel %vm6143, %v6136, %v6140
    %v6145 = vand.u32 2147483647, %v6120
    %vm6146 = vcmp.eq.f32.partialorder %v6145, 8.507059e+37
    %v6147 = vand.u32 %v6120, 2147483648
    %v6148 = vor.u32 1.1754944e-38, %v6147
    %v6149 = vsel %vm6146, %v6148, %v6144
    %v6150 = vmul.f32 1.0, %v6149
    %v6151 = vtanh.pop %v6111
    %v6152 = vmul.f32 %v6135, %v5955
    %6154 = vrot.lane.b32.xlu0 %v6151, 64
    %v6155 = vpop.permute.xlu0 %6154
    %v6157 = vmul.f32 %v6135, %v6155
    %6159 = vrot.lane.b32.xlu0 %v6157, 64
    %v6160 = vpop.permute.xlu0 %6159
    %v6162 = vadd.f32 %v6152, %v6160
    %v6163 = vtanh.pop %v6162
    %6165 = vrot.lane.b32.xlu0 %v6163, 64
    %v6166 = vpop.permute.xlu0 %6165
    %v6168 = vmul.f32 %v6150, %v6166
    %v6169 = vrot.slane %v5841, 4
    %v6170 = vrot.slane %v5864, 4
    %v6174 = vsel %vm222, %v6063, 0
    %6176 = vmatpush.msra.mxu0 0.0
    %6177 = vmatpush.msra.mxu0 0.0
    %6178 = vmatpush.msra.mxu0 0.0
    %6179 = vmatpush.msra.mxu0 0.0
    %6180 = vmatpush.msra.mxu0 0.0
    %6181 = vmatpush.msra.mxu0 0.0
    %6182 = vmatpush.msra.mxu0 0.0
    %6183 = vmatpush.msra.mxu0 0.0
    %6184 = vmatpush.msra.mxu0 %v5763
    %6185 = vmatpush.msra.mxu0 %v5761
    %6186 = vmatpush.msra.mxu0 %v5759
    %6187 = vmatpush.msra.mxu0 %v5757
    %6188 = vmatpush.msra.mxu0 %v5755
    %6189 = vmatpush.msra.mxu0 %v5753
    %6190 = vmatpush.msra.mxu0 %v5751
    %6191 = vmatpush.msra.mxu0 %v5749
    %6192 = vmatmul.f32.gmra.mxu0 %v6174
    %v6193 = vpop.f32.mrf.mxu0
    %v6194 = vadd.f32 %v6169, %v6193
    %6195 = vdwg.mxu0
    %6196 = vmatpush.msra.mxu0 0.0
    %6197 = vmatpush.msra.mxu0 0.0
    %6198 = vmatpush.msra.mxu0 0.0
    %6199 = vmatpush.msra.mxu0 0.0
    %6200 = vmatpush.msra.mxu0 0.0
    %6201 = vmatpush.msra.mxu0 0.0
    %6202 = vmatpush.msra.mxu0 0.0
    %6203 = vmatpush.msra.mxu0 0.0
    %6204 = vmatpush.msra.mxu0 %v5764
    %6205 = vmatpush.msra.mxu0 %v5762
    %6206 = vmatpush.msra.mxu0 %v5760
    %6207 = vmatpush.msra.mxu0 %v5758
    %6208 = vmatpush.msra.mxu0 %v5756
    %6209 = vmatpush.msra.mxu0 %v5754
    %6210 = vmatpush.msra.mxu0 %v5752
    %6211 = vmatpush.msra.mxu0 %v5750
    %6212 = vmatmul.f32.gmra.mxu0 %v6174
    %v6213 = vpop.f32.mrf.mxu0
    %v6214 = vadd.f32 %v6170, %v6213
    %6215 = vdwg.mxu0
    %v6216 = vxor.u32 %v6194, 2147483648
    %v6217 = vxor.u32 %v6214, 2147483648
    %v6218 = vmul.f32 %v6216, 1.442695
    %v6219 = vpow.pop %v6218
    %v6220 = vmul.f32 %v6217, 1.442695
    %v6221 = vpow.pop %v6220
    %v6222 = vadd.f32 %v6219, 1.0
    %v6223 = vadd.f32 %v6221, 1.0
    %v6224 = vrcp.pop %v6222
    %v6225 = vmul.f32 %v6222, %v6224
    %v6226 = vsub.f32 1.0, %v6225
    %v6227 = vmul.f32 %v6224, %v6226
    %v6228 = vadd.f32 %v6224, %v6227
    %vm6229 = vweird.f32 %v6222
    %vm6230 = vweird.f32 %v6224
    %vm6231 = vmor %vm6229, %vm6230
    %v6232 = vsel %vm6231, %v6224, %v6228
    %v6233 = vand.u32 2147483647, %v6222
    %vm6234 = vcmp.eq.f32.partialorder %v6233, 8.507059e+37
    %v6235 = vand.u32 %v6222, 2147483648
    %v6236 = vor.u32 1.1754944e-38, %v6235
    %v6237 = vsel %vm6234, %v6236, %v6232
    %v6238 = vmul.f32 1.0, %v6237
    %v6239 = vrcp.pop %v6223
    %v6240 = vmul.f32 %v6223, %v6239
    %v6241 = vsub.f32 1.0, %v6240
    %v6242 = vmul.f32 %v6239, %v6241
    %v6243 = vadd.f32 %v6239, %v6242
    %vm6244 = vweird.f32 %v6223
    %vm6245 = vweird.f32 %v6239
    %vm6246 = vmor %vm6244, %vm6245
    %v6247 = vsel %vm6246, %v6239, %v6243
    %v6248 = vand.u32 2147483647, %v6223
    %vm6249 = vcmp.eq.f32.partialorder %v6248, 8.507059e+37
    %v6250 = vand.u32 %v6223, 2147483648
    %v6251 = vor.u32 1.1754944e-38, %v6250
    %v6252 = vsel %vm6249, %v6251, %v6247
    %v6253 = vmul.f32 1.0, %v6252
    %v6254 = vtanh.pop %v6214
    %v6255 = vmul.f32 %v6238, %v6057
    %6257 = vrot.lane.b32.xlu0 %v6254, 64
    %v6258 = vpop.permute.xlu0 %6257
    %v6260 = vmul.f32 %v6238, %v6258
    %6262 = vrot.lane.b32.xlu0 %v6260, 64
    %v6263 = vpop.permute.xlu0 %6262
    %v6265 = vadd.f32 %v6255, %v6263
    %v6266 = vtanh.pop %v6265
    %6268 = vrot.lane.b32.xlu0 %v6266, 64
    %v6269 = vpop.permute.xlu0 %6268
    %v6271 = vmul.f32 %v6253, %v6269
    %v6272 = vrot.slane %v5792, 4
    %v6273 = vrot.slane %v5815, 4
    %v6277 = vsel %vm222, %v6168, 0
    %6279 = vmatpush.msra.mxu0 0.0
    %6280 = vmatpush.msra.mxu0 0.0
    %6281 = vmatpush.msra.mxu0 0.0
    %6282 = vmatpush.msra.mxu0 0.0
    %6283 = vmatpush.msra.mxu0 0.0
    %6284 = vmatpush.msra.mxu0 0.0
    %6285 = vmatpush.msra.mxu0 0.0
    %6286 = vmatpush.msra.mxu0 0.0
    %6287 = vmatpush.msra.mxu0 %v5747
    %6288 = vmatpush.msra.mxu0 %v5745
    %6289 = vmatpush.msra.mxu0 %v5743
    %6290 = vmatpush.msra.mxu0 %v5741
    %6291 = vmatpush.msra.mxu0 %v5739
    %6292 = vmatpush.msra.mxu0 %v5737
    %6293 = vmatpush.msra.mxu0 %v5735
    %6294 = vmatpush.msra.mxu0 %v5733
    %6295 = vmatmul.f32.gmra.mxu0 %v6277
    %v6296 = vpop.f32.mrf.mxu0
    %v6297 = vadd.f32 %v6272, %v6296
    %6298 = vdwg.mxu0
    %6299 = vmatpush.msra.mxu0 0.0
    %6300 = vmatpush.msra.mxu0 0.0
    %6301 = vmatpush.msra.mxu0 0.0
    %6302 = vmatpush.msra.mxu0 0.0
    %6303 = vmatpush.msra.mxu0 0.0
    %6304 = vmatpush.msra.mxu0 0.0
    %6305 = vmatpush.msra.mxu0 0.0
    %6306 = vmatpush.msra.mxu0 0.0
    %6307 = vmatpush.msra.mxu0 %v5748
    %6308 = vmatpush.msra.mxu0 %v5746
    %6309 = vmatpush.msra.mxu0 %v5744
    %6310 = vmatpush.msra.mxu0 %v5742
    %6311 = vmatpush.msra.mxu0 %v5740
    %6312 = vmatpush.msra.mxu0 %v5738
    %6313 = vmatpush.msra.mxu0 %v5736
    %6314 = vmatpush.msra.mxu0 %v5734
    %6315 = vmatmul.f32.gmra.mxu0 %v6277
    %v6316 = vpop.f32.mrf.mxu0
    %v6317 = vadd.f32 %v6273, %v6316
    %6318 = vdwg.mxu0
    %v6319 = vxor.u32 %v6297, 2147483648
    %v6320 = vxor.u32 %v6317, 2147483648
    %v6321 = vmul.f32 %v6319, 1.442695
    %v6322 = vpow.pop %v6321
    %v6323 = vmul.f32 %v6320, 1.442695
    %v6324 = vpow.pop %v6323
    %v6325 = vadd.f32 %v6322, 1.0
    %v6326 = vadd.f32 %v6324, 1.0
    %v6327 = vrcp.pop %v6325
    %v6328 = vmul.f32 %v6325, %v6327
    %v6329 = vsub.f32 1.0, %v6328
    %v6330 = vmul.f32 %v6327, %v6329
    %v6331 = vadd.f32 %v6327, %v6330
    %vm6332 = vweird.f32 %v6325
    %vm6333 = vweird.f32 %v6327
    %vm6334 = vmor %vm6332, %vm6333
    %v6335 = vsel %vm6334, %v6327, %v6331
    %v6336 = vand.u32 2147483647, %v6325
    %vm6337 = vcmp.eq.f32.partialorder %v6336, 8.507059e+37
    %v6338 = vand.u32 %v6325, 2147483648
    %v6339 = vor.u32 1.1754944e-38, %v6338
    %v6340 = vsel %vm6337, %v6339, %v6335
    %v6341 = vmul.f32 1.0, %v6340
    %v6342 = vrcp.pop %v6326
    %v6343 = vmul.f32 %v6326, %v6342
    %v6344 = vsub.f32 1.0, %v6343
    %v6345 = vmul.f32 %v6342, %v6344
    %v6346 = vadd.f32 %v6342, %v6345
    %vm6347 = vweird.f32 %v6326
    %vm6348 = vweird.f32 %v6342
    %vm6349 = vmor %vm6347, %vm6348
    %v6350 = vsel %vm6349, %v6342, %v6346
    %v6351 = vand.u32 2147483647, %v6326
    %vm6352 = vcmp.eq.f32.partialorder %v6351, 8.507059e+37
    %v6353 = vand.u32 %v6326, 2147483648
    %v6354 = vor.u32 1.1754944e-38, %v6353
    %v6355 = vsel %vm6352, %v6354, %v6350
    %v6356 = vmul.f32 1.0, %v6355
    %v6357 = vtanh.pop %v6317
    %v6358 = vmul.f32 %v6341, %v6162
    %6360 = vrot.lane.b32.xlu0 %v6357, 64
    %v6361 = vpop.permute.xlu0 %6360
    %v6363 = vmul.f32 %v6341, %v6361
    %6365 = vrot.lane.b32.xlu0 %v6363, 64
    %v6366 = vpop.permute.xlu0 %6365
    %v6368 = vadd.f32 %v6358, %v6366
    %v6369 = vtanh.pop %v6368
    %6371 = vrot.lane.b32.xlu0 %v6369, 64
    %v6372 = vpop.permute.xlu0 %6371
    %v6374 = vmul.f32 %v6356, %v6372
    %v6375 = vrot.slane %v5841, 2
    %v6376 = vrot.slane %v5864, 2
    %v6380 = vsel %vm222, %v6271, 0
    %6382 = vmatpush.msra.mxu0 0.0
    %6383 = vmatpush.msra.mxu0 0.0
    %6384 = vmatpush.msra.mxu0 0.0
    %6385 = vmatpush.msra.mxu0 0.0
    %6386 = vmatpush.msra.mxu0 0.0
    %6387 = vmatpush.msra.mxu0 0.0
    %6388 = vmatpush.msra.mxu0 0.0
    %6389 = vmatpush.msra.mxu0 0.0
    %6390 = vmatpush.msra.mxu0 %v5763
    %6391 = vmatpush.msra.mxu0 %v5761
    %6392 = vmatpush.msra.mxu0 %v5759
    %6393 = vmatpush.msra.mxu0 %v5757
    %6394 = vmatpush.msra.mxu0 %v5755
    %6395 = vmatpush.msra.mxu0 %v5753
    %6396 = vmatpush.msra.mxu0 %v5751
    %6397 = vmatpush.msra.mxu0 %v5749
    %6398 = vmatmul.f32.gmra.mxu0 %v6380
    %v6399 = vpop.f32.mrf.mxu0
    %v6400 = vadd.f32 %v6375, %v6399
    %6401 = vdwg.mxu0
    %6402 = vmatpush.msra.mxu0 0.0
    %6403 = vmatpush.msra.mxu0 0.0
    %6404 = vmatpush.msra.mxu0 0.0
    %6405 = vmatpush.msra.mxu0 0.0
    %6406 = vmatpush.msra.mxu0 0.0
    %6407 = vmatpush.msra.mxu0 0.0
    %6408 = vmatpush.msra.mxu0 0.0
    %6409 = vmatpush.msra.mxu0 0.0
    %6410 = vmatpush.msra.mxu0 %v5764
    %6411 = vmatpush.msra.mxu0 %v5762
    %6412 = vmatpush.msra.mxu0 %v5760
    %6413 = vmatpush.msra.mxu0 %v5758
    %6414 = vmatpush.msra.mxu0 %v5756
    %6415 = vmatpush.msra.mxu0 %v5754
    %6416 = vmatpush.msra.mxu0 %v5752
    %6417 = vmatpush.msra.mxu0 %v5750
    %6418 = vmatmul.f32.gmra.mxu0 %v6380
    %v6419 = vpop.f32.mrf.mxu0
    %v6420 = vadd.f32 %v6376, %v6419
    %6421 = vdwg.mxu0
    %v6422 = vxor.u32 %v6400, 2147483648
    %v6423 = vxor.u32 %v6420, 2147483648
    %v6424 = vmul.f32 %v6422, 1.442695
    %v6425 = vpow.pop %v6424
    %v6426 = vmul.f32 %v6423, 1.442695
    %v6427 = vpow.pop %v6426
    %v6428 = vadd.f32 %v6425, 1.0
    %v6429 = vadd.f32 %v6427, 1.0
    %v6430 = vrcp.pop %v6428
    %v6431 = vmul.f32 %v6428, %v6430
    %v6432 = vsub.f32 1.0, %v6431
    %v6433 = vmul.f32 %v6430, %v6432
    %v6434 = vadd.f32 %v6430, %v6433
    %vm6435 = vweird.f32 %v6428
    %vm6436 = vweird.f32 %v6430
    %vm6437 = vmor %vm6435, %vm6436
    %v6438 = vsel %vm6437, %v6430, %v6434
    %v6439 = vand.u32 2147483647, %v6428
    %vm6440 = vcmp.eq.f32.partialorder %v6439, 8.507059e+37
    %v6441 = vand.u32 %v6428, 2147483648
    %v6442 = vor.u32 1.1754944e-38, %v6441
    %v6443 = vsel %vm6440, %v6442, %v6438
    %v6444 = vmul.f32 1.0, %v6443
    %v6445 = vrcp.pop %v6429
    %v6446 = vmul.f32 %v6429, %v6445
    %v6447 = vsub.f32 1.0, %v6446
    %v6448 = vmul.f32 %v6445, %v6447
    %v6449 = vadd.f32 %v6445, %v6448
    %vm6450 = vweird.f32 %v6429
    %vm6451 = vweird.f32 %v6445
    %vm6452 = vmor %vm6450, %vm6451
    %v6453 = vsel %vm6452, %v6445, %v6449
    %v6454 = vand.u32 2147483647, %v6429
    %vm6455 = vcmp.eq.f32.partialorder %v6454, 8.507059e+37
    %v6456 = vand.u32 %v6429, 2147483648
    %v6457 = vor.u32 1.1754944e-38, %v6456
    %v6458 = vsel %vm6455, %v6457, %v6453
    %v6459 = vmul.f32 1.0, %v6458
    %v6460 = vtanh.pop %v6420
    %v6461 = vmul.f32 %v6444, %v6265
    %6463 = vrot.lane.b32.xlu0 %v6460, 64
    %v6464 = vpop.permute.xlu0 %6463
    %v6466 = vmul.f32 %v6444, %v6464
    %6468 = vrot.lane.b32.xlu0 %v6466, 64
    %v6469 = vpop.permute.xlu0 %6468
    %v6471 = vadd.f32 %v6461, %v6469
    %v6472 = vtanh.pop %v6471
    %6474 = vrot.lane.b32.xlu0 %v6472, 64
    %v6475 = vpop.permute.xlu0 %6474
    %v6477 = vmul.f32 %v6459, %v6475
    %v6478 = vrot.slane %v5792, 6
    %v6479 = vrot.slane %v5815, 6
    %v6483 = vsel %vm222, %v6374, 0
    %6485 = vmatpush.msra.mxu0 0.0
    %6486 = vmatpush.msra.mxu0 0.0
    %6487 = vmatpush.msra.mxu0 0.0
    %6488 = vmatpush.msra.mxu0 0.0
    %6489 = vmatpush.msra.mxu0 0.0
    %6490 = vmatpush.msra.mxu0 0.0
    %6491 = vmatpush.msra.mxu0 0.0
    %6492 = vmatpush.msra.mxu0 0.0
    %6493 = vmatpush.msra.mxu0 %v5747
    %6494 = vmatpush.msra.mxu0 %v5745
    %6495 = vmatpush.msra.mxu0 %v5743
    %6496 = vmatpush.msra.mxu0 %v5741
    %6497 = vmatpush.msra.mxu0 %v5739
    %6498 = vmatpush.msra.mxu0 %v5737
    %6499 = vmatpush.msra.mxu0 %v5735
    %6500 = vmatpush.msra.mxu0 %v5733
    %6501 = vmatmul.f32.gmra.mxu0 %v6483
    %v6502 = vpop.f32.mrf.mxu0
    %v6503 = vadd.f32 %v6478, %v6502
    %6504 = vdwg.mxu0
    %6505 = vmatpush.msra.mxu0 0.0
    %6506 = vmatpush.msra.mxu0 0.0
    %6507 = vmatpush.msra.mxu0 0.0
    %6508 = vmatpush.msra.mxu0 0.0
    %6509 = vmatpush.msra.mxu0 0.0
    %6510 = vmatpush.msra.mxu0 0.0
    %6511 = vmatpush.msra.mxu0 0.0
    %6512 = vmatpush.msra.mxu0 0.0
    %6513 = vmatpush.msra.mxu0 %v5748
    %6514 = vmatpush.msra.mxu0 %v5746
    %6515 = vmatpush.msra.mxu0 %v5744
    %6516 = vmatpush.msra.mxu0 %v5742
    %6517 = vmatpush.msra.mxu0 %v5740
    %6518 = vmatpush.msra.mxu0 %v5738
    %6519 = vmatpush.msra.mxu0 %v5736
    %6520 = vmatpush.msra.mxu0 %v5734
    %6521 = vmatmul.f32.gmra.mxu0 %v6483
    %v6522 = vpop.f32.mrf.mxu0
    %v6523 = vadd.f32 %v6479, %v6522
    %6524 = vdwg.mxu0
    %v6525 = vxor.u32 %v6503, 2147483648
    %v6526 = vxor.u32 %v6523, 2147483648
    %v6527 = vmul.f32 %v6525, 1.442695
    %v6528 = vpow.pop %v6527
    %v6529 = vmul.f32 %v6526, 1.442695
    %v6530 = vpow.pop %v6529
    %v6531 = vadd.f32 %v6528, 1.0
    %v6532 = vadd.f32 %v6530, 1.0
    %v6533 = vrcp.pop %v6531
    %v6534 = vmul.f32 %v6531, %v6533
    %v6535 = vsub.f32 1.0, %v6534
    %v6536 = vmul.f32 %v6533, %v6535
    %v6537 = vadd.f32 %v6533, %v6536
    %vm6538 = vweird.f32 %v6531
    %vm6539 = vweird.f32 %v6533
    %vm6540 = vmor %vm6538, %vm6539
    %v6541 = vsel %vm6540, %v6533, %v6537
    %v6542 = vand.u32 2147483647, %v6531
    %vm6543 = vcmp.eq.f32.partialorder %v6542, 8.507059e+37
    %v6544 = vand.u32 %v6531, 2147483648
    %v6545 = vor.u32 1.1754944e-38, %v6544
    %v6546 = vsel %vm6543, %v6545, %v6541
    %v6547 = vmul.f32 1.0, %v6546
    %v6548 = vrcp.pop %v6532
    %v6549 = vmul.f32 %v6532, %v6548
    %v6550 = vsub.f32 1.0, %v6549
    %v6551 = vmul.f32 %v6548, %v6550
    %v6552 = vadd.f32 %v6548, %v6551
    %vm6553 = vweird.f32 %v6532
    %vm6554 = vweird.f32 %v6548
    %vm6555 = vmor %vm6553, %vm6554
    %v6556 = vsel %vm6555, %v6548, %v6552
    %v6557 = vand.u32 2147483647, %v6532
    %vm6558 = vcmp.eq.f32.partialorder %v6557, 8.507059e+37
    %v6559 = vand.u32 %v6532, 2147483648
    %v6560 = vor.u32 1.1754944e-38, %v6559
    %v6561 = vsel %vm6558, %v6560, %v6556
    %v6562 = vmul.f32 1.0, %v6561
    %v6563 = vtanh.pop %v6523
    %v6564 = vmul.f32 %v6547, %v6368
    %6566 = vrot.lane.b32.xlu0 %v6563, 64
    %v6567 = vpop.permute.xlu0 %6566
    %v6569 = vmul.f32 %v6547, %v6567
    %6571 = vrot.lane.b32.xlu0 %v6569, 64
    %v6572 = vpop.permute.xlu0 %6571
    %v6574 = vadd.f32 %v6564, %v6572
    %v6575 = vtanh.pop %v6574
    %6577 = vrot.lane.b32.xlu0 %v6575, 64
    %v6578 = vpop.permute.xlu0 %6577
    %v6580 = vmul.f32 %v6562, %v6578
    %v6582 = vsel %vm222, %v6477, 0
    %6584 = vmatpush.msra.mxu0 0.0
    %6585 = vmatpush.msra.mxu0 0.0
    %6586 = vmatpush.msra.mxu0 0.0
    %6587 = vmatpush.msra.mxu0 0.0
    %6588 = vmatpush.msra.mxu0 0.0
    %6589 = vmatpush.msra.mxu0 0.0
    %6590 = vmatpush.msra.mxu0 0.0
    %6591 = vmatpush.msra.mxu0 0.0
    %6592 = vmatpush.msra.mxu0 %v5763
    %6593 = vmatpush.msra.mxu0 %v5761
    %6594 = vmatpush.msra.mxu0 %v5759
    %6595 = vmatpush.msra.mxu0 %v5757
    %6596 = vmatpush.msra.mxu0 %v5755
    %6597 = vmatpush.msra.mxu0 %v5753
    %6598 = vmatpush.msra.mxu0 %v5751
    %6599 = vmatpush.msra.mxu0 %v5749
    %6600 = vmatmul.f32.gmra.mxu0 %v6582
    %v6601 = vpop.f32.mrf.mxu0
    %v6602 = vadd.f32 %v5841, %v6601
    %6603 = vdwg.mxu0
    %6604 = vmatpush.msra.mxu0 0.0
    %6605 = vmatpush.msra.mxu0 0.0
    %6606 = vmatpush.msra.mxu0 0.0
    %6607 = vmatpush.msra.mxu0 0.0
    %6608 = vmatpush.msra.mxu0 0.0
    %6609 = vmatpush.msra.mxu0 0.0
    %6610 = vmatpush.msra.mxu0 0.0
    %6611 = vmatpush.msra.mxu0 0.0
    %6612 = vmatpush.msra.mxu0 %v5764
    %6613 = vmatpush.msra.mxu0 %v5762
    %6614 = vmatpush.msra.mxu0 %v5760
    %6615 = vmatpush.msra.mxu0 %v5758
    %6616 = vmatpush.msra.mxu0 %v5756
    %6617 = vmatpush.msra.mxu0 %v5754
    %6618 = vmatpush.msra.mxu0 %v5752
    %6619 = vmatpush.msra.mxu0 %v5750
    %6620 = vmatmul.f32.gmra.mxu0 %v6582
    %v6621 = vpop.f32.mrf.mxu0
    %v6622 = vadd.f32 %v5864, %v6621
    %6623 = vdwg.mxu0
    %v6624 = vxor.u32 %v6602, 2147483648
    %v6625 = vxor.u32 %v6622, 2147483648
    %v6626 = vmul.f32 %v6624, 1.442695
    %v6627 = vpow.pop %v6626
    %v6628 = vmul.f32 %v6625, 1.442695
    %v6629 = vpow.pop %v6628
    %v6630 = vadd.f32 %v6627, 1.0
    %v6631 = vadd.f32 %v6629, 1.0
    %v6632 = vrcp.pop %v6630
    %v6633 = vmul.f32 %v6630, %v6632
    %v6634 = vsub.f32 1.0, %v6633
    %v6635 = vmul.f32 %v6632, %v6634
    %v6636 = vadd.f32 %v6632, %v6635
    %vm6637 = vweird.f32 %v6630
    %vm6638 = vweird.f32 %v6632
    %vm6639 = vmor %vm6637, %vm6638
    %v6640 = vsel %vm6639, %v6632, %v6636
    %v6641 = vand.u32 2147483647, %v6630
    %vm6642 = vcmp.eq.f32.partialorder %v6641, 8.507059e+37
    %v6643 = vand.u32 %v6630, 2147483648
    %v6644 = vor.u32 1.1754944e-38, %v6643
    %v6645 = vsel %vm6642, %v6644, %v6640
    %v6646 = vmul.f32 1.0, %v6645
    %v6647 = vrcp.pop %v6631
    %v6648 = vmul.f32 %v6631, %v6647
    %v6649 = vsub.f32 1.0, %v6648
    %v6650 = vmul.f32 %v6647, %v6649
    %v6651 = vadd.f32 %v6647, %v6650
    %vm6652 = vweird.f32 %v6631
    %vm6653 = vweird.f32 %v6647
    %vm6654 = vmor %vm6652, %vm6653
    %v6655 = vsel %vm6654, %v6647, %v6651
    %v6656 = vand.u32 2147483647, %v6631
    %vm6657 = vcmp.eq.f32.partialorder %v6656, 8.507059e+37
    %v6658 = vand.u32 %v6631, 2147483648
    %v6659 = vor.u32 1.1754944e-38, %v6658
    %v6660 = vsel %vm6657, %v6659, %v6655
    %v6661 = vmul.f32 1.0, %v6660
    %v6662 = vtanh.pop %v6622
    %v6663 = vmul.f32 %v6646, %v6471
    %6665 = vrot.lane.b32.xlu0 %v6662, 64
    %v6666 = vpop.permute.xlu0 %6665
    %v6668 = vmul.f32 %v6646, %v6666
    %6670 = vrot.lane.b32.xlu0 %v6668, 64
    %v6671 = vpop.permute.xlu0 %6670
    %v6673 = vadd.f32 %v6663, %v6671
    %v6674 = vtanh.pop %v6673
    %6676 = vrot.lane.b32.xlu0 %v6674, 64
    %v6677 = vpop.permute.xlu0 %6676
    %v6679 = vmul.f32 %v6661, %v6677
    %v6681 = vsel %vm222, %v6580, 0
    %6683 = vmatpush.msra.mxu0 0.0
    %6684 = vmatpush.msra.mxu0 0.0
    %6685 = vmatpush.msra.mxu0 0.0
    %6686 = vmatpush.msra.mxu0 0.0
    %6687 = vmatpush.msra.mxu0 0.0
    %6688 = vmatpush.msra.mxu0 0.0
    %6689 = vmatpush.msra.mxu0 0.0
    %6690 = vmatpush.msra.mxu0 0.0
    %6691 = vmatpush.msra.mxu0 %v5747
    %6692 = vmatpush.msra.mxu0 %v5745
    %6693 = vmatpush.msra.mxu0 %v5743
    %6694 = vmatpush.msra.mxu0 %v5741
    %6695 = vmatpush.msra.mxu0 %v5739
    %6696 = vmatpush.msra.mxu0 %v5737
    %6697 = vmatpush.msra.mxu0 %v5735
    %6698 = vmatpush.msra.mxu0 %v5733
    %6699 = vmatmul.f32.gmra.mxu0 %v6681
    %v6700 = vpop.f32.mrf.mxu0
    %v6701 = vadd.f32 %v5795, %v6700
    %6702 = vdwg.mxu0
    %6703 = vmatpush.msra.mxu0 0.0
    %6704 = vmatpush.msra.mxu0 0.0
    %6705 = vmatpush.msra.mxu0 0.0
    %6706 = vmatpush.msra.mxu0 0.0
    %6707 = vmatpush.msra.mxu0 0.0
    %6708 = vmatpush.msra.mxu0 0.0
    %6709 = vmatpush.msra.mxu0 0.0
    %6710 = vmatpush.msra.mxu0 0.0
    %6711 = vmatpush.msra.mxu0 %v5748
    %6712 = vmatpush.msra.mxu0 %v5746
    %6713 = vmatpush.msra.mxu0 %v5744
    %6714 = vmatpush.msra.mxu0 %v5742
    %6715 = vmatpush.msra.mxu0 %v5740
    %6716 = vmatpush.msra.mxu0 %v5738
    %6717 = vmatpush.msra.mxu0 %v5736
    %6718 = vmatpush.msra.mxu0 %v5734
    %6719 = vmatmul.f32.gmra.mxu0 %v6681
    %v6720 = vpop.f32.mrf.mxu0
    %v6721 = vadd.f32 %v5818, %v6720
    %6722 = vdwg.mxu0
    %v6723 = vxor.u32 %v6701, 2147483648
    %v6724 = vxor.u32 %v6721, 2147483648
    %v6725 = vmul.f32 %v6723, 1.442695
    %v6726 = vpow.pop %v6725
    %v6727 = vmul.f32 %v6724, 1.442695
    %v6728 = vpow.pop %v6727
    %v6729 = vadd.f32 %v6726, 1.0
    %v6730 = vadd.f32 %v6728, 1.0
    %v6731 = vrcp.pop %v6729
    %v6732 = vmul.f32 %v6729, %v6731
    %v6733 = vsub.f32 1.0, %v6732
    %v6734 = vmul.f32 %v6731, %v6733
    %v6735 = vadd.f32 %v6731, %v6734
    %vm6736 = vweird.f32 %v6729
    %vm6737 = vweird.f32 %v6731
    %vm6738 = vmor %vm6736, %vm6737
    %v6739 = vsel %vm6738, %v6731, %v6735
    %v6740 = vand.u32 2147483647, %v6729
    %vm6741 = vcmp.eq.f32.partialorder %v6740, 8.507059e+37
    %v6742 = vand.u32 %v6729, 2147483648
    %v6743 = vor.u32 1.1754944e-38, %v6742
    %v6744 = vsel %vm6741, %v6743, %v6739
    %v6745 = vmul.f32 1.0, %v6744
    %v6746 = vrcp.pop %v6730
    %v6747 = vmul.f32 %v6730, %v6746
    %v6748 = vsub.f32 1.0, %v6747
    %v6749 = vmul.f32 %v6746, %v6748
    %v6750 = vadd.f32 %v6746, %v6749
    %vm6751 = vweird.f32 %v6730
    %vm6752 = vweird.f32 %v6746
    %vm6753 = vmor %vm6751, %vm6752
    %v6754 = vsel %vm6753, %v6746, %v6750
    %v6755 = vand.u32 2147483647, %v6730
    %vm6756 = vcmp.eq.f32.partialorder %v6755, 8.507059e+37
    %v6757 = vand.u32 %v6730, 2147483648
    %v6758 = vor.u32 1.1754944e-38, %v6757
    %v6759 = vsel %vm6756, %v6758, %v6754
    %v6760 = vmul.f32 1.0, %v6759
    %v6761 = vtanh.pop %v6721
    %v6762 = vmul.f32 %v6745, %v6574
    %6764 = vrot.lane.b32.xlu0 %v6761, 64
    %v6765 = vpop.permute.xlu0 %6764
    %v6767 = vmul.f32 %v6745, %v6765
    %6769 = vrot.lane.b32.xlu0 %v6767, 64
    %v6770 = vpop.permute.xlu0 %6769
    %v6772 = vadd.f32 %v6762, %v6770
    %v6773 = vtanh.pop %v6772
    %6775 = vrot.lane.b32.xlu0 %v6773, 64
    %v6776 = vpop.permute.xlu0 %6775
    %v6778 = vmul.f32 %v6760, %v6776
    %v6781 = vrot.slane %v5838, 6
    %v6782 = vrot.slane %v5861, 6
    %v6786 = vsel %vm222, %v6679, 0
    %6788 = vmatpush.msra.mxu0 0.0
    %6789 = vmatpush.msra.mxu0 0.0
    %6790 = vmatpush.msra.mxu0 0.0
    %6791 = vmatpush.msra.mxu0 0.0
    %6792 = vmatpush.msra.mxu0 0.0
    %6793 = vmatpush.msra.mxu0 0.0
    %6794 = vmatpush.msra.mxu0 0.0
    %6795 = vmatpush.msra.mxu0 0.0
    %6796 = vmatpush.msra.mxu0 %v5763
    %6797 = vmatpush.msra.mxu0 %v5761
    %6798 = vmatpush.msra.mxu0 %v5759
    %6799 = vmatpush.msra.mxu0 %v5757
    %6800 = vmatpush.msra.mxu0 %v5755
    %6801 = vmatpush.msra.mxu0 %v5753
    %6802 = vmatpush.msra.mxu0 %v5751
    %6803 = vmatpush.msra.mxu0 %v5749
    %6804 = vmatmul.f32.gmra.mxu0 %v6786
    %v6805 = vpop.f32.mrf.mxu0
    %v6806 = vadd.f32 %v6781, %v6805
    %6807 = vdwg.mxu0
    %6808 = vmatpush.msra.mxu0 0.0
    %6809 = vmatpush.msra.mxu0 0.0
    %6810 = vmatpush.msra.mxu0 0.0
    %6811 = vmatpush.msra.mxu0 0.0
    %6812 = vmatpush.msra.mxu0 0.0
    %6813 = vmatpush.msra.mxu0 0.0
    %6814 = vmatpush.msra.mxu0 0.0
    %6815 = vmatpush.msra.mxu0 0.0
    %6816 = vmatpush.msra.mxu0 %v5764
    %6817 = vmatpush.msra.mxu0 %v5762
    %6818 = vmatpush.msra.mxu0 %v5760
    %6819 = vmatpush.msra.mxu0 %v5758
    %6820 = vmatpush.msra.mxu0 %v5756
    %6821 = vmatpush.msra.mxu0 %v5754
    %6822 = vmatpush.msra.mxu0 %v5752
    %6823 = vmatpush.msra.mxu0 %v5750
    %6824 = vmatmul.f32.gmra.mxu0 %v6786
    %v6825 = vpop.f32.mrf.mxu0
    %v6826 = vadd.f32 %v6782, %v6825
    %6827 = vdwg.mxu0
    %v6828 = vxor.u32 %v6806, 2147483648
    %v6829 = vxor.u32 %v6826, 2147483648
    %v6830 = vmul.f32 %v6828, 1.442695
    %v6831 = vpow.pop %v6830
    %v6832 = vmul.f32 %v6829, 1.442695
    %v6833 = vpow.pop %v6832
    %v6834 = vadd.f32 %v6831, 1.0
    %v6835 = vadd.f32 %v6833, 1.0
    %v6836 = vrcp.pop %v6834
    %v6837 = vmul.f32 %v6834, %v6836
    %v6838 = vsub.f32 1.0, %v6837
    %v6839 = vmul.f32 %v6836, %v6838
    %v6840 = vadd.f32 %v6836, %v6839
    %vm6841 = vweird.f32 %v6834
    %vm6842 = vweird.f32 %v6836
    %vm6843 = vmor %vm6841, %vm6842
    %v6844 = vsel %vm6843, %v6836, %v6840
    %v6845 = vand.u32 2147483647, %v6834
    %vm6846 = vcmp.eq.f32.partialorder %v6845, 8.507059e+37
    %v6847 = vand.u32 %v6834, 2147483648
    %v6848 = vor.u32 1.1754944e-38, %v6847
    %v6849 = vsel %vm6846, %v6848, %v6844
    %v6850 = vmul.f32 1.0, %v6849
    %v6851 = vrcp.pop %v6835
    %v6852 = vmul.f32 %v6835, %v6851
    %v6853 = vsub.f32 1.0, %v6852
    %v6854 = vmul.f32 %v6851, %v6853
    %v6855 = vadd.f32 %v6851, %v6854
    %vm6856 = vweird.f32 %v6835
    %vm6857 = vweird.f32 %v6851
    %vm6858 = vmor %vm6856, %vm6857
    %v6859 = vsel %vm6858, %v6851, %v6855
    %v6860 = vand.u32 2147483647, %v6835
    %vm6861 = vcmp.eq.f32.partialorder %v6860, 8.507059e+37
    %v6862 = vand.u32 %v6835, 2147483648
    %v6863 = vor.u32 1.1754944e-38, %v6862
    %v6864 = vsel %vm6861, %v6863, %v6859
    %v6865 = vmul.f32 1.0, %v6864
    %v6866 = vtanh.pop %v6826
    %v6867 = vmul.f32 %v6850, %v6673
    %6869 = vrot.lane.b32.xlu0 %v6866, 64
    %v6870 = vpop.permute.xlu0 %6869
    %v6872 = vmul.f32 %v6850, %v6870
    %6874 = vrot.lane.b32.xlu0 %v6872, 64
    %v6875 = vpop.permute.xlu0 %6874
    %v6877 = vadd.f32 %v6867, %v6875
    %v6878 = vtanh.pop %v6877
    %6880 = vrot.lane.b32.xlu0 %v6878, 64
    %v6881 = vpop.permute.xlu0 %6880
    %v6883 = vmul.f32 %v6865, %v6881
    %v6886 = vrot.slane %v5795, 2
    %v6887 = vrot.slane %v5818, 2
    %v6891 = vsel %vm222, %v6778, 0
    %6893 = vmatpush.msra.mxu0 0.0
    %6894 = vmatpush.msra.mxu0 0.0
    %6895 = vmatpush.msra.mxu0 0.0
    %6896 = vmatpush.msra.mxu0 0.0
    %6897 = vmatpush.msra.mxu0 0.0
    %6898 = vmatpush.msra.mxu0 0.0
    %6899 = vmatpush.msra.mxu0 0.0
    %6900 = vmatpush.msra.mxu0 0.0
    %6901 = vmatpush.msra.mxu0 %v5747
    %6902 = vmatpush.msra.mxu0 %v5745
    %6903 = vmatpush.msra.mxu0 %v5743
    %6904 = vmatpush.msra.mxu0 %v5741
    %6905 = vmatpush.msra.mxu0 %v5739
    %6906 = vmatpush.msra.mxu0 %v5737
    %6907 = vmatpush.msra.mxu0 %v5735
    %6908 = vmatpush.msra.mxu0 %v5733
    %6909 = vmatmul.f32.gmra.mxu0 %v6891
    %v6910 = vpop.f32.mrf.mxu0
    %v6911 = vadd.f32 %v6886, %v6910
    %6912 = vdwg.mxu0
    %6913 = vmatpush.msra.mxu0 0.0
    %6914 = vmatpush.msra.mxu0 0.0
    %6915 = vmatpush.msra.mxu0 0.0
    %6916 = vmatpush.msra.mxu0 0.0
    %6917 = vmatpush.msra.mxu0 0.0
    %6918 = vmatpush.msra.mxu0 0.0
    %6919 = vmatpush.msra.mxu0 0.0
    %6920 = vmatpush.msra.mxu0 0.0
    %6921 = vmatpush.msra.mxu0 %v5748
    %6922 = vmatpush.msra.mxu0 %v5746
    %6923 = vmatpush.msra.mxu0 %v5744
    %6924 = vmatpush.msra.mxu0 %v5742
    %6925 = vmatpush.msra.mxu0 %v5740
    %6926 = vmatpush.msra.mxu0 %v5738
    %6927 = vmatpush.msra.mxu0 %v5736
    %6928 = vmatpush.msra.mxu0 %v5734
    %6929 = vmatmul.f32.gmra.mxu0 %v6891
    %v6930 = vpop.f32.mrf.mxu0
    %v6931 = vadd.f32 %v6887, %v6930
    %6932 = vdwg.mxu0
    %v6933 = vxor.u32 %v6911, 2147483648
    %v6934 = vxor.u32 %v6931, 2147483648
    %v6935 = vmul.f32 %v6933, 1.442695
    %v6936 = vpow.pop %v6935
    %v6937 = vmul.f32 %v6934, 1.442695
    %v6938 = vpow.pop %v6937
    %v6939 = vadd.f32 %v6936, 1.0
    %v6940 = vadd.f32 %v6938, 1.0
    %v6941 = vrcp.pop %v6939
    %v6942 = vmul.f32 %v6939, %v6941
    %v6943 = vsub.f32 1.0, %v6942
    %v6944 = vmul.f32 %v6941, %v6943
    %v6945 = vadd.f32 %v6941, %v6944
    %vm6946 = vweird.f32 %v6939
    %vm6947 = vweird.f32 %v6941
    %vm6948 = vmor %vm6946, %vm6947
    %v6949 = vsel %vm6948, %v6941, %v6945
    %v6950 = vand.u32 2147483647, %v6939
    %vm6951 = vcmp.eq.f32.partialorder %v6950, 8.507059e+37
    %v6952 = vand.u32 %v6939, 2147483648
    %v6953 = vor.u32 1.1754944e-38, %v6952
    %v6954 = vsel %vm6951, %v6953, %v6949
    %v6955 = vmul.f32 1.0, %v6954
    %v6956 = vrcp.pop %v6940
    %v6957 = vmul.f32 %v6940, %v6956
    %v6958 = vsub.f32 1.0, %v6957
    %v6959 = vmul.f32 %v6956, %v6958
    %v6960 = vadd.f32 %v6956, %v6959
    %vm6961 = vweird.f32 %v6940
    %vm6962 = vweird.f32 %v6956
    %vm6963 = vmor %vm6961, %vm6962
    %v6964 = vsel %vm6963, %v6956, %v6960
    %v6965 = vand.u32 2147483647, %v6940
    %vm6966 = vcmp.eq.f32.partialorder %v6965, 8.507059e+37
    %v6967 = vand.u32 %v6940, 2147483648
    %v6968 = vor.u32 1.1754944e-38, %v6967
    %v6969 = vsel %vm6966, %v6968, %v6964
    %v6970 = vmul.f32 1.0, %v6969
    %v6971 = vtanh.pop %v6931
    %v6972 = vmul.f32 %v6955, %v6772
    %6974 = vrot.lane.b32.xlu0 %v6971, 64
    %v6975 = vpop.permute.xlu0 %6974
    %v6977 = vmul.f32 %v6955, %v6975
    %6979 = vrot.lane.b32.xlu0 %v6977, 64
    %v6980 = vpop.permute.xlu0 %6979
    %v6982 = vadd.f32 %v6972, %v6980
    %v6983 = vtanh.pop %v6982
    %6985 = vrot.lane.b32.xlu0 %v6983, 64
    %v6986 = vpop.permute.xlu0 %6985
    %v6988 = vmul.f32 %v6970, %v6986
    %v6989 = vrot.slane %v5838, 4
    %v6990 = vrot.slane %v5861, 4
    %v6994 = vsel %vm222, %v6883, 0
    %6996 = vmatpush.msra.mxu0 0.0
    %6997 = vmatpush.msra.mxu0 0.0
    %6998 = vmatpush.msra.mxu0 0.0
    %6999 = vmatpush.msra.mxu0 0.0
    %7000 = vmatpush.msra.mxu0 0.0
    %7001 = vmatpush.msra.mxu0 0.0
    %7002 = vmatpush.msra.mxu0 0.0
    %7003 = vmatpush.msra.mxu0 0.0
    %7004 = vmatpush.msra.mxu0 %v5763
    %7005 = vmatpush.msra.mxu0 %v5761
    %7006 = vmatpush.msra.mxu0 %v5759
    %7007 = vmatpush.msra.mxu0 %v5757
    %7008 = vmatpush.msra.mxu0 %v5755
    %7009 = vmatpush.msra.mxu0 %v5753
    %7010 = vmatpush.msra.mxu0 %v5751
    %7011 = vmatpush.msra.mxu0 %v5749
    %7012 = vmatmul.f32.gmra.mxu0 %v6994
    %v7013 = vpop.f32.mrf.mxu0
    %v7014 = vadd.f32 %v6989, %v7013
    %7015 = vdwg.mxu0
    %7016 = vmatpush.msra.mxu0 0.0
    %7017 = vmatpush.msra.mxu0 0.0
    %7018 = vmatpush.msra.mxu0 0.0
    %7019 = vmatpush.msra.mxu0 0.0
    %7020 = vmatpush.msra.mxu0 0.0
    %7021 = vmatpush.msra.mxu0 0.0
    %7022 = vmatpush.msra.mxu0 0.0
    %7023 = vmatpush.msra.mxu0 0.0
    %7024 = vmatpush.msra.mxu0 %v5764
    %7025 = vmatpush.msra.mxu0 %v5762
    %7026 = vmatpush.msra.mxu0 %v5760
    %7027 = vmatpush.msra.mxu0 %v5758
    %7028 = vmatpush.msra.mxu0 %v5756
    %7029 = vmatpush.msra.mxu0 %v5754
    %7030 = vmatpush.msra.mxu0 %v5752
    %7031 = vmatpush.msra.mxu0 %v5750
    %7032 = vmatmul.f32.gmra.mxu0 %v6994
    %v7033 = vpop.f32.mrf.mxu0
    %v7034 = vadd.f32 %v6990, %v7033
    %7035 = vdwg.mxu0
    %v7036 = vxor.u32 %v7014, 2147483648
    %v7037 = vxor.u32 %v7034, 2147483648
    %v7038 = vmul.f32 %v7036, 1.442695
    %v7039 = vpow.pop %v7038
    %v7040 = vmul.f32 %v7037, 1.442695
    %v7041 = vpow.pop %v7040
    %v7042 = vadd.f32 %v7039, 1.0
    %v7043 = vadd.f32 %v7041, 1.0
    %v7044 = vrcp.pop %v7042
    %v7045 = vmul.f32 %v7042, %v7044
    %v7046 = vsub.f32 1.0, %v7045
    %v7047 = vmul.f32 %v7044, %v7046
    %v7048 = vadd.f32 %v7044, %v7047
    %vm7049 = vweird.f32 %v7042
    %vm7050 = vweird.f32 %v7044
    %vm7051 = vmor %vm7049, %vm7050
    %v7052 = vsel %vm7051, %v7044, %v7048
    %v7053 = vand.u32 2147483647, %v7042
    %vm7054 = vcmp.eq.f32.partialorder %v7053, 8.507059e+37
    %v7055 = vand.u32 %v7042, 2147483648
    %v7056 = vor.u32 1.1754944e-38, %v7055
    %v7057 = vsel %vm7054, %v7056, %v7052
    %v7058 = vmul.f32 1.0, %v7057
    %v7059 = vrcp.pop %v7043
    %v7060 = vmul.f32 %v7043, %v7059
    %v7061 = vsub.f32 1.0, %v7060
    %v7062 = vmul.f32 %v7059, %v7061
    %v7063 = vadd.f32 %v7059, %v7062
    %vm7064 = vweird.f32 %v7043
    %vm7065 = vweird.f32 %v7059
    %vm7066 = vmor %vm7064, %vm7065
    %v7067 = vsel %vm7066, %v7059, %v7063
    %v7068 = vand.u32 2147483647, %v7043
    %vm7069 = vcmp.eq.f32.partialorder %v7068, 8.507059e+37
    %v7070 = vand.u32 %v7043, 2147483648
    %v7071 = vor.u32 1.1754944e-38, %v7070
    %v7072 = vsel %vm7069, %v7071, %v7067
    %v7073 = vmul.f32 1.0, %v7072
    %v7074 = vtanh.pop %v7034
    %v7075 = vmul.f32 %v7058, %v6877
    %7077 = vrot.lane.b32.xlu0 %v7074, 64
    %v7078 = vpop.permute.xlu0 %7077
    %v7080 = vmul.f32 %v7058, %v7078
    %7082 = vrot.lane.b32.xlu0 %v7080, 64
    %v7083 = vpop.permute.xlu0 %7082
    %v7085 = vadd.f32 %v7075, %v7083
    %v7086 = vtanh.pop %v7085
    %7088 = vrot.lane.b32.xlu0 %v7086, 64
    %v7089 = vpop.permute.xlu0 %7088
    %v7091 = vmul.f32 %v7073, %v7089
    %v7092 = vrot.slane %v5795, 4
    %v7093 = vrot.slane %v5818, 4
    %v7097 = vsel %vm222, %v6988, 0
    %7099 = vmatpush.msra.mxu0 0.0
    %7100 = vmatpush.msra.mxu0 0.0
    %7101 = vmatpush.msra.mxu0 0.0
    %7102 = vmatpush.msra.mxu0 0.0
    %7103 = vmatpush.msra.mxu0 0.0
    %7104 = vmatpush.msra.mxu0 0.0
    %7105 = vmatpush.msra.mxu0 0.0
    %7106 = vmatpush.msra.mxu0 0.0
    %7107 = vmatpush.msra.mxu0 %v5747
    %7108 = vmatpush.msra.mxu0 %v5745
    %7109 = vmatpush.msra.mxu0 %v5743
    %7110 = vmatpush.msra.mxu0 %v5741
    %7111 = vmatpush.msra.mxu0 %v5739
    %7112 = vmatpush.msra.mxu0 %v5737
    %7113 = vmatpush.msra.mxu0 %v5735
    %7114 = vmatpush.msra.mxu0 %v5733
    %7115 = vmatmul.f32.gmra.mxu0 %v7097
    %v7116 = vpop.f32.mrf.mxu0
    %v7117 = vadd.f32 %v7092, %v7116
    %7118 = vdwg.mxu0
    %7119 = vmatpush.msra.mxu0 0.0
    %7120 = vmatpush.msra.mxu0 0.0
    %7121 = vmatpush.msra.mxu0 0.0
    %7122 = vmatpush.msra.mxu0 0.0
    %7123 = vmatpush.msra.mxu0 0.0
    %7124 = vmatpush.msra.mxu0 0.0
    %7125 = vmatpush.msra.mxu0 0.0
    %7126 = vmatpush.msra.mxu0 0.0
    %7127 = vmatpush.msra.mxu0 %v5748
    %7128 = vmatpush.msra.mxu0 %v5746
    %7129 = vmatpush.msra.mxu0 %v5744
    %7130 = vmatpush.msra.mxu0 %v5742
    %7131 = vmatpush.msra.mxu0 %v5740
    %7132 = vmatpush.msra.mxu0 %v5738
    %7133 = vmatpush.msra.mxu0 %v5736
    %7134 = vmatpush.msra.mxu0 %v5734
    %7135 = vmatmul.f32.gmra.mxu0 %v7097
    %v7136 = vpop.f32.mrf.mxu0
    %v7137 = vadd.f32 %v7093, %v7136
    %7138 = vdwg.mxu0
    %v7139 = vxor.u32 %v7117, 2147483648
    %v7140 = vxor.u32 %v7137, 2147483648
    %v7141 = vmul.f32 %v7139, 1.442695
    %v7142 = vpow.pop %v7141
    %v7143 = vmul.f32 %v7140, 1.442695
    %v7144 = vpow.pop %v7143
    %v7145 = vadd.f32 %v7142, 1.0
    %v7146 = vadd.f32 %v7144, 1.0
    %v7147 = vrcp.pop %v7145
    %v7148 = vmul.f32 %v7145, %v7147
    %v7149 = vsub.f32 1.0, %v7148
    %v7150 = vmul.f32 %v7147, %v7149
    %v7151 = vadd.f32 %v7147, %v7150
    %vm7152 = vweird.f32 %v7145
    %vm7153 = vweird.f32 %v7147
    %vm7154 = vmor %vm7152, %vm7153
    %v7155 = vsel %vm7154, %v7147, %v7151
    %v7156 = vand.u32 2147483647, %v7145
    %vm7157 = vcmp.eq.f32.partialorder %v7156, 8.507059e+37
    %v7158 = vand.u32 %v7145, 2147483648
    %v7159 = vor.u32 1.1754944e-38, %v7158
    %v7160 = vsel %vm7157, %v7159, %v7155
    %v7161 = vmul.f32 1.0, %v7160
    %v7162 = vrcp.pop %v7146
    %v7163 = vmul.f32 %v7146, %v7162
    %v7164 = vsub.f32 1.0, %v7163
    %v7165 = vmul.f32 %v7162, %v7164
    %v7166 = vadd.f32 %v7162, %v7165
    %vm7167 = vweird.f32 %v7146
    %vm7168 = vweird.f32 %v7162
    %vm7169 = vmor %vm7167, %vm7168
    %v7170 = vsel %vm7169, %v7162, %v7166
    %v7171 = vand.u32 2147483647, %v7146
    %vm7172 = vcmp.eq.f32.partialorder %v7171, 8.507059e+37
    %v7173 = vand.u32 %v7146, 2147483648
    %v7174 = vor.u32 1.1754944e-38, %v7173
    %v7175 = vsel %vm7172, %v7174, %v7170
    %v7176 = vmul.f32 1.0, %v7175
    %v7177 = vtanh.pop %v7137
    %v7178 = vmul.f32 %v7161, %v6982
    %7180 = vrot.lane.b32.xlu0 %v7177, 64
    %v7181 = vpop.permute.xlu0 %7180
    %v7183 = vmul.f32 %v7161, %v7181
    %7185 = vrot.lane.b32.xlu0 %v7183, 64
    %v7186 = vpop.permute.xlu0 %7185
    %v7188 = vadd.f32 %v7178, %v7186
    %v7189 = vtanh.pop %v7188
    %7191 = vrot.lane.b32.xlu0 %v7189, 64
    %v7192 = vpop.permute.xlu0 %7191
    %v7194 = vmul.f32 %v7176, %v7192
    %v7195 = vrot.slane %v5838, 2
    %v7196 = vrot.slane %v5861, 2
    %v7200 = vsel %vm222, %v7091, 0
    %7202 = vmatpush.msra.mxu0 0.0
    %7203 = vmatpush.msra.mxu0 0.0
    %7204 = vmatpush.msra.mxu0 0.0
    %7205 = vmatpush.msra.mxu0 0.0
    %7206 = vmatpush.msra.mxu0 0.0
    %7207 = vmatpush.msra.mxu0 0.0
    %7208 = vmatpush.msra.mxu0 0.0
    %7209 = vmatpush.msra.mxu0 0.0
    %7210 = vmatpush.msra.mxu0 %v5763
    %7211 = vmatpush.msra.mxu0 %v5761
    %7212 = vmatpush.msra.mxu0 %v5759
    %7213 = vmatpush.msra.mxu0 %v5757
    %7214 = vmatpush.msra.mxu0 %v5755
    %7215 = vmatpush.msra.mxu0 %v5753
    %7216 = vmatpush.msra.mxu0 %v5751
    %7217 = vmatpush.msra.mxu0 %v5749
    %7218 = vmatmul.f32.gmra.mxu0 %v7200
    %v7219 = vpop.f32.mrf.mxu0
    %v7220 = vadd.f32 %v7195, %v7219
    %7221 = vdwg.mxu0
    %7222 = vmatpush.msra.mxu0 0.0
    %7223 = vmatpush.msra.mxu0 0.0
    %7224 = vmatpush.msra.mxu0 0.0
    %7225 = vmatpush.msra.mxu0 0.0
    %7226 = vmatpush.msra.mxu0 0.0
    %7227 = vmatpush.msra.mxu0 0.0
    %7228 = vmatpush.msra.mxu0 0.0
    %7229 = vmatpush.msra.mxu0 0.0
    %7230 = vmatpush.msra.mxu0 %v5764
    %7231 = vmatpush.msra.mxu0 %v5762
    %7232 = vmatpush.msra.mxu0 %v5760
    %7233 = vmatpush.msra.mxu0 %v5758
    %7234 = vmatpush.msra.mxu0 %v5756
    %7235 = vmatpush.msra.mxu0 %v5754
    %7236 = vmatpush.msra.mxu0 %v5752
    %7237 = vmatpush.msra.mxu0 %v5750
    %7238 = vmatmul.f32.gmra.mxu0 %v7200
    %v7239 = vpop.f32.mrf.mxu0
    %v7240 = vadd.f32 %v7196, %v7239
    %7241 = vdwg.mxu0
    %v7242 = vxor.u32 %v7220, 2147483648
    %v7243 = vxor.u32 %v7240, 2147483648
    %v7244 = vmul.f32 %v7242, 1.442695
    %v7245 = vpow.pop %v7244
    %v7246 = vmul.f32 %v7243, 1.442695
    %v7247 = vpow.pop %v7246
    %v7248 = vadd.f32 %v7245, 1.0
    %v7249 = vadd.f32 %v7247, 1.0
    %v7250 = vrcp.pop %v7248
    %v7251 = vmul.f32 %v7248, %v7250
    %v7252 = vsub.f32 1.0, %v7251
    %v7253 = vmul.f32 %v7250, %v7252
    %v7254 = vadd.f32 %v7250, %v7253
    %vm7255 = vweird.f32 %v7248
    %vm7256 = vweird.f32 %v7250
    %vm7257 = vmor %vm7255, %vm7256
    %v7258 = vsel %vm7257, %v7250, %v7254
    %v7259 = vand.u32 2147483647, %v7248
    %vm7260 = vcmp.eq.f32.partialorder %v7259, 8.507059e+37
    %v7261 = vand.u32 %v7248, 2147483648
    %v7262 = vor.u32 1.1754944e-38, %v7261
    %v7263 = vsel %vm7260, %v7262, %v7258
    %v7264 = vmul.f32 1.0, %v7263
    %v7265 = vrcp.pop %v7249
    %v7266 = vmul.f32 %v7249, %v7265
    %v7267 = vsub.f32 1.0, %v7266
    %v7268 = vmul.f32 %v7265, %v7267
    %v7269 = vadd.f32 %v7265, %v7268
    %vm7270 = vweird.f32 %v7249
    %vm7271 = vweird.f32 %v7265
    %vm7272 = vmor %vm7270, %vm7271
    %v7273 = vsel %vm7272, %v7265, %v7269
    %v7274 = vand.u32 2147483647, %v7249
    %vm7275 = vcmp.eq.f32.partialorder %v7274, 8.507059e+37
    %v7276 = vand.u32 %v7249, 2147483648
    %v7277 = vor.u32 1.1754944e-38, %v7276
    %v7278 = vsel %vm7275, %v7277, %v7273
    %v7279 = vmul.f32 1.0, %v7278
    %v7280 = vtanh.pop %v7240
    %v7281 = vmul.f32 %v7264, %v7085
    %7283 = vrot.lane.b32.xlu0 %v7280, 64
    %v7284 = vpop.permute.xlu0 %7283
    %v7286 = vmul.f32 %v7264, %v7284
    %7288 = vrot.lane.b32.xlu0 %v7286, 64
    %v7289 = vpop.permute.xlu0 %7288
    %v7291 = vadd.f32 %v7281, %v7289
    %v7292 = vtanh.pop %v7291
    %7294 = vrot.lane.b32.xlu0 %v7292, 64
    %v7295 = vpop.permute.xlu0 %7294
    %v7297 = vmul.f32 %v7279, %v7295
    %v7298 = vrot.slane %v5795, 6
    %v7299 = vrot.slane %v5818, 6
    %v7303 = vsel %vm222, %v7194, 0
    %7305 = vmatpush.msra.mxu0 0.0
    %7306 = vmatpush.msra.mxu0 0.0
    %7307 = vmatpush.msra.mxu0 0.0
    %7308 = vmatpush.msra.mxu0 0.0
    %7309 = vmatpush.msra.mxu0 0.0
    %7310 = vmatpush.msra.mxu0 0.0
    %7311 = vmatpush.msra.mxu0 0.0
    %7312 = vmatpush.msra.mxu0 0.0
    %7313 = vmatpush.msra.mxu0 %v5747
    %7314 = vmatpush.msra.mxu0 %v5745
    %7315 = vmatpush.msra.mxu0 %v5743
    %7316 = vmatpush.msra.mxu0 %v5741
    %7317 = vmatpush.msra.mxu0 %v5739
    %7318 = vmatpush.msra.mxu0 %v5737
    %7319 = vmatpush.msra.mxu0 %v5735
    %7320 = vmatpush.msra.mxu0 %v5733
    %7321 = vmatmul.f32.gmra.mxu0 %v7303
    %v7322 = vpop.f32.mrf.mxu0
    %v7323 = vadd.f32 %v7298, %v7322
    %7324 = vdwg.mxu0
    %7325 = vmatpush.msra.mxu0 0.0
    %7326 = vmatpush.msra.mxu0 0.0
    %7327 = vmatpush.msra.mxu0 0.0
    %7328 = vmatpush.msra.mxu0 0.0
    %7329 = vmatpush.msra.mxu0 0.0
    %7330 = vmatpush.msra.mxu0 0.0
    %7331 = vmatpush.msra.mxu0 0.0
    %7332 = vmatpush.msra.mxu0 0.0
    %7333 = vmatpush.msra.mxu0 %v5748
    %7334 = vmatpush.msra.mxu0 %v5746
    %7335 = vmatpush.msra.mxu0 %v5744
    %7336 = vmatpush.msra.mxu0 %v5742
    %7337 = vmatpush.msra.mxu0 %v5740
    %7338 = vmatpush.msra.mxu0 %v5738
    %7339 = vmatpush.msra.mxu0 %v5736
    %7340 = vmatpush.msra.mxu0 %v5734
    %7341 = vmatmul.f32.gmra.mxu0 %v7303
    %v7342 = vpop.f32.mrf.mxu0
    %v7343 = vadd.f32 %v7299, %v7342
    %7344 = vdwg.mxu0
    %v7345 = vxor.u32 %v7323, 2147483648
    %v7346 = vxor.u32 %v7343, 2147483648
    %v7347 = vmul.f32 %v7345, 1.442695
    %v7348 = vpow.pop %v7347
    %v7349 = vmul.f32 %v7346, 1.442695
    %v7350 = vpow.pop %v7349
    %v7351 = vadd.f32 %v7348, 1.0
    %v7352 = vadd.f32 %v7350, 1.0
    %v7353 = vrcp.pop %v7351
    %v7354 = vmul.f32 %v7351, %v7353
    %v7355 = vsub.f32 1.0, %v7354
    %v7356 = vmul.f32 %v7353, %v7355
    %v7357 = vadd.f32 %v7353, %v7356
    %vm7358 = vweird.f32 %v7351
    %vm7359 = vweird.f32 %v7353
    %vm7360 = vmor %vm7358, %vm7359
    %v7361 = vsel %vm7360, %v7353, %v7357
    %v7362 = vand.u32 2147483647, %v7351
    %vm7363 = vcmp.eq.f32.partialorder %v7362, 8.507059e+37
    %v7364 = vand.u32 %v7351, 2147483648
    %v7365 = vor.u32 1.1754944e-38, %v7364
    %v7366 = vsel %vm7363, %v7365, %v7361
    %v7367 = vmul.f32 1.0, %v7366
    %v7368 = vrcp.pop %v7352
    %v7369 = vmul.f32 %v7352, %v7368
    %v7370 = vsub.f32 1.0, %v7369
    %v7371 = vmul.f32 %v7368, %v7370
    %v7372 = vadd.f32 %v7368, %v7371
    %vm7373 = vweird.f32 %v7352
    %vm7374 = vweird.f32 %v7368
    %vm7375 = vmor %vm7373, %vm7374
    %v7376 = vsel %vm7375, %v7368, %v7372
    %v7377 = vand.u32 2147483647, %v7352
    %vm7378 = vcmp.eq.f32.partialorder %v7377, 8.507059e+37
    %v7379 = vand.u32 %v7352, 2147483648
    %v7380 = vor.u32 1.1754944e-38, %v7379
    %v7381 = vsel %vm7378, %v7380, %v7376
    %v7382 = vmul.f32 1.0, %v7381
    %v7383 = vtanh.pop %v7343
    %v7384 = vmul.f32 %v7367, %v7188
    %7386 = vrot.lane.b32.xlu0 %v7383, 64
    %v7387 = vpop.permute.xlu0 %7386
    %v7389 = vmul.f32 %v7367, %v7387
    %7391 = vrot.lane.b32.xlu0 %v7389, 64
    %v7392 = vpop.permute.xlu0 %7391
    %v7394 = vadd.f32 %v7384, %v7392
    %v7395 = vtanh.pop %v7394
    %7397 = vrot.lane.b32.xlu0 %v7395, 64
    %v7398 = vpop.permute.xlu0 %7397
    %v7400 = vmul.f32 %v7382, %v7398
    %v7402 = vsel %vm222, %v7297, 0
    %7404 = vmatpush.msra.mxu0 0.0
    %7405 = vmatpush.msra.mxu0 0.0
    %7406 = vmatpush.msra.mxu0 0.0
    %7407 = vmatpush.msra.mxu0 0.0
    %7408 = vmatpush.msra.mxu0 0.0
    %7409 = vmatpush.msra.mxu0 0.0
    %7410 = vmatpush.msra.mxu0 0.0
    %7411 = vmatpush.msra.mxu0 0.0
    %7412 = vmatpush.msra.mxu0 %v5763
    %7413 = vmatpush.msra.mxu0 %v5761
    %7414 = vmatpush.msra.mxu0 %v5759
    %7415 = vmatpush.msra.mxu0 %v5757
    %7416 = vmatpush.msra.mxu0 %v5755
    %7417 = vmatpush.msra.mxu0 %v5753
    %7418 = vmatpush.msra.mxu0 %v5751
    %7419 = vmatpush.msra.mxu0 %v5749
    %7420 = vmatmul.f32.gmra.mxu0 %v7402
    %v7421 = vpop.f32.mrf.mxu0
    %v7422 = vadd.f32 %v5838, %v7421
    %7423 = vdwg.mxu0
    %7424 = vmatpush.msra.mxu0 0.0
    %7425 = vmatpush.msra.mxu0 0.0
    %7426 = vmatpush.msra.mxu0 0.0
    %7427 = vmatpush.msra.mxu0 0.0
    %7428 = vmatpush.msra.mxu0 0.0
    %7429 = vmatpush.msra.mxu0 0.0
    %7430 = vmatpush.msra.mxu0 0.0
    %7431 = vmatpush.msra.mxu0 0.0
    %7432 = vmatpush.msra.mxu0 %v5764
    %7433 = vmatpush.msra.mxu0 %v5762
    %7434 = vmatpush.msra.mxu0 %v5760
    %7435 = vmatpush.msra.mxu0 %v5758
    %7436 = vmatpush.msra.mxu0 %v5756
    %7437 = vmatpush.msra.mxu0 %v5754
    %7438 = vmatpush.msra.mxu0 %v5752
    %7439 = vmatpush.msra.mxu0 %v5750
    %7440 = vmatmul.f32.gmra.mxu0 %v7402
    %v7441 = vpop.f32.mrf.mxu0
    %v7442 = vadd.f32 %v5861, %v7441
    %7443 = vdwg.mxu0
    %v7444 = vxor.u32 %v7422, 2147483648
    %v7445 = vxor.u32 %v7442, 2147483648
    %v7446 = vmul.f32 %v7444, 1.442695
    %v7447 = vpow.pop %v7446
    %v7448 = vmul.f32 %v7445, 1.442695
    %v7449 = vpow.pop %v7448
    %v7450 = vadd.f32 %v7447, 1.0
    %v7451 = vadd.f32 %v7449, 1.0
    %v7452 = vrcp.pop %v7450
    %v7453 = vmul.f32 %v7450, %v7452
    %v7454 = vsub.f32 1.0, %v7453
    %v7455 = vmul.f32 %v7452, %v7454
    %v7456 = vadd.f32 %v7452, %v7455
    %vm7457 = vweird.f32 %v7450
    %vm7458 = vweird.f32 %v7452
    %vm7459 = vmor %vm7457, %vm7458
    %v7460 = vsel %vm7459, %v7452, %v7456
    %v7461 = vand.u32 2147483647, %v7450
    %vm7462 = vcmp.eq.f32.partialorder %v7461, 8.507059e+37
    %v7463 = vand.u32 %v7450, 2147483648
    %v7464 = vor.u32 1.1754944e-38, %v7463
    %v7465 = vsel %vm7462, %v7464, %v7460
    %v7466 = vmul.f32 1.0, %v7465
    %v7467 = vrcp.pop %v7451
    %v7468 = vmul.f32 %v7451, %v7467
    %v7469 = vsub.f32 1.0, %v7468
    %v7470 = vmul.f32 %v7467, %v7469
    %v7471 = vadd.f32 %v7467, %v7470
    %vm7472 = vweird.f32 %v7451
    %vm7473 = vweird.f32 %v7467
    %vm7474 = vmor %vm7472, %vm7473
    %v7475 = vsel %vm7474, %v7467, %v7471
    %v7476 = vand.u32 2147483647, %v7451
    %vm7477 = vcmp.eq.f32.partialorder %v7476, 8.507059e+37
    %v7478 = vand.u32 %v7451, 2147483648
    %v7479 = vor.u32 1.1754944e-38, %v7478
    %v7480 = vsel %vm7477, %v7479, %v7475
    %v7481 = vmul.f32 1.0, %v7480
    %v7482 = vtanh.pop %v7442
    %v7483 = vmul.f32 %v7466, %v7291
    %7485 = vrot.lane.b32.xlu0 %v7482, 64
    %v7486 = vpop.permute.xlu0 %7485
    %v7488 = vmul.f32 %v7466, %v7486
    %7490 = vrot.lane.b32.xlu0 %v7488, 64
    %v7491 = vpop.permute.xlu0 %7490
    %v7493 = vadd.f32 %v7483, %v7491
    %v7494 = vtanh.pop %v7493
    %7496 = vrot.lane.b32.xlu0 %v7494, 64
    %v7497 = vpop.permute.xlu0 %7496
    %v7499 = vmul.f32 %v7481, %v7497
    %v7500 = vrot.slane %v6168, 6
    %v7502 = vrot.slane %v6374, 4
    %v7504 = vrot.slane %v6580, 2
    %v7506 = vrot.slane %v6988, 6
    %v7508 = vrot.slane %v7194, 4
    %v7511 = vrot.slane %v7400, 2
    %v7513 = vsel %vm1873, %v5961, %v7500
    %v7514 = vsel %vm1875, %v7513, %v7502
    %v7515 = vsel %vm1877, %v7514, %v7504
    %v7516 = vsel %vm1873, %v6778, %v7506
    %v7517 = vsel %vm1875, %v7516, %v7508
    %v7518 = vsel %vm1877, %v7517, %v7511
    %v7519 = vrot.slane %v7297, 6
    %v7521 = vrot.slane %v7091, 4
    %v7523 = vrot.slane %v6883, 2
    %v7525 = vrot.slane %v6477, 6
    %v7527 = vrot.slane %v6271, 4
    %v7529 = vrot.slane %v6063, 2
    %v7531 = vsel %vm1873, %v7499, %v7519
    %v7532 = vsel %vm1875, %v7531, %v7521
    %v7533 = vsel %vm1877, %v7532, %v7523
    %v7534 = vsel %vm1873, %v6679, %v7525
    %v7535 = vsel %vm1875, %v7534, %v7527
    %v7536 = vsel %vm1877, %v7535, %v7529
    %7539 = vrot.lane.b32.xlu0 %v7533, 64
    %v7540 = vpop.permute.xlu0 %7539
    %7541 = vrot.lane.b32.xlu0 %v7536, 64
    %v7542 = vpop.permute.xlu0 %7541
    %v7545 = vsel %vm222, %v7515, %v7540
    %v7546 = vsel %vm222, %v7518, %v7542
    %v7547 = vld [vmem:[%s17] sm:$0xff]
    %v7548 = vld [vmem:[%s17 + $0x8] sm:$0xff]
    %v7549 = vld [vmem:[%s17 + $0x10] sm:$0xff]
    %v7550 = vld [vmem:[%s17 + $0x18] sm:$0xff]
    %v7551 = vld [vmem:[%s17 + $0x20] sm:$0xff]
    %v7552 = vld [vmem:[%s17 + $0x28] sm:$0xff]
    %v7553 = vld [vmem:[%s17 + $0x30] sm:$0xff]
    %v7554 = vld [vmem:[%s17 + $0x38] sm:$0xff]
    %v7555 = vld [vmem:[%s17 + $0x40] sm:$0xff]
    %v7556 = vld [vmem:[%s17 + $0x48] sm:$0xff]
    %v7557 = vld [vmem:[%s17 + $0x50] sm:$0xff]
    %v7558 = vld [vmem:[%s17 + $0x58] sm:$0xff]
    %v7559 = vld [vmem:[%s17 + $0x60] sm:$0xff]
    %v7560 = vld [vmem:[%s17 + $0x68] sm:$0xff]
    %v7561 = vld [vmem:[%s17 + $0x70] sm:$0xff]
    %v7562 = vld [vmem:[%s17 + $0x78] sm:$0xff]
    %v7563 = vld [vmem:[%s17 + $0x80] sm:$0xff]
    %v7564 = vld [vmem:[%s17 + $0x88] sm:$0xff]
    %v7565 = vld [vmem:[%s17 + $0x90] sm:$0xff]
    %v7566 = vld [vmem:[%s17 + $0x98] sm:$0xff]
    %v7567 = vld [vmem:[%s17 + $0xa0] sm:$0xff]
    %v7568 = vld [vmem:[%s17 + $0xa8] sm:$0xff]
    %v7569 = vld [vmem:[%s17 + $0xb0] sm:$0xff]
    %v7570 = vld [vmem:[%s17 + $0xb8] sm:$0xff]
    %v7571 = vld [vmem:[%s17 + $0xc0] sm:$0xff]
    %v7572 = vld [vmem:[%s17 + $0xc8] sm:$0xff]
    %v7573 = vld [vmem:[%s17 + $0xd0] sm:$0xff]
    %v7574 = vld [vmem:[%s17 + $0xd8] sm:$0xff]
    %v7575 = vld [vmem:[%s17 + $0xe0] sm:$0xff]
    %v7576 = vld [vmem:[%s17 + $0xe8] sm:$0xff]
    %v7577 = vld [vmem:[%s17 + $0xf0] sm:$0xff]
    %v7578 = vld [vmem:[%s17 + $0xf8] sm:$0xff]
    %v7579 = vld [vmem:[%s17 + $0x100] sm:$0xff]
    %v7580 = vld [vmem:[%s17 + $0x108] sm:$0xff]
    %v7581 = vld [vmem:[%s17 + $0x110] sm:$0xff]
    %v7582 = vld [vmem:[%s17 + $0x118] sm:$0xff]
    %v7583 = vld [vmem:[%s17 + $0x120] sm:$0xff]
    %v7584 = vld [vmem:[%s17 + $0x128] sm:$0xff]
    %v7585 = vld [vmem:[%s17 + $0x130] sm:$0xff]
    %v7586 = vld [vmem:[%s17 + $0x138] sm:$0xff]
    %v7587 = vld [vmem:[%s17 + $0x140] sm:$0xff]
    %v7588 = vld [vmem:[%s17 + $0x148] sm:$0xff]
    %v7589 = vld [vmem:[%s17 + $0x150] sm:$0xff]
    %v7590 = vld [vmem:[%s17 + $0x158] sm:$0xff]
    %v7591 = vld [vmem:[%s17 + $0x160] sm:$0xff]
    %v7592 = vld [vmem:[%s17 + $0x168] sm:$0xff]
    %v7593 = vld [vmem:[%s17 + $0x170] sm:$0xff]
    %v7594 = vld [vmem:[%s17 + $0x178] sm:$0xff]
    %v7595 = vld [vmem:[%s17 + $0x180] sm:$0xff]
    %v7596 = vld [vmem:[%s17 + $0x188] sm:$0xff]
    %v7597 = vld [vmem:[%s17 + $0x190] sm:$0xff]
    %v7598 = vld [vmem:[%s17 + $0x198] sm:$0xff]
    %v7599 = vld [vmem:[%s17 + $0x1a0] sm:$0xff]
    %v7600 = vld [vmem:[%s17 + $0x1a8] sm:$0xff]
    %v7601 = vld [vmem:[%s17 + $0x1b0] sm:$0xff]
    %v7602 = vld [vmem:[%s17 + $0x1b8] sm:$0xff]
    %v7603 = vld [vmem:[%s17 + $0x1c0] sm:$0xff]
    %v7604 = vld [vmem:[%s17 + $0x1c8] sm:$0xff]
    %v7605 = vld [vmem:[%s17 + $0x1d0] sm:$0xff]
    %v7606 = vld [vmem:[%s17 + $0x1d8] sm:$0xff]
    %v7607 = vld [vmem:[%s17 + $0x1e0] sm:$0xff]
    %v7608 = vld [vmem:[%s17 + $0x1e8] sm:$0xff]
    %v7609 = vld [vmem:[%s17 + $0x1f0] sm:$0xff]
    %v7610 = vld [vmem:[%s17 + $0x1f8] sm:$0xff]
    %v7611 = vld [vmem:[%s18] sm:$0xf]
    %v7612 = vld [vmem:[%s19] sm:$0xff]
    %v7613 = vld [vmem:[%s19 + $0x8] sm:$0xff]
    %v7614 = vld [vmem:[%s19 + $0x10] sm:$0xff]
    %v7615 = vld [vmem:[%s19 + $0x18] sm:$0xff]
    %v7616 = vld [vmem:[%s19 + $0x20] sm:$0xff]
    %v7617 = vld [vmem:[%s19 + $0x28] sm:$0xff]
    %v7618 = vld [vmem:[%s19 + $0x30] sm:$0xff]
    %v7619 = vld [vmem:[%s19 + $0x38] sm:$0xff]
    %v7620 = vld [vmem:[%s19 + $0x40] sm:$0xff]
    %v7621 = vld [vmem:[%s19 + $0x48] sm:$0xff]
    %v7622 = vld [vmem:[%s19 + $0x50] sm:$0xff]
    %v7623 = vld [vmem:[%s19 + $0x58] sm:$0xff]
    %v7624 = vld [vmem:[%s19 + $0x60] sm:$0xff]
    %v7625 = vld [vmem:[%s19 + $0x68] sm:$0xff]
    %v7626 = vld [vmem:[%s19 + $0x70] sm:$0xff]
    %v7627 = vld [vmem:[%s19 + $0x78] sm:$0xff]
    %v7628 = vld [vmem:[%s20] sm:$0xff]
    %v7629 = vld [vmem:[%s20 + $0x8] sm:$0xff]
    %v7630 = vld [vmem:[%s20 + $0x10] sm:$0xff]
    %v7631 = vld [vmem:[%s20 + $0x18] sm:$0xff]
    %v7632 = vld [vmem:[%s20 + $0x20] sm:$0xff]
    %v7633 = vld [vmem:[%s20 + $0x28] sm:$0xff]
    %v7634 = vld [vmem:[%s20 + $0x30] sm:$0xff]
    %v7635 = vld [vmem:[%s20 + $0x38] sm:$0xff]
    %v7636 = vld [vmem:[%s20 + $0x40] sm:$0xff]
    %v7637 = vld [vmem:[%s20 + $0x48] sm:$0xff]
    %v7638 = vld [vmem:[%s20 + $0x50] sm:$0xff]
    %v7639 = vld [vmem:[%s20 + $0x58] sm:$0xff]
    %v7640 = vld [vmem:[%s20 + $0x60] sm:$0xff]
    %v7641 = vld [vmem:[%s20 + $0x68] sm:$0xff]
    %v7642 = vld [vmem:[%s20 + $0x70] sm:$0xff]
    %v7643 = vld [vmem:[%s20 + $0x78] sm:$0xff]
    %v7645 = vperm.slane %v7611, 0
    %v7646 = vperm.slane %v7611, 1
    %v7647 = vperm.slane %v7611, 2
    %v7648 = vperm.slane %v7611, 3
    %7653 = vmatpush.msra.mxu0 %v7607
    %7654 = vmatpush.msra.mxu0 %v7603
    %7655 = vmatpush.msra.mxu0 %v7599
    %7656 = vmatpush.msra.mxu0 %v7595
    %7657 = vmatpush.msra.mxu0 %v7591
    %7658 = vmatpush.msra.mxu0 %v7587
    %7659 = vmatpush.msra.mxu0 %v7583
    %7660 = vmatpush.msra.mxu0 %v7579
    %7661 = vmatpush.msra.mxu0 %v7575
    %7662 = vmatpush.msra.mxu0 %v7571
    %7663 = vmatpush.msra.mxu0 %v7567
    %7664 = vmatpush.msra.mxu0 %v7563
    %7665 = vmatpush.msra.mxu0 %v7559
    %7666 = vmatpush.msra.mxu0 %v7555
    %7667 = vmatpush.msra.mxu0 %v7551
    %7668 = vmatpush.msra.mxu0 %v7547
    %7669 = vmatmul.f32.gmra.mxu0 %v7545
    %v7670 = vpop.f32.mrf.mxu0
    %v7671 = vadd.f32 %v7645, %v7670
    %7672 = vmatmul.f32.gmra.mxu0 %v7546
    %v7673 = vpop.f32.mrf.mxu0
    %v7674 = vadd.f32 %v7645, %v7673
    %7675 = vdwg.mxu0
    %7676 = vmatpush.msra.mxu0 %v7608
    %7677 = vmatpush.msra.mxu0 %v7604
    %7678 = vmatpush.msra.mxu0 %v7600
    %7679 = vmatpush.msra.mxu0 %v7596
    %7680 = vmatpush.msra.mxu0 %v7592
    %7681 = vmatpush.msra.mxu0 %v7588
    %7682 = vmatpush.msra.mxu0 %v7584
    %7683 = vmatpush.msra.mxu0 %v7580
    %7684 = vmatpush.msra.mxu0 %v7576
    %7685 = vmatpush.msra.mxu0 %v7572
    %7686 = vmatpush.msra.mxu0 %v7568
    %7687 = vmatpush.msra.mxu0 %v7564
    %7688 = vmatpush.msra.mxu0 %v7560
    %7689 = vmatpush.msra.mxu0 %v7556
    %7690 = vmatpush.msra.mxu0 %v7552
    %7691 = vmatpush.msra.mxu0 %v7548
    %7692 = vmatmul.f32.gmra.mxu0 %v7545
    %v7693 = vpop.f32.mrf.mxu0
    %v7694 = vadd.f32 %v7646, %v7693
    %7695 = vmatmul.f32.gmra.mxu0 %v7546
    %v7696 = vpop.f32.mrf.mxu0
    %v7697 = vadd.f32 %v7646, %v7696
    %7698 = vdwg.mxu0
    %7699 = vmatpush.msra.mxu0 %v7609
    %7700 = vmatpush.msra.mxu0 %v7605
    %7701 = vmatpush.msra.mxu0 %v7601
    %7702 = vmatpush.msra.mxu0 %v7597
    %7703 = vmatpush.msra.mxu0 %v7593
    %7704 = vmatpush.msra.mxu0 %v7589
    %7705 = vmatpush.msra.mxu0 %v7585
    %7706 = vmatpush.msra.mxu0 %v7581
    %7707 = vmatpush.msra.mxu0 %v7577
    %7708 = vmatpush.msra.mxu0 %v7573
    %7709 = vmatpush.msra.mxu0 %v7569
    %7710 = vmatpush.msra.mxu0 %v7565
    %7711 = vmatpush.msra.mxu0 %v7561
    %7712 = vmatpush.msra.mxu0 %v7557
    %7713 = vmatpush.msra.mxu0 %v7553
    %7714 = vmatpush.msra.mxu0 %v7549
    %7715 = vmatmul.f32.gmra.mxu0 %v7545
    %v7716 = vpop.f32.mrf.mxu0
    %7717 = vmatmul.f32.gmra.mxu0 %v7546
    %v7718 = vpop.f32.mrf.mxu0
    %v7719 = vadd.f32 %v7647, %v7718
    %7720 = vdwg.mxu0
    %7721 = vmatpush.msra.mxu0 %v7610
    %7722 = vmatpush.msra.mxu0 %v7606
    %7723 = vmatpush.msra.mxu0 %v7602
    %7724 = vmatpush.msra.mxu0 %v7598
    %7725 = vmatpush.msra.mxu0 %v7594
    %7726 = vmatpush.msra.mxu0 %v7590
    %7727 = vmatpush.msra.mxu0 %v7586
    %7728 = vmatpush.msra.mxu0 %v7582
    %7729 = vmatpush.msra.mxu0 %v7578
    %7730 = vmatpush.msra.mxu0 %v7574
    %7731 = vmatpush.msra.mxu0 %v7570
    %7732 = vmatpush.msra.mxu0 %v7566
    %7733 = vmatpush.msra.mxu0 %v7562
    %7734 = vmatpush.msra.mxu0 %v7558
    %7735 = vmatpush.msra.mxu0 %v7554
    %7736 = vmatpush.msra.mxu0 %v7550
    %7737 = vmatmul.f32.gmra.mxu0 %v7545
    %v7738 = vpop.f32.mrf.mxu0
    %7739 = vmatmul.f32.gmra.mxu0 %v7546
    %v7740 = vpop.f32.mrf.mxu0
    %v7741 = vadd.f32 %v7648, %v7740
    %7742 = vdwg.mxu0
    %7743 = vmatpush.msra.mxu0 0.0
    %7744 = vmatpush.msra.mxu0 0.0
    %7745 = vmatpush.msra.mxu0 0.0
    %7746 = vmatpush.msra.mxu0 0.0
    %7747 = vmatpush.msra.mxu0 0.0
    %7748 = vmatpush.msra.mxu0 0.0
    %7749 = vmatpush.msra.mxu0 0.0
    %7750 = vmatpush.msra.mxu0 0.0
    %7751 = vmatpush.msra.mxu0 %v7626
    %7752 = vmatpush.msra.mxu0 %v7624
    %7753 = vmatpush.msra.mxu0 %v7622
    %7754 = vmatpush.msra.mxu0 %v7620
    %7755 = vmatpush.msra.mxu0 %v7618
    %7756 = vmatpush.msra.mxu0 %v7616
    %7757 = vmatpush.msra.mxu0 %v7614
    %7758 = vmatpush.msra.mxu0 %v7612
    %7759 = vmatmul.f32.gmra.mxu0 %v224
    %v7760 = vpop.f32.mrf.mxu0
    %v7761 = vadd.f32 %v7671, %v7760
    %7762 = vdwg.mxu0
    %7763 = vmatpush.msra.mxu0 0.0
    %7764 = vmatpush.msra.mxu0 0.0
    %7765 = vmatpush.msra.mxu0 0.0
    %7766 = vmatpush.msra.mxu0 0.0
    %7767 = vmatpush.msra.mxu0 0.0
    %7768 = vmatpush.msra.mxu0 0.0
    %7769 = vmatpush.msra.mxu0 0.0
    %7770 = vmatpush.msra.mxu0 0.0
    %7771 = vmatpush.msra.mxu0 %v7627
    %7772 = vmatpush.msra.mxu0 %v7625
    %7773 = vmatpush.msra.mxu0 %v7623
    %7774 = vmatpush.msra.mxu0 %v7621
    %7775 = vmatpush.msra.mxu0 %v7619
    %7776 = vmatpush.msra.mxu0 %v7617
    %7777 = vmatpush.msra.mxu0 %v7615
    %7778 = vmatpush.msra.mxu0 %v7613
    %7779 = vmatmul.f32.gmra.mxu0 %v224
    %v7780 = vpop.f32.mrf.mxu0
    %v7781 = vadd.f32 %v7694, %v7780
    %7782 = vdwg.mxu0
    %v7783 = vxor.u32 %v7761, 2147483648
    %v7784 = vxor.u32 %v7781, 2147483648
    %v7785 = vmul.f32 %v7783, 1.442695
    %v7786 = vpow.pop %v7785
    %v7787 = vmul.f32 %v7784, 1.442695
    %v7788 = vpow.pop %v7787
    %v7789 = vadd.f32 %v7786, 1.0
    %v7790 = vadd.f32 %v7788, 1.0
    %v7791 = vrcp.pop %v7789
    %v7792 = vmul.f32 %v7789, %v7791
    %v7793 = vsub.f32 1.0, %v7792
    %v7794 = vmul.f32 %v7791, %v7793
    %v7795 = vadd.f32 %v7791, %v7794
    %vm7796 = vweird.f32 %v7789
    %vm7797 = vweird.f32 %v7791
    %vm7798 = vmor %vm7796, %vm7797
    %v7799 = vsel %vm7798, %v7791, %v7795
    %v7800 = vand.u32 2147483647, %v7789
    %vm7801 = vcmp.eq.f32.partialorder %v7800, 8.507059e+37
    %v7802 = vand.u32 %v7789, 2147483648
    %v7803 = vor.u32 1.1754944e-38, %v7802
    %v7804 = vsel %vm7801, %v7803, %v7799
    %v7805 = vmul.f32 1.0, %v7804
    %v7806 = vrcp.pop %v7790
    %v7807 = vmul.f32 %v7790, %v7806
    %v7808 = vsub.f32 1.0, %v7807
    %v7809 = vmul.f32 %v7806, %v7808
    %v7810 = vadd.f32 %v7806, %v7809
    %vm7811 = vweird.f32 %v7790
    %vm7812 = vweird.f32 %v7806
    %vm7813 = vmor %vm7811, %vm7812
    %v7814 = vsel %vm7813, %v7806, %v7810
    %v7815 = vand.u32 2147483647, %v7790
    %vm7816 = vcmp.eq.f32.partialorder %v7815, 8.507059e+37
    %v7817 = vand.u32 %v7790, 2147483648
    %v7818 = vor.u32 1.1754944e-38, %v7817
    %v7819 = vsel %vm7816, %v7818, %v7814
    %v7820 = vmul.f32 1.0, %v7819
    %v7821 = vtanh.pop %v7781
    %v7822 = vmul.f32 %v7805, 0.0
    %7824 = vrot.lane.b32.xlu0 %v7821, 64
    %v7825 = vpop.permute.xlu0 %7824
    %v7827 = vmul.f32 %v7805, %v7825
    %7829 = vrot.lane.b32.xlu0 %v7827, 64
    %v7830 = vpop.permute.xlu0 %7829
    %v7832 = vadd.f32 %v7822, %v7830
    %v7833 = vtanh.pop %v7832
    %7835 = vrot.lane.b32.xlu0 %v7833, 64
    %v7836 = vpop.permute.xlu0 %7835
    %v7838 = vmul.f32 %v7820, %v7836
    %v7841 = vrot.slane %v7719, 6
    %v7842 = vrot.slane %v7741, 6
    %7845 = vmatpush.msra.mxu0 0.0
    %7846 = vmatpush.msra.mxu0 0.0
    %7847 = vmatpush.msra.mxu0 0.0
    %7848 = vmatpush.msra.mxu0 0.0
    %7849 = vmatpush.msra.mxu0 0.0
    %7850 = vmatpush.msra.mxu0 0.0
    %7851 = vmatpush.msra.mxu0 0.0
    %7852 = vmatpush.msra.mxu0 0.0
    %7853 = vmatpush.msra.mxu0 %v7642
    %7854 = vmatpush.msra.mxu0 %v7640
    %7855 = vmatpush.msra.mxu0 %v7638
    %7856 = vmatpush.msra.mxu0 %v7636
    %7857 = vmatpush.msra.mxu0 %v7634
    %7858 = vmatpush.msra.mxu0 %v7632
    %7859 = vmatpush.msra.mxu0 %v7630
    %7860 = vmatpush.msra.mxu0 %v7628
    %7861 = vmatmul.f32.gmra.mxu0 %v224
    %v7862 = vpop.f32.mrf.mxu0
    %v7863 = vadd.f32 %v7841, %v7862
    %7864 = vdwg.mxu0
    %7865 = vmatpush.msra.mxu0 0.0
    %7866 = vmatpush.msra.mxu0 0.0
    %7867 = vmatpush.msra.mxu0 0.0
    %7868 = vmatpush.msra.mxu0 0.0
    %7869 = vmatpush.msra.mxu0 0.0
    %7870 = vmatpush.msra.mxu0 0.0
    %7871 = vmatpush.msra.mxu0 0.0
    %7872 = vmatpush.msra.mxu0 0.0
    %7873 = vmatpush.msra.mxu0 %v7643
    %7874 = vmatpush.msra.mxu0 %v7641
    %7875 = vmatpush.msra.mxu0 %v7639
    %7876 = vmatpush.msra.mxu0 %v7637
    %7877 = vmatpush.msra.mxu0 %v7635
    %7878 = vmatpush.msra.mxu0 %v7633
    %7879 = vmatpush.msra.mxu0 %v7631
    %7880 = vmatpush.msra.mxu0 %v7629
    %7881 = vmatmul.f32.gmra.mxu0 %v224
    %v7882 = vpop.f32.mrf.mxu0
    %v7883 = vadd.f32 %v7842, %v7882
    %7884 = vdwg.mxu0
    %v7885 = vxor.u32 %v7863, 2147483648
    %v7886 = vxor.u32 %v7883, 2147483648
    %v7887 = vmul.f32 %v7885, 1.442695
    %v7888 = vpow.pop %v7887
    %v7889 = vmul.f32 %v7886, 1.442695
    %v7890 = vpow.pop %v7889
    %v7891 = vadd.f32 %v7888, 1.0
    %v7892 = vadd.f32 %v7890, 1.0
    %v7893 = vrcp.pop %v7891
    %v7894 = vmul.f32 %v7891, %v7893
    %v7895 = vsub.f32 1.0, %v7894
    %v7896 = vmul.f32 %v7893, %v7895
    %v7897 = vadd.f32 %v7893, %v7896
    %vm7898 = vweird.f32 %v7891
    %vm7899 = vweird.f32 %v7893
    %vm7900 = vmor %vm7898, %vm7899
    %v7901 = vsel %vm7900, %v7893, %v7897
    %v7902 = vand.u32 2147483647, %v7891
    %vm7903 = vcmp.eq.f32.partialorder %v7902, 8.507059e+37
    %v7904 = vand.u32 %v7891, 2147483648
    %v7905 = vor.u32 1.1754944e-38, %v7904
    %v7906 = vsel %vm7903, %v7905, %v7901
    %v7907 = vmul.f32 1.0, %v7906
    %v7908 = vrcp.pop %v7892
    %v7909 = vmul.f32 %v7892, %v7908
    %v7910 = vsub.f32 1.0, %v7909
    %v7911 = vmul.f32 %v7908, %v7910
    %v7912 = vadd.f32 %v7908, %v7911
    %vm7913 = vweird.f32 %v7892
    %vm7914 = vweird.f32 %v7908
    %vm7915 = vmor %vm7913, %vm7914
    %v7916 = vsel %vm7915, %v7908, %v7912
    %v7917 = vand.u32 2147483647, %v7892
    %vm7918 = vcmp.eq.f32.partialorder %v7917, 8.507059e+37
    %v7919 = vand.u32 %v7892, 2147483648
    %v7920 = vor.u32 1.1754944e-38, %v7919
    %v7921 = vsel %vm7918, %v7920, %v7916
    %v7922 = vmul.f32 1.0, %v7921
    %v7923 = vtanh.pop %v7883
    %v7924 = vmul.f32 %v7907, 0.0
    %7926 = vrot.lane.b32.xlu0 %v7923, 64
    %v7927 = vpop.permute.xlu0 %7926
    %v7929 = vmul.f32 %v7907, %v7927
    %7931 = vrot.lane.b32.xlu0 %v7929, 64
    %v7932 = vpop.permute.xlu0 %7931
    %v7934 = vadd.f32 %v7924, %v7932
    %v7935 = vtanh.pop %v7934
    %7937 = vrot.lane.b32.xlu0 %v7935, 64
    %v7938 = vpop.permute.xlu0 %7937
    %v7940 = vmul.f32 %v7922, %v7938
    %v7943 = vrot.slane %v7671, 2
    %v7944 = vrot.slane %v7694, 2
    %v7948 = vsel %vm222, %v7838, 0
    %7950 = vmatpush.msra.mxu0 0.0
    %7951 = vmatpush.msra.mxu0 0.0
    %7952 = vmatpush.msra.mxu0 0.0
    %7953 = vmatpush.msra.mxu0 0.0
    %7954 = vmatpush.msra.mxu0 0.0
    %7955 = vmatpush.msra.mxu0 0.0
    %7956 = vmatpush.msra.mxu0 0.0
    %7957 = vmatpush.msra.mxu0 0.0
    %7958 = vmatpush.msra.mxu0 %v7626
    %7959 = vmatpush.msra.mxu0 %v7624
    %7960 = vmatpush.msra.mxu0 %v7622
    %7961 = vmatpush.msra.mxu0 %v7620
    %7962 = vmatpush.msra.mxu0 %v7618
    %7963 = vmatpush.msra.mxu0 %v7616
    %7964 = vmatpush.msra.mxu0 %v7614
    %7965 = vmatpush.msra.mxu0 %v7612
    %7966 = vmatmul.f32.gmra.mxu0 %v7948
    %v7967 = vpop.f32.mrf.mxu0
    %v7968 = vadd.f32 %v7943, %v7967
    %7969 = vdwg.mxu0
    %7970 = vmatpush.msra.mxu0 0.0
    %7971 = vmatpush.msra.mxu0 0.0
    %7972 = vmatpush.msra.mxu0 0.0
    %7973 = vmatpush.msra.mxu0 0.0
    %7974 = vmatpush.msra.mxu0 0.0
    %7975 = vmatpush.msra.mxu0 0.0
    %7976 = vmatpush.msra.mxu0 0.0
    %7977 = vmatpush.msra.mxu0 0.0
    %7978 = vmatpush.msra.mxu0 %v7627
    %7979 = vmatpush.msra.mxu0 %v7625
    %7980 = vmatpush.msra.mxu0 %v7623
    %7981 = vmatpush.msra.mxu0 %v7621
    %7982 = vmatpush.msra.mxu0 %v7619
    %7983 = vmatpush.msra.mxu0 %v7617
    %7984 = vmatpush.msra.mxu0 %v7615
    %7985 = vmatpush.msra.mxu0 %v7613
    %7986 = vmatmul.f32.gmra.mxu0 %v7948
    %v7987 = vpop.f32.mrf.mxu0
    %v7988 = vadd.f32 %v7944, %v7987
    %7989 = vdwg.mxu0
    %v7990 = vxor.u32 %v7968, 2147483648
    %v7991 = vxor.u32 %v7988, 2147483648
    %v7992 = vmul.f32 %v7990, 1.442695
    %v7993 = vpow.pop %v7992
    %v7994 = vmul.f32 %v7991, 1.442695
    %v7995 = vpow.pop %v7994
    %v7996 = vadd.f32 %v7993, 1.0
    %v7997 = vadd.f32 %v7995, 1.0
    %v7998 = vrcp.pop %v7996
    %v7999 = vmul.f32 %v7996, %v7998
    %v8000 = vsub.f32 1.0, %v7999
    %v8001 = vmul.f32 %v7998, %v8000
    %v8002 = vadd.f32 %v7998, %v8001
    %vm8003 = vweird.f32 %v7996
    %vm8004 = vweird.f32 %v7998
    %vm8005 = vmor %vm8003, %vm8004
    %v8006 = vsel %vm8005, %v7998, %v8002
    %v8007 = vand.u32 2147483647, %v7996
    %vm8008 = vcmp.eq.f32.partialorder %v8007, 8.507059e+37
    %v8009 = vand.u32 %v7996, 2147483648
    %v8010 = vor.u32 1.1754944e-38, %v8009
    %v8011 = vsel %vm8008, %v8010, %v8006
    %v8012 = vmul.f32 1.0, %v8011
    %v8013 = vrcp.pop %v7997
    %v8014 = vmul.f32 %v7997, %v8013
    %v8015 = vsub.f32 1.0, %v8014
    %v8016 = vmul.f32 %v8013, %v8015
    %v8017 = vadd.f32 %v8013, %v8016
    %vm8018 = vweird.f32 %v7997
    %vm8019 = vweird.f32 %v8013
    %vm8020 = vmor %vm8018, %vm8019
    %v8021 = vsel %vm8020, %v8013, %v8017
    %v8022 = vand.u32 2147483647, %v7997
    %vm8023 = vcmp.eq.f32.partialorder %v8022, 8.507059e+37
    %v8024 = vand.u32 %v7997, 2147483648
    %v8025 = vor.u32 1.1754944e-38, %v8024
    %v8026 = vsel %vm8023, %v8025, %v8021
    %v8027 = vmul.f32 1.0, %v8026
    %v8028 = vtanh.pop %v7988
    %v8029 = vmul.f32 %v8012, %v7832
    %8031 = vrot.lane.b32.xlu0 %v8028, 64
    %v8032 = vpop.permute.xlu0 %8031
    %v8034 = vmul.f32 %v8012, %v8032
    %8036 = vrot.lane.b32.xlu0 %v8034, 64
    %v8037 = vpop.permute.xlu0 %8036
    %v8039 = vadd.f32 %v8029, %v8037
    %v8040 = vtanh.pop %v8039
    %8042 = vrot.lane.b32.xlu0 %v8040, 64
    %v8043 = vpop.permute.xlu0 %8042
    %v8045 = vmul.f32 %v8027, %v8043
    %v8046 = vrot.slane %v7671, 4
    %v8047 = vrot.slane %v7694, 4
    %v8051 = vsel %vm222, %v8045, 0
    %8053 = vmatpush.msra.mxu0 0.0
    %8054 = vmatpush.msra.mxu0 0.0
    %8055 = vmatpush.msra.mxu0 0.0
    %8056 = vmatpush.msra.mxu0 0.0
    %8057 = vmatpush.msra.mxu0 0.0
    %8058 = vmatpush.msra.mxu0 0.0
    %8059 = vmatpush.msra.mxu0 0.0
    %8060 = vmatpush.msra.mxu0 0.0
    %8061 = vmatpush.msra.mxu0 %v7626
    %8062 = vmatpush.msra.mxu0 %v7624
    %8063 = vmatpush.msra.mxu0 %v7622
    %8064 = vmatpush.msra.mxu0 %v7620
    %8065 = vmatpush.msra.mxu0 %v7618
    %8066 = vmatpush.msra.mxu0 %v7616
    %8067 = vmatpush.msra.mxu0 %v7614
    %8068 = vmatpush.msra.mxu0 %v7612
    %8069 = vmatmul.f32.gmra.mxu0 %v8051
    %v8070 = vpop.f32.mrf.mxu0
    %v8071 = vadd.f32 %v8046, %v8070
    %8072 = vdwg.mxu0
    %8073 = vmatpush.msra.mxu0 0.0
    %8074 = vmatpush.msra.mxu0 0.0
    %8075 = vmatpush.msra.mxu0 0.0
    %8076 = vmatpush.msra.mxu0 0.0
    %8077 = vmatpush.msra.mxu0 0.0
    %8078 = vmatpush.msra.mxu0 0.0
    %8079 = vmatpush.msra.mxu0 0.0
    %8080 = vmatpush.msra.mxu0 0.0
    %8081 = vmatpush.msra.mxu0 %v7627
    %8082 = vmatpush.msra.mxu0 %v7625
    %8083 = vmatpush.msra.mxu0 %v7623
    %8084 = vmatpush.msra.mxu0 %v7621
    %8085 = vmatpush.msra.mxu0 %v7619
    %8086 = vmatpush.msra.mxu0 %v7617
    %8087 = vmatpush.msra.mxu0 %v7615
    %8088 = vmatpush.msra.mxu0 %v7613
    %8089 = vmatmul.f32.gmra.mxu0 %v8051
    %v8090 = vpop.f32.mrf.mxu0
    %v8091 = vadd.f32 %v8047, %v8090
    %8092 = vdwg.mxu0
    %v8093 = vxor.u32 %v8071, 2147483648
    %v8094 = vxor.u32 %v8091, 2147483648
    %v8095 = vmul.f32 %v8093, 1.442695
    %v8096 = vpow.pop %v8095
    %v8097 = vmul.f32 %v8094, 1.442695
    %v8098 = vpow.pop %v8097
    %v8099 = vadd.f32 %v8096, 1.0
    %v8100 = vadd.f32 %v8098, 1.0
    %v8101 = vrcp.pop %v8099
    %v8102 = vmul.f32 %v8099, %v8101
    %v8103 = vsub.f32 1.0, %v8102
    %v8104 = vmul.f32 %v8101, %v8103
    %v8105 = vadd.f32 %v8101, %v8104
    %vm8106 = vweird.f32 %v8099
    %vm8107 = vweird.f32 %v8101
    %vm8108 = vmor %vm8106, %vm8107
    %v8109 = vsel %vm8108, %v8101, %v8105
    %v8110 = vand.u32 2147483647, %v8099
    %vm8111 = vcmp.eq.f32.partialorder %v8110, 8.507059e+37
    %v8112 = vand.u32 %v8099, 2147483648
    %v8113 = vor.u32 1.1754944e-38, %v8112
    %v8114 = vsel %vm8111, %v8113, %v8109
    %v8115 = vmul.f32 1.0, %v8114
    %v8116 = vrcp.pop %v8100
    %v8117 = vmul.f32 %v8100, %v8116
    %v8118 = vsub.f32 1.0, %v8117
    %v8119 = vmul.f32 %v8116, %v8118
    %v8120 = vadd.f32 %v8116, %v8119
    %vm8121 = vweird.f32 %v8100
    %vm8122 = vweird.f32 %v8116
    %vm8123 = vmor %vm8121, %vm8122
    %v8124 = vsel %vm8123, %v8116, %v8120
    %v8125 = vand.u32 2147483647, %v8100
    %vm8126 = vcmp.eq.f32.partialorder %v8125, 8.507059e+37
    %v8127 = vand.u32 %v8100, 2147483648
    %v8128 = vor.u32 1.1754944e-38, %v8127
    %v8129 = vsel %vm8126, %v8128, %v8124
    %v8130 = vmul.f32 1.0, %v8129
    %v8131 = vtanh.pop %v8091
    %v8132 = vmul.f32 %v8115, %v8039
    %8134 = vrot.lane.b32.xlu0 %v8131, 64
    %v8135 = vpop.permute.xlu0 %8134
    %v8137 = vmul.f32 %v8115, %v8135
    %8139 = vrot.lane.b32.xlu0 %v8137, 64
    %v8140 = vpop.permute.xlu0 %8139
    %v8142 = vadd.f32 %v8132, %v8140
    %v8143 = vtanh.pop %v8142
    %8145 = vrot.lane.b32.xlu0 %v8143, 64
    %v8146 = vpop.permute.xlu0 %8145
    %v8148 = vmul.f32 %v8130, %v8146
    %v8149 = vrot.slane %v7671, 6
    %v8150 = vrot.slane %v7694, 6
    %v8154 = vsel %vm222, %v8148, 0
    %8156 = vmatpush.msra.mxu0 0.0
    %8157 = vmatpush.msra.mxu0 0.0
    %8158 = vmatpush.msra.mxu0 0.0
    %8159 = vmatpush.msra.mxu0 0.0
    %8160 = vmatpush.msra.mxu0 0.0
    %8161 = vmatpush.msra.mxu0 0.0
    %8162 = vmatpush.msra.mxu0 0.0
    %8163 = vmatpush.msra.mxu0 0.0
    %8164 = vmatpush.msra.mxu0 %v7626
    %8165 = vmatpush.msra.mxu0 %v7624
    %8166 = vmatpush.msra.mxu0 %v7622
    %8167 = vmatpush.msra.mxu0 %v7620
    %8168 = vmatpush.msra.mxu0 %v7618
    %8169 = vmatpush.msra.mxu0 %v7616
    %8170 = vmatpush.msra.mxu0 %v7614
    %8171 = vmatpush.msra.mxu0 %v7612
    %8172 = vmatmul.f32.gmra.mxu0 %v8154
    %v8173 = vpop.f32.mrf.mxu0
    %v8174 = vadd.f32 %v8149, %v8173
    %8175 = vdwg.mxu0
    %8176 = vmatpush.msra.mxu0 0.0
    %8177 = vmatpush.msra.mxu0 0.0
    %8178 = vmatpush.msra.mxu0 0.0
    %8179 = vmatpush.msra.mxu0 0.0
    %8180 = vmatpush.msra.mxu0 0.0
    %8181 = vmatpush.msra.mxu0 0.0
    %8182 = vmatpush.msra.mxu0 0.0
    %8183 = vmatpush.msra.mxu0 0.0
    %8184 = vmatpush.msra.mxu0 %v7627
    %8185 = vmatpush.msra.mxu0 %v7625
    %8186 = vmatpush.msra.mxu0 %v7623
    %8187 = vmatpush.msra.mxu0 %v7621
    %8188 = vmatpush.msra.mxu0 %v7619
    %8189 = vmatpush.msra.mxu0 %v7617
    %8190 = vmatpush.msra.mxu0 %v7615
    %8191 = vmatpush.msra.mxu0 %v7613
    %8192 = vmatmul.f32.gmra.mxu0 %v8154
    %v8193 = vpop.f32.mrf.mxu0
    %v8194 = vadd.f32 %v8150, %v8193
    %8195 = vdwg.mxu0
    %v8196 = vxor.u32 %v8174, 2147483648
    %v8197 = vxor.u32 %v8194, 2147483648
    %v8198 = vmul.f32 %v8196, 1.442695
    %v8199 = vpow.pop %v8198
    %v8200 = vmul.f32 %v8197, 1.442695
    %v8201 = vpow.pop %v8200
    %v8202 = vadd.f32 %v8199, 1.0
    %v8203 = vadd.f32 %v8201, 1.0
    %v8204 = vrcp.pop %v8202
    %v8205 = vmul.f32 %v8202, %v8204
    %v8206 = vsub.f32 1.0, %v8205
    %v8207 = vmul.f32 %v8204, %v8206
    %v8208 = vadd.f32 %v8204, %v8207
    %vm8209 = vweird.f32 %v8202
    %vm8210 = vweird.f32 %v8204
    %vm8211 = vmor %vm8209, %vm8210
    %v8212 = vsel %vm8211, %v8204, %v8208
    %v8213 = vand.u32 2147483647, %v8202
    %vm8214 = vcmp.eq.f32.partialorder %v8213, 8.507059e+37
    %v8215 = vand.u32 %v8202, 2147483648
    %v8216 = vor.u32 1.1754944e-38, %v8215
    %v8217 = vsel %vm8214, %v8216, %v8212
    %v8218 = vmul.f32 1.0, %v8217
    %v8219 = vrcp.pop %v8203
    %v8220 = vmul.f32 %v8203, %v8219
    %v8221 = vsub.f32 1.0, %v8220
    %v8222 = vmul.f32 %v8219, %v8221
    %v8223 = vadd.f32 %v8219, %v8222
    %vm8224 = vweird.f32 %v8203
    %vm8225 = vweird.f32 %v8219
    %vm8226 = vmor %vm8224, %vm8225
    %v8227 = vsel %vm8226, %v8219, %v8223
    %v8228 = vand.u32 2147483647, %v8203
    %vm8229 = vcmp.eq.f32.partialorder %v8228, 8.507059e+37
    %v8230 = vand.u32 %v8203, 2147483648
    %v8231 = vor.u32 1.1754944e-38, %v8230
    %v8232 = vsel %vm8229, %v8231, %v8227
    %v8233 = vmul.f32 1.0, %v8232
    %v8234 = vtanh.pop %v8194
    %v8235 = vmul.f32 %v8218, %v8142
    %8237 = vrot.lane.b32.xlu0 %v8234, 64
    %v8238 = vpop.permute.xlu0 %8237
    %v8240 = vmul.f32 %v8218, %v8238
    %8242 = vrot.lane.b32.xlu0 %v8240, 64
    %v8243 = vpop.permute.xlu0 %8242
    %v8245 = vadd.f32 %v8235, %v8243
    %v8246 = vtanh.pop %v8245
    %8248 = vrot.lane.b32.xlu0 %v8246, 64
    %v8249 = vpop.permute.xlu0 %8248
    %v8251 = vmul.f32 %v8233, %v8249
    %v8253 = vsel %vm222, %v8251, 0
    %8255 = vmatpush.msra.mxu0 0.0
    %8256 = vmatpush.msra.mxu0 0.0
    %8257 = vmatpush.msra.mxu0 0.0
    %8258 = vmatpush.msra.mxu0 0.0
    %8259 = vmatpush.msra.mxu0 0.0
    %8260 = vmatpush.msra.mxu0 0.0
    %8261 = vmatpush.msra.mxu0 0.0
    %8262 = vmatpush.msra.mxu0 0.0
    %8263 = vmatpush.msra.mxu0 %v7626
    %8264 = vmatpush.msra.mxu0 %v7624
    %8265 = vmatpush.msra.mxu0 %v7622
    %8266 = vmatpush.msra.mxu0 %v7620
    %8267 = vmatpush.msra.mxu0 %v7618
    %8268 = vmatpush.msra.mxu0 %v7616
    %8269 = vmatpush.msra.mxu0 %v7614
    %8270 = vmatpush.msra.mxu0 %v7612
    %8271 = vmatmul.f32.gmra.mxu0 %v8253
    %v8272 = vpop.f32.mrf.mxu0
    %v8273 = vadd.f32 %v7674, %v8272
    %8274 = vdwg.mxu0
    %8275 = vmatpush.msra.mxu0 0.0
    %8276 = vmatpush.msra.mxu0 0.0
    %8277 = vmatpush.msra.mxu0 0.0
    %8278 = vmatpush.msra.mxu0 0.0
    %8279 = vmatpush.msra.mxu0 0.0
    %8280 = vmatpush.msra.mxu0 0.0
    %8281 = vmatpush.msra.mxu0 0.0
    %8282 = vmatpush.msra.mxu0 0.0
    %8283 = vmatpush.msra.mxu0 %v7627
    %8284 = vmatpush.msra.mxu0 %v7625
    %8285 = vmatpush.msra.mxu0 %v7623
    %8286 = vmatpush.msra.mxu0 %v7621
    %8287 = vmatpush.msra.mxu0 %v7619
    %8288 = vmatpush.msra.mxu0 %v7617
    %8289 = vmatpush.msra.mxu0 %v7615
    %8290 = vmatpush.msra.mxu0 %v7613
    %8291 = vmatmul.f32.gmra.mxu0 %v8253
    %v8292 = vpop.f32.mrf.mxu0
    %v8293 = vadd.f32 %v7697, %v8292
    %8294 = vdwg.mxu0
    %v8295 = vxor.u32 %v8273, 2147483648
    %v8296 = vxor.u32 %v8293, 2147483648
    %v8297 = vmul.f32 %v8295, 1.442695
    %v8298 = vpow.pop %v8297
    %v8299 = vmul.f32 %v8296, 1.442695
    %v8300 = vpow.pop %v8299
    %v8301 = vadd.f32 %v8298, 1.0
    %v8302 = vadd.f32 %v8300, 1.0
    %v8303 = vrcp.pop %v8301
    %v8304 = vmul.f32 %v8301, %v8303
    %v8305 = vsub.f32 1.0, %v8304
    %v8306 = vmul.f32 %v8303, %v8305
    %v8307 = vadd.f32 %v8303, %v8306
    %vm8308 = vweird.f32 %v8301
    %vm8309 = vweird.f32 %v8303
    %vm8310 = vmor %vm8308, %vm8309
    %v8311 = vsel %vm8310, %v8303, %v8307
    %v8312 = vand.u32 2147483647, %v8301
    %vm8313 = vcmp.eq.f32.partialorder %v8312, 8.507059e+37
    %v8314 = vand.u32 %v8301, 2147483648
    %v8315 = vor.u32 1.1754944e-38, %v8314
    %v8316 = vsel %vm8313, %v8315, %v8311
    %v8317 = vmul.f32 1.0, %v8316
    %v8318 = vrcp.pop %v8302
    %v8319 = vmul.f32 %v8302, %v8318
    %v8320 = vsub.f32 1.0, %v8319
    %v8321 = vmul.f32 %v8318, %v8320
    %v8322 = vadd.f32 %v8318, %v8321
    %vm8323 = vweird.f32 %v8302
    %vm8324 = vweird.f32 %v8318
    %vm8325 = vmor %vm8323, %vm8324
    %v8326 = vsel %vm8325, %v8318, %v8322
    %v8327 = vand.u32 2147483647, %v8302
    %vm8328 = vcmp.eq.f32.partialorder %v8327, 8.507059e+37
    %v8329 = vand.u32 %v8302, 2147483648
    %v8330 = vor.u32 1.1754944e-38, %v8329
    %v8331 = vsel %vm8328, %v8330, %v8326
    %v8332 = vmul.f32 1.0, %v8331
    %v8333 = vtanh.pop %v8293
    %v8334 = vmul.f32 %v8317, %v8245
    %8336 = vrot.lane.b32.xlu0 %v8333, 64
    %v8337 = vpop.permute.xlu0 %8336
    %v8339 = vmul.f32 %v8317, %v8337
    %8341 = vrot.lane.b32.xlu0 %v8339, 64
    %v8342 = vpop.permute.xlu0 %8341
    %v8344 = vadd.f32 %v8334, %v8342
    %v8345 = vtanh.pop %v8344
    %8347 = vrot.lane.b32.xlu0 %v8345, 64
    %v8348 = vpop.permute.xlu0 %8347
    %v8350 = vmul.f32 %v8332, %v8348
    %v8353 = vrot.slane %v7674, 2
    %v8354 = vrot.slane %v7697, 2
    %v8358 = vsel %vm222, %v8350, 0
    %8360 = vmatpush.msra.mxu0 0.0
    %8361 = vmatpush.msra.mxu0 0.0
    %8362 = vmatpush.msra.mxu0 0.0
    %8363 = vmatpush.msra.mxu0 0.0
    %8364 = vmatpush.msra.mxu0 0.0
    %8365 = vmatpush.msra.mxu0 0.0
    %8366 = vmatpush.msra.mxu0 0.0
    %8367 = vmatpush.msra.mxu0 0.0
    %8368 = vmatpush.msra.mxu0 %v7626
    %8369 = vmatpush.msra.mxu0 %v7624
    %8370 = vmatpush.msra.mxu0 %v7622
    %8371 = vmatpush.msra.mxu0 %v7620
    %8372 = vmatpush.msra.mxu0 %v7618
    %8373 = vmatpush.msra.mxu0 %v7616
    %8374 = vmatpush.msra.mxu0 %v7614
    %8375 = vmatpush.msra.mxu0 %v7612
    %8376 = vmatmul.f32.gmra.mxu0 %v8358
    %v8377 = vpop.f32.mrf.mxu0
    %v8378 = vadd.f32 %v8353, %v8377
    %8379 = vdwg.mxu0
    %8380 = vmatpush.msra.mxu0 0.0
    %8381 = vmatpush.msra.mxu0 0.0
    %8382 = vmatpush.msra.mxu0 0.0
    %8383 = vmatpush.msra.mxu0 0.0
    %8384 = vmatpush.msra.mxu0 0.0
    %8385 = vmatpush.msra.mxu0 0.0
    %8386 = vmatpush.msra.mxu0 0.0
    %8387 = vmatpush.msra.mxu0 0.0
    %8388 = vmatpush.msra.mxu0 %v7627
    %8389 = vmatpush.msra.mxu0 %v7625
    %8390 = vmatpush.msra.mxu0 %v7623
    %8391 = vmatpush.msra.mxu0 %v7621
    %8392 = vmatpush.msra.mxu0 %v7619
    %8393 = vmatpush.msra.mxu0 %v7617
    %8394 = vmatpush.msra.mxu0 %v7615
    %8395 = vmatpush.msra.mxu0 %v7613
    %8396 = vmatmul.f32.gmra.mxu0 %v8358
    %v8397 = vpop.f32.mrf.mxu0
    %v8398 = vadd.f32 %v8354, %v8397
    %8399 = vdwg.mxu0
    %v8400 = vxor.u32 %v8378, 2147483648
    %v8401 = vxor.u32 %v8398, 2147483648
    %v8402 = vmul.f32 %v8400, 1.442695
    %v8403 = vpow.pop %v8402
    %v8404 = vmul.f32 %v8401, 1.442695
    %v8405 = vpow.pop %v8404
    %v8406 = vadd.f32 %v8403, 1.0
    %v8407 = vadd.f32 %v8405, 1.0
    %v8408 = vrcp.pop %v8406
    %v8409 = vmul.f32 %v8406, %v8408
    %v8410 = vsub.f32 1.0, %v8409
    %v8411 = vmul.f32 %v8408, %v8410
    %v8412 = vadd.f32 %v8408, %v8411
    %vm8413 = vweird.f32 %v8406
    %vm8414 = vweird.f32 %v8408
    %vm8415 = vmor %vm8413, %vm8414
    %v8416 = vsel %vm8415, %v8408, %v8412
    %v8417 = vand.u32 2147483647, %v8406
    %vm8418 = vcmp.eq.f32.partialorder %v8417, 8.507059e+37
    %v8419 = vand.u32 %v8406, 2147483648
    %v8420 = vor.u32 1.1754944e-38, %v8419
    %v8421 = vsel %vm8418, %v8420, %v8416
    %v8422 = vmul.f32 1.0, %v8421
    %v8423 = vrcp.pop %v8407
    %v8424 = vmul.f32 %v8407, %v8423
    %v8425 = vsub.f32 1.0, %v8424
    %v8426 = vmul.f32 %v8423, %v8425
    %v8427 = vadd.f32 %v8423, %v8426
    %vm8428 = vweird.f32 %v8407
    %vm8429 = vweird.f32 %v8423
    %vm8430 = vmor %vm8428, %vm8429
    %v8431 = vsel %vm8430, %v8423, %v8427
    %v8432 = vand.u32 2147483647, %v8407
    %vm8433 = vcmp.eq.f32.partialorder %v8432, 8.507059e+37
    %v8434 = vand.u32 %v8407, 2147483648
    %v8435 = vor.u32 1.1754944e-38, %v8434
    %v8436 = vsel %vm8433, %v8435, %v8431
    %v8437 = vmul.f32 1.0, %v8436
    %v8438 = vtanh.pop %v8398
    %v8439 = vmul.f32 %v8422, %v8344
    %8441 = vrot.lane.b32.xlu0 %v8438, 64
    %v8442 = vpop.permute.xlu0 %8441
    %v8444 = vmul.f32 %v8422, %v8442
    %8446 = vrot.lane.b32.xlu0 %v8444, 64
    %v8447 = vpop.permute.xlu0 %8446
    %v8449 = vadd.f32 %v8439, %v8447
    %v8450 = vtanh.pop %v8449
    %8452 = vrot.lane.b32.xlu0 %v8450, 64
    %v8453 = vpop.permute.xlu0 %8452
    %v8455 = vmul.f32 %v8437, %v8453
    %v8456 = vrot.slane %v7674, 4
    %v8457 = vrot.slane %v7697, 4
    %v8461 = vsel %vm222, %v8455, 0
    %8463 = vmatpush.msra.mxu0 0.0
    %8464 = vmatpush.msra.mxu0 0.0
    %8465 = vmatpush.msra.mxu0 0.0
    %8466 = vmatpush.msra.mxu0 0.0
    %8467 = vmatpush.msra.mxu0 0.0
    %8468 = vmatpush.msra.mxu0 0.0
    %8469 = vmatpush.msra.mxu0 0.0
    %8470 = vmatpush.msra.mxu0 0.0
    %8471 = vmatpush.msra.mxu0 %v7626
    %8472 = vmatpush.msra.mxu0 %v7624
    %8473 = vmatpush.msra.mxu0 %v7622
    %8474 = vmatpush.msra.mxu0 %v7620
    %8475 = vmatpush.msra.mxu0 %v7618
    %8476 = vmatpush.msra.mxu0 %v7616
    %8477 = vmatpush.msra.mxu0 %v7614
    %8478 = vmatpush.msra.mxu0 %v7612
    %8479 = vmatmul.f32.gmra.mxu0 %v8461
    %v8480 = vpop.f32.mrf.mxu0
    %v8481 = vadd.f32 %v8456, %v8480
    %8482 = vdwg.mxu0
    %8483 = vmatpush.msra.mxu0 0.0
    %8484 = vmatpush.msra.mxu0 0.0
    %8485 = vmatpush.msra.mxu0 0.0
    %8486 = vmatpush.msra.mxu0 0.0
    %8487 = vmatpush.msra.mxu0 0.0
    %8488 = vmatpush.msra.mxu0 0.0
    %8489 = vmatpush.msra.mxu0 0.0
    %8490 = vmatpush.msra.mxu0 0.0
    %8491 = vmatpush.msra.mxu0 %v7627
    %8492 = vmatpush.msra.mxu0 %v7625
    %8493 = vmatpush.msra.mxu0 %v7623
    %8494 = vmatpush.msra.mxu0 %v7621
    %8495 = vmatpush.msra.mxu0 %v7619
    %8496 = vmatpush.msra.mxu0 %v7617
    %8497 = vmatpush.msra.mxu0 %v7615
    %8498 = vmatpush.msra.mxu0 %v7613
    %8499 = vmatmul.f32.gmra.mxu0 %v8461
    %v8500 = vpop.f32.mrf.mxu0
    %v8501 = vadd.f32 %v8457, %v8500
    %8502 = vdwg.mxu0
    %v8503 = vxor.u32 %v8481, 2147483648
    %v8504 = vxor.u32 %v8501, 2147483648
    %v8505 = vmul.f32 %v8503, 1.442695
    %v8506 = vpow.pop %v8505
    %v8507 = vmul.f32 %v8504, 1.442695
    %v8508 = vpow.pop %v8507
    %v8509 = vadd.f32 %v8506, 1.0
    %v8510 = vadd.f32 %v8508, 1.0
    %v8511 = vrcp.pop %v8509
    %v8512 = vmul.f32 %v8509, %v8511
    %v8513 = vsub.f32 1.0, %v8512
    %v8514 = vmul.f32 %v8511, %v8513
    %v8515 = vadd.f32 %v8511, %v8514
    %vm8516 = vweird.f32 %v8509
    %vm8517 = vweird.f32 %v8511
    %vm8518 = vmor %vm8516, %vm8517
    %v8519 = vsel %vm8518, %v8511, %v8515
    %v8520 = vand.u32 2147483647, %v8509
    %vm8521 = vcmp.eq.f32.partialorder %v8520, 8.507059e+37
    %v8522 = vand.u32 %v8509, 2147483648
    %v8523 = vor.u32 1.1754944e-38, %v8522
    %v8524 = vsel %vm8521, %v8523, %v8519
    %v8525 = vmul.f32 1.0, %v8524
    %v8526 = vrcp.pop %v8510
    %v8527 = vmul.f32 %v8510, %v8526
    %v8528 = vsub.f32 1.0, %v8527
    %v8529 = vmul.f32 %v8526, %v8528
    %v8530 = vadd.f32 %v8526, %v8529
    %vm8531 = vweird.f32 %v8510
    %vm8532 = vweird.f32 %v8526
    %vm8533 = vmor %vm8531, %vm8532
    %v8534 = vsel %vm8533, %v8526, %v8530
    %v8535 = vand.u32 2147483647, %v8510
    %vm8536 = vcmp.eq.f32.partialorder %v8535, 8.507059e+37
    %v8537 = vand.u32 %v8510, 2147483648
    %v8538 = vor.u32 1.1754944e-38, %v8537
    %v8539 = vsel %vm8536, %v8538, %v8534
    %v8540 = vmul.f32 1.0, %v8539
    %v8541 = vtanh.pop %v8501
    %v8542 = vmul.f32 %v8525, %v8449
    %8544 = vrot.lane.b32.xlu0 %v8541, 64
    %v8545 = vpop.permute.xlu0 %8544
    %v8547 = vmul.f32 %v8525, %v8545
    %8549 = vrot.lane.b32.xlu0 %v8547, 64
    %v8550 = vpop.permute.xlu0 %8549
    %v8552 = vadd.f32 %v8542, %v8550
    %v8553 = vtanh.pop %v8552
    %8555 = vrot.lane.b32.xlu0 %v8553, 64
    %v8556 = vpop.permute.xlu0 %8555
    %v8558 = vmul.f32 %v8540, %v8556
    %v8559 = vrot.slane %v7674, 6
    %v8560 = vrot.slane %v7697, 6
    %v8564 = vsel %vm222, %v8558, 0
    %8566 = vmatpush.msra.mxu0 0.0
    %8567 = vmatpush.msra.mxu0 0.0
    %8568 = vmatpush.msra.mxu0 0.0
    %8569 = vmatpush.msra.mxu0 0.0
    %8570 = vmatpush.msra.mxu0 0.0
    %8571 = vmatpush.msra.mxu0 0.0
    %8572 = vmatpush.msra.mxu0 0.0
    %8573 = vmatpush.msra.mxu0 0.0
    %8574 = vmatpush.msra.mxu0 %v7626
    %8575 = vmatpush.msra.mxu0 %v7624
    %8576 = vmatpush.msra.mxu0 %v7622
    %8577 = vmatpush.msra.mxu0 %v7620
    %8578 = vmatpush.msra.mxu0 %v7618
    %8579 = vmatpush.msra.mxu0 %v7616
    %8580 = vmatpush.msra.mxu0 %v7614
    %8581 = vmatpush.msra.mxu0 %v7612
    %8582 = vmatmul.f32.gmra.mxu0 %v8564
    %v8583 = vpop.f32.mrf.mxu0
    %v8584 = vadd.f32 %v8559, %v8583
    %8585 = vdwg.mxu0
    %8586 = vmatpush.msra.mxu0 0.0
    %8587 = vmatpush.msra.mxu0 0.0
    %8588 = vmatpush.msra.mxu0 0.0
    %8589 = vmatpush.msra.mxu0 0.0
    %8590 = vmatpush.msra.mxu0 0.0
    %8591 = vmatpush.msra.mxu0 0.0
    %8592 = vmatpush.msra.mxu0 0.0
    %8593 = vmatpush.msra.mxu0 0.0
    %8594 = vmatpush.msra.mxu0 %v7627
    %8595 = vmatpush.msra.mxu0 %v7625
    %8596 = vmatpush.msra.mxu0 %v7623
    %8597 = vmatpush.msra.mxu0 %v7621
    %8598 = vmatpush.msra.mxu0 %v7619
    %8599 = vmatpush.msra.mxu0 %v7617
    %8600 = vmatpush.msra.mxu0 %v7615
    %8601 = vmatpush.msra.mxu0 %v7613
    %8602 = vmatmul.f32.gmra.mxu0 %v8564
    %v8603 = vpop.f32.mrf.mxu0
    %v8604 = vadd.f32 %v8560, %v8603
    %8605 = vdwg.mxu0
    %v8606 = vxor.u32 %v8584, 2147483648
    %v8607 = vxor.u32 %v8604, 2147483648
    %v8608 = vmul.f32 %v8606, 1.442695
    %v8609 = vpow.pop %v8608
    %v8610 = vmul.f32 %v8607, 1.442695
    %v8611 = vpow.pop %v8610
    %v8612 = vadd.f32 %v8609, 1.0
    %v8613 = vadd.f32 %v8611, 1.0
    %v8614 = vrcp.pop %v8612
    %v8615 = vmul.f32 %v8612, %v8614
    %v8616 = vsub.f32 1.0, %v8615
    %v8617 = vmul.f32 %v8614, %v8616
    %v8618 = vadd.f32 %v8614, %v8617
    %vm8619 = vweird.f32 %v8612
    %vm8620 = vweird.f32 %v8614
    %vm8621 = vmor %vm8619, %vm8620
    %v8622 = vsel %vm8621, %v8614, %v8618
    %v8623 = vand.u32 2147483647, %v8612
    %vm8624 = vcmp.eq.f32.partialorder %v8623, 8.507059e+37
    %v8625 = vand.u32 %v8612, 2147483648
    %v8626 = vor.u32 1.1754944e-38, %v8625
    %v8627 = vsel %vm8624, %v8626, %v8622
    %v8628 = vmul.f32 1.0, %v8627
    %v8629 = vrcp.pop %v8613
    %v8630 = vmul.f32 %v8613, %v8629
    %v8631 = vsub.f32 1.0, %v8630
    %v8632 = vmul.f32 %v8629, %v8631
    %v8633 = vadd.f32 %v8629, %v8632
    %vm8634 = vweird.f32 %v8613
    %vm8635 = vweird.f32 %v8629
    %vm8636 = vmor %vm8634, %vm8635
    %v8637 = vsel %vm8636, %v8629, %v8633
    %v8638 = vand.u32 2147483647, %v8613
    %vm8639 = vcmp.eq.f32.partialorder %v8638, 8.507059e+37
    %v8640 = vand.u32 %v8613, 2147483648
    %v8641 = vor.u32 1.1754944e-38, %v8640
    %v8642 = vsel %vm8639, %v8641, %v8637
    %v8643 = vmul.f32 1.0, %v8642
    %v8644 = vtanh.pop %v8604
    %v8645 = vmul.f32 %v8628, %v8552
    %8647 = vrot.lane.b32.xlu0 %v8644, 64
    %v8648 = vpop.permute.xlu0 %8647
    %v8650 = vmul.f32 %v8628, %v8648
    %8652 = vrot.lane.b32.xlu0 %v8650, 64
    %v8653 = vpop.permute.xlu0 %8652
    %v8655 = vadd.f32 %v8645, %v8653
    %v8656 = vtanh.pop %v8655
    %8658 = vrot.lane.b32.xlu0 %v8656, 64
    %v8659 = vpop.permute.xlu0 %8658
    %v8661 = vmul.f32 %v8643, %v8659
    %8663 = vrot.lane.b32.xlu0 %v7940, 64
    %v8664 = vpop.permute.xlu0 %8663
    %v8666 = vsel %vm222, %v8661, %v8664
    %v8667 = vld [vmem:[%s21] sm:$0xff]
    %v8668 = vld [vmem:[%s21 + $0x8] sm:$0xff]
    %v8669 = vld [vmem:[%s21 + $0x10] sm:$0xff]
    %v8670 = vld [vmem:[%s21 + $0x18] sm:$0xff]
    %v8671 = vld [vmem:[%s21 + $0x20] sm:$0xff]
    %v8672 = vld [vmem:[%s21 + $0x28] sm:$0xff]
    %v8673 = vld [vmem:[%s21 + $0x30] sm:$0xff]
    %v8674 = vld [vmem:[%s21 + $0x38] sm:$0xff]
    %v8675 = vld [vmem:[%s21 + $0x40] sm:$0xff]
    %v8676 = vld [vmem:[%s21 + $0x48] sm:$0xff]
    %v8677 = vld [vmem:[%s21 + $0x50] sm:$0xff]
    %v8678 = vld [vmem:[%s21 + $0x58] sm:$0xff]
    %v8679 = vld [vmem:[%s21 + $0x60] sm:$0xff]
    %v8680 = vld [vmem:[%s21 + $0x68] sm:$0xff]
    %v8681 = vld [vmem:[%s21 + $0x70] sm:$0xff]
    %v8682 = vld [vmem:[%s21 + $0x78] sm:$0xff]
    %v8683 = vld [vmem:[%s22] sm:$0x1]
    %v8685 = vperm.slane %v8683, 0
    %8687 = vmatpush.msra.mxu0 %v8682
    %8688 = vmatpush.msra.mxu0 %v8681
    %8689 = vmatpush.msra.mxu0 %v8680
    %8690 = vmatpush.msra.mxu0 %v8679
    %8691 = vmatpush.msra.mxu0 %v8678
    %8692 = vmatpush.msra.mxu0 %v8677
    %8693 = vmatpush.msra.mxu0 %v8676
    %8694 = vmatpush.msra.mxu0 %v8675
    %8695 = vmatpush.msra.mxu0 %v8674
    %8696 = vmatpush.msra.mxu0 %v8673
    %8697 = vmatpush.msra.mxu0 %v8672
    %8698 = vmatpush.msra.mxu0 %v8671
    %8699 = vmatpush.msra.mxu0 %v8670
    %8700 = vmatpush.msra.mxu0 %v8669
    %8701 = vmatpush.msra.mxu0 %v8668
    %8702 = vmatpush.msra.mxu0 %v8667
    %8703 = vmatmul.f32.gmra.mxu0 %v8666
    %v8704 = vpop.f32.mrf.mxu0
    %v8705 = vadd.f32 %v8685, %v8704
    %8706 = vdwg.mxu0
    %vm8707 = vcmask 58368
    %8708 = vst.msk [vmem:[#allocation2] sm:$0x3] %vm8707, %v8705
    // Predicated region
    $region94: #{crime_lstm_forward.1} parent=1 // pred_check
      _
    $region95: #{crime_lstm_forward.1} parent=1 // pred_check_branch
      %8710 = sbr.rel (0) target = $region97
    $region96: #{crime_lstm_forward.1} parent=1 // pred_region
      %8712 = vsyncadd [#allocation3], 0
      %s8714 = sshll.u32 [#allocation2], 4
      %s8715 = int_to_ptr.vmem [resolvable:$true] %s8714
      %s8716 = sshll.u32 %s23, 4
      %s8717 = int_to_ptr.hbm [resolvable:$true] %s8716
      %8719 = dma.vmem_to_hbm [thread:$0]  %s8715, 32, %s8717, [#allocation3]
    $region97: #{crime_lstm_forward.1} parent=1 // pred_fallthru
      _
    // Predicated region
    $region98: #{crime_lstm_forward.1} parent=1 // pred_check
      _
    $region99: #{crime_lstm_forward.1} parent=1 // pred_check_branch
      %8721 = sbr.rel (0) target = $region101
    $region100: #{crime_lstm_forward.1} parent=1 // pred_region
      %8723 = dma.done [#allocation3], 32
    $region101: #{crime_lstm_forward.1} parent=1 // pred_fallthru
      _
    %8724 = vsyncpa [#allocation3], 1

</llo_original>
